<compile_context>
chip_gen: v7x
topology: tpu7x:2x2x1
jax: 0.10.0
libtpu: 0.0.40
codegen_flags: <defaults>
</compile_context>

<pallas_src>
import functools
import math

import numpy as np
import jax
import jax.numpy as jnp
from jax.experimental import pallas as pl
from jax.experimental.pallas import tpu as pltpu

NEG_INF = -1.0e30   # stands in for float('-inf'); avoids inf-inf NaN corners
PAD_NEG = -2.0e30   # bias for artificial pad-key lanes (strictly below NEG_INF
                    # so fully user-masked rows still ignore the pad keys)


# ----------------------------------------------------------------------------
# Feature probes (run once, cached; fall back to safe paths on failure)
# ----------------------------------------------------------------------------
@functools.lru_cache(maxsize=None)
def _strided_roll_ok(rows, width, shift, dtype_name):
    """True iff pltpu.roll(x, shift, 1, stride=1, stride_axis=0) rolls row i
    right by (shift + i) (np.roll semantics) at this exact shape/dtype."""
    try:
        dtype = jnp.dtype(dtype_name)
        x_np = np.mod(np.arange(rows * width, dtype=np.float32), 251.0)
        x_np = x_np.reshape(rows, width)
        x = jnp.asarray(x_np, dtype)

        def kern(x_ref, o_ref):
            o_ref[...] = pltpu.roll(x_ref[...], shift, 1, stride=1, stride_axis=0)

        got = pl.pallas_call(
            kern, out_shape=jax.ShapeDtypeStruct((rows, width), dtype))(x)
        got = np.asarray(jax.device_get(got)).astype(np.float32)
        ref = np.asarray(jax.device_get(x)).astype(np.float32)
        want = np.stack([np.roll(ref[i], shift + i) for i in range(rows)])
        return bool(np.array_equal(got, want))
    except Exception:
        return False


@functools.lru_cache(maxsize=None)
def _single_buffer_ok():
    """True iff BlockSpec(pipeline_mode=pl.Buffered(1)) works, so grid-invariant
    operands can be held single-buffered (halves their VMEM footprint)."""
    try:
        def kern(c_ref, o_ref):
            o_ref[...] = c_ref[...] + 1.0

        c = jnp.arange(8 * 128, dtype=jnp.float32).reshape(8, 128)
        got = pl.pallas_call(
            kern,
            grid=(2,),
            in_specs=[pl.BlockSpec((8, 128), lambda i: (0, 0),
                                   pipeline_mode=pl.Buffered(1))],
            out_specs=pl.BlockSpec((8, 128), lambda i: (i, 0)),
            out_shape=jax.ShapeDtypeStruct((16, 128), jnp.float32),
        )(c)
        got = np.asarray(jax.device_get(got))
        want = np.tile(np.asarray(jax.device_get(c)) + 1.0, (2, 1))
        return bool(np.array_equal(got, want))
    except Exception:
        return False


def _auto_b_tile(bs, n_pad, d_model):
    """Keep >= 2 grid steps when bs >= 2 (both v7x TensorCores fed) while
    amortizing per-step overhead; bound the f32 q/k/v intermediate to ~6 MiB."""
    vmem_cap = max(1, (6 * 2 ** 20) // max(1, n_pad * 3 * d_model * 4))
    cap = max(1, min(4, vmem_cap, bs // 2 if bs >= 2 else 1))
    for d in range(cap, 0, -1):
        if bs % d == 0:
            return d
    return 1


# ----------------------------------------------------------------------------
# Mask combination (mirror of the torch logic, as an additive bias)
# ----------------------------------------------------------------------------
def _build_additive_mask(attn_mask, key_padding_mask, bs, n, n_pad):
    """Additive f32 bias with the artificial pad-key columns always disabled.
    Returns (mask, per_batch, per_row) with mask shape (bs|1, n|1, n_pad)."""
    pad_cols = np.arange(n_pad) >= n
    if attn_mask is None and key_padding_mask is None:
        m = jnp.asarray(np.where(pad_cols, PAD_NEG, 0.0), jnp.float32)
        return m.reshape(1, 1, n_pad), False, False
    if attn_mask is None:
        # key-padding only: broadcast (bs, 1, n_pad) bias (review item: do not
        # materialize a (bs, n, n) tensor in HBM just for key padding).
        kpm = key_padding_mask.astype(bool)
        m = jnp.where(kpm[:, None, :], NEG_INF, 0.0).astype(jnp.float32)
        m = jnp.pad(m, ((0, 0), (0, 0), (0, n_pad - n)), constant_values=PAD_NEG)
        return m, True, False
    am = jnp.asarray(attn_mask, jnp.float32)
    if am.ndim == 2:
        am = am[None]
    if am.shape[0] not in (1, bs) or am.shape[-2:] != (n, n):
        raise ValueError(f"unsupported attn_mask shape {attn_mask.shape}")
    per_batch = (am.shape[0] == bs and bs > 1) or (key_padding_mask is not None)
    if key_padding_mask is not None:
        am = jnp.broadcast_to(am, (bs, n, n))
        am = jnp.where(key_padding_mask.astype(bool)[:, None, :], NEG_INF, am)
    am = jnp.pad(am, ((0, 0), (0, 0), (0, n_pad - n)), constant_values=PAD_NEG)
    return am, per_batch, True


# ----------------------------------------------------------------------------
# Kernel
# ----------------------------------------------------------------------------
def _make_kernel(*, n, n_pad, d_model, num_heads, hd, scale, cdt, b_tile,
                 shared_x, mask_per_batch, use_strided_roll,
                 rounds_q, rounds_b, rounds_bar, return_attn):
    """n = true sequence length (query rows); n_pad = lane-padded key length."""

    def right_roll(x, step):
        # static circular right-rotation along the last (lane) axis
        w = x.shape[-1]
        step = step % w
        if step == 0:
            return x
        return jnp.concatenate([x[:, w - step:], x[:, :w - step]], axis=-1)

    def skew_select(qe, mref, rounds):
        # per-row right-rotation; bit t of the rotation amount is mref[t] (0/1)
        x = qe
        for t in range(rounds):
            x = jnp.where(mref[t] > 0.5, right_roll(x, 1 << t), x)
        return x

    def kernel(*refs):
        refs = list(refs)
        if shared_x:
            xq_ref = xk_ref = xv_ref = refs.pop(0)
        else:
            xq_ref, xk_ref, xv_ref = refs.pop(0), refs.pop(0), refs.pop(0)
        w_ref = refs.pop(0)          # (d_model, 3*d_model)     cdt
        b_ref = refs.pop(0)          # (1, 3*d_model)           f32
        erq_ref = refs.pop(0)        # (H, hd, 2n)              cdt
        erb_ref = refs.pop(0)        # (H, hd, n//2)            cdt
        erbar_ref = refs.pop(0)      # (H, hd, n//8)            cdt
        expq_ref = refs.pop(0)       # (2n,   n_pad) one-hot    cdt
        expb_ref = refs.pop(0)       # (n//2, n_pad) one-hot    cdt
        expbar_ref = refs.pop(0)     # (n//8, n_pad) one-hot    cdt
        mq_ref = None if use_strided_roll else refs.pop(0)
        mb_ref = refs.pop(0)         # (rounds_b,   n, n//2)    cdt
        mbar_ref = refs.pop(0)       # (rounds_bar, n, n//8)    cdt
        mask_ref = refs.pop(0)       # (1|b_tile, 1|n, n_pad)   f32
        out_ref = refs.pop(0)        # (b_tile, n, d_model)
        attn_ref = refs.pop(0) if return_attn else None

        rows = b_tile * n_pad
        bias = b_ref[...]

        # ---- fused QKV projection over all b_tile * n_pad rows (one MXU pass)
        if shared_x:
            x2 = xq_ref[...].reshape(rows, d_model)
            qkv = jnp.dot(x2, w_ref[...], preferred_element_type=jnp.float32) + bias
            q_all = qkv[:, :d_model] * scale           # fold 1/sqrt(hd) into q
            k_all = qkv[:, d_model:2 * d_model]
            v_all = qkv[:, 2 * d_model:]
        else:
            def proj(x_ref, c0):
                x2 = x_ref[...].reshape(rows, d_model)
                return (jnp.dot(x2, w_ref[:, c0:c0 + d_model],
                                preferred_element_type=jnp.float32)
                        + bias[:, c0:c0 + d_model])
            q_all = proj(xq_ref, 0) * scale
            k_all = proj(xk_ref, d_model)
            v_all = proj(xv_ref, 2 * d_model)

        expand_q = expq_ref[...]
        expand_b = expb_ref[...]
        expand_bar = expbar_ref[...]

        # TODO(synk): for very large num_heads, switch this static unroll to a
        # lax.fori_loop over pl.ds(h*hd, hd) slices to bound live ranges.
        for bi in range(b_tile):
            r0 = bi * n_pad
            add_mask = mask_ref[bi if mask_per_batch else 0]     # (1|n, n_pad)
            for h in range(num_heads):
                c0 = h * hd
                q_h = q_all[r0:r0 + n, c0:c0 + hd].astype(cdt)        # (n, hd)
                k_h = k_all[r0:r0 + n_pad, c0:c0 + hd].astype(cdt)    # (n_pad, hd)
                v_h = v_all[r0:r0 + n_pad, c0:c0 + hd].astype(cdt)

                scores = jax.lax.dot_general(
                    q_h, k_h, (((1,), (1,)), ((), ())),
                    preferred_element_type=jnp.float32)               # (n, n_pad)

                qe_q = jnp.dot(q_h, erq_ref[h],
                               preferred_element_type=jnp.float32).astype(cdt)
                qe_b = jnp.dot(q_h, erb_ref[h],
                               preferred_element_type=jnp.float32).astype(cdt)
                qe_bar = jnp.dot(q_h, erbar_ref[h],
                                 preferred_element_type=jnp.float32).astype(cdt)

                # relative-position skew: right-rotate row i by
                #   quaver: n + i     beat: n/4 + i//4     bar: n/16 + i//16
                if use_strided_roll:
                    rot_q = pltpu.roll(qe_q, n, 1, stride=1, stride_axis=0)
                else:
                    rot_q = skew_select(qe_q, mq_ref, rounds_q)
                rot_b = skew_select(qe_b, mb_ref, rounds_b)
                rot_bar = skew_select(qe_bar, mbar_ref, rounds_bar)

                # lane-dense expansion of the skewed biases on the MXU
                logits = (scores
                          + jnp.dot(rot_q, expand_q,
                                    preferred_element_type=jnp.float32)
                          + jnp.dot(rot_b, expand_b,
                                    preferred_element_type=jnp.float32)
                          + jnp.dot(rot_bar, expand_bar,
                                    preferred_element_type=jnp.float32)
                          + add_mask)

                # softmax in f32 (EUP exp + approx reciprocal)
                m = jnp.max(logits, axis=-1, keepdims=True)
                ex = jnp.exp(logits - m)
                denom = jnp.sum(ex, axis=-1, keepdims=True)
                p = ex * pl.reciprocal(denom, approx=True)
                if return_attn:
                    attn_ref[bi, h] = p.astype(attn_ref.dtype)

                ctx = jnp.dot(p.astype(cdt), v_h,
                              preferred_element_type=jnp.float32)
                out_ref[bi, :, c0:c0 + hd] = ctx.astype(out_ref.dtype)

    return kernel


# ----------------------------------------------------------------------------
# Wrapper
# ----------------------------------------------------------------------------
def mhsa_relpos(query, key, value, params, num_heads, max_len,
                attn_mask=None, key_padding_mask=None, return_attn=True,
                compute_dtype=jnp.bfloat16, attn_dtype=jnp.bfloat16,
                b_tile=None, use_xlu_roll=None):
    """Forward pass of MultiheadSelfAttentionwithRelativePositionalEmbedding.

    Returns (out, attn) like the torch module (attn is None if
    return_attn=False; keep it off on perf paths).  dropout(p=0) == identity.
    """
    bs, n, d_model = query.shape
    hd = d_model // num_heads
    assert hd * num_heads == d_model, "embed_dim must be divisible by num_heads"
    # Er slicing (as in the torch module) needs n < max_len and n % 16 == 0.
    assert n % 16 == 0 and n < max_len and max_len % 16 == 0

    cdt = compute_dtype
    out_dtype = query.dtype
    scale = 1.0 / math.sqrt(hd)
    n_pad = ((n + 127) // 128) * 128            # lane-dense key/value length
    Lq, Lb, Lbar = 2 * n, n // 2, n // 8

    shared_x = (key is None or key is query) and (value is None or value is query)
    key = query if key is None else key
    value = query if value is None else value

    if b_tile is None:
        b_tile = _auto_b_tile(bs, n_pad, d_model)
    assert bs % b_tile == 0, "b_tile must divide the batch size"
    grid = (bs // b_tile,)

    # fused QKV weight: torch nn.Linear stores W as (out, in); y = x @ W.T + b
    w_qkv = jnp.concatenate([params["Wq"].T, params["Wk"].T, params["Wv"].T],
                            axis=1).astype(cdt)
    b_qkv = jnp.concatenate([params["bq"], params["bk"], params["bv"]]
                            ).reshape(1, 3 * d_model).astype(jnp.float32)

    # Er slices exactly as in the torch forward, pre-transposed to (H, hd, L)
    er_q = jnp.transpose(params["quaver_Er"][:, max_len - n:max_len + n, :],
                         (0, 2, 1)).astype(cdt)
    er_b = jnp.transpose(
        params["beat_Er"][:, (max_len - n) // 4:(max_len + n) // 4, :],
        (0, 2, 1)).astype(cdt)
    er_bar = jnp.transpose(
        params["bar_Er"][:, (max_len - n) // 16:(max_len + n) // 16, :],
        (0, 2, 1)).astype(cdt)
    assert er_q.shape == (num_heads, hd, Lq)
    assert er_b.shape == (num_heads, hd, Lb)
    assert er_bar.shape == (num_heads, hd, Lbar)

    # host-precomputed one-hot "pick skewed column into logits column" tables
    # (these also provide the lane padding to n_pad for free)
    cols = np.arange(n_pad)
    valid = (cols < n)[None, :]
    expand_q = jnp.asarray(((np.arange(Lq)[:, None] == cols[None, :]) & valid
                            ).astype(np.float32), cdt)
    expand_b = jnp.asarray(((np.arange(Lb)[:, None] == (cols // 4)[None, :]) & valid
                            ).astype(np.float32), cdt)
    expand_bar = jnp.asarray(((np.arange(Lbar)[:, None] == (cols // 16)[None, :]) & valid
                              ).astype(np.float32), cdt)

    # per-row rotation amounts (right-roll) and their bit-select masks
    rows_i = np.arange(n)
    rounds_q = max(1, (Lq - 1).bit_length())
    rounds_b = max(1, (Lb - 1).bit_length())
    rounds_bar = max(1, (Lbar - 1).bit_length())

    use_roll = use_xlu_roll
    if use_roll is None:
        use_roll = _strided_roll_ok(n, Lq, n, jnp.dtype(cdt).name)

    def bit_masks(shift, width, rounds):
        s = np.asarray(shift, np.int64) % width
        bits = ((s[:, None] >> np.arange(rounds)[None, :]) & 1).astype(np.float32)
        m = np.broadcast_to(bits.T[:, :, None], (rounds, n, width))
        return jnp.asarray(m, cdt)

    masks_b = bit_masks(rows_i // 4 + n // 4, Lb, rounds_b)
    masks_bar = bit_masks(rows_i // 16 + n // 16, Lbar, rounds_bar)
    masks_q = None if use_roll else bit_masks(rows_i + n, Lq, rounds_q)

    add_mask, mask_per_batch, mask_per_row = _build_additive_mask(
        attn_mask, key_padding_mask, bs, n, n_pad)
    m_b = b_tile if mask_per_batch else 1
    m_r = n if mask_per_row else 1

    # activations: cast to compute dtype, pad seq to n_pad so the projected
    # keys/values are lane-dense (pad keys are disabled via the mask)
    def prep(x):
        return jnp.pad(x.astype(cdt), ((0, 0), (0, n_pad - n), (0, 0)))
    acts = [prep(query)] if shared_x else [prep(query), prep(key), prep(value)]

    single_buf = _single_buffer_ok()

    def const_spec(shape):
        nd = len(shape)
        kwargs = {"pipeline_mode": pl.Buffered(1)} if single_buf else {}
        return pl.BlockSpec(shape, lambda b: (0,) * nd, **kwargs)

    x_spec = pl.BlockSpec((b_tile, n_pad, d_model), lambda b: (b, 0, 0))
    in_specs = [x_spec] * len(acts)
    inputs = list(acts)
    for arr in (w_qkv, b_qkv, er_q, er_b, er_bar,
                expand_q, expand_b, expand_bar):
        in_specs.append(const_spec(arr.shape))
        inputs.append(arr)
    if not use_roll:
        in_specs.append(const_spec(masks_q.shape))
        inputs.append(masks_q)
    for arr in (masks_b, masks_bar):
        in_specs.append(const_spec(arr.shape))
        inputs.append(arr)
    in_specs.append(pl.BlockSpec(
        (m_b, m_r, n_pad),
        (lambda b: (b, 0, 0)) if mask_per_batch else (lambda b: (0, 0, 0))))
    inputs.append(add_mask)

    out_spec = pl.BlockSpec((b_tile, n, d_model), lambda b: (b, 0, 0))
    out_sds = jax.ShapeDtypeStruct((bs, n, d_model), out_dtype)
    if return_attn:
        out_specs = (out_spec,
                     pl.BlockSpec((b_tile, num_heads, n, n_pad),
                                  lambda b: (b, 0, 0, 0)))
        out_shape = (out_sds,
                     jax.ShapeDtypeStruct((bs, num_heads, n, n_pad), attn_dtype))
    else:
        out_specs = out_spec
        out_shape = out_sds

    kernel = _make_kernel(
        n=n, n_pad=n_pad, d_model=d_model, num_heads=num_heads, hd=hd,
        scale=scale, cdt=cdt, b_tile=b_tile, shared_x=shared_x,
        mask_per_batch=mask_per_batch, use_strided_roll=use_roll,
        rounds_q=rounds_q, rounds_b=rounds_b, rounds_bar=rounds_bar,
        return_attn=return_attn)

    # rough per-step working-set estimate; only raise the scoped-VMEM limit
    # when it might exceed v5e's 16 MiB default (stay < v7x's 64 MiB physical)
    f32b = 4
    cs = jnp.dtype(cdt).itemsize
    cbuf = 1 if single_buf else 2
    est = (
        len(acts) * b_tile * n_pad * d_model * cs * 2
        + d_model * 3 * d_model * cs * cbuf
        + 3 * d_model * f32b * cbuf
        + num_heads * hd * (Lq + Lb + Lbar) * cs * cbuf
        + (Lq + Lb + Lbar) * n_pad * cs * cbuf
        + (rounds_b * Lb + rounds_bar * Lbar
           + (0 if use_roll else rounds_q * Lq)) * n * cs * cbuf
        + m_b * m_r * n_pad * f32b * 2
        + b_tile * n * d_model * jnp.dtype(out_dtype).itemsize * 2
        + (b_tile * num_heads * n * n_pad * jnp.dtype(attn_dtype).itemsize * 2
           if return_attn else 0)
        + b_tile * n_pad * 3 * d_model * f32b
        + 8 * n * n_pad * f32b)
    cparams = {"dimension_semantics": ("parallel",)}
    if est > 12 * 2 ** 20:
        cparams["vmem_limit_bytes"] = int(min(max(3 * est // 2, 32 * 2 ** 20),
                                              56 * 2 ** 20))

    res = pl.pallas_call(
        kernel, grid=grid, in_specs=in_specs, out_specs=out_specs,
        out_shape=out_shape,
        compiler_params=pltpu.CompilerParams(**cparams),
    )(*inputs)

    if return_attn:
        out, attn_padded = res
        return out, attn_padded[..., :n]
    return res, None


# ----------------------------------------------------------------------------
# Pure-JAX reference (literal port of the torch forward, for verification)
# ----------------------------------------------------------------------------
def _skew_ref(QEr):
    bs, H, n, L = QEr.shape
    Q = jnp.pad(QEr, ((0, 0), (0, 0), (0, 0), (0, 1)))
    Q = Q.reshape(bs, H, -1)
    Q = jnp.pad(Q, ((0, 0), (0, 0), (0, L - n)))
    Q = Q.reshape(bs, H, n + 1, L)
    return Q[:, :, :n, L - n:]


def _skew_multi_ref(QEr, rep):
    bs, H, n, _ = QEr.shape
    Q = jnp.repeat(QEr, rep, axis=-1)
    for i in range(n // rep):
        blk = Q[:, :, i * rep:(i + 1) * rep, :]
        Q = Q.at[:, :, i * rep:(i + 1) * rep, :].set(jnp.roll(blk, i * rep, axis=-1))
    return Q[:, :, :n, -n:]


def reference(query, key, value, params, num_heads, max_len, additive_mask=None):
    bs, n, d_model = query.shape
    hd = d_model // num_heads

    def lin(x, W, b):
        return x @ W.T + b

    q = lin(query, params["Wq"], params["bq"]).reshape(bs, n, num_heads, hd).transpose(0, 2, 1, 3)
    k = lin(key, params["Wk"], params["bk"]).reshape(bs, n, num_heads, hd).transpose(0, 2, 3, 1)
    v = lin(value, params["Wv"], params["bv"]).reshape(bs, n, num_heads, hd).transpose(0, 2, 1, 3)

    Er_t_q = jnp.transpose(params["quaver_Er"][:, max_len - n:max_len + n, :], (0, 2, 1))
    Er_t_b = jnp.transpose(
        params["beat_Er"][:, (max_len - n) // 4:(max_len + n) // 4, :], (0, 2, 1))
    Er_t_bar = jnp.transpose(
        params["bar_Er"][:, (max_len - n) // 16:(max_len + n) // 16, :], (0, 2, 1))

    Srel = _skew_ref(jnp.matmul(q, Er_t_q))
    Srel_b = _skew_multi_ref(jnp.matmul(q, Er_t_b), 4)
    Srel_bar = _skew_multi_ref(jnp.matmul(q, Er_t_bar), 16)

    logits = (jnp.matmul(q, k) + Srel + Srel_b + Srel_bar) / math.sqrt(hd)
    if additive_mask is not None:
        logits = logits + additive_mask[:, None, :, :]
    attn = jax.nn.softmax(logits, axis=-1)
    out = jnp.matmul(attn, v).transpose(0, 2, 1, 3).reshape(bs, n, d_model)
    return out, attn


# ----------------------------------------------------------------------------
if __name__ == "__main__":
    bs, src_len, d_model, num_heads, max_len = 2, 32, 32, 4, 128
    hd = d_model // num_heads
    L = 2 * max_len - 1

    root = jax.random.PRNGKey(0)
    ks = jax.random.split(root, 11)
    s = 1.0 / math.sqrt(d_model)
    params = {
        "Wq": jax.random.uniform(ks[0], (d_model, d_model), jnp.float32, -s, s),
        "Wk": jax.random.uniform(ks[1], (d_model, d_model), jnp.float32, -s, s),
        "Wv": jax.random.uniform(ks[2], (d_model, d_model), jnp.float32, -s, s),
        "bq": jax.random.uniform(ks[3], (d_model,), jnp.float32, -s, s),
        "bk": jax.random.uniform(ks[4], (d_model,), jnp.float32, -s, s),
        "bv": jax.random.uniform(ks[5], (d_model,), jnp.float32, -s, s),
        "quaver_Er": jax.random.normal(ks[6], (num_heads, L, hd), jnp.float32),
        "beat_Er": jax.random.normal(ks[7], (num_heads, L // 4, hd), jnp.float32),
        "bar_Er": jax.random.normal(ks[8], (num_heads, L // 16, hd), jnp.float32),
    }
    x = jax.random.normal(ks[9], (bs, src_len, d_model), jnp.float32)

    # --- self-attention, no mask, attention probs requested -------------------
    out, attn = mhsa_relpos(x, x, x, params, num_heads, max_len, return_attn=True)
    jax.block_until_ready((out, attn))
    ref_out, ref_attn = reference(x, x, x, params, num_heads, max_len)
    assert out.shape == (bs, src_len, d_model)
    assert attn.shape == (bs, num_heads, src_len, src_len)
    # Kernel does bf16 matmuls with f32 accumulation vs an f32 reference.
    assert jnp.allclose(out, ref_out, atol=3e-2, rtol=3e-2)
    assert jnp.allclose(attn, ref_attn, atol=3e-2, rtol=3e-2)

    # --- causal attn_mask + key_padding_mask, attention probs disabled --------
    kpm = jnp.broadcast_to(jnp.arange(src_len) >= src_len - 8, (bs, src_len))
    causal = jnp.where(jnp.tril(jnp.ones((src_len, src_len), bool)),
                       0.0, NEG_INF).astype(jnp.float32)
    out_m, attn_m = mhsa_relpos(x, x, x, params, num_heads, max_len,
                                attn_mask=causal, key_padding_mask=kpm,
                                return_attn=False)
    jax.block_until_ready(out_m)
    assert attn_m is None
    add = jnp.where(kpm[:, None, :], NEG_INF,
                    jnp.broadcast_to(causal, (bs, src_len, src_len)))
    ref_out_m, _ = reference(x, x, x, params, num_heads, max_len,
                             additive_mask=add)
    assert jnp.allclose(out_m, ref_out_m, atol=3e-2, rtol=3e-2)

    # --- batch-tiled path (bs=4, b_tile=2 -> 2 grid steps) ---------------------
    x4 = jax.random.normal(ks[10], (4, src_len, d_model), jnp.float32)
    out4, _ = mhsa_relpos(x4, x4, x4, params, num_heads, max_len,
                          return_attn=False, b_tile=2)
    jax.block_until_ready(out4)
    ref_out4, _ = reference(x4, x4, x4, params, num_heads, max_len)
    assert jnp.allclose(out4, ref_out4, atol=3e-2, rtol=3e-2)

    print("KERNEL_OK")
</pallas_src>

<mosaic_0001>
module attributes {stable_mosaic.version = 11 : i64} {
  func.func @kern(%arg0: memref<32x64xbf16, #tpu.memory_space<vmem>>, %arg1: memref<32x64xbf16, #tpu.memory_space<vmem>>) attributes {dimension_semantics = [], scalar_prefetch = 0 : i64, scratch_operands = 0 : i64, tpu.core_type = #tpu.core_type<tc>} {
    %c0 = arith.constant 0 : index
    %c0_0 = arith.constant 0 : index
    %0 = vector.load %arg0[%c0, %c0_0] : memref<32x64xbf16, #tpu.memory_space<vmem>>, vector<32x64xbf16>
    %c32_i32 = arith.constant 32 : i32
    %1 = tpu.dynamic_rotate %0 by %c32_i32 dim 1 {stride = 1 : si32, stride_dimension = 0 : si32} : vector<32x64xbf16>, i32 -> vector<32x64xbf16>
    %c0_1 = arith.constant 0 : index
    %c0_2 = arith.constant 0 : index
    %2 = vector.load %arg1[%c0_1, %c0_2] : memref<32x64xbf16, #tpu.memory_space<vmem>>, vector<32x64xbf16>
    tpu.vector_store %arg1[%c0_1, %c0_2], %1 {strides = array<i32>} : memref<32x64xbf16, #tpu.memory_space<vmem>>, vector<32x64xbf16>,
    return
  }
}

module attributes {stable_mosaic.version = 11 : i64} {
  func.func @kern(%arg0: i32, %arg1: memref<8x128xf32, #tpu.memory_space<vmem>>, %arg2: memref<8x128xf32, #tpu.memory_space<vmem>>) attributes {dimension_semantics = [#tpu.dimension_semantics<arbitrary>], iteration_bounds = array<i64: 2>, scalar_prefetch = 0 : i64, scratch_operands = 0 : i64, tpu.core_type = #tpu.core_type<tc>, window_params = [{pipeline_mode = #tpu.pipeline_mode<synchronous>, transform_indices = @transform_0, window_bounds = array<i64: 8, 128>}, {transform_indices = @transform_1, window_bounds = array<i64: 8, 128>}]} {
    %c0 = arith.constant 0 : index
    %c0_0 = arith.constant 0 : index
    %0 = vector.load %arg1[%c0, %c0_0] : memref<8x128xf32, #tpu.memory_space<vmem>>, vector<8x128xf32>
    %cst = arith.constant 1.000000e+00 : f32
    %1 = vector.broadcast %cst : f32 to vector<8x128xf32>
    %2 = arith.addf %0, %1 : vector<8x128xf32>
    %c0_1 = arith.constant 0 : index
    %c0_2 = arith.constant 0 : index
    %3 = vector.load %arg2[%c0_1, %c0_2] : memref<8x128xf32, #tpu.memory_space<vmem>>, vector<8x128xf32>
    tpu.vector_store %arg2[%c0_1, %c0_2], %2 {strides = array<i32>} : memref<8x128xf32, #tpu.memory_space<vmem>>, vector<8x128xf32>,
    return
  }
  func.func @transform_0(%arg0: i32) -> (i32, i32) {
    %c0_i32 = arith.constant 0 : i32
    %c0_i32_0 = arith.constant 0 : i32
    %c0_i32_1 = arith.constant 0 : i32
    return %c0_i32, %c0_i32_0 : i32, i32
  }
  func.func @transform_1(%arg0: i32) -> (i32, i32) {
    %c0_i32 = arith.constant 0 : i32
    %c0_i32_0 = arith.constant 0 : i32
    return %arg0, %c0_i32 : i32, i32
  }
}

module attributes {stable_mosaic.version = 11 : i64} {
  func.func @kernel(%arg0: i32, %arg1: memref<1x128x32xbf16, #tpu.memory_space<vmem>>, %arg2: memref<32x96xbf16, #tpu.memory_space<vmem>>, %arg3: memref<1x96xf32, #tpu.memory_space<vmem>>, %arg4: memref<4x8x64xbf16, #tpu.memory_space<vmem>>, %arg5: memref<4x8x16xbf16, #tpu.memory_space<vmem>>, %arg6: memref<4x8x4xbf16, #tpu.memory_space<vmem>>, %arg7: memref<64x128xbf16, #tpu.memory_space<vmem>>, %arg8: memref<16x128xbf16, #tpu.memory_space<vmem>>, %arg9: memref<4x128xbf16, #tpu.memory_space<vmem>>, %arg10: memref<6x32x64xbf16, #tpu.memory_space<vmem>>, %arg11: memref<4x32x16xbf16, #tpu.memory_space<vmem>>, %arg12: memref<2x32x4xbf16, #tpu.memory_space<vmem>>, %arg13: memref<1x1x128xf32, #tpu.memory_space<vmem>>, %arg14: memref<1x32x32xf32, #tpu.memory_space<vmem>>, %arg15: memref<1x4x32x128xbf16, #tpu.memory_space<vmem>>) attributes {dimension_semantics = [#tpu.dimension_semantics<parallel>], iteration_bounds = array<i64: 2>, scalar_prefetch = 0 : i64, scratch_operands = 0 : i64, tpu.core_type = #tpu.core_type<tc>, window_params = [{transform_indices = @transform_0, window_bounds = array<i64: 1, 128, 32>}, {pipeline_mode = #tpu.pipeline_mode<synchronous>, transform_indices = @transform_1, window_bounds = array<i64: 32, 96>}, {pipeline_mode = #tpu.pipeline_mode<synchronous>, transform_indices = @transform_2, window_bounds = array<i64: 1, 96>}, {pipeline_mode = #tpu.pipeline_mode<synchronous>, transform_indices = @transform_3, window_bounds = array<i64: 4, 8, 64>}, {pipeline_mode = #tpu.pipeline_mode<synchronous>, transform_indices = @transform_4, window_bounds = array<i64: 4, 8, 16>}, {pipeline_mode = #tpu.pipeline_mode<synchronous>, transform_indices = @transform_5, window_bounds = array<i64: 4, 8, 4>}, {pipeline_mode = #tpu.pipeline_mode<synchronous>, transform_indices = @transform_6, window_bounds = array<i64: 64, 128>}, {pipeline_mode = #tpu.pipeline_mode<synchronous>, transform_indices = @transform_7, window_bounds = array<i64: 16, 128>}, {pipeline_mode = #tpu.pipeline_mode<synchronous>, transform_indices = @transform_8, window_bounds = array<i64: 4, 128>}, {pipeline_mode = #tpu.pipeline_mode<synchronous>, transform_indices = @transform_9, window_bounds = array<i64: 6, 32, 64>}, {pipeline_mode = #tpu.pipeline_mode<synchronous>, transform_indices = @transform_10, window_bounds = array<i64: 4, 32, 16>}, {pipeline_mode = #tpu.pipeline_mode<synchronous>, transform_indices = @transform_11, window_bounds = array<i64: 2, 32, 4>}, {pipeline_mode = #tpu.pipeline_mode<synchronous>, transform_indices = @transform_12, window_bounds = array<i64: 1, 1, 128>}, {transform_indices = @transform_13, window_bounds = array<i64: 1, 32, 32>}, {transform_indices = @transform_14, window_bounds = array<i64: 1, 4, 32, 128>}]} {
    %c0 = arith.constant 0 : index
    %c0_0 = arith.constant 0 : index
    %0 = vector.load %arg3[%c0, %c0_0] : memref<1x96xf32, #tpu.memory_space<vmem>>, vector<1x96xf32>
    %c0_1 = arith.constant 0 : index
    %c0_2 = arith.constant 0 : index
    %c0_3 = arith.constant 0 : index
    %1 = vector.load %arg1[%c0_1, %c0_2, %c0_3] : memref<1x128x32xbf16, #tpu.memory_space<vmem>>, vector<1x128x32xbf16>
    %2 = vector.shape_cast %1 : vector<1x128x32xbf16> to vector<128x32xbf16>
    %c0_4 = arith.constant 0 : index
    %c0_5 = arith.constant 0 : index
    %3 = vector.load %arg2[%c0_4, %c0_5] : memref<32x96xbf16, #tpu.memory_space<vmem>>, vector<32x96xbf16>
    %cst = arith.constant dense<0.000000e+00> : vector<128x96xf32>
    %4 = tpu.matmul %2, %3, %cst {dimension_numbers = #tpu.dot_dimension_numbers<[1], [0], [0], [1], [0, 0, 1, 1], [], []>} : vector<128x32xbf16>, vector<32x96xbf16>, vector<128x96xf32> -> vector<128x96xf32>
    %5 = vector.broadcast %0 : vector<1x96xf32> to vector<128x96xf32>
    %6 = arith.addf %4, %5 : vector<128x96xf32>
    %7 = vector.extract_strided_slice %6 {offsets = [0, 0], sizes = [128, 32], strides = [1, 1]} : vector<128x96xf32> to vector<128x32xf32>
    %cst_6 = arith.constant 0.353553385 : f32
    %8 = vector.broadcast %cst_6 : f32 to vector<128x32xf32>
    %9 = arith.mulf %7, %8 : vector<128x32xf32>
    %10 = vector.extract_strided_slice %6 {offsets = [0, 32], sizes = [128, 32], strides = [1, 1]} : vector<128x96xf32> to vector<128x32xf32>
    %11 = vector.extract_strided_slice %6 {offsets = [0, 64], sizes = [128, 32], strides = [1, 1]} : vector<128x96xf32> to vector<128x32xf32>
    %c0_7 = arith.constant 0 : index
    %c0_8 = arith.constant 0 : index
    %12 = vector.load %arg7[%c0_7, %c0_8] : memref<64x128xbf16, #tpu.memory_space<vmem>>, vector<64x128xbf16>
    %c0_9 = arith.constant 0 : index
    %c0_10 = arith.constant 0 : index
    %13 = vector.load %arg8[%c0_9, %c0_10] : memref<16x128xbf16, #tpu.memory_space<vmem>>, vector<16x128xbf16>
    %c0_11 = arith.constant 0 : index
    %c0_12 = arith.constant 0 : index
    %14 = vector.load %arg9[%c0_11, %c0_12] : memref<4x128xbf16, #tpu.memory_space<vmem>>, vector<4x128xbf16>
    %c0_13 = arith.constant 0 : index
    %c0_14 = arith.constant 0 : index
    %c0_15 = arith.constant 0 : index
    %15 = vector.load %arg13[%c0_13, %c0_14, %c0_15] : memref<1x1x128xf32, #tpu.memory_space<vmem>>, vector<1x1x128xf32>
    %16 = vector.shape_cast %15 : vector<1x1x128xf32> to vector<1x128xf32>
    %17 = vector.extract_strided_slice %9 {offsets = [0, 0], sizes = [32, 8], strides = [1, 1]} : vector<128x32xf32> to vector<32x8xf32>
    %18 = arith.truncf %17 : vector<32x8xf32> to vector<32x8xbf16>
    %19 = vector.extract_strided_slice %10 {offsets = [0, 0], sizes = [128, 8], strides = [1, 1]} : vector<128x32xf32> to vector<128x8xf32>
    %20 = arith.truncf %19 : vector<128x8xf32> to vector<128x8xbf16>
    %21 = vector.extract_strided_slice %11 {offsets = [0, 0], sizes = [128, 8], strides = [1, 1]} : vector<128x32xf32> to vector<128x8xf32>
    %22 = arith.truncf %21 : vector<128x8xf32> to vector<128x8xbf16>
    %cst_16 = arith.constant dense<0.000000e+00> : vector<32x128xf32>
    %23 = tpu.matmul %18, %20, %cst_16 {dimension_numbers = #tpu.dot_dimension_numbers<[1], [1], [0], [0], [0, 0, 1, 0], [], []>} : vector<32x8xbf16>, vector<128x8xbf16>, vector<32x128xf32> -> vector<32x128xf32>
    %c0_17 = arith.constant 0 : index
    %c0_18 = arith.constant 0 : index
    %c0_19 = arith.constant 0 : index
    %24 = vector.load %arg4[%c0_17, %c0_18, %c0_19] : memref<4x8x64xbf16, #tpu.memory_space<vmem>>, vector<1x8x64xbf16>
    %25 = vector.shape_cast %24 : vector<1x8x64xbf16> to vector<8x64xbf16>
    %cst_20 = arith.constant dense<0.000000e+00> : vector<32x64xf32>
    %26 = tpu.matmul %18, %25, %cst_20 {dimension_numbers = #tpu.dot_dimension_numbers<[1], [0], [0], [1], [0, 0, 1, 1], [], []>} : vector<32x8xbf16>, vector<8x64xbf16>, vector<32x64xf32> -> vector<32x64xf32>
    %27 = arith.truncf %26 : vector<32x64xf32> to vector<32x64xbf16>
    %c0_21 = arith.constant 0 : index
    %c0_22 = arith.constant 0 : index
    %c0_23 = arith.constant 0 : index
    %28 = vector.load %arg5[%c0_21, %c0_22, %c0_23] : memref<4x8x16xbf16, #tpu.memory_space<vmem>>, vector<1x8x16xbf16>
    %29 = vector.shape_cast %28 : vector<1x8x16xbf16> to vector<8x16xbf16>
    %cst_24 = arith.constant dense<0.000000e+00> : vector<32x16xf32>
    %30 = tpu.matmul %18, %29, %cst_24 {dimension_numbers = #tpu.dot_dimension_numbers<[1], [0], [0], [1], [0, 0, 1, 1], [], []>} : vector<32x8xbf16>, vector<8x16xbf16>, vector<32x16xf32> -> vector<32x16xf32>
    %31 = arith.truncf %30 : vector<32x16xf32> to vector<32x16xbf16>
    %c0_25 = arith.constant 0 : index
    %c0_26 = arith.constant 0 : index
    %c0_27 = arith.constant 0 : index
    %32 = vector.load %arg6[%c0_25, %c0_26, %c0_27] : memref<4x8x4xbf16, #tpu.memory_space<vmem>>, vector<1x8x4xbf16>
    %33 = vector.shape_cast %32 : vector<1x8x4xbf16> to vector<8x4xbf16>
    %cst_28 = arith.constant dense<0.000000e+00> : vector<32x4xf32>
    %34 = tpu.matmul %18, %33, %cst_28 {dimension_numbers = #tpu.dot_dimension_numbers<[1], [0], [0], [1], [0, 0, 1, 1], [], []>} : vector<32x8xbf16>, vector<8x4xbf16>, vector<32x4xf32> -> vector<32x4xf32>
    %35 = arith.truncf %34 : vector<32x4xf32> to vector<32x4xbf16>
    %c0_29 = arith.constant 0 : index
    %c0_30 = arith.constant 0 : index
    %c0_31 = arith.constant 0 : index
    %36 = vector.load %arg10[%c0_29, %c0_30, %c0_31] : memref<6x32x64xbf16, #tpu.memory_space<vmem>>, vector<1x32x64xbf16>
    %37 = vector.shape_cast %36 : vector<1x32x64xbf16> to vector<32x64xbf16>
    %cst_32 = arith.constant 5.000000e-01 : bf16
    %38 = vector.broadcast %cst_32 : bf16 to vector<32x64xbf16>
    %39 = arith.cmpf ogt, %37, %38 : vector<32x64xbf16>
    %40 = vector.extract_strided_slice %27 {offsets = [0, 63], sizes = [32, 1], strides = [1, 1]} : vector<32x64xbf16> to vector<32x1xbf16>
    %41 = vector.extract_strided_slice %27 {offsets = [0, 0], sizes = [32, 63], strides = [1, 1]} : vector<32x64xbf16> to vector<32x63xbf16>
    %42 = tpu.concatenate %40, %41 in 1 : vector<32x1xbf16>, vector<32x63xbf16> -> vector<32x64xbf16>
    %43 = arith.select %39, %42, %27 : vector<32x64xi1>, vector<32x64xbf16>
    %c1 = arith.constant 1 : index
    %c0_33 = arith.constant 0 : index
    %c0_34 = arith.constant 0 : index
    %44 = vector.load %arg10[%c1, %c0_33, %c0_34] : memref<6x32x64xbf16, #tpu.memory_space<vmem>>, vector<1x32x64xbf16>
    %45 = vector.shape_cast %44 : vector<1x32x64xbf16> to vector<32x64xbf16>
    %cst_35 = arith.constant 5.000000e-01 : bf16
    %46 = vector.broadcast %cst_35 : bf16 to vector<32x64xbf16>
    %47 = arith.cmpf ogt, %45, %46 : vector<32x64xbf16>
    %48 = vector.extract_strided_slice %43 {offsets = [0, 62], sizes = [32, 2], strides = [1, 1]} : vector<32x64xbf16> to vector<32x2xbf16>
    %49 = vector.extract_strided_slice %43 {offsets = [0, 0], sizes = [32, 62], strides = [1, 1]} : vector<32x64xbf16> to vector<32x62xbf16>
    %50 = tpu.concatenate %48, %49 in 1 : vector<32x2xbf16>, vector<32x62xbf16> -> vector<32x64xbf16>
    %51 = arith.select %47, %50, %43 : vector<32x64xi1>, vector<32x64xbf16>
    %c2 = arith.constant 2 : index
    %c0_36 = arith.constant 0 : index
    %c0_37 = arith.constant 0 : index
    %52 = vector.load %arg10[%c2, %c0_36, %c0_37] : memref<6x32x64xbf16, #tpu.memory_space<vmem>>, vector<1x32x64xbf16>
    %53 = vector.shape_cast %52 : vector<1x32x64xbf16> to vector<32x64xbf16>
    %cst_38 = arith.constant 5.000000e-01 : bf16
    %54 = vector.broadcast %cst_38 : bf16 to vector<32x64xbf16>
    %55 = arith.cmpf ogt, %53, %54 : vector<32x64xbf16>
    %56 = vector.extract_strided_slice %51 {offsets = [0, 60], sizes = [32, 4], strides = [1, 1]} : vector<32x64xbf16> to vector<32x4xbf16>
    %57 = vector.extract_strided_slice %51 {offsets = [0, 0], sizes = [32, 60], strides = [1, 1]} : vector<32x64xbf16> to vector<32x60xbf16>
    %58 = tpu.concatenate %56, %57 in 1 : vector<32x4xbf16>, vector<32x60xbf16> -> vector<32x64xbf16>
    %59 = arith.select %55, %58, %51 : vector<32x64xi1>, vector<32x64xbf16>
    %c3 = arith.constant 3 : index
    %c0_39 = arith.constant 0 : index
    %c0_40 = arith.constant 0 : index
    %60 = vector.load %arg10[%c3, %c0_39, %c0_40] : memref<6x32x64xbf16, #tpu.memory_space<vmem>>, vector<1x32x64xbf16>
    %61 = vector.shape_cast %60 : vector<1x32x64xbf16> to vector<32x64xbf16>
    %cst_41 = arith.constant 5.000000e-01 : bf16
    %62 = vector.broadcast %cst_41 : bf16 to vector<32x64xbf16>
    %63 = arith.cmpf ogt, %61, %62 : vector<32x64xbf16>
    %64 = vector.extract_strided_slice %59 {offsets = [0, 56], sizes = [32, 8], strides = [1, 1]} : vector<32x64xbf16> to vector<32x8xbf16>
    %65 = vector.extract_strided_slice %59 {offsets = [0, 0], sizes = [32, 56], strides = [1, 1]} : vector<32x64xbf16> to vector<32x56xbf16>
    %66 = tpu.concatenate %64, %65 in 1 : vector<32x8xbf16>, vector<32x56xbf16> -> vector<32x64xbf16>
    %67 = arith.select %63, %66, %59 : vector<32x64xi1>, vector<32x64xbf16>
    %c4 = arith.constant 4 : index
    %c0_42 = arith.constant 0 : index
    %c0_43 = arith.constant 0 : index
    %68 = vector.load %arg10[%c4, %c0_42, %c0_43] : memref<6x32x64xbf16, #tpu.memory_space<vmem>>, vector<1x32x64xbf16>
    %69 = vector.shape_cast %68 : vector<1x32x64xbf16> to vector<32x64xbf16>
    %cst_44 = arith.constant 5.000000e-01 : bf16
    %70 = vector.broadcast %cst_44 : bf16 to vector<32x64xbf16>
    %71 = arith.cmpf ogt, %69, %70 : vector<32x64xbf16>
    %72 = vector.extract_strided_slice %67 {offsets = [0, 48], sizes = [32, 16], strides = [1, 1]} : vector<32x64xbf16> to vector<32x16xbf16>
    %73 = vector.extract_strided_slice %67 {offsets = [0, 0], sizes = [32, 48], strides = [1, 1]} : vector<32x64xbf16> to vector<32x48xbf16>
    %74 = tpu.concatenate %72, %73 in 1 : vector<32x16xbf16>, vector<32x48xbf16> -> vector<32x64xbf16>
    %75 = arith.select %71, %74, %67 : vector<32x64xi1>, vector<32x64xbf16>
    %c5 = arith.constant 5 : index
    %c0_45 = arith.constant 0 : index
    %c0_46 = arith.constant 0 : index
    %76 = vector.load %arg10[%c5, %c0_45, %c0_46] : memref<6x32x64xbf16, #tpu.memory_space<vmem>>, vector<1x32x64xbf16>
    %77 = vector.shape_cast %76 : vector<1x32x64xbf16> to vector<32x64xbf16>
    %cst_47 = arith.constant 5.000000e-01 : bf16
    %78 = vector.broadcast %cst_47 : bf16 to vector<32x64xbf16>
    %79 = arith.cmpf ogt, %77, %78 : vector<32x64xbf16>
    %80 = vector.extract_strided_slice %75 {offsets = [0, 32], sizes = [32, 32], strides = [1, 1]} : vector<32x64xbf16> to vector<32x32xbf16>
    %81 = vector.extract_strided_slice %75 {offsets = [0, 0], sizes = [32, 32], strides = [1, 1]} : vector<32x64xbf16> to vector<32x32xbf16>
    %82 = tpu.concatenate %80, %81 in 1 : vector<32x32xbf16>, vector<32x32xbf16> -> vector<32x64xbf16>
    %83 = arith.select %79, %82, %75 : vector<32x64xi1>, vector<32x64xbf16>
    %c0_48 = arith.constant 0 : index
    %c0_49 = arith.constant 0 : index
    %c0_50 = arith.constant 0 : index
    %84 = vector.load %arg11[%c0_48, %c0_49, %c0_50] : memref<4x32x16xbf16, #tpu.memory_space<vmem>>, vector<1x32x16xbf16>
    %85 = vector.shape_cast %84 : vector<1x32x16xbf16> to vector<32x16xbf16>
    %cst_51 = arith.constant 5.000000e-01 : bf16
    %86 = vector.broadcast %cst_51 : bf16 to vector<32x16xbf16>
    %87 = arith.cmpf ogt, %85, %86 : vector<32x16xbf16>
    %88 = vector.extract_strided_slice %31 {offsets = [0, 15], sizes = [32, 1], strides = [1, 1]} : vector<32x16xbf16> to vector<32x1xbf16>
    %89 = vector.extract_strided_slice %31 {offsets = [0, 0], sizes = [32, 15], strides = [1, 1]} : vector<32x16xbf16> to vector<32x15xbf16>
    %90 = tpu.concatenate %88, %89 in 1 : vector<32x1xbf16>, vector<32x15xbf16> -> vector<32x16xbf16>
    %91 = arith.select %87, %90, %31 : vector<32x16xi1>, vector<32x16xbf16>
    %c1_52 = arith.constant 1 : index
    %c0_53 = arith.constant 0 : index
    %c0_54 = arith.constant 0 : index
    %92 = vector.load %arg11[%c1_52, %c0_53, %c0_54] : memref<4x32x16xbf16, #tpu.memory_space<vmem>>, vector<1x32x16xbf16>
    %93 = vector.shape_cast %92 : vector<1x32x16xbf16> to vector<32x16xbf16>
    %cst_55 = arith.constant 5.000000e-01 : bf16
    %94 = vector.broadcast %cst_55 : bf16 to vector<32x16xbf16>
    %95 = arith.cmpf ogt, %93, %94 : vector<32x16xbf16>
    %96 = vector.extract_strided_slice %91 {offsets = [0, 14], sizes = [32, 2], strides = [1, 1]} : vector<32x16xbf16> to vector<32x2xbf16>
    %97 = vector.extract_strided_slice %91 {offsets = [0, 0], sizes = [32, 14], strides = [1, 1]} : vector<32x16xbf16> to vector<32x14xbf16>
    %98 = tpu.concatenate %96, %97 in 1 : vector<32x2xbf16>, vector<32x14xbf16> -> vector<32x16xbf16>
    %99 = arith.select %95, %98, %91 : vector<32x16xi1>, vector<32x16xbf16>
    %c2_56 = arith.constant 2 : index
    %c0_57 = arith.constant 0 : index
    %c0_58 = arith.constant 0 : index
    %100 = vector.load %arg11[%c2_56, %c0_57, %c0_58] : memref<4x32x16xbf16, #tpu.memory_space<vmem>>, vector<1x32x16xbf16>
    %101 = vector.shape_cast %100 : vector<1x32x16xbf16> to vector<32x16xbf16>
    %cst_59 = arith.constant 5.000000e-01 : bf16
    %102 = vector.broadcast %cst_59 : bf16 to vector<32x16xbf16>
    %103 = arith.cmpf ogt, %101, %102 : vector<32x16xbf16>
    %104 = vector.extract_strided_slice %99 {offsets = [0, 12], sizes = [32, 4], strides = [1, 1]} : vector<32x16xbf16> to vector<32x4xbf16>
    %105 = vector.extract_strided_slice %99 {offsets = [0, 0], sizes = [32, 12], strides = [1, 1]} : vector<32x16xbf16> to vector<32x12xbf16>
    %106 = tpu.concatenate %104, %105 in 1 : vector<32x4xbf16>, vector<32x12xbf16> -> vector<32x16xbf16>
    %107 = arith.select %103, %106, %99 : vector<32x16xi1>, vector<32x16xbf16>
    %c3_60 = arith.constant 3 : index
    %c0_61 = arith.constant 0 : index
    %c0_62 = arith.constant 0 : index
    %108 = vector.load %arg11[%c3_60, %c0_61, %c0_62] : memref<4x32x16xbf16, #tpu.memory_space<vmem>>, vector<1x32x16xbf16>
    %109 = vector.shape_cast %108 : vector<1x32x16xbf16> to vector<32x16xbf16>
    %cst_63 = arith.constant 5.000000e-01 : bf16
    %110 = vector.broadcast %cst_63 : bf16 to vector<32x16xbf16>
    %111 = arith.cmpf ogt, %109, %110 : vector<32x16xbf16>
    %112 = vector.extract_strided_slice %107 {offsets = [0, 8], sizes = [32, 8], strides = [1, 1]} : vector<32x16xbf16> to vector<32x8xbf16>
    %113 = vector.extract_strided_slice %107 {offsets = [0, 0], sizes = [32, 8], strides = [1, 1]} : vector<32x16xbf16> to vector<32x8xbf16>
    %114 = tpu.concatenate %112, %113 in 1 : vector<32x8xbf16>, vector<32x8xbf16> -> vector<32x16xbf16>
    %115 = arith.select %111, %114, %107 : vector<32x16xi1>, vector<32x16xbf16>
    %c0_64 = arith.constant 0 : index
    %c0_65 = arith.constant 0 : index
    %c0_66 = arith.constant 0 : index
    %116 = vector.load %arg12[%c0_64, %c0_65, %c0_66] : memref<2x32x4xbf16, #tpu.memory_space<vmem>>, vector<1x32x4xbf16>
    %117 = vector.shape_cast %116 : vector<1x32x4xbf16> to vector<32x4xbf16>
    %cst_67 = arith.constant 5.000000e-01 : bf16
    %118 = vector.broadcast %cst_67 : bf16 to vector<32x4xbf16>
    %119 = arith.cmpf ogt, %117, %118 : vector<32x4xbf16>
    %120 = vector.extract_strided_slice %35 {offsets = [0, 3], sizes = [32, 1], strides = [1, 1]} : vector<32x4xbf16> to vector<32x1xbf16>
    %121 = vector.extract_strided_slice %35 {offsets = [0, 0], sizes = [32, 3], strides = [1, 1]} : vector<32x4xbf16> to vector<32x3xbf16>
    %122 = tpu.concatenate %120, %121 in 1 : vector<32x1xbf16>, vector<32x3xbf16> -> vector<32x4xbf16>
    %123 = arith.select %119, %122, %35 : vector<32x4xi1>, vector<32x4xbf16>
    %c1_68 = arith.constant 1 : index
    %c0_69 = arith.constant 0 : index
    %c0_70 = arith.constant 0 : index
    %124 = vector.load %arg12[%c1_68, %c0_69, %c0_70] : memref<2x32x4xbf16, #tpu.memory_space<vmem>>, vector<1x32x4xbf16>
    %125 = vector.shape_cast %124 : vector<1x32x4xbf16> to vector<32x4xbf16>
    %cst_71 = arith.constant 5.000000e-01 : bf16
    %126 = vector.broadcast %cst_71 : bf16 to vector<32x4xbf16>
    %127 = arith.cmpf ogt, %125, %126 : vector<32x4xbf16>
    %128 = vector.extract_strided_slice %123 {offsets = [0, 2], sizes = [32, 2], strides = [1, 1]} : vector<32x4xbf16> to vector<32x2xbf16>
    %129 = vector.extract_strided_slice %123 {offsets = [0, 0], sizes = [32, 2], strides = [1, 1]} : vector<32x4xbf16> to vector<32x2xbf16>
    %130 = tpu.concatenate %128, %129 in 1 : vector<32x2xbf16>, vector<32x2xbf16> -> vector<32x4xbf16>
    %131 = arith.select %127, %130, %123 : vector<32x4xi1>, vector<32x4xbf16>
    %cst_72 = arith.constant dense<0.000000e+00> : vector<32x128xf32>
    %132 = tpu.matmul %83, %12, %cst_72 {dimension_numbers = #tpu.dot_dimension_numbers<[1], [0], [0], [1], [0, 0, 1, 1], [], []>} : vector<32x64xbf16>, vector<64x128xbf16>, vector<32x128xf32> -> vector<32x128xf32>
    %133 = arith.addf %23, %132 : vector<32x128xf32>
    %cst_73 = arith.constant dense<0.000000e+00> : vector<32x128xf32>
    %134 = tpu.matmul %115, %13, %cst_73 {dimension_numbers = #tpu.dot_dimension_numbers<[1], [0], [0], [1], [0, 0, 1, 1], [], []>} : vector<32x16xbf16>, vector<16x128xbf16>, vector<32x128xf32> -> vector<32x128xf32>
    %135 = arith.addf %133, %134 : vector<32x128xf32>
    %cst_74 = arith.constant dense<0.000000e+00> : vector<32x128xf32>
    %136 = tpu.matmul %131, %14, %cst_74 {dimension_numbers = #tpu.dot_dimension_numbers<[1], [0], [0], [1], [0, 0, 1, 1], [], []>} : vector<32x4xbf16>, vector<4x128xbf16>, vector<32x128xf32> -> vector<32x128xf32>
    %137 = arith.addf %135, %136 : vector<32x128xf32>
    %138 = vector.broadcast %16 : vector<1x128xf32> to vector<32x128xf32>
    %139 = arith.addf %137, %138 : vector<32x128xf32>
    %cst_75 = arith.constant dense<0xFF800000> : vector<32xf32>
    %140 = vector.multi_reduction <maximumf>, %139, %cst_75 [1] : vector<32x128xf32> to vector<32xf32>
    %141 = vector.shape_cast %140 : vector<32xf32> to vector<32x1xf32>
    %142 = vector.broadcast %141 : vector<32x1xf32> to vector<32x128xf32>
    %143 = arith.subf %139, %142 : vector<32x128xf32>
    %144 = math.exp %143 : vector<32x128xf32>
    %cst_76 = arith.constant dense<0.000000e+00> : vector<32xf32>
    %145 = vector.multi_reduction <add>, %144, %cst_76 [1] : vector<32x128xf32> to vector<32xf32>
    %146 = vector.shape_cast %145 : vector<32xf32> to vector<32x1xf32>
    %147 = tpu.reciprocal %146 {approx = true} : vector<32x1xf32> -> vector<32x1xf32>
    %148 = vector.broadcast %147 : vector<32x1xf32> to vector<32x128xf32>
    %149 = arith.mulf %144, %148 : vector<32x128xf32>
    %150 = arith.truncf %149 : vector<32x128xf32> to vector<32x128xbf16>
    %c0_77 = arith.constant 0 : index
    %c0_78 = arith.constant 0 : index
    %c0_79 = arith.constant 0 : index
    %c0_80 = arith.constant 0 : index
    %151 = vector.load %arg15[%c0_77, %c0_78, %c0_79, %c0_80] : memref<1x4x32x128xbf16, #tpu.memory_space<vmem>>, vector<1x1x32x128xbf16>
    %152 = vector.shape_cast %151 : vector<1x1x32x128xbf16> to vector<32x128xbf16>
    %153 = vector.shape_cast %150 : vector<32x128xbf16> to vector<1x1x32x128xbf16>
    tpu.vector_store %arg15[%c0_77, %c0_78, %c0_79, %c0_80], %153 {strides = array<i32>} : memref<1x4x32x128xbf16, #tpu.memory_space<vmem>>, vector<1x1x32x128xbf16>,
    %154 = arith.truncf %149 : vector<32x128xf32> to vector<32x128xbf16>
    %cst_81 = arith.constant dense<0.000000e+00> : vector<32x8xf32>
    %155 = tpu.matmul %154, %22, %cst_81 {dimension_numbers = #tpu.dot_dimension_numbers<[1], [0], [0], [1], [0, 0, 1, 1], [], []>} : vector<32x128xbf16>, vector<128x8xbf16>, vector<32x8xf32> -> vector<32x8xf32>
    %c0_82 = arith.constant 0 : index
    %c0_83 = arith.constant 0 : index
    %c0_84 = arith.constant 0 : index
    %156 = vector.load %arg14[%c0_82, %c0_83, %c0_84] : memref<1x32x32xf32, #tpu.memory_space<vmem>>, vector<1x32x8xf32>
    %157 = vector.shape_cast %156 : vector<1x32x8xf32> to vector<32x8xf32>
    %158 = vector.shape_cast %155 : vector<32x8xf32> to vector<1x32x8xf32>
    tpu.vector_store %arg14[%c0_82, %c0_83, %c0_84], %158 {strides = array<i32>} : memref<1x32x32xf32, #tpu.memory_space<vmem>>, vector<1x32x8xf32>,
    %159 = vector.extract_strided_slice %9 {offsets = [0, 8], sizes = [32, 8], strides = [1, 1]} : vector<128x32xf32> to vector<32x8xf32>
    %160 = arith.truncf %159 : vector<32x8xf32> to vector<32x8xbf16>
    %161 = vector.extract_strided_slice %10 {offsets = [0, 8], sizes = [128, 8], strides = [1, 1]} : vector<128x32xf32> to vector<128x8xf32>
    %162 = arith.truncf %161 : vector<128x8xf32> to vector<128x8xbf16>
    %163 = vector.extract_strided_slice %11 {offsets = [0, 8], sizes = [128, 8], strides = [1, 1]} : vector<128x32xf32> to vector<128x8xf32>
    %164 = arith.truncf %163 : vector<128x8xf32> to vector<128x8xbf16>
    %cst_85 = arith.constant dense<0.000000e+00> : vector<32x128xf32>
    %165 = tpu.matmul %160, %162, %cst_85 {dimension_numbers = #tpu.dot_dimension_numbers<[1], [1], [0], [0], [0, 0, 1, 0], [], []>} : vector<32x8xbf16>, vector<128x8xbf16>, vector<32x128xf32> -> vector<32x128xf32>
    %c1_86 = arith.constant 1 : index
    %c0_87 = arith.constant 0 : index
    %c0_88 = arith.constant 0 : index
    %166 = vector.load %arg4[%c1_86, %c0_87, %c0_88] : memref<4x8x64xbf16, #tpu.memory_space<vmem>>, vector<1x8x64xbf16>
    %167 = vector.shape_cast %166 : vector<1x8x64xbf16> to vector<8x64xbf16>
    %cst_89 = arith.constant dense<0.000000e+00> : vector<32x64xf32>
    %168 = tpu.matmul %160, %167, %cst_89 {dimension_numbers = #tpu.dot_dimension_numbers<[1], [0], [0], [1], [0, 0, 1, 1], [], []>} : vector<32x8xbf16>, vector<8x64xbf16>, vector<32x64xf32> -> vector<32x64xf32>
    %169 = arith.truncf %168 : vector<32x64xf32> to vector<32x64xbf16>
    %c1_90 = arith.constant 1 : index
    %c0_91 = arith.constant 0 : index
    %c0_92 = arith.constant 0 : index
    %170 = vector.load %arg5[%c1_90, %c0_91, %c0_92] : memref<4x8x16xbf16, #tpu.memory_space<vmem>>, vector<1x8x16xbf16>
    %171 = vector.shape_cast %170 : vector<1x8x16xbf16> to vector<8x16xbf16>
    %cst_93 = arith.constant dense<0.000000e+00> : vector<32x16xf32>
    %172 = tpu.matmul %160, %171, %cst_93 {dimension_numbers = #tpu.dot_dimension_numbers<[1], [0], [0], [1], [0, 0, 1, 1], [], []>} : vector<32x8xbf16>, vector<8x16xbf16>, vector<32x16xf32> -> vector<32x16xf32>
    %173 = arith.truncf %172 : vector<32x16xf32> to vector<32x16xbf16>
    %c1_94 = arith.constant 1 : index
    %c0_95 = arith.constant 0 : index
    %c0_96 = arith.constant 0 : index
    %174 = vector.load %arg6[%c1_94, %c0_95, %c0_96] : memref<4x8x4xbf16, #tpu.memory_space<vmem>>, vector<1x8x4xbf16>
    %175 = vector.shape_cast %174 : vector<1x8x4xbf16> to vector<8x4xbf16>
    %cst_97 = arith.constant dense<0.000000e+00> : vector<32x4xf32>
    %176 = tpu.matmul %160, %175, %cst_97 {dimension_numbers = #tpu.dot_dimension_numbers<[1], [0], [0], [1], [0, 0, 1, 1], [], []>} : vector<32x8xbf16>, vector<8x4xbf16>, vector<32x4xf32> -> vector<32x4xf32>
    %177 = arith.truncf %176 : vector<32x4xf32> to vector<32x4xbf16>
    %c0_98 = arith.constant 0 : index
    %c0_99 = arith.constant 0 : index
    %c0_100 = arith.constant 0 : index
    %178 = vector.load %arg10[%c0_98, %c0_99, %c0_100] : memref<6x32x64xbf16, #tpu.memory_space<vmem>>, vector<1x32x64xbf16>
    %179 = vector.shape_cast %178 : vector<1x32x64xbf16> to vector<32x64xbf16>
    %cst_101 = arith.constant 5.000000e-01 : bf16
    %180 = vector.broadcast %cst_101 : bf16 to vector<32x64xbf16>
    %181 = arith.cmpf ogt, %179, %180 : vector<32x64xbf16>
    %182 = vector.extract_strided_slice %169 {offsets = [0, 63], sizes = [32, 1], strides = [1, 1]} : vector<32x64xbf16> to vector<32x1xbf16>
    %183 = vector.extract_strided_slice %169 {offsets = [0, 0], sizes = [32, 63], strides = [1, 1]} : vector<32x64xbf16> to vector<32x63xbf16>
    %184 = tpu.concatenate %182, %183 in 1 : vector<32x1xbf16>, vector<32x63xbf16> -> vector<32x64xbf16>
    %185 = arith.select %181, %184, %169 : vector<32x64xi1>, vector<32x64xbf16>
    %c1_102 = arith.constant 1 : index
    %c0_103 = arith.constant 0 : index
    %c0_104 = arith.constant 0 : index
    %186 = vector.load %arg10[%c1_102, %c0_103, %c0_104] : memref<6x32x64xbf16, #tpu.memory_space<vmem>>, vector<1x32x64xbf16>
    %187 = vector.shape_cast %186 : vector<1x32x64xbf16> to vector<32x64xbf16>
    %cst_105 = arith.constant 5.000000e-01 : bf16
    %188 = vector.broadcast %cst_105 : bf16 to vector<32x64xbf16>
    %189 = arith.cmpf ogt, %187, %188 : vector<32x64xbf16>
    %190 = vector.extract_strided_slice %185 {offsets = [0, 62], sizes = [32, 2], strides = [1, 1]} : vector<32x64xbf16> to vector<32x2xbf16>
    %191 = vector.extract_strided_slice %185 {offsets = [0, 0], sizes = [32, 62], strides = [1, 1]} : vector<32x64xbf16> to vector<32x62xbf16>
    %192 = tpu.concatenate %190, %191 in 1 : vector<32x2xbf16>, vector<32x62xbf16> -> vector<32x64xbf16>
    %193 = arith.select %189, %192, %185 : vector<32x64xi1>, vector<32x64xbf16>
    %c2_106 = arith.constant 2 : index
    %c0_107 = arith.constant 0 : index
    %c0_108 = arith.constant 0 : index
    %194 = vector.load %arg10[%c2_106, %c0_107, %c0_108] : memref<6x32x64xbf16, #tpu.memory_space<vmem>>, vector<1x32x64xbf16>
    %195 = vector.shape_cast %194 : vector<1x32x64xbf16> to vector<32x64xbf16>
    %cst_109 = arith.constant 5.000000e-01 : bf16
    %196 = vector.broadcast %cst_109 : bf16 to vector<32x64xbf16>
    %197 = arith.cmpf ogt, %195, %196 : vector<32x64xbf16>
    %198 = vector.extract_strided_slice %193 {offsets = [0, 60], sizes = [32, 4], strides = [1, 1]} : vector<32x64xbf16> to vector<32x4xbf16>
    %199 = vector.extract_strided_slice %193 {offsets = [0, 0], sizes = [32, 60], strides = [1, 1]} : vector<32x64xbf16> to vector<32x60xbf16>
    %200 = tpu.concatenate %198, %199 in 1 : vector<32x4xbf16>, vector<32x60xbf16> -> vector<32x64xbf16>
    %201 = arith.select %197, %200, %193 : vector<32x64xi1>, vector<32x64xbf16>
    %c3_110 = arith.constant 3 : index
    %c0_111 = arith.constant 0 : index
    %c0_112 = arith.constant 0 : index
    %202 = vector.load %arg10[%c3_110, %c0_111, %c0_112] : memref<6x32x64xbf16, #tpu.memory_space<vmem>>, vector<1x32x64xbf16>
    %203 = vector.shape_cast %202 : vector<1x32x64xbf16> to vector<32x64xbf16>
    %cst_113 = arith.constant 5.000000e-01 : bf16
    %204 = vector.broadcast %cst_113 : bf16 to vector<32x64xbf16>
    %205 = arith.cmpf ogt, %203, %204 : vector<32x64xbf16>
    %206 = vector.extract_strided_slice %201 {offsets = [0, 56], sizes = [32, 8], strides = [1, 1]} : vector<32x64xbf16> to vector<32x8xbf16>
    %207 = vector.extract_strided_slice %201 {offsets = [0, 0], sizes = [32, 56], strides = [1, 1]} : vector<32x64xbf16> to vector<32x56xbf16>
    %208 = tpu.concatenate %206, %207 in 1 : vector<32x8xbf16>, vector<32x56xbf16> -> vector<32x64xbf16>
    %209 = arith.select %205, %208, %201 : vector<32x64xi1>, vector<32x64xbf16>
    %c4_114 = arith.constant 4 : index
    %c0_115 = arith.constant 0 : index
    %c0_116 = arith.constant 0 : index
    %210 = vector.load %arg10[%c4_114, %c0_115, %c0_116] : memref<6x32x64xbf16, #tpu.memory_space<vmem>>, vector<1x32x64xbf16>
    %211 = vector.shape_cast %210 : vector<1x32x64xbf16> to vector<32x64xbf16>
    %cst_117 = arith.constant 5.000000e-01 : bf16
    %212 = vector.broadcast %cst_117 : bf16 to vector<32x64xbf16>
    %213 = arith.cmpf ogt, %211, %212 : vector<32x64xbf16>
    %214 = vector.extract_strided_slice %209 {offsets = [0, 48], sizes = [32, 16], strides = [1, 1]} : vector<32x64xbf16> to vector<32x16xbf16>
    %215 = vector.extract_strided_slice %209 {offsets = [0, 0], sizes = [32, 48], strides = [1, 1]} : vector<32x64xbf16> to vector<32x48xbf16>
    %216 = tpu.concatenate %214, %215 in 1 : vector<32x16xbf16>, vector<32x48xbf16> -> vector<32x64xbf16>
    %217 = arith.select %213, %216, %209 : vector<32x64xi1>, vector<32x64xbf16>
    %c5_118 = arith.constant 5 : index
    %c0_119 = arith.constant 0 : index
    %c0_120 = arith.constant 0 : index
    %218 = vector.load %arg10[%c5_118, %c0_119, %c0_120] : memref<6x32x64xbf16, #tpu.memory_space<vmem>>, vector<1x32x64xbf16>
    %219 = vector.shape_cast %218 : vector<1x32x64xbf16> to vector<32x64xbf16>
    %cst_121 = arith.constant 5.000000e-01 : bf16
    %220 = vector.broadcast %cst_121 : bf16 to vector<32x64xbf16>
    %221 = arith.cmpf ogt, %219, %220 : vector<32x64xbf16>
    %222 = vector.extract_strided_slice %217 {offsets = [0, 32], sizes = [32, 32], strides = [1, 1]} : vector<32x64xbf16> to vector<32x32xbf16>
    %223 = vector.extract_strided_slice %217 {offsets = [0, 0], sizes = [32, 32], strides = [1, 1]} : vector<32x64xbf16> to vector<32x32xbf16>
    %224 = tpu.concatenate %222, %223 in 1 : vector<32x32xbf16>, vector<32x32xbf16> -> vector<32x64xbf16>
    %225 = arith.select %221, %224, %217 : vector<32x64xi1>, vector<32x64xbf16>
    %c0_122 = arith.constant 0 : index
    %c0_123 = arith.constant 0 : index
    %c0_124 = arith.constant 0 : index
    %226 = vector.load %arg11[%c0_122, %c0_123, %c0_124] : memref<4x32x16xbf16, #tpu.memory_space<vmem>>, vector<1x32x16xbf16>
    %227 = vector.shape_cast %226 : vector<1x32x16xbf16> to vector<32x16xbf16>
    %cst_125 = arith.constant 5.000000e-01 : bf16
    %228 = vector.broadcast %cst_125 : bf16 to vector<32x16xbf16>
    %229 = arith.cmpf ogt, %227, %228 : vector<32x16xbf16>
    %230 = vector.extract_strided_slice %173 {offsets = [0, 15], sizes = [32, 1], strides = [1, 1]} : vector<32x16xbf16> to vector<32x1xbf16>
    %231 = vector.extract_strided_slice %173 {offsets = [0, 0], sizes = [32, 15], strides = [1, 1]} : vector<32x16xbf16> to vector<32x15xbf16>
    %232 = tpu.concatenate %230, %231 in 1 : vector<32x1xbf16>, vector<32x15xbf16> -> vector<32x16xbf16>
    %233 = arith.select %229, %232, %173 : vector<32x16xi1>, vector<32x16xbf16>
    %c1_126 = arith.constant 1 : index
    %c0_127 = arith.constant 0 : index
    %c0_128 = arith.constant 0 : index
    %234 = vector.load %arg11[%c1_126, %c0_127, %c0_128] : memref<4x32x16xbf16, #tpu.memory_space<vmem>>, vector<1x32x16xbf16>
    %235 = vector.shape_cast %234 : vector<1x32x16xbf16> to vector<32x16xbf16>
    %cst_129 = arith.constant 5.000000e-01 : bf16
    %236 = vector.broadcast %cst_129 : bf16 to vector<32x16xbf16>
    %237 = arith.cmpf ogt, %235, %236 : vector<32x16xbf16>
    %238 = vector.extract_strided_slice %233 {offsets = [0, 14], sizes = [32, 2], strides = [1, 1]} : vector<32x16xbf16> to vector<32x2xbf16>
    %239 = vector.extract_strided_slice %233 {offsets = [0, 0], sizes = [32, 14], strides = [1, 1]} : vector<32x16xbf16> to vector<32x14xbf16>
    %240 = tpu.concatenate %238, %239 in 1 : vector<32x2xbf16>, vector<32x14xbf16> -> vector<32x16xbf16>
    %241 = arith.select %237, %240, %233 : vector<32x16xi1>, vector<32x16xbf16>
    %c2_130 = arith.constant 2 : index
    %c0_131 = arith.constant 0 : index
    %c0_132 = arith.constant 0 : index
    %242 = vector.load %arg11[%c2_130, %c0_131, %c0_132] : memref<4x32x16xbf16, #tpu.memory_space<vmem>>, vector<1x32x16xbf16>
    %243 = vector.shape_cast %242 : vector<1x32x16xbf16> to vector<32x16xbf16>
    %cst_133 = arith.constant 5.000000e-01 : bf16
    %244 = vector.broadcast %cst_133 : bf16 to vector<32x16xbf16>
    %245 = arith.cmpf ogt, %243, %244 : vector<32x16xbf16>
    %246 = vector.extract_strided_slice %241 {offsets = [0, 12], sizes = [32, 4], strides = [1, 1]} : vector<32x16xbf16> to vector<32x4xbf16>
    %247 = vector.extract_strided_slice %241 {offsets = [0, 0], sizes = [32, 12], strides = [1, 1]} : vector<32x16xbf16> to vector<32x12xbf16>
    %248 = tpu.concatenate %246, %247 in 1 : vector<32x4xbf16>, vector<32x12xbf16> -> vector<32x16xbf16>
    %249 = arith.select %245, %248, %241 : vector<32x16xi1>, vector<32x16xbf16>
    %c3_134 = arith.constant 3 : index
    %c0_135 = arith.constant 0 : index
    %c0_136 = arith.constant 0 : index
    %250 = vector.load %arg11[%c3_134, %c0_135, %c0_136] : memref<4x32x16xbf16, #tpu.memory_space<vmem>>, vector<1x32x16xbf16>
    %251 = vector.shape_cast %250 : vector<1x32x16xbf16> to vector<32x16xbf16>
    %cst_137 = arith.constant 5.000000e-01 : bf16
    %252 = vector.broadcast %cst_137 : bf16 to vector<32x16xbf16>
    %253 = arith.cmpf ogt, %251, %252 : vector<32x16xbf16>
    %254 = vector.extract_strided_slice %249 {offsets = [0, 8], sizes = [32, 8], strides = [1, 1]} : vector<32x16xbf16> to vector<32x8xbf16>
    %255 = vector.extract_strided_slice %249 {offsets = [0, 0], sizes = [32, 8], strides = [1, 1]} : vector<32x16xbf16> to vector<32x8xbf16>
    %256 = tpu.concatenate %254, %255 in 1 : vector<32x8xbf16>, vector<32x8xbf16> -> vector<32x16xbf16>
    %257 = arith.select %253, %256, %249 : vector<32x16xi1>, vector<32x16xbf16>
    %c0_138 = arith.constant 0 : index
    %c0_139 = arith.constant 0 : index
    %c0_140 = arith.constant 0 : index
    %258 = vector.load %arg12[%c0_138, %c0_139, %c0_140] : memref<2x32x4xbf16, #tpu.memory_space<vmem>>, vector<1x32x4xbf16>
    %259 = vector.shape_cast %258 : vector<1x32x4xbf16> to vector<32x4xbf16>
    %cst_141 = arith.constant 5.000000e-01 : bf16
    %260 = vector.broadcast %cst_141 : bf16 to vector<32x4xbf16>
    %261 = arith.cmpf ogt, %259, %260 : vector<32x4xbf16>
    %262 = vector.extract_strided_slice %177 {offsets = [0, 3], sizes = [32, 1], strides = [1, 1]} : vector<32x4xbf16> to vector<32x1xbf16>
    %263 = vector.extract_strided_slice %177 {offsets = [0, 0], sizes = [32, 3], strides = [1, 1]} : vector<32x4xbf16> to vector<32x3xbf16>
    %264 = tpu.concatenate %262, %263 in 1 : vector<32x1xbf16>, vector<32x3xbf16> -> vector<32x4xbf16>
    %265 = arith.select %261, %264, %177 : vector<32x4xi1>, vector<32x4xbf16>
    %c1_142 = arith.constant 1 : index
    %c0_143 = arith.constant 0 : index
    %c0_144 = arith.constant 0 : index
    %266 = vector.load %arg12[%c1_142, %c0_143, %c0_144] : memref<2x32x4xbf16, #tpu.memory_space<vmem>>, vector<1x32x4xbf16>
    %267 = vector.shape_cast %266 : vector<1x32x4xbf16> to vector<32x4xbf16>
    %cst_145 = arith.constant 5.000000e-01 : bf16
    %268 = vector.broadcast %cst_145 : bf16 to vector<32x4xbf16>
    %269 = arith.cmpf ogt, %267, %268 : vector<32x4xbf16>
    %270 = vector.extract_strided_slice %265 {offsets = [0, 2], sizes = [32, 2], strides = [1, 1]} : vector<32x4xbf16> to vector<32x2xbf16>
    %271 = vector.extract_strided_slice %265 {offsets = [0, 0], sizes = [32, 2], strides = [1, 1]} : vector<32x4xbf16> to vector<32x2xbf16>
    %272 = tpu.concatenate %270, %271 in 1 : vector<32x2xbf16>, vector<32x2xbf16> -> vector<32x4xbf16>
    %273 = arith.select %269, %272, %265 : vector<32x4xi1>, vector<32x4xbf16>
    %cst_146 = arith.constant dense<0.000000e+00> : vector<32x128xf32>
    %274 = tpu.matmul %225, %12, %cst_146 {dimension_numbers = #tpu.dot_dimension_numbers<[1], [0], [0], [1], [0, 0, 1, 1], [], []>} : vector<32x64xbf16>, vector<64x128xbf16>, vector<32x128xf32> -> vector<32x128xf32>
    %275 = arith.addf %165, %274 : vector<32x128xf32>
    %cst_147 = arith.constant dense<0.000000e+00> : vector<32x128xf32>
    %276 = tpu.matmul %257, %13, %cst_147 {dimension_numbers = #tpu.dot_dimension_numbers<[1], [0], [0], [1], [0, 0, 1, 1], [], []>} : vector<32x16xbf16>, vector<16x128xbf16>, vector<32x128xf32> -> vector<32x128xf32>
    %277 = arith.addf %275, %276 : vector<32x128xf32>
    %cst_148 = arith.constant dense<0.000000e+00> : vector<32x128xf32>
    %278 = tpu.matmul %273, %14, %cst_148 {dimension_numbers = #tpu.dot_dimension_numbers<[1], [0], [0], [1], [0, 0, 1, 1], [], []>} : vector<32x4xbf16>, vector<4x128xbf16>, vector<32x128xf32> -> vector<32x128xf32>
    %279 = arith.addf %277, %278 : vector<32x128xf32>
    %280 = vector.broadcast %16 : vector<1x128xf32> to vector<32x128xf32>
    %281 = arith.addf %279, %280 : vector<32x128xf32>
    %cst_149 = arith.constant dense<0xFF800000> : vector<32xf32>
    %282 = vector.multi_reduction <maximumf>, %281, %cst_149 [1] : vector<32x128xf32> to vector<32xf32>
    %283 = vector.shape_cast %282 : vector<32xf32> to vector<32x1xf32>
    %284 = vector.broadcast %283 : vector<32x1xf32> to vector<32x128xf32>
    %285 = arith.subf %281, %284 : vector<32x128xf32>
    %286 = math.exp %285 : vector<32x128xf32>
    %cst_150 = arith.constant dense<0.000000e+00> : vector<32xf32>
    %287 = vector.multi_reduction <add>, %286, %cst_150 [1] : vector<32x128xf32> to vector<32xf32>
    %288 = vector.shape_cast %287 : vector<32xf32> to vector<32x1xf32>
    %289 = tpu.reciprocal %288 {approx = true} : vector<32x1xf32> -> vector<32x1xf32>
    %290 = vector.broadcast %289 : vector<32x1xf32> to vector<32x128xf32>
    %291 = arith.mulf %286, %290 : vector<32x128xf32>
    %292 = arith.truncf %291 : vector<32x128xf32> to vector<32x128xbf16>
    %c0_151 = arith.constant 0 : index
    %c1_152 = arith.constant 1 : index
    %c0_153 = arith.constant 0 : index
    %c0_154 = arith.constant 0 : index
    %293 = vector.load %arg15[%c0_151, %c1_152, %c0_153, %c0_154] : memref<1x4x32x128xbf16, #tpu.memory_space<vmem>>, vector<1x1x32x128xbf16>
    %294 = vector.shape_cast %293 : vector<1x1x32x128xbf16> to vector<32x128xbf16>
    %295 = vector.shape_cast %292 : vector<32x128xbf16> to vector<1x1x32x128xbf16>
    tpu.vector_store %arg15[%c0_151, %c1_152, %c0_153, %c0_154], %295 {strides = array<i32>} : memref<1x4x32x128xbf16, #tpu.memory_space<vmem>>, vector<1x1x32x128xbf16>,
    %296 = arith.truncf %291 : vector<32x128xf32> to vector<32x128xbf16>
    %cst_155 = arith.constant dense<0.000000e+00> : vector<32x8xf32>
    %297 = tpu.matmul %296, %164, %cst_155 {dimension_numbers = #tpu.dot_dimension_numbers<[1], [0], [0], [1], [0, 0, 1, 1], [], []>} : vector<32x128xbf16>, vector<128x8xbf16>, vector<32x8xf32> -> vector<32x8xf32>
    %c0_156 = arith.constant 0 : index
    %c0_157 = arith.constant 0 : index
    %c8 = arith.constant 8 : index
    %298 = vector.load %arg14[%c0_156, %c0_157, %c8] : memref<1x32x32xf32, #tpu.memory_space<vmem>>, vector<1x32x8xf32>
    %299 = vector.shape_cast %298 : vector<1x32x8xf32> to vector<32x8xf32>
    %300 = vector.shape_cast %297 : vector<32x8xf32> to vector<1x32x8xf32>
    tpu.vector_store %arg14[%c0_156, %c0_157, %c8], %300 {strides = array<i32>} : memref<1x32x32xf32, #tpu.memory_space<vmem>>, vector<1x32x8xf32>,
    %301 = vector.extract_strided_slice %9 {offsets = [0, 16], sizes = [32, 8], strides = [1, 1]} : vector<128x32xf32> to vector<32x8xf32>
    %302 = arith.truncf %301 : vector<32x8xf32> to vector<32x8xbf16>
    %303 = vector.extract_strided_slice %10 {offsets = [0, 16], sizes = [128, 8], strides = [1, 1]} : vector<128x32xf32> to vector<128x8xf32>
    %304 = arith.truncf %303 : vector<128x8xf32> to vector<128x8xbf16>
    %305 = vector.extract_strided_slice %11 {offsets = [0, 16], sizes = [128, 8], strides = [1, 1]} : vector<128x32xf32> to vector<128x8xf32>
    %306 = arith.truncf %305 : vector<128x8xf32> to vector<128x8xbf16>
    %cst_158 = arith.constant dense<0.000000e+00> : vector<32x128xf32>
    %307 = tpu.matmul %302, %304, %cst_158 {dimension_numbers = #tpu.dot_dimension_numbers<[1], [1], [0], [0], [0, 0, 1, 0], [], []>} : vector<32x8xbf16>, vector<128x8xbf16>, vector<32x128xf32> -> vector<32x128xf32>
    %c2_159 = arith.constant 2 : index
    %c0_160 = arith.constant 0 : index
    %c0_161 = arith.constant 0 : index
    %308 = vector.load %arg4[%c2_159, %c0_160, %c0_161] : memref<4x8x64xbf16, #tpu.memory_space<vmem>>, vector<1x8x64xbf16>
    %309 = vector.shape_cast %308 : vector<1x8x64xbf16> to vector<8x64xbf16>
    %cst_162 = arith.constant dense<0.000000e+00> : vector<32x64xf32>
    %310 = tpu.matmul %302, %309, %cst_162 {dimension_numbers = #tpu.dot_dimension_numbers<[1], [0], [0], [1], [0, 0, 1, 1], [], []>} : vector<32x8xbf16>, vector<8x64xbf16>, vector<32x64xf32> -> vector<32x64xf32>
    %311 = arith.truncf %310 : vector<32x64xf32> to vector<32x64xbf16>
    %c2_163 = arith.constant 2 : index
    %c0_164 = arith.constant 0 : index
    %c0_165 = arith.constant 0 : index
    %312 = vector.load %arg5[%c2_163, %c0_164, %c0_165] : memref<4x8x16xbf16, #tpu.memory_space<vmem>>, vector<1x8x16xbf16>
    %313 = vector.shape_cast %312 : vector<1x8x16xbf16> to vector<8x16xbf16>
    %cst_166 = arith.constant dense<0.000000e+00> : vector<32x16xf32>
    %314 = tpu.matmul %302, %313, %cst_166 {dimension_numbers = #tpu.dot_dimension_numbers<[1], [0], [0], [1], [0, 0, 1, 1], [], []>} : vector<32x8xbf16>, vector<8x16xbf16>, vector<32x16xf32> -> vector<32x16xf32>
    %315 = arith.truncf %314 : vector<32x16xf32> to vector<32x16xbf16>
    %c2_167 = arith.constant 2 : index
    %c0_168 = arith.constant 0 : index
    %c0_169 = arith.constant 0 : index
    %316 = vector.load %arg6[%c2_167, %c0_168, %c0_169] : memref<4x8x4xbf16, #tpu.memory_space<vmem>>, vector<1x8x4xbf16>
    %317 = vector.shape_cast %316 : vector<1x8x4xbf16> to vector<8x4xbf16>
    %cst_170 = arith.constant dense<0.000000e+00> : vector<32x4xf32>
    %318 = tpu.matmul %302, %317, %cst_170 {dimension_numbers = #tpu.dot_dimension_numbers<[1], [0], [0], [1], [0, 0, 1, 1], [], []>} : vector<32x8xbf16>, vector<8x4xbf16>, vector<32x4xf32> -> vector<32x4xf32>
    %319 = arith.truncf %318 : vector<32x4xf32> to vector<32x4xbf16>
    %c0_171 = arith.constant 0 : index
    %c0_172 = arith.constant 0 : index
    %c0_173 = arith.constant 0 : index
    %320 = vector.load %arg10[%c0_171, %c0_172, %c0_173] : memref<6x32x64xbf16, #tpu.memory_space<vmem>>, vector<1x32x64xbf16>
    %321 = vector.shape_cast %320 : vector<1x32x64xbf16> to vector<32x64xbf16>
    %cst_174 = arith.constant 5.000000e-01 : bf16
    %322 = vector.broadcast %cst_174 : bf16 to vector<32x64xbf16>
    %323 = arith.cmpf ogt, %321, %322 : vector<32x64xbf16>
    %324 = vector.extract_strided_slice %311 {offsets = [0, 63], sizes = [32, 1], strides = [1, 1]} : vector<32x64xbf16> to vector<32x1xbf16>
    %325 = vector.extract_strided_slice %311 {offsets = [0, 0], sizes = [32, 63], strides = [1, 1]} : vector<32x64xbf16> to vector<32x63xbf16>
    %326 = tpu.concatenate %324, %325 in 1 : vector<32x1xbf16>, vector<32x63xbf16> -> vector<32x64xbf16>
    %327 = arith.select %323, %326, %311 : vector<32x64xi1>, vector<32x64xbf16>
    %c1_175 = arith.constant 1 : index
    %c0_176 = arith.constant 0 : index
    %c0_177 = arith.constant 0 : index
    %328 = vector.load %arg10[%c1_175, %c0_176, %c0_177] : memref<6x32x64xbf16, #tpu.memory_space<vmem>>, vector<1x32x64xbf16>
    %329 = vector.shape_cast %328 : vector<1x32x64xbf16> to vector<32x64xbf16>
    %cst_178 = arith.constant 5.000000e-01 : bf16
    %330 = vector.broadcast %cst_178 : bf16 to vector<32x64xbf16>
    %331 = arith.cmpf ogt, %329, %330 : vector<32x64xbf16>
    %332 = vector.extract_strided_slice %327 {offsets = [0, 62], sizes = [32, 2], strides = [1, 1]} : vector<32x64xbf16> to vector<32x2xbf16>
    %333 = vector.extract_strided_slice %327 {offsets = [0, 0], sizes = [32, 62], strides = [1, 1]} : vector<32x64xbf16> to vector<32x62xbf16>
    %334 = tpu.concatenate %332, %333 in 1 : vector<32x2xbf16>, vector<32x62xbf16> -> vector<32x64xbf16>
    %335 = arith.select %331, %334, %327 : vector<32x64xi1>, vector<32x64xbf16>
    %c2_179 = arith.constant 2 : index
    %c0_180 = arith.constant 0 : index
    %c0_181 = arith.constant 0 : index
    %336 = vector.load %arg10[%c2_179, %c0_180, %c0_181] : memref<6x32x64xbf16, #tpu.memory_space<vmem>>, vector<1x32x64xbf16>
    %337 = vector.shape_cast %336 : vector<1x32x64xbf16> to vector<32x64xbf16>
    %cst_182 = arith.constant 5.000000e-01 : bf16
    %338 = vector.broadcast %cst_182 : bf16 to vector<32x64xbf16>
    %339 = arith.cmpf ogt, %337, %338 : vector<32x64xbf16>
    %340 = vector.extract_strided_slice %335 {offsets = [0, 60], sizes = [32, 4], strides = [1, 1]} : vector<32x64xbf16> to vector<32x4xbf16>
    %341 = vector.extract_strided_slice %335 {offsets = [0, 0], sizes = [32, 60], strides = [1, 1]} : vector<32x64xbf16> to vector<32x60xbf16>
    %342 = tpu.concatenate %340, %341 in 1 : vector<32x4xbf16>, vector<32x60xbf16> -> vector<32x64xbf16>
    %343 = arith.select %339, %342, %335 : vector<32x64xi1>, vector<32x64xbf16>
    %c3_183 = arith.constant 3 : index
    %c0_184 = arith.constant 0 : index
    %c0_185 = arith.constant 0 : index
    %344 = vector.load %arg10[%c3_183, %c0_184, %c0_185] : memref<6x32x64xbf16, #tpu.memory_space<vmem>>, vector<1x32x64xbf16>
    %345 = vector.shape_cast %344 : vector<1x32x64xbf16> to vector<32x64xbf16>
    %cst_186 = arith.constant 5.000000e-01 : bf16
    %346 = vector.broadcast %cst_186 : bf16 to vector<32x64xbf16>
    %347 = arith.cmpf ogt, %345, %346 : vector<32x64xbf16>
    %348 = vector.extract_strided_slice %343 {offsets = [0, 56], sizes = [32, 8], strides = [1, 1]} : vector<32x64xbf16> to vector<32x8xbf16>
    %349 = vector.extract_strided_slice %343 {offsets = [0, 0], sizes = [32, 56], strides = [1, 1]} : vector<32x64xbf16> to vector<32x56xbf16>
    %350 = tpu.concatenate %348, %349 in 1 : vector<32x8xbf16>, vector<32x56xbf16> -> vector<32x64xbf16>
    %351 = arith.select %347, %350, %343 : vector<32x64xi1>, vector<32x64xbf16>
    %c4_187 = arith.constant 4 : index
    %c0_188 = arith.constant 0 : index
    %c0_189 = arith.constant 0 : index
    %352 = vector.load %arg10[%c4_187, %c0_188, %c0_189] : memref<6x32x64xbf16, #tpu.memory_space<vmem>>, vector<1x32x64xbf16>
    %353 = vector.shape_cast %352 : vector<1x32x64xbf16> to vector<32x64xbf16>
    %cst_190 = arith.constant 5.000000e-01 : bf16
    %354 = vector.broadcast %cst_190 : bf16 to vector<32x64xbf16>
    %355 = arith.cmpf ogt, %353, %354 : vector<32x64xbf16>
    %356 = vector.extract_strided_slice %351 {offsets = [0, 48], sizes = [32, 16], strides = [1, 1]} : vector<32x64xbf16> to vector<32x16xbf16>
    %357 = vector.extract_strided_slice %351 {offsets = [0, 0], sizes = [32, 48], strides = [1, 1]} : vector<32x64xbf16> to vector<32x48xbf16>
    %358 = tpu.concatenate %356, %357 in 1 : vector<32x16xbf16>, vector<32x48xbf16> -> vector<32x64xbf16>
    %359 = arith.select %355, %358, %351 : vector<32x64xi1>, vector<32x64xbf16>
    %c5_191 = arith.constant 5 : index
    %c0_192 = arith.constant 0 : index
    %c0_193 = arith.constant 0 : index
    %360 = vector.load %arg10[%c5_191, %c0_192, %c0_193] : memref<6x32x64xbf16, #tpu.memory_space<vmem>>, vector<1x32x64xbf16>
    %361 = vector.shape_cast %360 : vector<1x32x64xbf16> to vector<32x64xbf16>
    %cst_194 = arith.constant 5.000000e-01 : bf16
    %362 = vector.broadcast %cst_194 : bf16 to vector<32x64xbf16>
    %363 = arith.cmpf ogt, %361, %362 : vector<32x64xbf16>
    %364 = vector.extract_strided_slice %359 {offsets = [0, 32], sizes = [32, 32], strides = [1, 1]} : vector<32x64xbf16> to vector<32x32xbf16>
    %365 = vector.extract_strided_slice %359 {offsets = [0, 0], sizes = [32, 32], strides = [1, 1]} : vector<32x64xbf16> to vector<32x32xbf16>
    %366 = tpu.concatenate %364, %365 in 1 : vector<32x32xbf16>, vector<32x32xbf16> -> vector<32x64xbf16>
    %367 = arith.select %363, %366, %359 : vector<32x64xi1>, vector<32x64xbf16>
    %c0_195 = arith.constant 0 : index
    %c0_196 = arith.constant 0 : index
    %c0_197 = arith.constant 0 : index
    %368 = vector.load %arg11[%c0_195, %c0_196, %c0_197] : memref<4x32x16xbf16, #tpu.memory_space<vmem>>, vector<1x32x16xbf16>
    %369 = vector.shape_cast %368 : vector<1x32x16xbf16> to vector<32x16xbf16>
    %cst_198 = arith.constant 5.000000e-01 : bf16
    %370 = vector.broadcast %cst_198 : bf16 to vector<32x16xbf16>
    %371 = arith.cmpf ogt, %369, %370 : vector<32x16xbf16>
    %372 = vector.extract_strided_slice %315 {offsets = [0, 15], sizes = [32, 1], strides = [1, 1]} : vector<32x16xbf16> to vector<32x1xbf16>
    %373 = vector.extract_strided_slice %315 {offsets = [0, 0], sizes = [32, 15], strides = [1, 1]} : vector<32x16xbf16> to vector<32x15xbf16>
    %374 = tpu.concatenate %372, %373 in 1 : vector<32x1xbf16>, vector<32x15xbf16> -> vector<32x16xbf16>
    %375 = arith.select %371, %374, %315 : vector<32x16xi1>, vector<32x16xbf16>
    %c1_199 = arith.constant 1 : index
    %c0_200 = arith.constant 0 : index
    %c0_201 = arith.constant 0 : index
    %376 = vector.load %arg11[%c1_199, %c0_200, %c0_201] : memref<4x32x16xbf16, #tpu.memory_space<vmem>>, vector<1x32x16xbf16>
    %377 = vector.shape_cast %376 : vector<1x32x16xbf16> to vector<32x16xbf16>
    %cst_202 = arith.constant 5.000000e-01 : bf16
    %378 = vector.broadcast %cst_202 : bf16 to vector<32x16xbf16>
    %379 = arith.cmpf ogt, %377, %378 : vector<32x16xbf16>
    %380 = vector.extract_strided_slice %375 {offsets = [0, 14], sizes = [32, 2], strides = [1, 1]} : vector<32x16xbf16> to vector<32x2xbf16>
    %381 = vector.extract_strided_slice %375 {offsets = [0, 0], sizes = [32, 14], strides = [1, 1]} : vector<32x16xbf16> to vector<32x14xbf16>
    %382 = tpu.concatenate %380, %381 in 1 : vector<32x2xbf16>, vector<32x14xbf16> -> vector<32x16xbf16>
    %383 = arith.select %379, %382, %375 : vector<32x16xi1>, vector<32x16xbf16>
    %c2_203 = arith.constant 2 : index
    %c0_204 = arith.constant 0 : index
    %c0_205 = arith.constant 0 : index
    %384 = vector.load %arg11[%c2_203, %c0_204, %c0_205] : memref<4x32x16xbf16, #tpu.memory_space<vmem>>, vector<1x32x16xbf16>
    %385 = vector.shape_cast %384 : vector<1x32x16xbf16> to vector<32x16xbf16>
    %cst_206 = arith.constant 5.000000e-01 : bf16
    %386 = vector.broadcast %cst_206 : bf16 to vector<32x16xbf16>
    %387 = arith.cmpf ogt, %385, %386 : vector<32x16xbf16>
    %388 = vector.extract_strided_slice %383 {offsets = [0, 12], sizes = [32, 4], strides = [1, 1]} : vector<32x16xbf16> to vector<32x4xbf16>
    %389 = vector.extract_strided_slice %383 {offsets = [0, 0], sizes = [32, 12], strides = [1, 1]} : vector<32x16xbf16> to vector<32x12xbf16>
    %390 = tpu.concatenate %388, %389 in 1 : vector<32x4xbf16>, vector<32x12xbf16> -> vector<32x16xbf16>
    %391 = arith.select %387, %390, %383 : vector<32x16xi1>, vector<32x16xbf16>
    %c3_207 = arith.constant 3 : index
    %c0_208 = arith.constant 0 : index
    %c0_209 = arith.constant 0 : index
    %392 = vector.load %arg11[%c3_207, %c0_208, %c0_209] : memref<4x32x16xbf16, #tpu.memory_space<vmem>>, vector<1x32x16xbf16>
    %393 = vector.shape_cast %392 : vector<1x32x16xbf16> to vector<32x16xbf16>
    %cst_210 = arith.constant 5.000000e-01 : bf16
    %394 = vector.broadcast %cst_210 : bf16 to vector<32x16xbf16>
    %395 = arith.cmpf ogt, %393, %394 : vector<32x16xbf16>
    %396 = vector.extract_strided_slice %391 {offsets = [0, 8], sizes = [32, 8], strides = [1, 1]} : vector<32x16xbf16> to vector<32x8xbf16>
    %397 = vector.extract_strided_slice %391 {offsets = [0, 0], sizes = [32, 8], strides = [1, 1]} : vector<32x16xbf16> to vector<32x8xbf16>
    %398 = tpu.concatenate %396, %397 in 1 : vector<32x8xbf16>, vector<32x8xbf16> -> vector<32x16xbf16>
    %399 = arith.select %395, %398, %391 : vector<32x16xi1>, vector<32x16xbf16>
    %c0_211 = arith.constant 0 : index
    %c0_212 = arith.constant 0 : index
    %c0_213 = arith.constant 0 : index
    %400 = vector.load %arg12[%c0_211, %c0_212, %c0_213] : memref<2x32x4xbf16, #tpu.memory_space<vmem>>, vector<1x32x4xbf16>
    %401 = vector.shape_cast %400 : vector<1x32x4xbf16> to vector<32x4xbf16>
    %cst_214 = arith.constant 5.000000e-01 : bf16
    %402 = vector.broadcast %cst_214 : bf16 to vector<32x4xbf16>
    %403 = arith.cmpf ogt, %401, %402 : vector<32x4xbf16>
    %404 = vector.extract_strided_slice %319 {offsets = [0, 3], sizes = [32, 1], strides = [1, 1]} : vector<32x4xbf16> to vector<32x1xbf16>
    %405 = vector.extract_strided_slice %319 {offsets = [0, 0], sizes = [32, 3], strides = [1, 1]} : vector<32x4xbf16> to vector<32x3xbf16>
    %406 = tpu.concatenate %404, %405 in 1 : vector<32x1xbf16>, vector<32x3xbf16> -> vector<32x4xbf16>
    %407 = arith.select %403, %406, %319 : vector<32x4xi1>, vector<32x4xbf16>
    %c1_215 = arith.constant 1 : index
    %c0_216 = arith.constant 0 : index
    %c0_217 = arith.constant 0 : index
    %408 = vector.load %arg12[%c1_215, %c0_216, %c0_217] : memref<2x32x4xbf16, #tpu.memory_space<vmem>>, vector<1x32x4xbf16>
    %409 = vector.shape_cast %408 : vector<1x32x4xbf16> to vector<32x4xbf16>
    %cst_218 = arith.constant 5.000000e-01 : bf16
    %410 = vector.broadcast %cst_218 : bf16 to vector<32x4xbf16>
    %411 = arith.cmpf ogt, %409, %410 : vector<32x4xbf16>
    %412 = vector.extract_strided_slice %407 {offsets = [0, 2], sizes = [32, 2], strides = [1, 1]} : vector<32x4xbf16> to vector<32x2xbf16>
    %413 = vector.extract_strided_slice %407 {offsets = [0, 0], sizes = [32, 2], strides = [1, 1]} : vector<32x4xbf16> to vector<32x2xbf16>
    %414 = tpu.concatenate %412, %413 in 1 : vector<32x2xbf16>, vector<32x2xbf16> -> vector<32x4xbf16>
    %415 = arith.select %411, %414, %407 : vector<32x4xi1>, vector<32x4xbf16>
    %cst_219 = arith.constant dense<0.000000e+00> : vector<32x128xf32>
    %416 = tpu.matmul %367, %12, %cst_219 {dimension_numbers = #tpu.dot_dimension_numbers<[1], [0], [0], [1], [0, 0, 1, 1], [], []>} : vector<32x64xbf16>, vector<64x128xbf16>, vector<32x128xf32> -> vector<32x128xf32>
    %417 = arith.addf %307, %416 : vector<32x128xf32>
    %cst_220 = arith.constant dense<0.000000e+00> : vector<32x128xf32>
    %418 = tpu.matmul %399, %13, %cst_220 {dimension_numbers = #tpu.dot_dimension_numbers<[1], [0], [0], [1], [0, 0, 1, 1], [], []>} : vector<32x16xbf16>, vector<16x128xbf16>, vector<32x128xf32> -> vector<32x128xf32>
    %419 = arith.addf %417, %418 : vector<32x128xf32>
    %cst_221 = arith.constant dense<0.000000e+00> : vector<32x128xf32>
    %420 = tpu.matmul %415, %14, %cst_221 {dimension_numbers = #tpu.dot_dimension_numbers<[1], [0], [0], [1], [0, 0, 1, 1], [], []>} : vector<32x4xbf16>, vector<4x128xbf16>, vector<32x128xf32> -> vector<32x128xf32>
    %421 = arith.addf %419, %420 : vector<32x128xf32>
    %422 = vector.broadcast %16 : vector<1x128xf32> to vector<32x128xf32>
    %423 = arith.addf %421, %422 : vector<32x128xf32>
    %cst_222 = arith.constant dense<0xFF800000> : vector<32xf32>
    %424 = vector.multi_reduction <maximumf>, %423, %cst_222 [1] : vector<32x128xf32> to vector<32xf32>
    %425 = vector.shape_cast %424 : vector<32xf32> to vector<32x1xf32>
    %426 = vector.broadcast %425 : vector<32x1xf32> to vector<32x128xf32>
    %427 = arith.subf %423, %426 : vector<32x128xf32>
    %428 = math.exp %427 : vector<32x128xf32>
    %cst_223 = arith.constant dense<0.000000e+00> : vector<32xf32>
    %429 = vector.multi_reduction <add>, %428, %cst_223 [1] : vector<32x128xf32> to vector<32xf32>
    %430 = vector.shape_cast %429 : vector<32xf32> to vector<32x1xf32>
    %431 = tpu.reciprocal %430 {approx = true} : vector<32x1xf32> -> vector<32x1xf32>
    %432 = vector.broadcast %431 : vector<32x1xf32> to vector<32x128xf32>
    %433 = arith.mulf %428, %432 : vector<32x128xf32>
    %434 = arith.truncf %433 : vector<32x128xf32> to vector<32x128xbf16>
    %c0_224 = arith.constant 0 : index
    %c2_225 = arith.constant 2 : index
    %c0_226 = arith.constant 0 : index
    %c0_227 = arith.constant 0 : index
    %435 = vector.load %arg15[%c0_224, %c2_225, %c0_226, %c0_227] : memref<1x4x32x128xbf16, #tpu.memory_space<vmem>>, vector<1x1x32x128xbf16>
    %436 = vector.shape_cast %435 : vector<1x1x32x128xbf16> to vector<32x128xbf16>
    %437 = vector.shape_cast %434 : vector<32x128xbf16> to vector<1x1x32x128xbf16>
    tpu.vector_store %arg15[%c0_224, %c2_225, %c0_226, %c0_227], %437 {strides = array<i32>} : memref<1x4x32x128xbf16, #tpu.memory_space<vmem>>, vector<1x1x32x128xbf16>,
    %438 = arith.truncf %433 : vector<32x128xf32> to vector<32x128xbf16>
    %cst_228 = arith.constant dense<0.000000e+00> : vector<32x8xf32>
    %439 = tpu.matmul %438, %306, %cst_228 {dimension_numbers = #tpu.dot_dimension_numbers<[1], [0], [0], [1], [0, 0, 1, 1], [], []>} : vector<32x128xbf16>, vector<128x8xbf16>, vector<32x8xf32> -> vector<32x8xf32>
    %c0_229 = arith.constant 0 : index
    %c0_230 = arith.constant 0 : index
    %c16 = arith.constant 16 : index
    %440 = vector.load %arg14[%c0_229, %c0_230, %c16] : memref<1x32x32xf32, #tpu.memory_space<vmem>>, vector<1x32x8xf32>
    %441 = vector.shape_cast %440 : vector<1x32x8xf32> to vector<32x8xf32>
    %442 = vector.shape_cast %439 : vector<32x8xf32> to vector<1x32x8xf32>
    tpu.vector_store %arg14[%c0_229, %c0_230, %c16], %442 {strides = array<i32>} : memref<1x32x32xf32, #tpu.memory_space<vmem>>, vector<1x32x8xf32>,
    %443 = vector.extract_strided_slice %9 {offsets = [0, 24], sizes = [32, 8], strides = [1, 1]} : vector<128x32xf32> to vector<32x8xf32>
    %444 = arith.truncf %443 : vector<32x8xf32> to vector<32x8xbf16>
    %445 = vector.extract_strided_slice %10 {offsets = [0, 24], sizes = [128, 8], strides = [1, 1]} : vector<128x32xf32> to vector<128x8xf32>
    %446 = arith.truncf %445 : vector<128x8xf32> to vector<128x8xbf16>
    %447 = vector.extract_strided_slice %11 {offsets = [0, 24], sizes = [128, 8], strides = [1, 1]} : vector<128x32xf32> to vector<128x8xf32>
    %448 = arith.truncf %447 : vector<128x8xf32> to vector<128x8xbf16>
    %cst_231 = arith.constant dense<0.000000e+00> : vector<32x128xf32>
    %449 = tpu.matmul %444, %446, %cst_231 {dimension_numbers = #tpu.dot_dimension_numbers<[1], [1], [0], [0], [0, 0, 1, 0], [], []>} : vector<32x8xbf16>, vector<128x8xbf16>, vector<32x128xf32> -> vector<32x128xf32>
    %c3_232 = arith.constant 3 : index
    %c0_233 = arith.constant 0 : index
    %c0_234 = arith.constant 0 : index
    %450 = vector.load %arg4[%c3_232, %c0_233, %c0_234] : memref<4x8x64xbf16, #tpu.memory_space<vmem>>, vector<1x8x64xbf16>
    %451 = vector.shape_cast %450 : vector<1x8x64xbf16> to vector<8x64xbf16>
    %cst_235 = arith.constant dense<0.000000e+00> : vector<32x64xf32>
    %452 = tpu.matmul %444, %451, %cst_235 {dimension_numbers = #tpu.dot_dimension_numbers<[1], [0], [0], [1], [0, 0, 1, 1], [], []>} : vector<32x8xbf16>, vector<8x64xbf16>, vector<32x64xf32> -> vector<32x64xf32>
    %453 = arith.truncf %452 : vector<32x64xf32> to vector<32x64xbf16>
    %c3_236 = arith.constant 3 : index
    %c0_237 = arith.constant 0 : index
    %c0_238 = arith.constant 0 : index
    %454 = vector.load %arg5[%c3_236, %c0_237, %c0_238] : memref<4x8x16xbf16, #tpu.memory_space<vmem>>, vector<1x8x16xbf16>
    %455 = vector.shape_cast %454 : vector<1x8x16xbf16> to vector<8x16xbf16>
    %cst_239 = arith.constant dense<0.000000e+00> : vector<32x16xf32>
    %456 = tpu.matmul %444, %455, %cst_239 {dimension_numbers = #tpu.dot_dimension_numbers<[1], [0], [0], [1], [0, 0, 1, 1], [], []>} : vector<32x8xbf16>, vector<8x16xbf16>, vector<32x16xf32> -> vector<32x16xf32>
    %457 = arith.truncf %456 : vector<32x16xf32> to vector<32x16xbf16>
    %c3_240 = arith.constant 3 : index
    %c0_241 = arith.constant 0 : index
    %c0_242 = arith.constant 0 : index
    %458 = vector.load %arg6[%c3_240, %c0_241, %c0_242] : memref<4x8x4xbf16, #tpu.memory_space<vmem>>, vector<1x8x4xbf16>
    %459 = vector.shape_cast %458 : vector<1x8x4xbf16> to vector<8x4xbf16>
    %cst_243 = arith.constant dense<0.000000e+00> : vector<32x4xf32>
    %460 = tpu.matmul %444, %459, %cst_243 {dimension_numbers = #tpu.dot_dimension_numbers<[1], [0], [0], [1], [0, 0, 1, 1], [], []>} : vector<32x8xbf16>, vector<8x4xbf16>, vector<32x4xf32> -> vector<32x4xf32>
    %461 = arith.truncf %460 : vector<32x4xf32> to vector<32x4xbf16>
    %c0_244 = arith.constant 0 : index
    %c0_245 = arith.constant 0 : index
    %c0_246 = arith.constant 0 : index
    %462 = vector.load %arg10[%c0_244, %c0_245, %c0_246] : memref<6x32x64xbf16, #tpu.memory_space<vmem>>, vector<1x32x64xbf16>
    %463 = vector.shape_cast %462 : vector<1x32x64xbf16> to vector<32x64xbf16>
    %cst_247 = arith.constant 5.000000e-01 : bf16
    %464 = vector.broadcast %cst_247 : bf16 to vector<32x64xbf16>
    %465 = arith.cmpf ogt, %463, %464 : vector<32x64xbf16>
    %466 = vector.extract_strided_slice %453 {offsets = [0, 63], sizes = [32, 1], strides = [1, 1]} : vector<32x64xbf16> to vector<32x1xbf16>
    %467 = vector.extract_strided_slice %453 {offsets = [0, 0], sizes = [32, 63], strides = [1, 1]} : vector<32x64xbf16> to vector<32x63xbf16>
    %468 = tpu.concatenate %466, %467 in 1 : vector<32x1xbf16>, vector<32x63xbf16> -> vector<32x64xbf16>
    %469 = arith.select %465, %468, %453 : vector<32x64xi1>, vector<32x64xbf16>
    %c1_248 = arith.constant 1 : index
    %c0_249 = arith.constant 0 : index
    %c0_250 = arith.constant 0 : index
    %470 = vector.load %arg10[%c1_248, %c0_249, %c0_250] : memref<6x32x64xbf16, #tpu.memory_space<vmem>>, vector<1x32x64xbf16>
    %471 = vector.shape_cast %470 : vector<1x32x64xbf16> to vector<32x64xbf16>
    %cst_251 = arith.constant 5.000000e-01 : bf16
    %472 = vector.broadcast %cst_251 : bf16 to vector<32x64xbf16>
    %473 = arith.cmpf ogt, %471, %472 : vector<32x64xbf16>
    %474 = vector.extract_strided_slice %469 {offsets = [0, 62], sizes = [32, 2], strides = [1, 1]} : vector<32x64xbf16> to vector<32x2xbf16>
    %475 = vector.extract_strided_slice %469 {offsets = [0, 0], sizes = [32, 62], strides = [1, 1]} : vector<32x64xbf16> to vector<32x62xbf16>
    %476 = tpu.concatenate %474, %475 in 1 : vector<32x2xbf16>, vector<32x62xbf16> -> vector<32x64xbf16>
    %477 = arith.select %473, %476, %469 : vector<32x64xi1>, vector<32x64xbf16>
    %c2_252 = arith.constant 2 : index
    %c0_253 = arith.constant 0 : index
    %c0_254 = arith.constant 0 : index
    %478 = vector.load %arg10[%c2_252, %c0_253, %c0_254] : memref<6x32x64xbf16, #tpu.memory_space<vmem>>, vector<1x32x64xbf16>
    %479 = vector.shape_cast %478 : vector<1x32x64xbf16> to vector<32x64xbf16>
    %cst_255 = arith.constant 5.000000e-01 : bf16
    %480 = vector.broadcast %cst_255 : bf16 to vector<32x64xbf16>
    %481 = arith.cmpf ogt, %479, %480 : vector<32x64xbf16>
    %482 = vector.extract_strided_slice %477 {offsets = [0, 60], sizes = [32, 4], strides = [1, 1]} : vector<32x64xbf16> to vector<32x4xbf16>
    %483 = vector.extract_strided_slice %477 {offsets = [0, 0], sizes = [32, 60], strides = [1, 1]} : vector<32x64xbf16> to vector<32x60xbf16>
    %484 = tpu.concatenate %482, %483 in 1 : vector<32x4xbf16>, vector<32x60xbf16> -> vector<32x64xbf16>
    %485 = arith.select %481, %484, %477 : vector<32x64xi1>, vector<32x64xbf16>
    %c3_256 = arith.constant 3 : index
    %c0_257 = arith.constant 0 : index
    %c0_258 = arith.constant 0 : index
    %486 = vector.load %arg10[%c3_256, %c0_257, %c0_258] : memref<6x32x64xbf16, #tpu.memory_space<vmem>>, vector<1x32x64xbf16>
    %487 = vector.shape_cast %486 : vector<1x32x64xbf16> to vector<32x64xbf16>
    %cst_259 = arith.constant 5.000000e-01 : bf16
    %488 = vector.broadcast %cst_259 : bf16 to vector<32x64xbf16>
    %489 = arith.cmpf ogt, %487, %488 : vector<32x64xbf16>
    %490 = vector.extract_strided_slice %485 {offsets = [0, 56], sizes = [32, 8], strides = [1, 1]} : vector<32x64xbf16> to vector<32x8xbf16>
    %491 = vector.extract_strided_slice %485 {offsets = [0, 0], sizes = [32, 56], strides = [1, 1]} : vector<32x64xbf16> to vector<32x56xbf16>
    %492 = tpu.concatenate %490, %491 in 1 : vector<32x8xbf16>, vector<32x56xbf16> -> vector<32x64xbf16>
    %493 = arith.select %489, %492, %485 : vector<32x64xi1>, vector<32x64xbf16>
    %c4_260 = arith.constant 4 : index
    %c0_261 = arith.constant 0 : index
    %c0_262 = arith.constant 0 : index
    %494 = vector.load %arg10[%c4_260, %c0_261, %c0_262] : memref<6x32x64xbf16, #tpu.memory_space<vmem>>, vector<1x32x64xbf16>
    %495 = vector.shape_cast %494 : vector<1x32x64xbf16> to vector<32x64xbf16>
    %cst_263 = arith.constant 5.000000e-01 : bf16
    %496 = vector.broadcast %cst_263 : bf16 to vector<32x64xbf16>
    %497 = arith.cmpf ogt, %495, %496 : vector<32x64xbf16>
    %498 = vector.extract_strided_slice %493 {offsets = [0, 48], sizes = [32, 16], strides = [1, 1]} : vector<32x64xbf16> to vector<32x16xbf16>
    %499 = vector.extract_strided_slice %493 {offsets = [0, 0], sizes = [32, 48], strides = [1, 1]} : vector<32x64xbf16> to vector<32x48xbf16>
    %500 = tpu.concatenate %498, %499 in 1 : vector<32x16xbf16>, vector<32x48xbf16> -> vector<32x64xbf16>
    %501 = arith.select %497, %500, %493 : vector<32x64xi1>, vector<32x64xbf16>
    %c5_264 = arith.constant 5 : index
    %c0_265 = arith.constant 0 : index
    %c0_266 = arith.constant 0 : index
    %502 = vector.load %arg10[%c5_264, %c0_265, %c0_266] : memref<6x32x64xbf16, #tpu.memory_space<vmem>>, vector<1x32x64xbf16>
    %503 = vector.shape_cast %502 : vector<1x32x64xbf16> to vector<32x64xbf16>
    %cst_267 = arith.constant 5.000000e-01 : bf16
    %504 = vector.broadcast %cst_267 : bf16 to vector<32x64xbf16>
    %505 = arith.cmpf ogt, %503, %504 : vector<32x64xbf16>
    %506 = vector.extract_strided_slice %501 {offsets = [0, 32], sizes = [32, 32], strides = [1, 1]} : vector<32x64xbf16> to vector<32x32xbf16>
    %507 = vector.extract_strided_slice %501 {offsets = [0, 0], sizes = [32, 32], strides = [1, 1]} : vector<32x64xbf16> to vector<32x32xbf16>
    %508 = tpu.concatenate %506, %507 in 1 : vector<32x32xbf16>, vector<32x32xbf16> -> vector<32x64xbf16>
    %509 = arith.select %505, %508, %501 : vector<32x64xi1>, vector<32x64xbf16>
    %c0_268 = arith.constant 0 : index
    %c0_269 = arith.constant 0 : index
    %c0_270 = arith.constant 0 : index
    %510 = vector.load %arg11[%c0_268, %c0_269, %c0_270] : memref<4x32x16xbf16, #tpu.memory_space<vmem>>, vector<1x32x16xbf16>
    %511 = vector.shape_cast %510 : vector<1x32x16xbf16> to vector<32x16xbf16>
    %cst_271 = arith.constant 5.000000e-01 : bf16
    %512 = vector.broadcast %cst_271 : bf16 to vector<32x16xbf16>
    %513 = arith.cmpf ogt, %511, %512 : vector<32x16xbf16>
    %514 = vector.extract_strided_slice %457 {offsets = [0, 15], sizes = [32, 1], strides = [1, 1]} : vector<32x16xbf16> to vector<32x1xbf16>
    %515 = vector.extract_strided_slice %457 {offsets = [0, 0], sizes = [32, 15], strides = [1, 1]} : vector<32x16xbf16> to vector<32x15xbf16>
    %516 = tpu.concatenate %514, %515 in 1 : vector<32x1xbf16>, vector<32x15xbf16> -> vector<32x16xbf16>
    %517 = arith.select %513, %516, %457 : vector<32x16xi1>, vector<32x16xbf16>
    %c1_272 = arith.constant 1 : index
    %c0_273 = arith.constant 0 : index
    %c0_274 = arith.constant 0 : index
    %518 = vector.load %arg11[%c1_272, %c0_273, %c0_274] : memref<4x32x16xbf16, #tpu.memory_space<vmem>>, vector<1x32x16xbf16>
    %519 = vector.shape_cast %518 : vector<1x32x16xbf16> to vector<32x16xbf16>
    %cst_275 = arith.constant 5.000000e-01 : bf16
    %520 = vector.broadcast %cst_275 : bf16 to vector<32x16xbf16>
    %521 = arith.cmpf ogt, %519, %520 : vector<32x16xbf16>
    %522 = vector.extract_strided_slice %517 {offsets = [0, 14], sizes = [32, 2], strides = [1, 1]} : vector<32x16xbf16> to vector<32x2xbf16>
    %523 = vector.extract_strided_slice %517 {offsets = [0, 0], sizes = [32, 14], strides = [1, 1]} : vector<32x16xbf16> to vector<32x14xbf16>
    %524 = tpu.concatenate %522, %523 in 1 : vector<32x2xbf16>, vector<32x14xbf16> -> vector<32x16xbf16>
    %525 = arith.select %521, %524, %517 : vector<32x16xi1>, vector<32x16xbf16>
    %c2_276 = arith.constant 2 : index
    %c0_277 = arith.constant 0 : index
    %c0_278 = arith.constant 0 : index
    %526 = vector.load %arg11[%c2_276, %c0_277, %c0_278] : memref<4x32x16xbf16, #tpu.memory_space<vmem>>, vector<1x32x16xbf16>
    %527 = vector.shape_cast %526 : vector<1x32x16xbf16> to vector<32x16xbf16>
    %cst_279 = arith.constant 5.000000e-01 : bf16
    %528 = vector.broadcast %cst_279 : bf16 to vector<32x16xbf16>
    %529 = arith.cmpf ogt, %527, %528 : vector<32x16xbf16>
    %530 = vector.extract_strided_slice %525 {offsets = [0, 12], sizes = [32, 4], strides = [1, 1]} : vector<32x16xbf16> to vector<32x4xbf16>
    %531 = vector.extract_strided_slice %525 {offsets = [0, 0], sizes = [32, 12], strides = [1, 1]} : vector<32x16xbf16> to vector<32x12xbf16>
    %532 = tpu.concatenate %530, %531 in 1 : vector<32x4xbf16>, vector<32x12xbf16> -> vector<32x16xbf16>
    %533 = arith.select %529, %532, %525 : vector<32x16xi1>, vector<32x16xbf16>
    %c3_280 = arith.constant 3 : index
    %c0_281 = arith.constant 0 : index
    %c0_282 = arith.constant 0 : index
    %534 = vector.load %arg11[%c3_280, %c0_281, %c0_282] : memref<4x32x16xbf16, #tpu.memory_space<vmem>>, vector<1x32x16xbf16>
    %535 = vector.shape_cast %534 : vector<1x32x16xbf16> to vector<32x16xbf16>
    %cst_283 = arith.constant 5.000000e-01 : bf16
    %536 = vector.broadcast %cst_283 : bf16 to vector<32x16xbf16>
    %537 = arith.cmpf ogt, %535, %536 : vector<32x16xbf16>
    %538 = vector.extract_strided_slice %533 {offsets = [0, 8], sizes = [32, 8], strides = [1, 1]} : vector<32x16xbf16> to vector<32x8xbf16>
    %539 = vector.extract_strided_slice %533 {offsets = [0, 0], sizes = [32, 8], strides = [1, 1]} : vector<32x16xbf16> to vector<32x8xbf16>
    %540 = tpu.concatenate %538, %539 in 1 : vector<32x8xbf16>, vector<32x8xbf16> -> vector<32x16xbf16>
    %541 = arith.select %537, %540, %533 : vector<32x16xi1>, vector<32x16xbf16>
    %c0_284 = arith.constant 0 : index
    %c0_285 = arith.constant 0 : index
    %c0_286 = arith.constant 0 : index
    %542 = vector.load %arg12[%c0_284, %c0_285, %c0_286] : memref<2x32x4xbf16, #tpu.memory_space<vmem>>, vector<1x32x4xbf16>
    %543 = vector.shape_cast %542 : vector<1x32x4xbf16> to vector<32x4xbf16>
    %cst_287 = arith.constant 5.000000e-01 : bf16
    %544 = vector.broadcast %cst_287 : bf16 to vector<32x4xbf16>
    %545 = arith.cmpf ogt, %543, %544 : vector<32x4xbf16>
    %546 = vector.extract_strided_slice %461 {offsets = [0, 3], sizes = [32, 1], strides = [1, 1]} : vector<32x4xbf16> to vector<32x1xbf16>
    %547 = vector.extract_strided_slice %461 {offsets = [0, 0], sizes = [32, 3], strides = [1, 1]} : vector<32x4xbf16> to vector<32x3xbf16>
    %548 = tpu.concatenate %546, %547 in 1 : vector<32x1xbf16>, vector<32x3xbf16> -> vector<32x4xbf16>
    %549 = arith.select %545, %548, %461 : vector<32x4xi1>, vector<32x4xbf16>
    %c1_288 = arith.constant 1 : index
    %c0_289 = arith.constant 0 : index
    %c0_290 = arith.constant 0 : index
    %550 = vector.load %arg12[%c1_288, %c0_289, %c0_290] : memref<2x32x4xbf16, #tpu.memory_space<vmem>>, vector<1x32x4xbf16>
    %551 = vector.shape_cast %550 : vector<1x32x4xbf16> to vector<32x4xbf16>
    %cst_291 = arith.constant 5.000000e-01 : bf16
    %552 = vector.broadcast %cst_291 : bf16 to vector<32x4xbf16>
    %553 = arith.cmpf ogt, %551, %552 : vector<32x4xbf16>
    %554 = vector.extract_strided_slice %549 {offsets = [0, 2], sizes = [32, 2], strides = [1, 1]} : vector<32x4xbf16> to vector<32x2xbf16>
    %555 = vector.extract_strided_slice %549 {offsets = [0, 0], sizes = [32, 2], strides = [1, 1]} : vector<32x4xbf16> to vector<32x2xbf16>
    %556 = tpu.concatenate %554, %555 in 1 : vector<32x2xbf16>, vector<32x2xbf16> -> vector<32x4xbf16>
    %557 = arith.select %553, %556, %549 : vector<32x4xi1>, vector<32x4xbf16>
    %cst_292 = arith.constant dense<0.000000e+00> : vector<32x128xf32>
    %558 = tpu.matmul %509, %12, %cst_292 {dimension_numbers = #tpu.dot_dimension_numbers<[1], [0], [0], [1], [0, 0, 1, 1], [], []>} : vector<32x64xbf16>, vector<64x128xbf16>, vector<32x128xf32> -> vector<32x128xf32>
    %559 = arith.addf %449, %558 : vector<32x128xf32>
    %cst_293 = arith.constant dense<0.000000e+00> : vector<32x128xf32>
    %560 = tpu.matmul %541, %13, %cst_293 {dimension_numbers = #tpu.dot_dimension_numbers<[1], [0], [0], [1], [0, 0, 1, 1], [], []>} : vector<32x16xbf16>, vector<16x128xbf16>, vector<32x128xf32> -> vector<32x128xf32>
    %561 = arith.addf %559, %560 : vector<32x128xf32>
    %cst_294 = arith.constant dense<0.000000e+00> : vector<32x128xf32>
    %562 = tpu.matmul %557, %14, %cst_294 {dimension_numbers = #tpu.dot_dimension_numbers<[1], [0], [0], [1], [0, 0, 1, 1], [], []>} : vector<32x4xbf16>, vector<4x128xbf16>, vector<32x128xf32> -> vector<32x128xf32>
    %563 = arith.addf %561, %562 : vector<32x128xf32>
    %564 = vector.broadcast %16 : vector<1x128xf32> to vector<32x128xf32>
    %565 = arith.addf %563, %564 : vector<32x128xf32>
    %cst_295 = arith.constant dense<0xFF800000> : vector<32xf32>
    %566 = vector.multi_reduction <maximumf>, %565, %cst_295 [1] : vector<32x128xf32> to vector<32xf32>
    %567 = vector.shape_cast %566 : vector<32xf32> to vector<32x1xf32>
    %568 = vector.broadcast %567 : vector<32x1xf32> to vector<32x128xf32>
    %569 = arith.subf %565, %568 : vector<32x128xf32>
    %570 = math.exp %569 : vector<32x128xf32>
    %cst_296 = arith.constant dense<0.000000e+00> : vector<32xf32>
    %571 = vector.multi_reduction <add>, %570, %cst_296 [1] : vector<32x128xf32> to vector<32xf32>
    %572 = vector.shape_cast %571 : vector<32xf32> to vector<32x1xf32>
    %573 = tpu.reciprocal %572 {approx = true} : vector<32x1xf32> -> vector<32x1xf32>
    %574 = vector.broadcast %573 : vector<32x1xf32> to vector<32x128xf32>
    %575 = arith.mulf %570, %574 : vector<32x128xf32>
    %576 = arith.truncf %575 : vector<32x128xf32> to vector<32x128xbf16>
    %c0_297 = arith.constant 0 : index
    %c3_298 = arith.constant 3 : index
    %c0_299 = arith.constant 0 : index
    %c0_300 = arith.constant 0 : index
    %577 = vector.load %arg15[%c0_297, %c3_298, %c0_299, %c0_300] : memref<1x4x32x128xbf16, #tpu.memory_space<vmem>>, vector<1x1x32x128xbf16>
    %578 = vector.shape_cast %577 : vector<1x1x32x128xbf16> to vector<32x128xbf16>
    %579 = vector.shape_cast %576 : vector<32x128xbf16> to vector<1x1x32x128xbf16>
    tpu.vector_store %arg15[%c0_297, %c3_298, %c0_299, %c0_300], %579 {strides = array<i32>} : memref<1x4x32x128xbf16, #tpu.memory_space<vmem>>, vector<1x1x32x128xbf16>,
    %580 = arith.truncf %575 : vector<32x128xf32> to vector<32x128xbf16>
    %cst_301 = arith.constant dense<0.000000e+00> : vector<32x8xf32>
    %581 = tpu.matmul %580, %448, %cst_301 {dimension_numbers = #tpu.dot_dimension_numbers<[1], [0], [0], [1], [0, 0, 1, 1], [], []>} : vector<32x128xbf16>, vector<128x8xbf16>, vector<32x8xf32> -> vector<32x8xf32>
    %c0_302 = arith.constant 0 : index
    %c0_303 = arith.constant 0 : index
    %c24 = arith.constant 24 : index
    %582 = vector.load %arg14[%c0_302, %c0_303, %c24] : memref<1x32x32xf32, #tpu.memory_space<vmem>>, vector<1x32x8xf32>
    %583 = vector.shape_cast %582 : vector<1x32x8xf32> to vector<32x8xf32>
    %584 = vector.shape_cast %581 : vector<32x8xf32> to vector<1x32x8xf32>
    tpu.vector_store %arg14[%c0_302, %c0_303, %c24], %584 {strides = array<i32>} : memref<1x32x32xf32, #tpu.memory_space<vmem>>, vector<1x32x8xf32>,
    return
  }
  func.func @transform_0(%arg0: i32) -> (i32, i32, i32) {
    %c0_i32 = arith.constant 0 : i32
    %c0_i32_0 = arith.constant 0 : i32
    %c0_i32_1 = arith.constant 0 : i32
    return %arg0, %c0_i32, %c0_i32_0 : i32, i32, i32
  }
  func.func @transform_1(%arg0: i32) -> (i32, i32) {
    %c0_i32 = arith.constant 0 : i32
    %c0_i32_0 = arith.constant 0 : i32
    %c0_i32_1 = arith.constant 0 : i32
    return %c0_i32, %c0_i32_0 : i32, i32
  }
  func.func @transform_2(%arg0: i32) -> (i32, i32) {
    %c0_i32 = arith.constant 0 : i32
    %c0_i32_0 = arith.constant 0 : i32
    %c0_i32_1 = arith.constant 0 : i32
    return %c0_i32, %c0_i32_0 : i32, i32
  }
  func.func @transform_3(%arg0: i32) -> (i32, i32, i32) {
    %c0_i32 = arith.constant 0 : i32
    %c0_i32_0 = arith.constant 0 : i32
    %c0_i32_1 = arith.constant 0 : i32
    %c0_i32_2 = arith.constant 0 : i32
    return %c0_i32, %c0_i32_0, %c0_i32_1 : i32, i32, i32
  }
  func.func @transform_4(%arg0: i32) -> (i32, i32, i32) {
    %c0_i32 = arith.constant 0 : i32
    %c0_i32_0 = arith.constant 0 : i32
    %c0_i32_1 = arith.constant 0 : i32
    %c0_i32_2 = arith.constant 0 : i32
    return %c0_i32, %c0_i32_0, %c0_i32_1 : i32, i32, i32
  }
  func.func @transform_5(%arg0: i32) -> (i32, i32, i32) {
    %c0_i32 = arith.constant 0 : i32
    %c0_i32_0 = arith.constant 0 : i32
    %c0_i32_1 = arith.constant 0 : i32
    %c0_i32_2 = arith.constant 0 : i32
    return %c0_i32, %c0_i32_0, %c0_i32_1 : i32, i32, i32
  }
  func.func @transform_6(%arg0: i32) -> (i32, i32) {
    %c0_i32 = arith.constant 0 : i32
    %c0_i32_0 = arith.constant 0 : i32
    %c0_i32_1 = arith.constant 0 : i32
    return %c0_i32, %c0_i32_0 : i32, i32
  }
  func.func @transform_7(%arg0: i32) -> (i32, i32) {
    %c0_i32 = arith.constant 0 : i32
    %c0_i32_0 = arith.constant 0 : i32
    %c0_i32_1 = arith.constant 0 : i32
    return %c0_i32, %c0_i32_0 : i32, i32
  }
  func.func @transform_8(%arg0: i32) -> (i32, i32) {
    %c0_i32 = arith.constant 0 : i32
    %c0_i32_0 = arith.constant 0 : i32
    %c0_i32_1 = arith.constant 0 : i32
    return %c0_i32, %c0_i32_0 : i32, i32
  }
  func.func @transform_9(%arg0: i32) -> (i32, i32, i32) {
    %c0_i32 = arith.constant 0 : i32
    %c0_i32_0 = arith.constant 0 : i32
    %c0_i32_1 = arith.constant 0 : i32
    %c0_i32_2 = arith.constant 0 : i32
    return %c0_i32, %c0_i32_0, %c0_i32_1 : i32, i32, i32
  }
  func.func @transform_10(%arg0: i32) -> (i32, i32, i32) {
    %c0_i32 = arith.constant 0 : i32
    %c0_i32_0 = arith.constant 0 : i32
    %c0_i32_1 = arith.constant 0 : i32
    %c0_i32_2 = arith.constant 0 : i32
    return %c0_i32, %c0_i32_0, %c0_i32_1 : i32, i32, i32
  }
  func.func @transform_11(%arg0: i32) -> (i32, i32, i32) {
    %c0_i32 = arith.constant 0 : i32
    %c0_i32_0 = arith.constant 0 : i32
    %c0_i32_1 = arith.constant 0 : i32
    %c0_i32_2 = arith.constant 0 : i32
    return %c0_i32, %c0_i32_0, %c0_i32_1 : i32, i32, i32
  }
  func.func @transform_12(%arg0: i32) -> (i32, i32, i32) {
    %c0_i32 = arith.constant 0 : i32
    %c0_i32_0 = arith.constant 0 : i32
    %c0_i32_1 = arith.constant 0 : i32
    %c0_i32_2 = arith.constant 0 : i32
    return %c0_i32, %c0_i32_0, %c0_i32_1 : i32, i32, i32
  }
  func.func @transform_13(%arg0: i32) -> (i32, i32, i32) {
    %c0_i32 = arith.constant 0 : i32
    %c0_i32_0 = arith.constant 0 : i32
    %c0_i32_1 = arith.constant 0 : i32
    return %arg0, %c0_i32, %c0_i32_0 : i32, i32, i32
  }
  func.func @transform_14(%arg0: i32) -> (i32, i32, i32, i32) {
    %c0_i32 = arith.constant 0 : i32
    %c0_i32_0 = arith.constant 0 : i32
    %c0_i32_1 = arith.constant 0 : i32
    %c0_i32_2 = arith.constant 0 : i32
    return %arg0, %c0_i32, %c0_i32_0, %c0_i32_1 : i32, i32, i32, i32
  }
}

</mosaic_0001>

<llo_original>
// kernel: tpu_custom_call.1
$region0: #{tpu_custom_call.1}
  #allocation0 [shape = 'u32[]', space=smem, size = 0x4, offset = 0x4, fixed_abs, tag = 'smem constant byte address 0x4 - core index']
  #allocation1 [shape = 'u32[144,128]{1,0:T(1,128)}', space=vmem, size = 0x12000, scoped, tag = 'internal scratch']
  %s0 = inlined_call_operand.hbm [shape: f32[8,128], index: 0, kind: input, shape index: {}]
  %s1 = inlined_call_operand.hbm [shape: f32[16,128], index: 1, kind: output, shape index: {}]
  %s2 = sld [smem:[#allocation0]]
  $region41: #{tpu_custom_call.1} parent=0
    _
  %s4 = ssub.s32 1, %s2
  %s5 = scalar_select 0, %s4, %s2
  $region1: #{tpu_custom_call.1} parent=0
    #allocation2 [shape = 'u8[4096]{0}', space=vmem, size = 0x1000, scoped, tag = 'input window, operand 0, single buffered']
    #allocation3 [shape = 's32[2]{0}', space=sflag, size = 0x8, scoped, tag = 'scoped memory for tpu_custom_call.1']
    #allocation4 [shape = 's32[2]{0}', space=sflag, size = 0x8, scoped, tag = 'scoped memory for tpu_custom_call.1']
    #allocation5 [shape = 'u8[8192]{0}', space=vmem, size = 0x2000, scoped, tag = 'output window, operand 0']
    %6 = vsyncpa [#allocation3], 0
    %7 = vsyncpa [#allocation4], 0
    %s8 = scalar_lea.sflag [#allocation4], 1
    %9 = vsyncpa %s8, 0
    loop: start=0, step=1, limit=4
    $region2: #{tpu_custom_call.1} parent=1 // loop_pre_header
      _
    $region3: #{tpu_custom_call.1} parent=1 // loop_header
      %s11 = sphi 0, %s15
      %p12 = scmp.ge.s32.totalorder %s11, 4
      %s19 = sphi 0, %s19
      %s21 = sphi 0, %s19
      %s22 = sphi 0, %s21
      %s36 = sphi 0, %s22
      %s42 = sphi 0, %s44
      %s45 = sphi 0, %s42
      %s46 = sphi 0, %s45
      %s62 = sphi 0, %s46
    $region4: #{tpu_custom_call.1} parent=1 // loop_header_branch
      %14 = sbr.rel (%p12) target = $region8
    $region5: #{tpu_custom_call.1} parent=1 // loop_body
      %s16 = ssub.s32 %s11, 1
      %s17 = ssub.s32 %s11, 2
      %s18 = sadd.s32 %s11, 1
      %s20 = sadd.s32 %s19, 1
      %p23 = scmp.eq.s32.totalorder %s11, 1
      %p24 = scmp.ne.s32.totalorder %s19, %s21
      %p25 = scmp.eq.s32.totalorder %s11, 0
      %p26 = por %p24, %p25
      %p27 = scmp.ne.s32.totalorder %s19, %s21
      %p28 = scmp.eq.s32.totalorder %s16, 1
      %p29 = por %p27, %p28
      %p30 = scmp.ne.s32.totalorder %s21, %s22
      %p31 = scmp.eq.s32.totalorder %s16, 0
      %p32 = por %p30, %p31
      %p33 = scmp.ne.s32.totalorder %s21, %s22
      %p34 = scmp.eq.s32.totalorder %s17, 1
      %p35 = por %p33, %p34
      %p37 = scmp.ne.s32.totalorder %s22, %s36
      %p38 = scmp.eq.s32.totalorder %s17, 0
      %p39 = por %p37, %p38
      %s40 = ssub.s32 %s11, %s18
      %p41 = scmp.eq.s32.totalorder %s40, 0
      %s43 = sadd.s32 %s42, 1
      %s44 = scalar_select %p41, %s42, %s43
      %p47 = pneg %p41
      %p48 = scmp.eq.s32.totalorder %s11, 1
      %p49 = por %p47, %p48
      %p50 = scmp.ne.s32.totalorder %s42, %s45
      %p51 = scmp.eq.s32.totalorder %s11, 0
      %p52 = por %p50, %p51
      %p53 = scmp.ne.s32.totalorder %s42, %s45
      %p54 = scmp.eq.s32.totalorder %s16, 1
      %p55 = por %p53, %p54
      %p56 = scmp.ne.s32.totalorder %s45, %s46
      %p57 = scmp.eq.s32.totalorder %s16, 0
      %p58 = por %p56, %p57
      %p59 = scmp.ne.s32.totalorder %s45, %s46
      %p60 = scmp.eq.s32.totalorder %s17, 1
      %p61 = por %p59, %p60
      %p63 = scmp.ne.s32.totalorder %s46, %s62
      %p64 = scmp.eq.s32.totalorder %s17, 0
      %p65 = por %p63, %p64
      %p66 = scmp.le.s32.totalorder 1, %s11
      %p67 = scmp.lt.s32.totalorder %s11, 3
      %p68 = pnand %p66, %p67
      %p69 = pneg %p68
      // Predicated region
      $region9: #{tpu_custom_call.1} parent=5 // pred_check
        _
      $region10: #{tpu_custom_call.1} parent=5 // pred_check_branch
        %71 = sbr.rel (%p68) target = $region12
      $region11: #{tpu_custom_call.1} parent=5 // pred_region
        %s72 = ssub.s32 %s11, 1
        // Predicated region
        $region13: #{tpu_custom_call.1} parent=11 // pred_check
          %p73 = pneg %p32
        $region14: #{tpu_custom_call.1} parent=11 // pred_check_branch
          %75 = sbr.rel (%p73) target = $region16
        $region15: #{tpu_custom_call.1} parent=11 // pred_region
          %s77 = ssub.s32 128, 128
          %78 = vsyncadd [#allocation3], %s77
          %s80 = sshll.u32 [#allocation2], 4
          %s81 = int_to_ptr.vmem [resolvable:$true] %s80
          %83 = dma.hbm_to_vmem [thread:$0]  %s0, 128, %s81, [#allocation3]
        $region16: #{tpu_custom_call.1} parent=11 // pred_fallthru
          _
      $region12: #{tpu_custom_call.1} parent=5 // pred_fallthru
        _
      %p84 = scmp.lt.s32.totalorder %s11, 2
      // Predicated region
      $region17: #{tpu_custom_call.1} parent=5 // pred_check
        %p85 = pneg %p84
      $region18: #{tpu_custom_call.1} parent=5 // pred_check_branch
        %87 = sbr.rel (%p85) target = $region20
      $region19: #{tpu_custom_call.1} parent=5 // pred_region
        _
      $region20: #{tpu_custom_call.1} parent=5 // pred_fallthru
        _
      %p88 = scmp.le.s32.totalorder 1, %s11
      %p89 = scmp.lt.s32.totalorder %s11, 3
      %p90 = pnand %p88, %p89
      %p91 = pneg %p90
      // Predicated region
      $region21: #{tpu_custom_call.1} parent=5 // pred_check
        _
      $region22: #{tpu_custom_call.1} parent=5 // pred_check_branch
        %93 = sbr.rel (%p90) target = $region24
      $region23: #{tpu_custom_call.1} parent=5 // pred_region
        %s94 = ssub.s32 %s11, 1
        // Predicated region
        $region25: #{tpu_custom_call.1} parent=23 // pred_check
          %p95 = pneg %p32
        $region26: #{tpu_custom_call.1} parent=23 // pred_check_branch
          %97 = sbr.rel (%p95) target = $region28
        $region27: #{tpu_custom_call.1} parent=23 // pred_region
          %98 = dma.done [#allocation3], 128
        $region28: #{tpu_custom_call.1} parent=23 // pred_fallthru
          _
        %p99 = pneg %p32
        %p100 = pneg %p29
        %p101 = pneg %p58
        %p102 = pneg %p55
        %s103 = sand.u32 %s45, 1
        %s104 = scalar_lea.sflag [#allocation4], %s103
        %s105 = sand.u32 %s45, 1
        %s106 = smul.addr %s105, 8
        %s107 = scalar_lea.vmem [#allocation5], %s106
        %v108 = vld [vmem:[#allocation2] sm:$0xff]
        %v109 = vadd.f32 %v108, 1.0
        %110 = vst [vmem:[%s107] sm:$0xff] %v109
        %s111 = sand.u32 %s45, 1
        %s112 = scalar_lea.sflag [#allocation4], %s111
        %s113 = sand.u32 %s45, 1
        %s114 = smul.addr %s113, 8
        %s115 = scalar_lea.vmem [#allocation5], %s114
        // Predicated region
        $region29: #{tpu_custom_call.1} parent=23 // pred_check
          %p116 = pneg %p55
        $region30: #{tpu_custom_call.1} parent=23 // pred_check_branch
          %118 = sbr.rel (%p116) target = $region32
        $region31: #{tpu_custom_call.1} parent=23 // pred_region
          %s120 = ssub.s32 128, 128
          %121 = vsyncadd %s112, %s120
          %s122 = smul.addr %s16, 128
          %s123 = scalar_lea.hbm %s1, %s122
          %s125 = sshll.u32 %s115, 4
          %s126 = int_to_ptr.vmem [resolvable:$true] %s125
          %128 = dma.vmem_to_hbm [thread:$0]  %s126, 128, %s123, %s112
        $region32: #{tpu_custom_call.1} parent=23 // pred_fallthru
          _
      $region24: #{tpu_custom_call.1} parent=5 // pred_fallthru
        _
      %p129 = scmp.le.s32.totalorder 2, %s11
      // Predicated region
      $region33: #{tpu_custom_call.1} parent=5 // pred_check
        %p130 = pneg %p129
      $region34: #{tpu_custom_call.1} parent=5 // pred_check_branch
        %132 = sbr.rel (%p130) target = $region36
      $region35: #{tpu_custom_call.1} parent=5 // pred_region
        %s133 = ssub.s32 %s11, 2
        // Predicated region
        $region37: #{tpu_custom_call.1} parent=35 // pred_check
          %p134 = pneg %p61
        $region38: #{tpu_custom_call.1} parent=35 // pred_check_branch
          %136 = sbr.rel (%p134) target = $region40
        $region39: #{tpu_custom_call.1} parent=35 // pred_region
          %s137 = sand.u32 %s46, 1
          %s138 = scalar_lea.sflag [#allocation4], %s137
          %s139 = sand.u32 %s46, 1
          %s140 = smul.addr %s139, 8
          %s141 = scalar_lea.vmem [#allocation5], %s140
          %142 = dma.done %s138, 128
        $region40: #{tpu_custom_call.1} parent=35 // pred_fallthru
          _
      $region36: #{tpu_custom_call.1} parent=5 // pred_fallthru
        _
    $region6: #{tpu_custom_call.1} parent=1 // loop_footer
      %s15 = sadd.s32 1, %s11
    $region7: #{tpu_custom_call.1} parent=1 // loop_footer_branch
      %10 = sbr.rel target = $region3
    $region8: #{tpu_custom_call.1} parent=1 // loop_exit
      _
    %143 = vsyncpa [#allocation3], 1
    %s144 = scalar_lea.sflag [#allocation3], 1
    %145 = vsyncpa %s144, 1
    %146 = vsyncpa [#allocation4], 1
    %s147 = scalar_lea.sflag [#allocation4], 1
    %148 = vsyncpa %s147, 1

// kernel: tpu_custom_call.1
$region0: #{tpu_custom_call.1}
  #allocation0 [shape = 'u32[]', space=smem, size = 0x4, offset = 0x4, fixed_abs, tag = 'smem constant byte address 0x4 - core index']
  #allocation1 [shape = 'u32[144,128]{1,0:T(1,128)}', space=vmem, size = 0x12000, scoped, tag = 'internal scratch']
  %s0 = inlined_call_operand.vmem [shape: bf16[2,128,32], index: 0, kind: input, shape index: {}]
  %s1 = inlined_call_operand.vmem [shape: bf16[32,96], index: 1, kind: input, shape index: {}]
  %s2 = inlined_call_operand.vmem [shape: f32[1,96], index: 2, kind: input, shape index: {}]
  %s3 = inlined_call_operand.vmem [shape: bf16[4,8,64], index: 3, kind: input, shape index: {}]
  %s4 = inlined_call_operand.vmem [shape: bf16[4,8,16], index: 4, kind: input, shape index: {}]
  %s5 = inlined_call_operand.vmem [shape: bf16[4,8,4], index: 5, kind: input, shape index: {}]
  %s6 = inlined_call_operand.vmem [shape: bf16[64,128], index: 6, kind: input, shape index: {}]
  %s7 = inlined_call_operand.vmem [shape: bf16[16,128], index: 7, kind: input, shape index: {}]
  %s8 = inlined_call_operand.vmem [shape: bf16[4,128], index: 8, kind: input, shape index: {}]
  %s9 = inlined_call_operand.vmem [shape: bf16[6,32,64], index: 9, kind: input, shape index: {}]
  %s10 = inlined_call_operand.vmem [shape: bf16[4,32,16], index: 10, kind: input, shape index: {}]
  %s11 = inlined_call_operand.vmem [shape: bf16[2,32,4], index: 11, kind: input, shape index: {}]
  %s12 = inlined_call_operand.vmem [shape: f32[1,1,128], index: 12, kind: input, shape index: {}]
  %s13 = inlined_call_operand.hbm [shape: f32[2,32,32], index: 13, kind: output, shape index: {0}]
  %s14 = inlined_call_operand.hbm [shape: bf16[2,4,32,128], index: 14, kind: output, shape index: {1}]
  %15 = xla_tuple %s13, %s14
  %s16 = sld [smem:[#allocation0]]
  $region93: #{tpu_custom_call.1} parent=0
    _
  %s18 = ssub.s32 1, %s16
  %s19 = scalar_select 0, %s18, %s16
  $region1: #{tpu_custom_call.1} parent=0
    #allocation2 [shape = 'u8[32768]{0}', space=vmem, size = 0x8000, scoped, tag = 'output window, operand 0']
    #allocation3 [shape = 's32[2]{0}', space=sflag, size = 0x8, scoped, tag = 'scoped memory for tpu_custom_call.1']
    #allocation4 [shape = 'u8[65536]{0}', space=vmem, size = 0x10000, scoped, tag = 'output window, operand 1']
    #allocation5 [shape = 's32[2]{0}', space=sflag, size = 0x8, scoped, tag = 'scoped memory for tpu_custom_call.1']
    %20 = vsyncpa [#allocation3], 0
    %s21 = scalar_lea.sflag [#allocation3], 1
    %22 = vsyncpa %s21, 0
    %23 = vsyncpa [#allocation5], 0
    %s24 = scalar_lea.sflag [#allocation5], 1
    %25 = vsyncpa %s24, 0
    loop: start=0, step=1, limit=4
    $region2: #{tpu_custom_call.1} parent=1 // loop_pre_header
      _
    $region3: #{tpu_custom_call.1} parent=1 // loop_header
      %s27 = sphi 0, %s31
      %p28 = scmp.ge.s32.totalorder %s27, 4
      %s37 = sphi 0, %s39
      %s40 = sphi 0, %s37
      %s41 = sphi 0, %s40
      %s57 = sphi 0, %s41
      %s61 = sphi 0, %s61
      %s63 = sphi 0, %s61
      %s64 = sphi 0, %s63
      %s78 = sphi 0, %s64
      %s82 = sphi 0, %s82
      %s84 = sphi 0, %s82
      %s85 = sphi 0, %s84
      %s99 = sphi 0, %s85
      %s103 = sphi 0, %s103
      %s105 = sphi 0, %s103
      %s106 = sphi 0, %s105
      %s120 = sphi 0, %s106
      %s124 = sphi 0, %s124
      %s126 = sphi 0, %s124
      %s127 = sphi 0, %s126
      %s141 = sphi 0, %s127
      %s145 = sphi 0, %s145
      %s147 = sphi 0, %s145
      %s148 = sphi 0, %s147
      %s162 = sphi 0, %s148
      %s166 = sphi 0, %s166
      %s168 = sphi 0, %s166
      %s169 = sphi 0, %s168
      %s183 = sphi 0, %s169
      %s187 = sphi 0, %s187
      %s189 = sphi 0, %s187
      %s190 = sphi 0, %s189
      %s204 = sphi 0, %s190
      %s208 = sphi 0, %s208
      %s210 = sphi 0, %s208
      %s211 = sphi 0, %s210
      %s225 = sphi 0, %s211
      %s229 = sphi 0, %s229
      %s231 = sphi 0, %s229
      %s232 = sphi 0, %s231
      %s246 = sphi 0, %s232
      %s250 = sphi 0, %s250
      %s252 = sphi 0, %s250
      %s253 = sphi 0, %s252
      %s267 = sphi 0, %s253
      %s271 = sphi 0, %s271
      %s273 = sphi 0, %s271
      %s274 = sphi 0, %s273
      %s288 = sphi 0, %s274
      %s292 = sphi 0, %s292
      %s294 = sphi 0, %s292
      %s295 = sphi 0, %s294
      %s309 = sphi 0, %s295
      %s315 = sphi 0, %s317
      %s318 = sphi 0, %s315
      %s319 = sphi 0, %s318
      %s335 = sphi 0, %s319
      %s341 = sphi 0, %s343
      %s344 = sphi 0, %s341
      %s345 = sphi 0, %s344
      %s361 = sphi 0, %s345
    $region4: #{tpu_custom_call.1} parent=1 // loop_header_branch
      %30 = sbr.rel (%p28) target = $region8
    $region5: #{tpu_custom_call.1} parent=1 // loop_body
      %s32 = ssub.s32 %s27, 1
      %s33 = ssub.s32 %s27, 2
      %s34 = sadd.s32 %s27, 1
      %s35 = ssub.s32 %s27, %s34
      %p36 = scmp.eq.s32.totalorder %s35, 0
      %s38 = sadd.s32 %s37, 1
      %s39 = scalar_select %p36, %s37, %s38
      %p42 = pneg %p36
      %p43 = scmp.eq.s32.totalorder %s27, 1
      %p44 = por %p42, %p43
      %p45 = scmp.ne.s32.totalorder %s37, %s40
      %p46 = scmp.eq.s32.totalorder %s27, 0
      %p47 = por %p45, %p46
      %p48 = scmp.ne.s32.totalorder %s37, %s40
      %p49 = scmp.eq.s32.totalorder %s32, 1
      %p50 = por %p48, %p49
      %p51 = scmp.ne.s32.totalorder %s40, %s41
      %p52 = scmp.eq.s32.totalorder %s32, 0
      %p53 = por %p51, %p52
      %p54 = scmp.ne.s32.totalorder %s40, %s41
      %p55 = scmp.eq.s32.totalorder %s33, 1
      %p56 = por %p54, %p55
      %p58 = scmp.ne.s32.totalorder %s41, %s57
      %p59 = scmp.eq.s32.totalorder %s33, 0
      %p60 = por %p58, %p59
      %s62 = sadd.s32 %s61, 1
      %p65 = scmp.eq.s32.totalorder %s27, 1
      %p66 = scmp.ne.s32.totalorder %s61, %s63
      %p67 = scmp.eq.s32.totalorder %s27, 0
      %p68 = por %p66, %p67
      %p69 = scmp.ne.s32.totalorder %s61, %s63
      %p70 = scmp.eq.s32.totalorder %s32, 1
      %p71 = por %p69, %p70
      %p72 = scmp.ne.s32.totalorder %s63, %s64
      %p73 = scmp.eq.s32.totalorder %s32, 0
      %p74 = por %p72, %p73
      %p75 = scmp.ne.s32.totalorder %s63, %s64
      %p76 = scmp.eq.s32.totalorder %s33, 1
      %p77 = por %p75, %p76
      %p79 = scmp.ne.s32.totalorder %s64, %s78
      %p80 = scmp.eq.s32.totalorder %s33, 0
      %p81 = por %p79, %p80
      %s83 = sadd.s32 %s82, 1
      %p86 = scmp.eq.s32.totalorder %s27, 1
      %p87 = scmp.ne.s32.totalorder %s82, %s84
      %p88 = scmp.eq.s32.totalorder %s27, 0
      %p89 = por %p87, %p88
      %p90 = scmp.ne.s32.totalorder %s82, %s84
      %p91 = scmp.eq.s32.totalorder %s32, 1
      %p92 = por %p90, %p91
      %p93 = scmp.ne.s32.totalorder %s84, %s85
      %p94 = scmp.eq.s32.totalorder %s32, 0
      %p95 = por %p93, %p94
      %p96 = scmp.ne.s32.totalorder %s84, %s85
      %p97 = scmp.eq.s32.totalorder %s33, 1
      %p98 = por %p96, %p97
      %p100 = scmp.ne.s32.totalorder %s85, %s99
      %p101 = scmp.eq.s32.totalorder %s33, 0
      %p102 = por %p100, %p101
      %s104 = sadd.s32 %s103, 1
      %p107 = scmp.eq.s32.totalorder %s27, 1
      %p108 = scmp.ne.s32.totalorder %s103, %s105
      %p109 = scmp.eq.s32.totalorder %s27, 0
      %p110 = por %p108, %p109
      %p111 = scmp.ne.s32.totalorder %s103, %s105
      %p112 = scmp.eq.s32.totalorder %s32, 1
      %p113 = por %p111, %p112
      %p114 = scmp.ne.s32.totalorder %s105, %s106
      %p115 = scmp.eq.s32.totalorder %s32, 0
      %p116 = por %p114, %p115
      %p117 = scmp.ne.s32.totalorder %s105, %s106
      %p118 = scmp.eq.s32.totalorder %s33, 1
      %p119 = por %p117, %p118
      %p121 = scmp.ne.s32.totalorder %s106, %s120
      %p122 = scmp.eq.s32.totalorder %s33, 0
      %p123 = por %p121, %p122
      %s125 = sadd.s32 %s124, 1
      %p128 = scmp.eq.s32.totalorder %s27, 1
      %p129 = scmp.ne.s32.totalorder %s124, %s126
      %p130 = scmp.eq.s32.totalorder %s27, 0
      %p131 = por %p129, %p130
      %p132 = scmp.ne.s32.totalorder %s124, %s126
      %p133 = scmp.eq.s32.totalorder %s32, 1
      %p134 = por %p132, %p133
      %p135 = scmp.ne.s32.totalorder %s126, %s127
      %p136 = scmp.eq.s32.totalorder %s32, 0
      %p137 = por %p135, %p136
      %p138 = scmp.ne.s32.totalorder %s126, %s127
      %p139 = scmp.eq.s32.totalorder %s33, 1
      %p140 = por %p138, %p139
      %p142 = scmp.ne.s32.totalorder %s127, %s141
      %p143 = scmp.eq.s32.totalorder %s33, 0
      %p144 = por %p142, %p143
      %s146 = sadd.s32 %s145, 1
      %p149 = scmp.eq.s32.totalorder %s27, 1
      %p150 = scmp.ne.s32.totalorder %s145, %s147
      %p151 = scmp.eq.s32.totalorder %s27, 0
      %p152 = por %p150, %p151
      %p153 = scmp.ne.s32.totalorder %s145, %s147
      %p154 = scmp.eq.s32.totalorder %s32, 1
      %p155 = por %p153, %p154
      %p156 = scmp.ne.s32.totalorder %s147, %s148
      %p157 = scmp.eq.s32.totalorder %s32, 0
      %p158 = por %p156, %p157
      %p159 = scmp.ne.s32.totalorder %s147, %s148
      %p160 = scmp.eq.s32.totalorder %s33, 1
      %p161 = por %p159, %p160
      %p163 = scmp.ne.s32.totalorder %s148, %s162
      %p164 = scmp.eq.s32.totalorder %s33, 0
      %p165 = por %p163, %p164
      %s167 = sadd.s32 %s166, 1
      %p170 = scmp.eq.s32.totalorder %s27, 1
      %p171 = scmp.ne.s32.totalorder %s166, %s168
      %p172 = scmp.eq.s32.totalorder %s27, 0
      %p173 = por %p171, %p172
      %p174 = scmp.ne.s32.totalorder %s166, %s168
      %p175 = scmp.eq.s32.totalorder %s32, 1
      %p176 = por %p174, %p175
      %p177 = scmp.ne.s32.totalorder %s168, %s169
      %p178 = scmp.eq.s32.totalorder %s32, 0
      %p179 = por %p177, %p178
      %p180 = scmp.ne.s32.totalorder %s168, %s169
      %p181 = scmp.eq.s32.totalorder %s33, 1
      %p182 = por %p180, %p181
      %p184 = scmp.ne.s32.totalorder %s169, %s183
      %p185 = scmp.eq.s32.totalorder %s33, 0
      %p186 = por %p184, %p185
      %s188 = sadd.s32 %s187, 1
      %p191 = scmp.eq.s32.totalorder %s27, 1
      %p192 = scmp.ne.s32.totalorder %s187, %s189
      %p193 = scmp.eq.s32.totalorder %s27, 0
      %p194 = por %p192, %p193
      %p195 = scmp.ne.s32.totalorder %s187, %s189
      %p196 = scmp.eq.s32.totalorder %s32, 1
      %p197 = por %p195, %p196
      %p198 = scmp.ne.s32.totalorder %s189, %s190
      %p199 = scmp.eq.s32.totalorder %s32, 0
      %p200 = por %p198, %p199
      %p201 = scmp.ne.s32.totalorder %s189, %s190
      %p202 = scmp.eq.s32.totalorder %s33, 1
      %p203 = por %p201, %p202
      %p205 = scmp.ne.s32.totalorder %s190, %s204
      %p206 = scmp.eq.s32.totalorder %s33, 0
      %p207 = por %p205, %p206
      %s209 = sadd.s32 %s208, 1
      %p212 = scmp.eq.s32.totalorder %s27, 1
      %p213 = scmp.ne.s32.totalorder %s208, %s210
      %p214 = scmp.eq.s32.totalorder %s27, 0
      %p215 = por %p213, %p214
      %p216 = scmp.ne.s32.totalorder %s208, %s210
      %p217 = scmp.eq.s32.totalorder %s32, 1
      %p218 = por %p216, %p217
      %p219 = scmp.ne.s32.totalorder %s210, %s211
      %p220 = scmp.eq.s32.totalorder %s32, 0
      %p221 = por %p219, %p220
      %p222 = scmp.ne.s32.totalorder %s210, %s211
      %p223 = scmp.eq.s32.totalorder %s33, 1
      %p224 = por %p222, %p223
      %p226 = scmp.ne.s32.totalorder %s211, %s225
      %p227 = scmp.eq.s32.totalorder %s33, 0
      %p228 = por %p226, %p227
      %s230 = sadd.s32 %s229, 1
      %p233 = scmp.eq.s32.totalorder %s27, 1
      %p234 = scmp.ne.s32.totalorder %s229, %s231
      %p235 = scmp.eq.s32.totalorder %s27, 0
      %p236 = por %p234, %p235
      %p237 = scmp.ne.s32.totalorder %s229, %s231
      %p238 = scmp.eq.s32.totalorder %s32, 1
      %p239 = por %p237, %p238
      %p240 = scmp.ne.s32.totalorder %s231, %s232
      %p241 = scmp.eq.s32.totalorder %s32, 0
      %p242 = por %p240, %p241
      %p243 = scmp.ne.s32.totalorder %s231, %s232
      %p244 = scmp.eq.s32.totalorder %s33, 1
      %p245 = por %p243, %p244
      %p247 = scmp.ne.s32.totalorder %s232, %s246
      %p248 = scmp.eq.s32.totalorder %s33, 0
      %p249 = por %p247, %p248
      %s251 = sadd.s32 %s250, 1
      %p254 = scmp.eq.s32.totalorder %s27, 1
      %p255 = scmp.ne.s32.totalorder %s250, %s252
      %p256 = scmp.eq.s32.totalorder %s27, 0
      %p257 = por %p255, %p256
      %p258 = scmp.ne.s32.totalorder %s250, %s252
      %p259 = scmp.eq.s32.totalorder %s32, 1
      %p260 = por %p258, %p259
      %p261 = scmp.ne.s32.totalorder %s252, %s253
      %p262 = scmp.eq.s32.totalorder %s32, 0
      %p263 = por %p261, %p262
      %p264 = scmp.ne.s32.totalorder %s252, %s253
      %p265 = scmp.eq.s32.totalorder %s33, 1
      %p266 = por %p264, %p265
      %p268 = scmp.ne.s32.totalorder %s253, %s267
      %p269 = scmp.eq.s32.totalorder %s33, 0
      %p270 = por %p268, %p269
      %s272 = sadd.s32 %s271, 1
      %p275 = scmp.eq.s32.totalorder %s27, 1
      %p276 = scmp.ne.s32.totalorder %s271, %s273
      %p277 = scmp.eq.s32.totalorder %s27, 0
      %p278 = por %p276, %p277
      %p279 = scmp.ne.s32.totalorder %s271, %s273
      %p280 = scmp.eq.s32.totalorder %s32, 1
      %p281 = por %p279, %p280
      %p282 = scmp.ne.s32.totalorder %s273, %s274
      %p283 = scmp.eq.s32.totalorder %s32, 0
      %p284 = por %p282, %p283
      %p285 = scmp.ne.s32.totalorder %s273, %s274
      %p286 = scmp.eq.s32.totalorder %s33, 1
      %p287 = por %p285, %p286
      %p289 = scmp.ne.s32.totalorder %s274, %s288
      %p290 = scmp.eq.s32.totalorder %s33, 0
      %p291 = por %p289, %p290
      %s293 = sadd.s32 %s292, 1
      %p296 = scmp.eq.s32.totalorder %s27, 1
      %p297 = scmp.ne.s32.totalorder %s292, %s294
      %p298 = scmp.eq.s32.totalorder %s27, 0
      %p299 = por %p297, %p298
      %p300 = scmp.ne.s32.totalorder %s292, %s294
      %p301 = scmp.eq.s32.totalorder %s32, 1
      %p302 = por %p300, %p301
      %p303 = scmp.ne.s32.totalorder %s294, %s295
      %p304 = scmp.eq.s32.totalorder %s32, 0
      %p305 = por %p303, %p304
      %p306 = scmp.ne.s32.totalorder %s294, %s295
      %p307 = scmp.eq.s32.totalorder %s33, 1
      %p308 = por %p306, %p307
      %p310 = scmp.ne.s32.totalorder %s295, %s309
      %p311 = scmp.eq.s32.totalorder %s33, 0
      %p312 = por %p310, %p311
      %s313 = ssub.s32 %s27, %s34
      %p314 = scmp.eq.s32.totalorder %s313, 0
      %s316 = sadd.s32 %s315, 1
      %s317 = scalar_select %p314, %s315, %s316
      %p320 = pneg %p314
      %p321 = scmp.eq.s32.totalorder %s27, 1
      %p322 = por %p320, %p321
      %p323 = scmp.ne.s32.totalorder %s315, %s318
      %p324 = scmp.eq.s32.totalorder %s27, 0
      %p325 = por %p323, %p324
      %p326 = scmp.ne.s32.totalorder %s315, %s318
      %p327 = scmp.eq.s32.totalorder %s32, 1
      %p328 = por %p326, %p327
      %p329 = scmp.ne.s32.totalorder %s318, %s319
      %p330 = scmp.eq.s32.totalorder %s32, 0
      %p331 = por %p329, %p330
      %p332 = scmp.ne.s32.totalorder %s318, %s319
      %p333 = scmp.eq.s32.totalorder %s33, 1
      %p334 = por %p332, %p333
      %p336 = scmp.ne.s32.totalorder %s319, %s335
      %p337 = scmp.eq.s32.totalorder %s33, 0
      %p338 = por %p336, %p337
      %s339 = ssub.s32 %s27, %s34
      %p340 = scmp.eq.s32.totalorder %s339, 0
      %s342 = sadd.s32 %s341, 1
      %s343 = scalar_select %p340, %s341, %s342
      %p346 = pneg %p340
      %p347 = scmp.eq.s32.totalorder %s27, 1
      %p348 = por %p346, %p347
      %p349 = scmp.ne.s32.totalorder %s341, %s344
      %p350 = scmp.eq.s32.totalorder %s27, 0
      %p351 = por %p349, %p350
      %p352 = scmp.ne.s32.totalorder %s341, %s344
      %p353 = scmp.eq.s32.totalorder %s32, 1
      %p354 = por %p352, %p353
      %p355 = scmp.ne.s32.totalorder %s344, %s345
      %p356 = scmp.eq.s32.totalorder %s32, 0
      %p357 = por %p355, %p356
      %p358 = scmp.ne.s32.totalorder %s344, %s345
      %p359 = scmp.eq.s32.totalorder %s33, 1
      %p360 = por %p358, %p359
      %p362 = scmp.ne.s32.totalorder %s345, %s361
      %p363 = scmp.eq.s32.totalorder %s33, 0
      %p364 = por %p362, %p363
      %p365 = scmp.le.s32.totalorder 1, %s27
      %p366 = scmp.lt.s32.totalorder %s27, 3
      %p367 = pnand %p365, %p366
      %p368 = pneg %p367
      // Predicated region
      $region9: #{tpu_custom_call.1} parent=5 // pred_check
        _
      $region10: #{tpu_custom_call.1} parent=5 // pred_check_branch
        %370 = sbr.rel (%p367) target = $region12
      $region11: #{tpu_custom_call.1} parent=5 // pred_region
        %s371 = ssub.s32 %s27, 1
        // Predicated region
        $region13: #{tpu_custom_call.1} parent=11 // pred_check
          %p372 = pneg %p74
        $region14: #{tpu_custom_call.1} parent=11 // pred_check_branch
          %374 = sbr.rel (%p372) target = $region16
        $region15: #{tpu_custom_call.1} parent=11 // pred_region
          _
        $region16: #{tpu_custom_call.1} parent=11 // pred_fallthru
          _
        // Predicated region
        $region17: #{tpu_custom_call.1} parent=11 // pred_check
          %p375 = pneg %p95
        $region18: #{tpu_custom_call.1} parent=11 // pred_check_branch
          %377 = sbr.rel (%p375) target = $region20
        $region19: #{tpu_custom_call.1} parent=11 // pred_region
          _
        $region20: #{tpu_custom_call.1} parent=11 // pred_fallthru
          _
        // Predicated region
        $region21: #{tpu_custom_call.1} parent=11 // pred_check
          %p378 = pneg %p116
        $region22: #{tpu_custom_call.1} parent=11 // pred_check_branch
          %380 = sbr.rel (%p378) target = $region24
        $region23: #{tpu_custom_call.1} parent=11 // pred_region
          _
        $region24: #{tpu_custom_call.1} parent=11 // pred_fallthru
          _
        // Predicated region
        $region25: #{tpu_custom_call.1} parent=11 // pred_check
          %p381 = pneg %p137
        $region26: #{tpu_custom_call.1} parent=11 // pred_check_branch
          %383 = sbr.rel (%p381) target = $region28
        $region27: #{tpu_custom_call.1} parent=11 // pred_region
          _
        $region28: #{tpu_custom_call.1} parent=11 // pred_fallthru
          _
        // Predicated region
        $region29: #{tpu_custom_call.1} parent=11 // pred_check
          %p384 = pneg %p158
        $region30: #{tpu_custom_call.1} parent=11 // pred_check_branch
          %386 = sbr.rel (%p384) target = $region32
        $region31: #{tpu_custom_call.1} parent=11 // pred_region
          _
        $region32: #{tpu_custom_call.1} parent=11 // pred_fallthru
          _
        // Predicated region
        $region33: #{tpu_custom_call.1} parent=11 // pred_check
          %p387 = pneg %p179
        $region34: #{tpu_custom_call.1} parent=11 // pred_check_branch
          %389 = sbr.rel (%p387) target = $region36
        $region35: #{tpu_custom_call.1} parent=11 // pred_region
          _
        $region36: #{tpu_custom_call.1} parent=11 // pred_fallthru
          _
        // Predicated region
        $region37: #{tpu_custom_call.1} parent=11 // pred_check
          %p390 = pneg %p200
        $region38: #{tpu_custom_call.1} parent=11 // pred_check_branch
          %392 = sbr.rel (%p390) target = $region40
        $region39: #{tpu_custom_call.1} parent=11 // pred_region
          _
        $region40: #{tpu_custom_call.1} parent=11 // pred_fallthru
          _
        // Predicated region
        $region41: #{tpu_custom_call.1} parent=11 // pred_check
          %p393 = pneg %p221
        $region42: #{tpu_custom_call.1} parent=11 // pred_check_branch
          %395 = sbr.rel (%p393) target = $region44
        $region43: #{tpu_custom_call.1} parent=11 // pred_region
          _
        $region44: #{tpu_custom_call.1} parent=11 // pred_fallthru
          _
        // Predicated region
        $region45: #{tpu_custom_call.1} parent=11 // pred_check
          %p396 = pneg %p242
        $region46: #{tpu_custom_call.1} parent=11 // pred_check_branch
          %398 = sbr.rel (%p396) target = $region48
        $region47: #{tpu_custom_call.1} parent=11 // pred_region
          _
        $region48: #{tpu_custom_call.1} parent=11 // pred_fallthru
          _
        // Predicated region
        $region49: #{tpu_custom_call.1} parent=11 // pred_check
          %p399 = pneg %p263
        $region50: #{tpu_custom_call.1} parent=11 // pred_check_branch
          %401 = sbr.rel (%p399) target = $region52
        $region51: #{tpu_custom_call.1} parent=11 // pred_region
          _
        $region52: #{tpu_custom_call.1} parent=11 // pred_fallthru
          _
        // Predicated region
        $region53: #{tpu_custom_call.1} parent=11 // pred_check
          %p402 = pneg %p284
        $region54: #{tpu_custom_call.1} parent=11 // pred_check_branch
          %404 = sbr.rel (%p402) target = $region56
        $region55: #{tpu_custom_call.1} parent=11 // pred_region
          _
        $region56: #{tpu_custom_call.1} parent=11 // pred_fallthru
          _
        // Predicated region
        $region57: #{tpu_custom_call.1} parent=11 // pred_check
          %p405 = pneg %p305
        $region58: #{tpu_custom_call.1} parent=11 // pred_check_branch
          %407 = sbr.rel (%p405) target = $region60
        $region59: #{tpu_custom_call.1} parent=11 // pred_region
          _
        $region60: #{tpu_custom_call.1} parent=11 // pred_fallthru
          _
      $region12: #{tpu_custom_call.1} parent=5 // pred_fallthru
        _
      %p408 = scmp.lt.s32.totalorder %s27, 2
      // Predicated region
      $region61: #{tpu_custom_call.1} parent=5 // pred_check
        %p409 = pneg %p408
      $region62: #{tpu_custom_call.1} parent=5 // pred_check_branch
        %411 = sbr.rel (%p409) target = $region64
      $region63: #{tpu_custom_call.1} parent=5 // pred_region
        // Predicated region
        $region65: #{tpu_custom_call.1} parent=63 // pred_check
          %p412 = pneg %p47
        $region66: #{tpu_custom_call.1} parent=63 // pred_check_branch
          %414 = sbr.rel (%p412) target = $region68
        $region67: #{tpu_custom_call.1} parent=63 // pred_region
          %p415 = scmp.lt.s32.totalorder %s27, 1
          %s416 = scalar_select %p415, %s27, 1
          %s417 = smul.addr %s416, 16
          %s418 = smul.addr %s417, 4
          %s419 = scalar_lea.vmem %s0, %s418
        $region68: #{tpu_custom_call.1} parent=63 // pred_fallthru
          _
      $region64: #{tpu_custom_call.1} parent=5 // pred_fallthru
        _
      %p420 = scmp.le.s32.totalorder 1, %s27
      %p421 = scmp.lt.s32.totalorder %s27, 3
      %p422 = pnand %p420, %p421
      %p423 = pneg %p422
      // Predicated region
      $region69: #{tpu_custom_call.1} parent=5 // pred_check
        _
      $region70: #{tpu_custom_call.1} parent=5 // pred_check_branch
        %425 = sbr.rel (%p422) target = $region72
      $region71: #{tpu_custom_call.1} parent=5 // pred_region
        %s426 = ssub.s32 %s27, 1
        %p427 = scmp.lt.s32.totalorder %s32, 1
        %s428 = scalar_select %p427, %s32, 1
        %s429 = smul.addr %s428, 16
        %s430 = smul.addr %s429, 4
        %s431 = scalar_lea.vmem %s0, %s430
        %p432 = pneg %p53
        %p433 = pneg %p50
        %p434 = pneg %p74
        %p435 = pneg %p71
        %p436 = pneg %p95
        %p437 = pneg %p92
        %p438 = pneg %p116
        %p439 = pneg %p113
        %p440 = pneg %p137
        %p441 = pneg %p134
        %p442 = pneg %p158
        %p443 = pneg %p155
        %p444 = pneg %p179
        %p445 = pneg %p176
        %p446 = pneg %p200
        %p447 = pneg %p197
        %p448 = pneg %p221
        %p449 = pneg %p218
        %p450 = pneg %p242
        %p451 = pneg %p239
        %p452 = pneg %p263
        %p453 = pneg %p260
        %p454 = pneg %p284
        %p455 = pneg %p281
        %p456 = pneg %p305
        %p457 = pneg %p302
        %p458 = pneg %p331
        %p459 = pneg %p328
        %s460 = sand.u32 %s318, 1
        %s461 = scalar_lea.sflag [#allocation3], %s460
        %s462 = sand.u32 %s318, 1
        %s463 = smul.addr %s462, 32
        %s464 = scalar_lea.vmem [#allocation2], %s463
        %p465 = pneg %p357
        %p466 = pneg %p354
        %s467 = sand.u32 %s344, 1
        %s468 = scalar_lea.sflag [#allocation5], %s467
        %s469 = sand.u32 %s344, 1
        %s470 = smul.addr %s469, 64
        %s471 = scalar_lea.vmem [#allocation4], %s470
        %p472 = scmp.lt.s32.totalorder %s32, 1
        %s473 = scalar_select %p472, %s32, 1
        %s474 = smul.addr %s473, 16
        %s475 = smul.addr %s474, 4
        %s476 = scalar_lea.vmem %s0, %s475
        %v479 = vld [vmem:[%s2] sm:$0x1]
        %v480 = vld [vmem:[%s476] sm:$0xf]
        %v481 = vld [vmem:[%s476 + $0x4] sm:$0xf]
        %v482 = vld [vmem:[%s476 + $0x8] sm:$0xf]
        %v483 = vld [vmem:[%s476 + $0xc] sm:$0xf]
        %v484 = vld [vmem:[%s476 + $0x10] sm:$0xf]
        %v485 = vld [vmem:[%s476 + $0x14] sm:$0xf]
        %v486 = vld [vmem:[%s476 + $0x18] sm:$0xf]
        %v487 = vld [vmem:[%s476 + $0x1c] sm:$0xf]
        %v488 = vld [vmem:[%s476 + $0x20] sm:$0xf]
        %v489 = vld [vmem:[%s476 + $0x24] sm:$0xf]
        %v490 = vld [vmem:[%s476 + $0x28] sm:$0xf]
        %v491 = vld [vmem:[%s476 + $0x2c] sm:$0xf]
        %v492 = vld [vmem:[%s476 + $0x30] sm:$0xf]
        %v493 = vld [vmem:[%s476 + $0x34] sm:$0xf]
        %v494 = vld [vmem:[%s476 + $0x38] sm:$0xf]
        %v495 = vld [vmem:[%s476 + $0x3c] sm:$0xf]
        %v496 = vld [vmem:[%s1] sm:$0xf]
        %v497 = vld [vmem:[%s1 + $0x4] sm:$0xf]
        %v498 = vld [vmem:[%s1 + $0x8] sm:$0xf]
        %v499 = vld [vmem:[%s1 + $0xc] sm:$0xf]
        %v501 = vlaneseq
        %v502 = vshrl.u32 %v501, 7
        %v503 = vsub.s32 0, %v502
        %v504 = vrot.slane %v479, %v503
        %v522 = vunpack.c.l.b16 %v480
        %v523 = vunpack.c.l.b16 %v481
        %v524 = vunpack.c.l.b16 %v482
        %v525 = vunpack.c.l.b16 %v483
        %v526 = vunpack.c.l.b16 %v484
        %v527 = vunpack.c.l.b16 %v485
        %v528 = vunpack.c.l.b16 %v486
        %v529 = vunpack.c.l.b16 %v487
        %v530 = vunpack.c.l.b16 %v488
        %v531 = vunpack.c.l.b16 %v489
        %v532 = vunpack.c.l.b16 %v490
        %v533 = vunpack.c.l.b16 %v491
        %v534 = vunpack.c.l.b16 %v492
        %v535 = vunpack.c.l.b16 %v493
        %v536 = vunpack.c.l.b16 %v494
        %v537 = vunpack.c.l.b16 %v495
        %v538 = vpack.c.b16 %v523, %v522
        %v539 = vpack.c.b16 %v525, %v524
        %v540 = vpack.c.b16 %v527, %v526
        %v541 = vpack.c.b16 %v529, %v528
        %v542 = vpack.c.b16 %v531, %v530
        %v543 = vpack.c.b16 %v533, %v532
        %v544 = vpack.c.b16 %v535, %v534
        %v545 = vpack.c.b16 %v537, %v536
        %v550 = vunpack.c.l.b16 %v496
        %v551 = vunpack.c.l.b16 %v497
        %v552 = vunpack.c.l.b16 %v498
        %v553 = vunpack.c.l.b16 %v499
        %v554 = vpack.c.b16 %v551, %v550
        %v555 = vpack.c.b16 %v553, %v552
        %vm558 = vcmask 261120
        %v560 = vsel %vm558, %v538, 0
        %v563 = vsel %vm558, %v539, 0
        %v566 = vsel %vm558, %v540, 0
        %v569 = vsel %vm558, %v541, 0
        %v572 = vsel %vm558, %v542, 0
        %v575 = vsel %vm558, %v543, 0
        %v578 = vsel %vm558, %v544, 0
        %v581 = vsel %vm558, %v545, 0
        %583 = vmatprep.subr.bf16.mxu0 0
        %584 = vmatpush1.bf16.msra.mxu0 %v554
        %585 = vmatprep.subr.bf16.mxu0 0
        %586 = vmatpush1.bf16.msra.mxu0 %v555
        %587 = vmatprep.subr.bf16.mxu0 0
        %588 = vmatpush1.bf16.msra.mxu0 0
        %589 = vmatprep.subr.bf16.mxu0 0
        %590 = vmatpush1.bf16.msra.mxu0 0
        %591 = vmatprep.subr.bf16.mxu0 0
        %592 = vmatpush1.bf16.msra.mxu0 0
        %593 = vmatprep.subr.bf16.mxu0 0
        %594 = vmatpush1.bf16.msra.mxu0 0
        %595 = vmatprep.subr.bf16.mxu0 0
        %596 = vmatpush1.bf16.msra.mxu0 0
        %597 = vmatprep.subr.bf16.mxu0 0
        %598 = vmatpush1.bf16.msra.mxu0 0
        %599 = vmatprep.subr.bf16.mxu0 0
        %600 = vmatpush1.bf16.msra.mxu0 0
        %601 = vmatprep.subr.bf16.mxu0 0
        %602 = vmatpush1.bf16.msra.mxu0 0
        %603 = vmatprep.subr.bf16.mxu0 0
        %604 = vmatpush1.bf16.msra.mxu0 0
        %605 = vmatprep.subr.bf16.mxu0 0
        %606 = vmatpush1.bf16.msra.mxu0 0
        %607 = vmatprep.subr.bf16.mxu0 0
        %608 = vmatpush1.bf16.msra.mxu0 0
        %609 = vmatprep.subr.bf16.mxu0 0
        %610 = vmatpush1.bf16.msra.mxu0 0
        %611 = vmatprep.subr.bf16.mxu0 0
        %612 = vmatpush1.bf16.msra.mxu0 0
        %613 = vmatprep.subr.bf16.mxu0 0
        %614 = vmatpush1.bf16.msra.mxu0 0
        %615 = vmatprep.mubr.bf16.mxu0 0
        %616 = vmatmul.mubr.bf16.gmra.mrb[0].mxu0 %v560
        %v617 = vpop.f32.mrb[0].mxu0
        %v618 = vadd.f32 %v504, %v617
        %v619 = vpop.f32.mrb[0].mxu0
        %v620 = vpop.f32.mrb[0].mxu0
        %v621 = vadd.f32 %v504, %v620
        %v622 = vpop.f32.mrb[0].mxu0
        %623 = vmatprep.mubr.bf16.mxu0 0
        %624 = vmatmul.mubr.bf16.gmra.mrb[0].mxu0 %v563
        %v625 = vpop.f32.mrb[0].mxu0
        %v626 = vadd.f32 %v504, %v625
        %v627 = vpop.f32.mrb[0].mxu0
        %v628 = vpop.f32.mrb[0].mxu0
        %v629 = vadd.f32 %v504, %v628
        %v630 = vpop.f32.mrb[0].mxu0
        %631 = vmatprep.mubr.bf16.mxu0 0
        %632 = vmatmul.mubr.bf16.gmra.mrb[0].mxu0 %v566
        %v633 = vpop.f32.mrb[0].mxu0
        %v634 = vadd.f32 %v504, %v633
        %v635 = vpop.f32.mrb[0].mxu0
        %v636 = vpop.f32.mrb[0].mxu0
        %v637 = vadd.f32 %v504, %v636
        %v638 = vpop.f32.mrb[0].mxu0
        %639 = vmatprep.mubr.bf16.mxu0 0
        %640 = vmatmul.mubr.bf16.gmra.mrb[0].mxu0 %v569
        %v641 = vpop.f32.mrb[0].mxu0
        %v642 = vadd.f32 %v504, %v641
        %v643 = vpop.f32.mrb[0].mxu0
        %v644 = vpop.f32.mrb[0].mxu0
        %v645 = vadd.f32 %v504, %v644
        %v646 = vpop.f32.mrb[0].mxu0
        %647 = vmatprep.mubr.bf16.mxu0 0
        %648 = vmatmul.mubr.bf16.gmra.mrb[0].mxu0 %v572
        %v649 = vpop.f32.mrb[0].mxu0
        %v650 = vadd.f32 %v504, %v649
        %v651 = vpop.f32.mrb[0].mxu0
        %v652 = vpop.f32.mrb[0].mxu0
        %v653 = vadd.f32 %v504, %v652
        %v654 = vpop.f32.mrb[0].mxu0
        %655 = vmatprep.mubr.bf16.mxu0 0
        %656 = vmatmul.mubr.bf16.gmra.mrb[0].mxu0 %v575
        %v657 = vpop.f32.mrb[0].mxu0
        %v658 = vadd.f32 %v504, %v657
        %v659 = vpop.f32.mrb[0].mxu0
        %v660 = vpop.f32.mrb[0].mxu0
        %v661 = vadd.f32 %v504, %v660
        %v662 = vpop.f32.mrb[0].mxu0
        %663 = vmatprep.mubr.bf16.mxu0 0
        %664 = vmatmul.mubr.bf16.gmra.mrb[0].mxu0 %v578
        %v665 = vpop.f32.mrb[0].mxu0
        %v666 = vadd.f32 %v504, %v665
        %v667 = vpop.f32.mrb[0].mxu0
        %v668 = vpop.f32.mrb[0].mxu0
        %v669 = vadd.f32 %v504, %v668
        %v670 = vpop.f32.mrb[0].mxu0
        %671 = vmatprep.mubr.bf16.mxu0 0
        %672 = vmatmul.mubr.bf16.gmra.mrb[0].mxu0 %v581
        %v673 = vpop.f32.mrb[0].mxu0
        %v674 = vadd.f32 %v504, %v673
        %v675 = vpop.f32.mrb[0].mxu0
        %v676 = vpop.f32.mrb[0].mxu0
        %v677 = vadd.f32 %v504, %v676
        %v678 = vpop.f32.mrb[0].mxu0
        %679 = vdwg.mxu0
        %v680 = vmul.f32 %v618, 0.35355338
        %v681 = vmul.f32 %v621, 0.35355338
        %v682 = vmul.f32 %v626, 0.35355338
        %v683 = vmul.f32 %v629, 0.35355338
        %v684 = vld [vmem:[%s6] sm:$0xf]
        %v685 = vld [vmem:[%s6 + $0x4] sm:$0xf]
        %v686 = vld [vmem:[%s6 + $0x8] sm:$0xf]
        %v687 = vld [vmem:[%s6 + $0xc] sm:$0xf]
        %v688 = vld [vmem:[%s6 + $0x10] sm:$0xf]
        %v689 = vld [vmem:[%s6 + $0x14] sm:$0xf]
        %v690 = vld [vmem:[%s6 + $0x18] sm:$0xf]
        %v691 = vld [vmem:[%s6 + $0x1c] sm:$0xf]
        %v692 = vld [vmem:[%s7] sm:$0xf]
        %v693 = vld [vmem:[%s7 + $0x4] sm:$0xf]
        %v694 = vld [vmem:[%s8] sm:$0x3]
        %v695 = vld [vmem:[%s12] sm:$0x1]
        %v696 = vpack.c.bf16 %v681, %v680
        %v697 = vpack.c.bf16 %v683, %v682
        %v698 = vpack.c.bf16 %v621, %v618
        %v699 = vpack.c.bf16 %v629, %v626
        %v700 = vpack.c.bf16 %v637, %v634
        %v701 = vpack.c.bf16 %v645, %v642
        %v702 = vpack.c.bf16 %v653, %v650
        %v703 = vpack.c.bf16 %v661, %v658
        %v704 = vpack.c.bf16 %v669, %v666
        %v705 = vpack.c.bf16 %v677, %v674
        %v706 = vld [vmem:[%s3] sm:$0xf]
        %vm707 = vcmask 64512
        %v709 = vsel %vm707, %v696, 0
        %v712 = vsel %vm707, %v697, 0
        %vm714 = vcmask 1043456
        %v716 = vsel %vm714, %v706, 0
        %718 = vmatprep.subr.bf16.mxu0 0
        %719 = vmatpush1.bf16.msra.mxu0 %v716
        %720 = vmatprep.subr.bf16.mxu0 0
        %721 = vmatpush1.bf16.msra.mxu0 0
        %722 = vmatprep.subr.bf16.mxu0 0
        %723 = vmatpush1.bf16.msra.mxu0 0
        %724 = vmatprep.subr.bf16.mxu0 0
        %725 = vmatpush1.bf16.msra.mxu0 0
        %726 = vmatprep.subr.bf16.mxu0 0
        %727 = vmatpush1.bf16.msra.mxu0 0
        %728 = vmatprep.subr.bf16.mxu0 0
        %729 = vmatpush1.bf16.msra.mxu0 0
        %730 = vmatprep.subr.bf16.mxu0 0
        %731 = vmatpush1.bf16.msra.mxu0 0
        %732 = vmatprep.subr.bf16.mxu0 0
        %733 = vmatpush1.bf16.msra.mxu0 0
        %734 = vmatprep.subr.bf16.mxu0 0
        %735 = vmatpush1.bf16.msra.mxu0 0
        %736 = vmatprep.subr.bf16.mxu0 0
        %737 = vmatpush1.bf16.msra.mxu0 0
        %738 = vmatprep.subr.bf16.mxu0 0
        %739 = vmatpush1.bf16.msra.mxu0 0
        %740 = vmatprep.subr.bf16.mxu0 0
        %741 = vmatpush1.bf16.msra.mxu0 0
        %742 = vmatprep.subr.bf16.mxu0 0
        %743 = vmatpush1.bf16.msra.mxu0 0
        %744 = vmatprep.subr.bf16.mxu0 0
        %745 = vmatpush1.bf16.msra.mxu0 0
        %746 = vmatprep.subr.bf16.mxu0 0
        %747 = vmatpush1.bf16.msra.mxu0 0
        %748 = vmatprep.subr.bf16.mxu0 0
        %749 = vmatpush1.bf16.msra.mxu0 0
        %750 = vmatprep.mubr.bf16.mxu0 0
        %751 = vmatmul.mubr.bf16.gmra.mrb[0].mxu0 %v709
        %v752 = vpop.f32.mrb[0].mxu0
        %v753 = vadd.f32 0.0, %v752
        %v754 = vpop.f32.mrb[0].mxu0
        %v755 = vpop.f32.mrb[0].mxu0
        %v756 = vadd.f32 0.0, %v755
        %v757 = vpop.f32.mrb[0].mxu0
        %758 = vmatprep.mubr.bf16.mxu0 0
        %759 = vmatmul.mubr.bf16.gmra.mrb[0].mxu0 %v712
        %v760 = vpop.f32.mrb[0].mxu0
        %v761 = vadd.f32 0.0, %v760
        %v762 = vpop.f32.mrb[0].mxu0
        %v763 = vpop.f32.mrb[0].mxu0
        %v764 = vadd.f32 0.0, %v763
        %v765 = vpop.f32.mrb[0].mxu0
        %766 = vdwg.mxu0
        %v767 = vpack.c.bf16 %v756, %v753
        %v768 = vpack.c.bf16 %v764, %v761
        %v769 = vld [vmem:[%s4] sm:$0xf]
        %v771 = vsel %vm714, %v769, 0
        %773 = vmatprep.subr.bf16.mxu0 0
        %774 = vmatpush1.bf16.msra.mxu0 %v771
        %775 = vmatprep.subr.bf16.mxu0 0
        %776 = vmatpush1.bf16.msra.mxu0 0
        %777 = vmatprep.subr.bf16.mxu0 0
        %778 = vmatpush1.bf16.msra.mxu0 0
        %779 = vmatprep.subr.bf16.mxu0 0
        %780 = vmatpush1.bf16.msra.mxu0 0
        %781 = vmatprep.subr.bf16.mxu0 0
        %782 = vmatpush1.bf16.msra.mxu0 0
        %783 = vmatprep.subr.bf16.mxu0 0
        %784 = vmatpush1.bf16.msra.mxu0 0
        %785 = vmatprep.subr.bf16.mxu0 0
        %786 = vmatpush1.bf16.msra.mxu0 0
        %787 = vmatprep.subr.bf16.mxu0 0
        %788 = vmatpush1.bf16.msra.mxu0 0
        %789 = vmatprep.subr.bf16.mxu0 0
        %790 = vmatpush1.bf16.msra.mxu0 0
        %791 = vmatprep.subr.bf16.mxu0 0
        %792 = vmatpush1.bf16.msra.mxu0 0
        %793 = vmatprep.subr.bf16.mxu0 0
        %794 = vmatpush1.bf16.msra.mxu0 0
        %795 = vmatprep.subr.bf16.mxu0 0
        %796 = vmatpush1.bf16.msra.mxu0 0
        %797 = vmatprep.subr.bf16.mxu0 0
        %798 = vmatpush1.bf16.msra.mxu0 0
        %799 = vmatprep.subr.bf16.mxu0 0
        %800 = vmatpush1.bf16.msra.mxu0 0
        %801 = vmatprep.subr.bf16.mxu0 0
        %802 = vmatpush1.bf16.msra.mxu0 0
        %803 = vmatprep.subr.bf16.mxu0 0
        %804 = vmatpush1.bf16.msra.mxu0 0
        %805 = vmatprep.mubr.bf16.mxu0 0
        %806 = vmatmul.mubr.bf16.gmra.mrb[0].mxu0 %v709
        %v807 = vpop.f32.mrb[0].mxu0
        %v808 = vadd.f32 0.0, %v807
        %v809 = vpop.f32.mrb[0].mxu0
        %v810 = vpop.f32.mrb[0].mxu0
        %v811 = vadd.f32 0.0, %v810
        %v812 = vpop.f32.mrb[0].mxu0
        %813 = vmatprep.mubr.bf16.mxu0 0
        %814 = vmatmul.mubr.bf16.gmra.mrb[0].mxu0 %v712
        %v815 = vpop.f32.mrb[0].mxu0
        %v816 = vadd.f32 0.0, %v815
        %v817 = vpop.f32.mrb[0].mxu0
        %v818 = vpop.f32.mrb[0].mxu0
        %v819 = vadd.f32 0.0, %v818
        %v820 = vpop.f32.mrb[0].mxu0
        %821 = vdwg.mxu0
        %v822 = vpack.c.bf16 %v811, %v808
        %v823 = vpack.c.bf16 %v819, %v816
        %v824 = vld [vmem:[%s5] sm:$0xf]
        %v826 = vsel %vm714, %v824, 0
        %828 = vmatprep.subr.bf16.mxu0 0
        %829 = vmatpush1.bf16.msra.mxu0 %v826
        %830 = vmatprep.subr.bf16.mxu0 0
        %831 = vmatpush1.bf16.msra.mxu0 0
        %832 = vmatprep.subr.bf16.mxu0 0
        %833 = vmatpush1.bf16.msra.mxu0 0
        %834 = vmatprep.subr.bf16.mxu0 0
        %835 = vmatpush1.bf16.msra.mxu0 0
        %836 = vmatprep.subr.bf16.mxu0 0
        %837 = vmatpush1.bf16.msra.mxu0 0
        %838 = vmatprep.subr.bf16.mxu0 0
        %839 = vmatpush1.bf16.msra.mxu0 0
        %840 = vmatprep.subr.bf16.mxu0 0
        %841 = vmatpush1.bf16.msra.mxu0 0
        %842 = vmatprep.subr.bf16.mxu0 0
        %843 = vmatpush1.bf16.msra.mxu0 0
        %844 = vmatprep.subr.bf16.mxu0 0
        %845 = vmatpush1.bf16.msra.mxu0 0
        %846 = vmatprep.subr.bf16.mxu0 0
        %847 = vmatpush1.bf16.msra.mxu0 0
        %848 = vmatprep.subr.bf16.mxu0 0
        %849 = vmatpush1.bf16.msra.mxu0 0
        %850 = vmatprep.subr.bf16.mxu0 0
        %851 = vmatpush1.bf16.msra.mxu0 0
        %852 = vmatprep.subr.bf16.mxu0 0
        %853 = vmatpush1.bf16.msra.mxu0 0
        %854 = vmatprep.subr.bf16.mxu0 0
        %855 = vmatpush1.bf16.msra.mxu0 0
        %856 = vmatprep.subr.bf16.mxu0 0
        %857 = vmatpush1.bf16.msra.mxu0 0
        %858 = vmatprep.subr.bf16.mxu0 0
        %859 = vmatpush1.bf16.msra.mxu0 0
        %860 = vmatprep.mubr.bf16.mxu0 0
        %861 = vmatmul.mubr.bf16.gmra.mrb[0].mxu0 %v709
        %v862 = vpop.f32.mrb[0].mxu0
        %v863 = vadd.f32 0.0, %v862
        %v864 = vpop.f32.mrb[0].mxu0
        %v865 = vpop.f32.mrb[0].mxu0
        %v866 = vadd.f32 0.0, %v865
        %v867 = vpop.f32.mrb[0].mxu0
        %868 = vmatprep.mubr.bf16.mxu0 0
        %869 = vmatmul.mubr.bf16.gmra.mrb[0].mxu0 %v712
        %v870 = vpop.f32.mrb[0].mxu0
        %v871 = vadd.f32 0.0, %v870
        %v872 = vpop.f32.mrb[0].mxu0
        %v873 = vpop.f32.mrb[0].mxu0
        %v874 = vadd.f32 0.0, %v873
        %v875 = vpop.f32.mrb[0].mxu0
        %876 = vdwg.mxu0
        %v877 = vpack.c.bf16 %v866, %v863
        %v878 = vpack.c.bf16 %v874, %v871
        %v879 = vld [vmem:[%s9] sm:$0xf]
        %v880 = vld [vmem:[%s9 + $0x4] sm:$0xf]
        %v881 = vld [vmem:[%s9 + $0x8] sm:$0xf]
        %v882 = vld [vmem:[%s9 + $0xc] sm:$0xf]
        %vm883 = vcmp.gt.bf16.partialorder %v879, 1056980736
        %vm884 = vcmp.gt.bf16.partialorder %v880, 1056980736
        %vm885 = vcmp.gt.bf16.partialorder %v881, 1056980736
        %vm886 = vcmp.gt.bf16.partialorder %v882, 1056980736
        %889 = vrot.lane.b32.xlu0 %v767, 65
        %v890 = vpop.permute.xlu0 %889
        %891 = vrot.lane.b32.xlu0 %v768, 65
        %v892 = vpop.permute.xlu0 %891
        %893 = vrot.lane.b32.xlu0 %v767, 1
        %v894 = vpop.permute.xlu0 %893
        %895 = vrot.lane.b32.xlu0 %v768, 1
        %v896 = vpop.permute.xlu0 %895
        %vm897 = vcmask 7168
        %v900 = vsel %vm897, %v890, %v894
        %v903 = vsel %vm897, %v892, %v896
        %v906 = vunpack.c.l.b16 %v900
        %v907 = vunpack.c.h.b16 %v900
        %v908 = vunpack.c.l.b16 %v903
        %v909 = vunpack.c.h.b16 %v903
        %v910 = vpack.c.b16 %v906, %v906
        %v911 = vpack.c.b16 %v907, %v907
        %v912 = vpack.c.b16 %v908, %v908
        %v913 = vpack.c.b16 %v909, %v909
        %v918 = vunpack.c.l.b16 %v767
        %v919 = vunpack.c.h.b16 %v767
        %v920 = vunpack.c.l.b16 %v768
        %v921 = vunpack.c.h.b16 %v768
        %v922 = vpack.c.b16 %v918, %v918
        %v923 = vpack.c.b16 %v919, %v919
        %v924 = vpack.c.b16 %v920, %v920
        %v925 = vpack.c.b16 %v921, %v921
        %v930 = vsel %vm883, %v910, %v922
        %v931 = vsel %vm884, %v911, %v923
        %v932 = vsel %vm885, %v912, %v924
        %v933 = vsel %vm886, %v913, %v925
        %s934 = scalar_lea.vmem %s9, 16
        %v935 = vld [vmem:[%s934] sm:$0xf]
        %v936 = vld [vmem:[%s934 + $0x4] sm:$0xf]
        %v937 = vld [vmem:[%s934 + $0x8] sm:$0xf]
        %v938 = vld [vmem:[%s934 + $0xc] sm:$0xf]
        %vm939 = vcmp.gt.bf16.partialorder %v935, 1056980736
        %vm940 = vcmp.gt.bf16.partialorder %v936, 1056980736
        %vm941 = vcmp.gt.bf16.partialorder %v937, 1056980736
        %vm942 = vcmp.gt.bf16.partialorder %v938, 1056980736
        %v947 = vunpack.c.l.b16 %v930
        %v948 = vunpack.c.l.b16 %v931
        %v949 = vunpack.c.l.b16 %v932
        %v950 = vunpack.c.l.b16 %v933
        %v951 = vpack.c.b16 %v948, %v947
        %v952 = vpack.c.b16 %v950, %v949
        %953 = vrot.lane.b32.xlu0 %v951, 66
        %v954 = vpop.permute.xlu0 %953
        %955 = vrot.lane.b32.xlu0 %v952, 66
        %v956 = vpop.permute.xlu0 %955
        %957 = vrot.lane.b32.xlu0 %v951, 2
        %v958 = vpop.permute.xlu0 %957
        %959 = vrot.lane.b32.xlu0 %v952, 2
        %v960 = vpop.permute.xlu0 %959
        %vm961 = vcmask 15360
        %v964 = vsel %vm961, %v954, %v958
        %v967 = vsel %vm961, %v956, %v960
        %v970 = vunpack.c.l.b16 %v964
        %v971 = vunpack.c.h.b16 %v964
        %v972 = vunpack.c.l.b16 %v967
        %v973 = vunpack.c.h.b16 %v967
        %v974 = vpack.c.b16 %v970, %v970
        %v975 = vpack.c.b16 %v971, %v971
        %v976 = vpack.c.b16 %v972, %v972
        %v977 = vpack.c.b16 %v973, %v973
        %v982 = vsel %vm939, %v974, %v930
        %v983 = vsel %vm940, %v975, %v931
        %v984 = vsel %vm941, %v976, %v932
        %v985 = vsel %vm942, %v977, %v933
        %s986 = scalar_lea.vmem %s9, 32
        %v987 = vld [vmem:[%s986] sm:$0xf]
        %v988 = vld [vmem:[%s986 + $0x4] sm:$0xf]
        %v989 = vld [vmem:[%s986 + $0x8] sm:$0xf]
        %v990 = vld [vmem:[%s986 + $0xc] sm:$0xf]
        %vm991 = vcmp.gt.bf16.partialorder %v987, 1056980736
        %vm992 = vcmp.gt.bf16.partialorder %v988, 1056980736
        %vm993 = vcmp.gt.bf16.partialorder %v989, 1056980736
        %vm994 = vcmp.gt.bf16.partialorder %v990, 1056980736
        %v999 = vunpack.c.l.b16 %v982
        %v1000 = vunpack.c.l.b16 %v983
        %v1001 = vunpack.c.l.b16 %v984
        %v1002 = vunpack.c.l.b16 %v985
        %v1003 = vpack.c.b16 %v1000, %v999
        %v1004 = vpack.c.b16 %v1002, %v1001
        %1005 = vrot.lane.b32.xlu0 %v1003, 68
        %v1006 = vpop.permute.xlu0 %1005
        %1007 = vrot.lane.b32.xlu0 %v1004, 68
        %v1008 = vpop.permute.xlu0 %1007
        %1009 = vrot.lane.b32.xlu0 %v1003, 4
        %v1010 = vpop.permute.xlu0 %1009
        %1011 = vrot.lane.b32.xlu0 %v1004, 4
        %v1012 = vpop.permute.xlu0 %1011
        %vm1013 = vcmask 31744
        %v1016 = vsel %vm1013, %v1006, %v1010
        %v1019 = vsel %vm1013, %v1008, %v1012
        %v1022 = vunpack.c.l.b16 %v1016
        %v1023 = vunpack.c.h.b16 %v1016
        %v1024 = vunpack.c.l.b16 %v1019
        %v1025 = vunpack.c.h.b16 %v1019
        %v1026 = vpack.c.b16 %v1022, %v1022
        %v1027 = vpack.c.b16 %v1023, %v1023
        %v1028 = vpack.c.b16 %v1024, %v1024
        %v1029 = vpack.c.b16 %v1025, %v1025
        %v1034 = vsel %vm991, %v1026, %v982
        %v1035 = vsel %vm992, %v1027, %v983
        %v1036 = vsel %vm993, %v1028, %v984
        %v1037 = vsel %vm994, %v1029, %v985
        %s1038 = scalar_lea.vmem %s9, 48
        %v1039 = vld [vmem:[%s1038] sm:$0xf]
        %v1040 = vld [vmem:[%s1038 + $0x4] sm:$0xf]
        %v1041 = vld [vmem:[%s1038 + $0x8] sm:$0xf]
        %v1042 = vld [vmem:[%s1038 + $0xc] sm:$0xf]
        %vm1043 = vcmp.gt.bf16.partialorder %v1039, 1056980736
        %vm1044 = vcmp.gt.bf16.partialorder %v1040, 1056980736
        %vm1045 = vcmp.gt.bf16.partialorder %v1041, 1056980736
        %vm1046 = vcmp.gt.bf16.partialorder %v1042, 1056980736
        %v1051 = vunpack.c.l.b16 %v1034
        %v1052 = vunpack.c.l.b16 %v1035
        %v1053 = vunpack.c.l.b16 %v1036
        %v1054 = vunpack.c.l.b16 %v1037
        %v1055 = vpack.c.b16 %v1052, %v1051
        %v1056 = vpack.c.b16 %v1054, %v1053
        %1057 = vrot.lane.b32.xlu0 %v1055, 72
        %v1058 = vpop.permute.xlu0 %1057
        %1059 = vrot.lane.b32.xlu0 %v1056, 72
        %v1060 = vpop.permute.xlu0 %1059
        %1061 = vrot.lane.b32.xlu0 %v1055, 8
        %v1062 = vpop.permute.xlu0 %1061
        %1063 = vrot.lane.b32.xlu0 %v1056, 8
        %v1064 = vpop.permute.xlu0 %1063
        %v1067 = vsel %vm707, %v1058, %v1062
        %v1070 = vsel %vm707, %v1060, %v1064
        %v1073 = vunpack.c.l.b16 %v1067
        %v1074 = vunpack.c.h.b16 %v1067
        %v1075 = vunpack.c.l.b16 %v1070
        %v1076 = vunpack.c.h.b16 %v1070
        %v1077 = vpack.c.b16 %v1073, %v1073
        %v1078 = vpack.c.b16 %v1074, %v1074
        %v1079 = vpack.c.b16 %v1075, %v1075
        %v1080 = vpack.c.b16 %v1076, %v1076
        %v1085 = vsel %vm1043, %v1077, %v1034
        %v1086 = vsel %vm1044, %v1078, %v1035
        %v1087 = vsel %vm1045, %v1079, %v1036
        %v1088 = vsel %vm1046, %v1080, %v1037
        %s1089 = scalar_lea.vmem %s9, 64
        %v1090 = vld [vmem:[%s1089] sm:$0xf]
        %v1091 = vld [vmem:[%s1089 + $0x4] sm:$0xf]
        %v1092 = vld [vmem:[%s1089 + $0x8] sm:$0xf]
        %v1093 = vld [vmem:[%s1089 + $0xc] sm:$0xf]
        %vm1094 = vcmp.gt.bf16.partialorder %v1090, 1056980736
        %vm1095 = vcmp.gt.bf16.partialorder %v1091, 1056980736
        %vm1096 = vcmp.gt.bf16.partialorder %v1092, 1056980736
        %vm1097 = vcmp.gt.bf16.partialorder %v1093, 1056980736
        %v1102 = vunpack.c.l.b16 %v1085
        %v1103 = vunpack.c.l.b16 %v1086
        %v1104 = vunpack.c.l.b16 %v1087
        %v1105 = vunpack.c.l.b16 %v1088
        %v1106 = vpack.c.b16 %v1103, %v1102
        %v1107 = vpack.c.b16 %v1105, %v1104
        %1108 = vrot.lane.b32.xlu0 %v1106, 80
        %v1109 = vpop.permute.xlu0 %1108
        %1110 = vrot.lane.b32.xlu0 %v1107, 80
        %v1111 = vpop.permute.xlu0 %1110
        %1112 = vrot.lane.b32.xlu0 %v1106, 16
        %v1113 = vpop.permute.xlu0 %1112
        %1114 = vrot.lane.b32.xlu0 %v1107, 16
        %v1115 = vpop.permute.xlu0 %1114
        %vm1116 = vcmask 130048
        %v1119 = vsel %vm1116, %v1109, %v1113
        %v1122 = vsel %vm1116, %v1111, %v1115
        %v1125 = vunpack.c.l.b16 %v1119
        %v1126 = vunpack.c.h.b16 %v1119
        %v1127 = vunpack.c.l.b16 %v1122
        %v1128 = vunpack.c.h.b16 %v1122
        %v1129 = vpack.c.b16 %v1125, %v1125
        %v1130 = vpack.c.b16 %v1126, %v1126
        %v1131 = vpack.c.b16 %v1127, %v1127
        %v1132 = vpack.c.b16 %v1128, %v1128
        %v1137 = vsel %vm1094, %v1129, %v1085
        %v1138 = vsel %vm1095, %v1130, %v1086
        %v1139 = vsel %vm1096, %v1131, %v1087
        %v1140 = vsel %vm1097, %v1132, %v1088
        %s1141 = scalar_lea.vmem %s9, 80
        %v1142 = vld [vmem:[%s1141] sm:$0xf]
        %v1143 = vld [vmem:[%s1141 + $0x4] sm:$0xf]
        %v1144 = vld [vmem:[%s1141 + $0x8] sm:$0xf]
        %v1145 = vld [vmem:[%s1141 + $0xc] sm:$0xf]
        %vm1146 = vcmp.gt.bf16.partialorder %v1142, 1056980736
        %vm1147 = vcmp.gt.bf16.partialorder %v1143, 1056980736
        %vm1148 = vcmp.gt.bf16.partialorder %v1144, 1056980736
        %vm1149 = vcmp.gt.bf16.partialorder %v1145, 1056980736
        %v1154 = vunpack.c.l.b16 %v1137
        %v1155 = vunpack.c.l.b16 %v1138
        %v1156 = vunpack.c.l.b16 %v1139
        %v1157 = vunpack.c.l.b16 %v1140
        %v1158 = vpack.c.b16 %v1155, %v1154
        %v1159 = vpack.c.b16 %v1157, %v1156
        %1160 = vrot.lane.b32.xlu0 %v1158, 96
        %v1161 = vpop.permute.xlu0 %1160
        %1162 = vrot.lane.b32.xlu0 %v1159, 96
        %v1163 = vpop.permute.xlu0 %1162
        %1164 = vrot.lane.b32.xlu0 %v1158, 32
        %v1165 = vpop.permute.xlu0 %1164
        %1166 = vrot.lane.b32.xlu0 %v1159, 32
        %v1167 = vpop.permute.xlu0 %1166
        %v1170 = vsel %vm558, %v1161, %v1165
        %v1173 = vsel %vm558, %v1163, %v1167
        %v1176 = vunpack.c.l.b16 %v1170
        %v1177 = vunpack.c.h.b16 %v1170
        %v1178 = vunpack.c.l.b16 %v1173
        %v1179 = vunpack.c.h.b16 %v1173
        %v1180 = vpack.c.b16 %v1176, %v1176
        %v1181 = vpack.c.b16 %v1177, %v1177
        %v1182 = vpack.c.b16 %v1178, %v1178
        %v1183 = vpack.c.b16 %v1179, %v1179
        %v1188 = vsel %vm1146, %v1180, %v1137
        %v1189 = vsel %vm1147, %v1181, %v1138
        %v1190 = vsel %vm1148, %v1182, %v1139
        %v1191 = vsel %vm1149, %v1183, %v1140
        %v1192 = vld [vmem:[%s10] sm:$0xf]
        %v1193 = vld [vmem:[%s10 + $0x4] sm:$0xf]
        %v1194 = vld [vmem:[%s10 + $0x8] sm:$0xf]
        %v1195 = vld [vmem:[%s10 + $0xc] sm:$0xf]
        %vm1196 = vcmp.gt.bf16.partialorder %v1192, 1056980736
        %vm1197 = vcmp.gt.bf16.partialorder %v1193, 1056980736
        %vm1198 = vcmp.gt.bf16.partialorder %v1194, 1056980736
        %vm1199 = vcmp.gt.bf16.partialorder %v1195, 1056980736
        %1202 = vrot.lane.b32.xlu0 %v822, 113
        %v1203 = vpop.permute.xlu0 %1202
        %1204 = vrot.lane.b32.xlu0 %v823, 113
        %v1205 = vpop.permute.xlu0 %1204
        %1206 = vrot.lane.b32.xlu0 %v822, 1
        %v1207 = vpop.permute.xlu0 %1206
        %1208 = vrot.lane.b32.xlu0 %v823, 1
        %v1209 = vpop.permute.xlu0 %1208
        %v1212 = vsel %vm897, %v1203, %v1207
        %v1215 = vsel %vm897, %v1205, %v1209
        %v1218 = vunpack.c.l.b16 %v1212
        %v1219 = vunpack.c.h.b16 %v1212
        %v1220 = vunpack.c.l.b16 %v1215
        %v1221 = vunpack.c.h.b16 %v1215
        %v1222 = vpack.c.b16 %v1218, %v1218
        %v1223 = vpack.c.b16 %v1219, %v1219
        %v1224 = vpack.c.b16 %v1220, %v1220
        %v1225 = vpack.c.b16 %v1221, %v1221
        %v1230 = vunpack.c.l.b16 %v822
        %v1231 = vunpack.c.h.b16 %v822
        %v1232 = vunpack.c.l.b16 %v823
        %v1233 = vunpack.c.h.b16 %v823
        %v1234 = vpack.c.b16 %v1230, %v1230
        %v1235 = vpack.c.b16 %v1231, %v1231
        %v1236 = vpack.c.b16 %v1232, %v1232
        %v1237 = vpack.c.b16 %v1233, %v1233
        %v1242 = vsel %vm1196, %v1222, %v1234
        %v1243 = vsel %vm1197, %v1223, %v1235
        %v1244 = vsel %vm1198, %v1224, %v1236
        %v1245 = vsel %vm1199, %v1225, %v1237
        %s1246 = scalar_lea.vmem %s10, 16
        %v1247 = vld [vmem:[%s1246] sm:$0xf]
        %v1248 = vld [vmem:[%s1246 + $0x4] sm:$0xf]
        %v1249 = vld [vmem:[%s1246 + $0x8] sm:$0xf]
        %v1250 = vld [vmem:[%s1246 + $0xc] sm:$0xf]
        %vm1251 = vcmp.gt.bf16.partialorder %v1247, 1056980736
        %vm1252 = vcmp.gt.bf16.partialorder %v1248, 1056980736
        %vm1253 = vcmp.gt.bf16.partialorder %v1249, 1056980736
        %vm1254 = vcmp.gt.bf16.partialorder %v1250, 1056980736
        %v1259 = vunpack.c.l.b16 %v1242
        %v1260 = vunpack.c.l.b16 %v1243
        %v1261 = vunpack.c.l.b16 %v1244
        %v1262 = vunpack.c.l.b16 %v1245
        %v1263 = vpack.c.b16 %v1260, %v1259
        %v1264 = vpack.c.b16 %v1262, %v1261
        %1265 = vrot.lane.b32.xlu0 %v1263, 114
        %v1266 = vpop.permute.xlu0 %1265
        %1267 = vrot.lane.b32.xlu0 %v1264, 114
        %v1268 = vpop.permute.xlu0 %1267
        %1269 = vrot.lane.b32.xlu0 %v1263, 2
        %v1270 = vpop.permute.xlu0 %1269
        %1271 = vrot.lane.b32.xlu0 %v1264, 2
        %v1272 = vpop.permute.xlu0 %1271
        %v1275 = vsel %vm961, %v1266, %v1270
        %v1278 = vsel %vm961, %v1268, %v1272
        %v1281 = vunpack.c.l.b16 %v1275
        %v1282 = vunpack.c.h.b16 %v1275
        %v1283 = vunpack.c.l.b16 %v1278
        %v1284 = vunpack.c.h.b16 %v1278
        %v1285 = vpack.c.b16 %v1281, %v1281
        %v1286 = vpack.c.b16 %v1282, %v1282
        %v1287 = vpack.c.b16 %v1283, %v1283
        %v1288 = vpack.c.b16 %v1284, %v1284
        %v1293 = vsel %vm1251, %v1285, %v1242
        %v1294 = vsel %vm1252, %v1286, %v1243
        %v1295 = vsel %vm1253, %v1287, %v1244
        %v1296 = vsel %vm1254, %v1288, %v1245
        %s1297 = scalar_lea.vmem %s10, 32
        %v1298 = vld [vmem:[%s1297] sm:$0xf]
        %v1299 = vld [vmem:[%s1297 + $0x4] sm:$0xf]
        %v1300 = vld [vmem:[%s1297 + $0x8] sm:$0xf]
        %v1301 = vld [vmem:[%s1297 + $0xc] sm:$0xf]
        %vm1302 = vcmp.gt.bf16.partialorder %v1298, 1056980736
        %vm1303 = vcmp.gt.bf16.partialorder %v1299, 1056980736
        %vm1304 = vcmp.gt.bf16.partialorder %v1300, 1056980736
        %vm1305 = vcmp.gt.bf16.partialorder %v1301, 1056980736
        %v1310 = vunpack.c.l.b16 %v1293
        %v1311 = vunpack.c.l.b16 %v1294
        %v1312 = vunpack.c.l.b16 %v1295
        %v1313 = vunpack.c.l.b16 %v1296
        %v1314 = vpack.c.b16 %v1311, %v1310
        %v1315 = vpack.c.b16 %v1313, %v1312
        %1316 = vrot.lane.b32.xlu0 %v1314, 116
        %v1317 = vpop.permute.xlu0 %1316
        %1318 = vrot.lane.b32.xlu0 %v1315, 116
        %v1319 = vpop.permute.xlu0 %1318
        %1320 = vrot.lane.b32.xlu0 %v1314, 4
        %v1321 = vpop.permute.xlu0 %1320
        %1322 = vrot.lane.b32.xlu0 %v1315, 4
        %v1323 = vpop.permute.xlu0 %1322
        %v1326 = vsel %vm1013, %v1317, %v1321
        %v1329 = vsel %vm1013, %v1319, %v1323
        %v1332 = vunpack.c.l.b16 %v1326
        %v1333 = vunpack.c.h.b16 %v1326
        %v1334 = vunpack.c.l.b16 %v1329
        %v1335 = vunpack.c.h.b16 %v1329
        %v1336 = vpack.c.b16 %v1332, %v1332
        %v1337 = vpack.c.b16 %v1333, %v1333
        %v1338 = vpack.c.b16 %v1334, %v1334
        %v1339 = vpack.c.b16 %v1335, %v1335
        %v1344 = vsel %vm1302, %v1336, %v1293
        %v1345 = vsel %vm1303, %v1337, %v1294
        %v1346 = vsel %vm1304, %v1338, %v1295
        %v1347 = vsel %vm1305, %v1339, %v1296
        %s1348 = scalar_lea.vmem %s10, 48
        %v1349 = vld [vmem:[%s1348] sm:$0xf]
        %v1350 = vld [vmem:[%s1348 + $0x4] sm:$0xf]
        %v1351 = vld [vmem:[%s1348 + $0x8] sm:$0xf]
        %v1352 = vld [vmem:[%s1348 + $0xc] sm:$0xf]
        %vm1353 = vcmp.gt.bf16.partialorder %v1349, 1056980736
        %vm1354 = vcmp.gt.bf16.partialorder %v1350, 1056980736
        %vm1355 = vcmp.gt.bf16.partialorder %v1351, 1056980736
        %vm1356 = vcmp.gt.bf16.partialorder %v1352, 1056980736
        %v1361 = vunpack.c.l.b16 %v1344
        %v1362 = vunpack.c.l.b16 %v1345
        %v1363 = vunpack.c.l.b16 %v1346
        %v1364 = vunpack.c.l.b16 %v1347
        %v1365 = vpack.c.b16 %v1362, %v1361
        %v1366 = vpack.c.b16 %v1364, %v1363
        %1367 = vrot.lane.b32.xlu0 %v1365, 120
        %v1368 = vpop.permute.xlu0 %1367
        %1369 = vrot.lane.b32.xlu0 %v1366, 120
        %v1370 = vpop.permute.xlu0 %1369
        %1371 = vrot.lane.b32.xlu0 %v1365, 8
        %v1372 = vpop.permute.xlu0 %1371
        %1373 = vrot.lane.b32.xlu0 %v1366, 8
        %v1374 = vpop.permute.xlu0 %1373
        %v1377 = vsel %vm707, %v1368, %v1372
        %v1380 = vsel %vm707, %v1370, %v1374
        %v1383 = vunpack.c.l.b16 %v1377
        %v1384 = vunpack.c.h.b16 %v1377
        %v1385 = vunpack.c.l.b16 %v1380
        %v1386 = vunpack.c.h.b16 %v1380
        %v1387 = vpack.c.b16 %v1383, %v1383
        %v1388 = vpack.c.b16 %v1384, %v1384
        %v1389 = vpack.c.b16 %v1385, %v1385
        %v1390 = vpack.c.b16 %v1386, %v1386
        %v1395 = vsel %vm1353, %v1387, %v1344
        %v1396 = vsel %vm1354, %v1388, %v1345
        %v1397 = vsel %vm1355, %v1389, %v1346
        %v1398 = vsel %vm1356, %v1390, %v1347
        %v1399 = vld [vmem:[%s11] sm:$0xf]
        %v1400 = vld [vmem:[%s11 + $0x4] sm:$0xf]
        %v1401 = vld [vmem:[%s11 + $0x8] sm:$0xf]
        %v1402 = vld [vmem:[%s11 + $0xc] sm:$0xf]
        %vm1403 = vcmp.gt.bf16.partialorder %v1399, 1056980736
        %vm1404 = vcmp.gt.bf16.partialorder %v1400, 1056980736
        %vm1405 = vcmp.gt.bf16.partialorder %v1401, 1056980736
        %vm1406 = vcmp.gt.bf16.partialorder %v1402, 1056980736
        %1409 = vrot.lane.b32.xlu0 %v877, 125
        %v1410 = vpop.permute.xlu0 %1409
        %1411 = vrot.lane.b32.xlu0 %v878, 125
        %v1412 = vpop.permute.xlu0 %1411
        %1413 = vrot.lane.b32.xlu0 %v877, 1
        %v1414 = vpop.permute.xlu0 %1413
        %1415 = vrot.lane.b32.xlu0 %v878, 1
        %v1416 = vpop.permute.xlu0 %1415
        %v1419 = vsel %vm897, %v1410, %v1414
        %v1422 = vsel %vm897, %v1412, %v1416
        %v1425 = vunpack.c.l.b16 %v1419
        %v1426 = vunpack.c.h.b16 %v1419
        %v1427 = vunpack.c.l.b16 %v1422
        %v1428 = vunpack.c.h.b16 %v1422
        %v1429 = vpack.c.b16 %v1425, %v1425
        %v1430 = vpack.c.b16 %v1426, %v1426
        %v1431 = vpack.c.b16 %v1427, %v1427
        %v1432 = vpack.c.b16 %v1428, %v1428
        %v1437 = vunpack.c.l.b16 %v877
        %v1438 = vunpack.c.h.b16 %v877
        %v1439 = vunpack.c.l.b16 %v878
        %v1440 = vunpack.c.h.b16 %v878
        %v1441 = vpack.c.b16 %v1437, %v1437
        %v1442 = vpack.c.b16 %v1438, %v1438
        %v1443 = vpack.c.b16 %v1439, %v1439
        %v1444 = vpack.c.b16 %v1440, %v1440
        %v1449 = vsel %vm1403, %v1429, %v1441
        %v1450 = vsel %vm1404, %v1430, %v1442
        %v1451 = vsel %vm1405, %v1431, %v1443
        %v1452 = vsel %vm1406, %v1432, %v1444
        %s1453 = scalar_lea.vmem %s11, 16
        %v1454 = vld [vmem:[%s1453] sm:$0xf]
        %v1455 = vld [vmem:[%s1453 + $0x4] sm:$0xf]
        %v1456 = vld [vmem:[%s1453 + $0x8] sm:$0xf]
        %v1457 = vld [vmem:[%s1453 + $0xc] sm:$0xf]
        %vm1458 = vcmp.gt.bf16.partialorder %v1454, 1056980736
        %vm1459 = vcmp.gt.bf16.partialorder %v1455, 1056980736
        %vm1460 = vcmp.gt.bf16.partialorder %v1456, 1056980736
        %vm1461 = vcmp.gt.bf16.partialorder %v1457, 1056980736
        %v1466 = vunpack.c.l.b16 %v1449
        %v1467 = vunpack.c.l.b16 %v1450
        %v1468 = vunpack.c.l.b16 %v1451
        %v1469 = vunpack.c.l.b16 %v1452
        %v1470 = vpack.c.b16 %v1467, %v1466
        %v1471 = vpack.c.b16 %v1469, %v1468
        %1472 = vrot.lane.b32.xlu0 %v1470, 126
        %v1473 = vpop.permute.xlu0 %1472
        %1474 = vrot.lane.b32.xlu0 %v1471, 126
        %v1475 = vpop.permute.xlu0 %1474
        %1476 = vrot.lane.b32.xlu0 %v1470, 2
        %v1477 = vpop.permute.xlu0 %1476
        %1478 = vrot.lane.b32.xlu0 %v1471, 2
        %v1479 = vpop.permute.xlu0 %1478
        %v1482 = vsel %vm961, %v1473, %v1477
        %v1485 = vsel %vm961, %v1475, %v1479
        %v1488 = vunpack.c.l.b16 %v1482
        %v1489 = vunpack.c.h.b16 %v1482
        %v1490 = vunpack.c.l.b16 %v1485
        %v1491 = vunpack.c.h.b16 %v1485
        %v1492 = vpack.c.b16 %v1488, %v1488
        %v1493 = vpack.c.b16 %v1489, %v1489
        %v1494 = vpack.c.b16 %v1490, %v1490
        %v1495 = vpack.c.b16 %v1491, %v1491
        %v1500 = vsel %vm1458, %v1492, %v1449
        %v1501 = vsel %vm1459, %v1493, %v1450
        %v1502 = vsel %vm1460, %v1494, %v1451
        %v1503 = vsel %vm1461, %v1495, %v1452
        %v1508 = vunpack.c.l.b16 %v1188
        %v1509 = vunpack.c.l.b16 %v1189
        %v1510 = vunpack.c.l.b16 %v1190
        %v1511 = vunpack.c.l.b16 %v1191
        %v1512 = vpack.c.b16 %v1509, %v1508
        %v1513 = vpack.c.b16 %v1511, %v1510
        %v1522 = vunpack.c.l.b16 %v684
        %v1523 = vunpack.c.l.b16 %v685
        %v1524 = vunpack.c.l.b16 %v686
        %v1525 = vunpack.c.l.b16 %v687
        %v1526 = vunpack.c.l.b16 %v688
        %v1527 = vunpack.c.l.b16 %v689
        %v1528 = vunpack.c.l.b16 %v690
        %v1529 = vunpack.c.l.b16 %v691
        %v1530 = vpack.c.b16 %v1523, %v1522
        %v1531 = vpack.c.b16 %v1525, %v1524
        %v1532 = vpack.c.b16 %v1527, %v1526
        %v1533 = vpack.c.b16 %v1529, %v1528
        %vm1538 = vcmask 523264
        %v1540 = vsel %vm1538, %v1512, 0
        %v1543 = vsel %vm1538, %v1513, 0
        %1545 = vmatprep.subr.bf16.mxu0 0
        %1546 = vmatpush1.bf16.msra.mxu0 %v1530
        %1547 = vmatprep.subr.bf16.mxu0 0
        %1548 = vmatpush1.bf16.msra.mxu0 %v1531
        %1549 = vmatprep.subr.bf16.mxu0 0
        %1550 = vmatpush1.bf16.msra.mxu0 %v1532
        %1551 = vmatprep.subr.bf16.mxu0 0
        %1552 = vmatpush1.bf16.msra.mxu0 %v1533
        %1553 = vmatprep.subr.bf16.mxu0 0
        %1554 = vmatpush1.bf16.msra.mxu0 0
        %1555 = vmatprep.subr.bf16.mxu0 0
        %1556 = vmatpush1.bf16.msra.mxu0 0
        %1557 = vmatprep.subr.bf16.mxu0 0
        %1558 = vmatpush1.bf16.msra.mxu0 0
        %1559 = vmatprep.subr.bf16.mxu0 0
        %1560 = vmatpush1.bf16.msra.mxu0 0
        %1561 = vmatprep.subr.bf16.mxu0 0
        %1562 = vmatpush1.bf16.msra.mxu0 0
        %1563 = vmatprep.subr.bf16.mxu0 0
        %1564 = vmatpush1.bf16.msra.mxu0 0
        %1565 = vmatprep.subr.bf16.mxu0 0
        %1566 = vmatpush1.bf16.msra.mxu0 0
        %1567 = vmatprep.subr.bf16.mxu0 0
        %1568 = vmatpush1.bf16.msra.mxu0 0
        %1569 = vmatprep.subr.bf16.mxu0 0
        %1570 = vmatpush1.bf16.msra.mxu0 0
        %1571 = vmatprep.subr.bf16.mxu0 0
        %1572 = vmatpush1.bf16.msra.mxu0 0
        %1573 = vmatprep.subr.bf16.mxu0 0
        %1574 = vmatpush1.bf16.msra.mxu0 0
        %1575 = vmatprep.subr.bf16.mxu0 0
        %1576 = vmatpush1.bf16.msra.mxu0 0
        %1577 = vmatprep.mubr.bf16.mxu0 0
        %1578 = vmatmul.mubr.bf16.gmra.mrb[0].mxu0 %v1540
        %v1579 = vpop.f32.mrb[0].mxu0
        %v1580 = vadd.f32 0.0, %v1579
        %v1581 = vpop.f32.mrb[0].mxu0
        %v1582 = vpop.f32.mrb[0].mxu0
        %v1583 = vadd.f32 0.0, %v1582
        %v1584 = vpop.f32.mrb[0].mxu0
        %1585 = vmatprep.mubr.bf16.mxu0 0
        %1586 = vmatmul.mubr.bf16.gmra.mrb[0].mxu0 %v1543
        %v1587 = vpop.f32.mrb[0].mxu0
        %v1588 = vadd.f32 0.0, %v1587
        %v1589 = vpop.f32.mrb[0].mxu0
        %v1590 = vpop.f32.mrb[0].mxu0
        %v1591 = vadd.f32 0.0, %v1590
        %v1592 = vpop.f32.mrb[0].mxu0
        %1593 = vdwg.mxu0
        %1602 = vrot.lane.b32.xlu0 %v698, 96
        %v1603 = vpop.permute.xlu0 %1602
        %1604 = vrot.lane.b32.xlu0 %v699, 96
        %v1605 = vpop.permute.xlu0 %1604
        %1606 = vrot.lane.b32.xlu0 %v700, 96
        %v1607 = vpop.permute.xlu0 %1606
        %1608 = vrot.lane.b32.xlu0 %v701, 96
        %v1609 = vpop.permute.xlu0 %1608
        %1610 = vrot.lane.b32.xlu0 %v702, 96
        %v1611 = vpop.permute.xlu0 %1610
        %1612 = vrot.lane.b32.xlu0 %v703, 96
        %v1613 = vpop.permute.xlu0 %1612
        %1614 = vrot.lane.b32.xlu0 %v704, 96
        %v1615 = vpop.permute.xlu0 %1614
        %1616 = vrot.lane.b32.xlu0 %v705, 96
        %v1617 = vpop.permute.xlu0 %1616
        %v1619 = vsel %vm707, %v1603, 0
        %v1622 = vsel %vm707, %v1605, 0
        %v1625 = vsel %vm707, %v1607, 0
        %v1628 = vsel %vm707, %v1609, 0
        %v1631 = vsel %vm707, %v1611, 0
        %v1634 = vsel %vm707, %v1613, 0
        %v1637 = vsel %vm707, %v1615, 0
        %v1640 = vsel %vm707, %v1617, 0
        %1642 = vmatprep.subr.bf16.mxu0 0
        %1643 = vmatpush1.bf16.xpose.msra.mxu0 %v1619
        %1644 = vmatprep.subr.bf16.mxu0 0
        %1645 = vmatpush1.bf16.xpose.msra.mxu0 %v1622
        %1646 = vmatprep.subr.bf16.mxu0 0
        %1647 = vmatpush1.bf16.xpose.msra.mxu0 %v1625
        %1648 = vmatprep.subr.bf16.mxu0 0
        %1649 = vmatpush1.bf16.xpose.msra.mxu0 %v1628
        %1650 = vmatprep.subr.bf16.mxu0 0
        %1651 = vmatpush1.bf16.xpose.msra.mxu0 %v1631
        %1652 = vmatprep.subr.bf16.mxu0 0
        %1653 = vmatpush1.bf16.xpose.msra.mxu0 %v1634
        %1654 = vmatprep.subr.bf16.mxu0 0
        %1655 = vmatpush1.bf16.xpose.msra.mxu0 %v1637
        %1656 = vmatprep.subr.bf16.mxu0 0
        %1657 = vmatpush1.bf16.xpose.msra.mxu0 %v1640
        %1658 = vmatprep.subr.bf16.mxu0 0
        %1659 = vmatpush1.bf16.xpose.msra.mxu0 0
        %1660 = vmatprep.subr.bf16.mxu0 0
        %1661 = vmatpush1.bf16.xpose.msra.mxu0 0
        %1662 = vmatprep.subr.bf16.mxu0 0
        %1663 = vmatpush1.bf16.xpose.msra.mxu0 0
        %1664 = vmatprep.subr.bf16.mxu0 0
        %1665 = vmatpush1.bf16.xpose.msra.mxu0 0
        %1666 = vmatprep.subr.bf16.mxu0 0
        %1667 = vmatpush1.bf16.xpose.msra.mxu0 0
        %1668 = vmatprep.subr.bf16.mxu0 0
        %1669 = vmatpush1.bf16.xpose.msra.mxu0 0
        %1670 = vmatprep.subr.bf16.mxu0 0
        %1671 = vmatpush1.bf16.xpose.msra.mxu0 0
        %1672 = vmatprep.subr.bf16.mxu0 0
        %1673 = vmatpush1.bf16.xpose.msra.mxu0 0
        %1674 = vmatprep.mubr.bf16.mxu0 0
        %1675 = vmatmul.mubr.bf16.gmra.mrb[0].mxu0 %v709
        %v1676 = vpop.f32.mrb[0].mxu0
        %v1677 = vadd.f32 %v1580, %v1676
        %v1678 = vpop.f32.mrb[0].mxu0
        %v1679 = vpop.f32.mrb[0].mxu0
        %v1680 = vadd.f32 %v1583, %v1679
        %v1681 = vpop.f32.mrb[0].mxu0
        %1682 = vmatprep.mubr.bf16.mxu0 0
        %1683 = vmatmul.mubr.bf16.gmra.mrb[0].mxu0 %v712
        %v1684 = vpop.f32.mrb[0].mxu0
        %v1685 = vadd.f32 %v1588, %v1684
        %v1686 = vpop.f32.mrb[0].mxu0
        %v1687 = vpop.f32.mrb[0].mxu0
        %v1688 = vadd.f32 %v1591, %v1687
        %v1689 = vpop.f32.mrb[0].mxu0
        %1690 = vdwg.mxu0
        %v1695 = vunpack.c.l.b16 %v1395
        %v1696 = vunpack.c.l.b16 %v1396
        %v1697 = vunpack.c.l.b16 %v1397
        %v1698 = vunpack.c.l.b16 %v1398
        %v1699 = vpack.c.b16 %v1696, %v1695
        %v1700 = vpack.c.b16 %v1698, %v1697
        %v1703 = vunpack.c.l.b16 %v692
        %v1704 = vunpack.c.l.b16 %v693
        %v1705 = vpack.c.b16 %v1704, %v1703
        %v1708 = vsel %vm1116, %v1699, 0
        %v1711 = vsel %vm1116, %v1700, 0
        %1713 = vmatprep.subr.bf16.mxu0 0
        %1714 = vmatpush1.bf16.msra.mxu0 %v1705
        %1715 = vmatprep.subr.bf16.mxu0 0
        %1716 = vmatpush1.bf16.msra.mxu0 0
        %1717 = vmatprep.subr.bf16.mxu0 0
        %1718 = vmatpush1.bf16.msra.mxu0 0
        %1719 = vmatprep.subr.bf16.mxu0 0
        %1720 = vmatpush1.bf16.msra.mxu0 0
        %1721 = vmatprep.subr.bf16.mxu0 0
        %1722 = vmatpush1.bf16.msra.mxu0 0
        %1723 = vmatprep.subr.bf16.mxu0 0
        %1724 = vmatpush1.bf16.msra.mxu0 0
        %1725 = vmatprep.subr.bf16.mxu0 0
        %1726 = vmatpush1.bf16.msra.mxu0 0
        %1727 = vmatprep.subr.bf16.mxu0 0
        %1728 = vmatpush1.bf16.msra.mxu0 0
        %1729 = vmatprep.subr.bf16.mxu0 0
        %1730 = vmatpush1.bf16.msra.mxu0 0
        %1731 = vmatprep.subr.bf16.mxu0 0
        %1732 = vmatpush1.bf16.msra.mxu0 0
        %1733 = vmatprep.subr.bf16.mxu0 0
        %1734 = vmatpush1.bf16.msra.mxu0 0
        %1735 = vmatprep.subr.bf16.mxu0 0
        %1736 = vmatpush1.bf16.msra.mxu0 0
        %1737 = vmatprep.subr.bf16.mxu0 0
        %1738 = vmatpush1.bf16.msra.mxu0 0
        %1739 = vmatprep.subr.bf16.mxu0 0
        %1740 = vmatpush1.bf16.msra.mxu0 0
        %1741 = vmatprep.subr.bf16.mxu0 0
        %1742 = vmatpush1.bf16.msra.mxu0 0
        %1743 = vmatprep.subr.bf16.mxu0 0
        %1744 = vmatpush1.bf16.msra.mxu0 0
        %1745 = vmatprep.mubr.bf16.mxu0 0
        %1746 = vmatmul.mubr.bf16.gmra.mrb[0].mxu0 %v1708
        %v1747 = vpop.f32.mrb[0].mxu0
        %v1748 = vadd.f32 0.0, %v1747
        %v1749 = vpop.f32.mrb[0].mxu0
        %v1750 = vpop.f32.mrb[0].mxu0
        %v1751 = vadd.f32 0.0, %v1750
        %v1752 = vpop.f32.mrb[0].mxu0
        %1753 = vmatprep.mubr.bf16.mxu0 0
        %1754 = vmatmul.mubr.bf16.gmra.mrb[0].mxu0 %v1711
        %v1755 = vpop.f32.mrb[0].mxu0
        %v1756 = vadd.f32 0.0, %v1755
        %v1757 = vpop.f32.mrb[0].mxu0
        %v1758 = vpop.f32.mrb[0].mxu0
        %v1759 = vadd.f32 0.0, %v1758
        %v1760 = vpop.f32.mrb[0].mxu0
        %1761 = vdwg.mxu0
        %v1762 = vadd.f32 %v1677, %v1748
        %v1763 = vadd.f32 %v1680, %v1751
        %v1764 = vadd.f32 %v1685, %v1756
        %v1765 = vadd.f32 %v1688, %v1759
        %v1770 = vunpack.c.l.b16 %v1500
        %v1771 = vunpack.c.l.b16 %v1501
        %v1772 = vunpack.c.l.b16 %v1502
        %v1773 = vunpack.c.l.b16 %v1503
        %v1774 = vpack.c.b16 %v1771, %v1770
        %v1775 = vpack.c.b16 %v1773, %v1772
        %v1777 = vsel %vm1013, %v1774, 0
        %v1780 = vsel %vm1013, %v1775, 0
        %vm1782 = vcmask 1041408
        %v1784 = vsel %vm1782, %v694, 0
        %1786 = vmatprep.subr.bf16.mxu0 0
        %1787 = vmatpush1.bf16.msra.mxu0 %v1784
        %1788 = vmatprep.subr.bf16.mxu0 0
        %1789 = vmatpush1.bf16.msra.mxu0 0
        %1790 = vmatprep.subr.bf16.mxu0 0
        %1791 = vmatpush1.bf16.msra.mxu0 0
        %1792 = vmatprep.subr.bf16.mxu0 0
        %1793 = vmatpush1.bf16.msra.mxu0 0
        %1794 = vmatprep.subr.bf16.mxu0 0
        %1795 = vmatpush1.bf16.msra.mxu0 0
        %1796 = vmatprep.subr.bf16.mxu0 0
        %1797 = vmatpush1.bf16.msra.mxu0 0
        %1798 = vmatprep.subr.bf16.mxu0 0
        %1799 = vmatpush1.bf16.msra.mxu0 0
        %1800 = vmatprep.subr.bf16.mxu0 0
        %1801 = vmatpush1.bf16.msra.mxu0 0
        %1802 = vmatprep.subr.bf16.mxu0 0
        %1803 = vmatpush1.bf16.msra.mxu0 0
        %1804 = vmatprep.subr.bf16.mxu0 0
        %1805 = vmatpush1.bf16.msra.mxu0 0
        %1806 = vmatprep.subr.bf16.mxu0 0
        %1807 = vmatpush1.bf16.msra.mxu0 0
        %1808 = vmatprep.subr.bf16.mxu0 0
        %1809 = vmatpush1.bf16.msra.mxu0 0
        %1810 = vmatprep.subr.bf16.mxu0 0
        %1811 = vmatpush1.bf16.msra.mxu0 0
        %1812 = vmatprep.subr.bf16.mxu0 0
        %1813 = vmatpush1.bf16.msra.mxu0 0
        %1814 = vmatprep.subr.bf16.mxu0 0
        %1815 = vmatpush1.bf16.msra.mxu0 0
        %1816 = vmatprep.subr.bf16.mxu0 0
        %1817 = vmatpush1.bf16.msra.mxu0 0
        %1818 = vmatprep.mubr.bf16.mxu0 0
        %1819 = vmatmul.mubr.bf16.gmra.mrb[0].mxu0 %v1777
        %v1820 = vpop.f32.mrb[0].mxu0
        %v1821 = vadd.f32 0.0, %v1820
        %v1822 = vpop.f32.mrb[0].mxu0
        %v1823 = vpop.f32.mrb[0].mxu0
        %v1824 = vadd.f32 0.0, %v1823
        %v1825 = vpop.f32.mrb[0].mxu0
        %1826 = vmatprep.mubr.bf16.mxu0 0
        %1827 = vmatmul.mubr.bf16.gmra.mrb[0].mxu0 %v1780
        %v1828 = vpop.f32.mrb[0].mxu0
        %v1829 = vadd.f32 0.0, %v1828
        %v1830 = vpop.f32.mrb[0].mxu0
        %v1831 = vpop.f32.mrb[0].mxu0
        %v1832 = vadd.f32 0.0, %v1831
        %v1833 = vpop.f32.mrb[0].mxu0
        %1834 = vdwg.mxu0
        %v1835 = vadd.f32 %v1762, %v1821
        %v1836 = vadd.f32 %v1763, %v1824
        %v1837 = vadd.f32 %v1764, %v1829
        %v1838 = vadd.f32 %v1765, %v1832
        %v1840 = vlaneseq
        %v1841 = vshrl.u32 %v1840, 7
        %v1842 = vsub.s32 0, %v1841
        %v1843 = vrot.slane %v695, %v1842
        %v1845 = vadd.f32 %v1835, %v1843
        %v1846 = vadd.f32 %v1836, %v1843
        %v1847 = vadd.f32 %v1837, %v1843
        %v1848 = vadd.f32 %v1838, %v1843
        %1849 = vmax.xlane.f32.xlu0 %v1845
        %v1850 = vpop.xlane.xlu0 %1849
        %1851 = vmax.xlane.f32.xlu0 %v1846
        %v1852 = vpop.xlane.xlu0 %1851
        %1853 = vmax.xlane.f32.xlu0 %v1847
        %v1854 = vpop.xlane.xlu0 %1853
        %1855 = vmax.xlane.f32.xlu0 %v1848
        %v1856 = vpop.xlane.xlu0 %1855
        %v1857 = vsub.f32 %v1845, %v1850
        %v1858 = vsub.f32 %v1846, %v1852
        %v1859 = vsub.f32 %v1847, %v1854
        %v1860 = vsub.f32 %v1848, %v1856
        %v1861 = vmul.f32 %v1857, 1.442695
        %v1862 = vpow.pop %v1861
        %v1863 = vmul.f32 %v1858, 1.442695
        %v1864 = vpow.pop %v1863
        %v1865 = vmul.f32 %v1859, 1.442695
        %v1866 = vpow.pop %v1865
        %v1867 = vmul.f32 %v1860, 1.442695
        %v1868 = vpow.pop %v1867
        %1869 = vadd.xlane.f32.xlu0 %v1862
        %v1870 = vpop.xlane.xlu0 %1869
        %1871 = vadd.xlane.f32.xlu0 %v1864
        %v1872 = vpop.xlane.xlu0 %1871
        %1873 = vadd.xlane.f32.xlu0 %v1866
        %v1874 = vpop.xlane.xlu0 %1873
        %1875 = vadd.xlane.f32.xlu0 %v1868
        %v1876 = vpop.xlane.xlu0 %1875
        %v1877 = vrcp.pop %v1870
        %v1878 = vrcp.pop %v1872
        %v1879 = vrcp.pop %v1874
        %v1880 = vrcp.pop %v1876
        %v1881 = vmul.f32 %v1862, %v1877
        %v1882 = vmul.f32 %v1864, %v1878
        %v1883 = vmul.f32 %v1866, %v1879
        %v1884 = vmul.f32 %v1868, %v1880
        %v1885 = vpack.c.bf16 %v1882, %v1881
        %v1886 = vpack.c.bf16 %v1884, %v1883
        %v1889 = vunpack.c.l.b16 %v1885
        %v1890 = vunpack.c.h.b16 %v1885
        %v1891 = vunpack.c.l.b16 %v1886
        %v1892 = vunpack.c.h.b16 %v1886
        %v1893 = vpack.c.b16 %v1889, %v1889
        %v1894 = vpack.c.b16 %v1890, %v1890
        %v1895 = vpack.c.b16 %v1891, %v1891
        %v1896 = vpack.c.b16 %v1892, %v1892
        %1901 = vst [vmem:[%s471] sm:$0xf] %v1893
        %1902 = vst [vmem:[%s471 + $0x4] sm:$0xf] %v1894
        %1903 = vst [vmem:[%s471 + $0x8] sm:$0xf] %v1895
        %1904 = vst [vmem:[%s471 + $0xc] sm:$0xf] %v1896
        %1905 = vrot.lane.b32.xlu0 %v698, 64
        %v1906 = vpop.permute.xlu0 %1905
        %1907 = vrot.lane.b32.xlu0 %v699, 64
        %v1908 = vpop.permute.xlu0 %1907
        %1909 = vrot.lane.b32.xlu0 %v700, 64
        %v1910 = vpop.permute.xlu0 %1909
        %1911 = vrot.lane.b32.xlu0 %v701, 64
        %v1912 = vpop.permute.xlu0 %1911
        %1913 = vrot.lane.b32.xlu0 %v702, 64
        %v1914 = vpop.permute.xlu0 %1913
        %1915 = vrot.lane.b32.xlu0 %v703, 64
        %v1916 = vpop.permute.xlu0 %1915
        %1917 = vrot.lane.b32.xlu0 %v704, 64
        %v1918 = vpop.permute.xlu0 %1917
        %1919 = vrot.lane.b32.xlu0 %v705, 64
        %v1920 = vpop.permute.xlu0 %1919
        %1929 = vmatprep.subr.bf16.mxu0 0
        %1930 = vmatpush1.bf16.msra.mxu0 %v1906
        %1931 = vmatprep.subr.bf16.mxu0 0
        %1932 = vmatpush1.bf16.msra.mxu0 %v1908
        %1933 = vmatprep.subr.bf16.mxu0 0
        %1934 = vmatpush1.bf16.msra.mxu0 %v1910
        %1935 = vmatprep.subr.bf16.mxu0 0
        %1936 = vmatpush1.bf16.msra.mxu0 %v1912
        %1937 = vmatprep.subr.bf16.mxu0 0
        %1938 = vmatpush1.bf16.msra.mxu0 %v1914
        %1939 = vmatprep.subr.bf16.mxu0 0
        %1940 = vmatpush1.bf16.msra.mxu0 %v1916
        %1941 = vmatprep.subr.bf16.mxu0 0
        %1942 = vmatpush1.bf16.msra.mxu0 %v1918
        %1943 = vmatprep.subr.bf16.mxu0 0
        %1944 = vmatpush1.bf16.msra.mxu0 %v1920
        %1945 = vmatprep.subr.bf16.mxu0 0
        %1946 = vmatpush1.bf16.msra.mxu0 0
        %1947 = vmatprep.subr.bf16.mxu0 0
        %1948 = vmatpush1.bf16.msra.mxu0 0
        %1949 = vmatprep.subr.bf16.mxu0 0
        %1950 = vmatpush1.bf16.msra.mxu0 0
        %1951 = vmatprep.subr.bf16.mxu0 0
        %1952 = vmatpush1.bf16.msra.mxu0 0
        %1953 = vmatprep.subr.bf16.mxu0 0
        %1954 = vmatpush1.bf16.msra.mxu0 0
        %1955 = vmatprep.subr.bf16.mxu0 0
        %1956 = vmatpush1.bf16.msra.mxu0 0
        %1957 = vmatprep.subr.bf16.mxu0 0
        %1958 = vmatpush1.bf16.msra.mxu0 0
        %1959 = vmatprep.subr.bf16.mxu0 0
        %1960 = vmatpush1.bf16.msra.mxu0 0
        %1961 = vmatprep.mubr.bf16.mxu0 0
        %1962 = vmatmul.mubr.bf16.gmra.mrb[0].mxu0 %v1885
        %v1963 = vpop.f32.mrb[0].mxu0
        %v1964 = vadd.f32 0.0, %v1963
        %v1965 = vpop.f32.mrb[0].mxu0
        %v1966 = vpop.f32.mrb[0].mxu0
        %v1967 = vadd.f32 0.0, %v1966
        %v1968 = vpop.f32.mrb[0].mxu0
        %1969 = vmatprep.mubr.bf16.mxu0 0
        %1970 = vmatmul.mubr.bf16.gmra.mrb[0].mxu0 %v1886
        %v1971 = vpop.f32.mrb[0].mxu0
        %v1972 = vadd.f32 0.0, %v1971
        %v1973 = vpop.f32.mrb[0].mxu0
        %v1974 = vpop.f32.mrb[0].mxu0
        %v1975 = vadd.f32 0.0, %v1974
        %v1976 = vpop.f32.mrb[0].mxu0
        %1977 = vdwg.mxu0
        %1978 = vst.msk [vmem:[%s464] sm:$0xff] %vm707, %v1964
        %1979 = vst.msk [vmem:[%s464 + $0x8] sm:$0xff] %vm707, %v1967
        %1980 = vst.msk [vmem:[%s464 + $0x10] sm:$0xff] %vm707, %v1972
        %1981 = vst.msk [vmem:[%s464 + $0x18] sm:$0xff] %vm707, %v1975
        %s1982 = scalar_lea.vmem %s3, 4
        %v1983 = vld [vmem:[%s1982] sm:$0xf]
        %1986 = vrot.lane.b32.xlu0 %v696, 120
        %v1987 = vpop.permute.xlu0 %1986
        %1988 = vrot.lane.b32.xlu0 %v697, 120
        %v1989 = vpop.permute.xlu0 %1988
        %v1991 = vsel %vm707, %v1987, 0
        %v1994 = vsel %vm707, %v1989, 0
        %v1997 = vsel %vm714, %v1983, 0
        %1999 = vmatprep.subr.bf16.mxu0 0
        %2000 = vmatpush1.bf16.msra.mxu0 %v1997
        %2001 = vmatprep.subr.bf16.mxu0 0
        %2002 = vmatpush1.bf16.msra.mxu0 0
        %2003 = vmatprep.subr.bf16.mxu0 0
        %2004 = vmatpush1.bf16.msra.mxu0 0
        %2005 = vmatprep.subr.bf16.mxu0 0
        %2006 = vmatpush1.bf16.msra.mxu0 0
        %2007 = vmatprep.subr.bf16.mxu0 0
        %2008 = vmatpush1.bf16.msra.mxu0 0
        %2009 = vmatprep.subr.bf16.mxu0 0
        %2010 = vmatpush1.bf16.msra.mxu0 0
        %2011 = vmatprep.subr.bf16.mxu0 0
        %2012 = vmatpush1.bf16.msra.mxu0 0
        %2013 = vmatprep.subr.bf16.mxu0 0
        %2014 = vmatpush1.bf16.msra.mxu0 0
        %2015 = vmatprep.subr.bf16.mxu0 0
        %2016 = vmatpush1.bf16.msra.mxu0 0
        %2017 = vmatprep.subr.bf16.mxu0 0
        %2018 = vmatpush1.bf16.msra.mxu0 0
        %2019 = vmatprep.subr.bf16.mxu0 0
        %2020 = vmatpush1.bf16.msra.mxu0 0
        %2021 = vmatprep.subr.bf16.mxu0 0
        %2022 = vmatpush1.bf16.msra.mxu0 0
        %2023 = vmatprep.subr.bf16.mxu0 0
        %2024 = vmatpush1.bf16.msra.mxu0 0
        %2025 = vmatprep.subr.bf16.mxu0 0
        %2026 = vmatpush1.bf16.msra.mxu0 0
        %2027 = vmatprep.subr.bf16.mxu0 0
        %2028 = vmatpush1.bf16.msra.mxu0 0
        %2029 = vmatprep.subr.bf16.mxu0 0
        %2030 = vmatpush1.bf16.msra.mxu0 0
        %2031 = vmatprep.mubr.bf16.mxu0 0
        %2032 = vmatmul.mubr.bf16.gmra.mrb[0].mxu0 %v1991
        %v2033 = vpop.f32.mrb[0].mxu0
        %v2034 = vadd.f32 0.0, %v2033
        %v2035 = vpop.f32.mrb[0].mxu0
        %v2036 = vpop.f32.mrb[0].mxu0
        %v2037 = vadd.f32 0.0, %v2036
        %v2038 = vpop.f32.mrb[0].mxu0
        %2039 = vmatprep.mubr.bf16.mxu0 0
        %2040 = vmatmul.mubr.bf16.gmra.mrb[0].mxu0 %v1994
        %v2041 = vpop.f32.mrb[0].mxu0
        %v2042 = vadd.f32 0.0, %v2041
        %v2043 = vpop.f32.mrb[0].mxu0
        %v2044 = vpop.f32.mrb[0].mxu0
        %v2045 = vadd.f32 0.0, %v2044
        %v2046 = vpop.f32.mrb[0].mxu0
        %2047 = vdwg.mxu0
        %v2048 = vpack.c.bf16 %v2037, %v2034
        %v2049 = vpack.c.bf16 %v2045, %v2042
        %s2050 = scalar_lea.vmem %s4, 4
        %v2051 = vld [vmem:[%s2050] sm:$0xf]
        %v2053 = vsel %vm714, %v2051, 0
        %2055 = vmatprep.subr.bf16.mxu0 0
        %2056 = vmatpush1.bf16.msra.mxu0 %v2053
        %2057 = vmatprep.subr.bf16.mxu0 0
        %2058 = vmatpush1.bf16.msra.mxu0 0
        %2059 = vmatprep.subr.bf16.mxu0 0
        %2060 = vmatpush1.bf16.msra.mxu0 0
        %2061 = vmatprep.subr.bf16.mxu0 0
        %2062 = vmatpush1.bf16.msra.mxu0 0
        %2063 = vmatprep.subr.bf16.mxu0 0
        %2064 = vmatpush1.bf16.msra.mxu0 0
        %2065 = vmatprep.subr.bf16.mxu0 0
        %2066 = vmatpush1.bf16.msra.mxu0 0
        %2067 = vmatprep.subr.bf16.mxu0 0
        %2068 = vmatpush1.bf16.msra.mxu0 0
        %2069 = vmatprep.subr.bf16.mxu0 0
        %2070 = vmatpush1.bf16.msra.mxu0 0
        %2071 = vmatprep.subr.bf16.mxu0 0
        %2072 = vmatpush1.bf16.msra.mxu0 0
        %2073 = vmatprep.subr.bf16.mxu0 0
        %2074 = vmatpush1.bf16.msra.mxu0 0
        %2075 = vmatprep.subr.bf16.mxu0 0
        %2076 = vmatpush1.bf16.msra.mxu0 0
        %2077 = vmatprep.subr.bf16.mxu0 0
        %2078 = vmatpush1.bf16.msra.mxu0 0
        %2079 = vmatprep.subr.bf16.mxu0 0
        %2080 = vmatpush1.bf16.msra.mxu0 0
        %2081 = vmatprep.subr.bf16.mxu0 0
        %2082 = vmatpush1.bf16.msra.mxu0 0
        %2083 = vmatprep.subr.bf16.mxu0 0
        %2084 = vmatpush1.bf16.msra.mxu0 0
        %2085 = vmatprep.subr.bf16.mxu0 0
        %2086 = vmatpush1.bf16.msra.mxu0 0
        %2087 = vmatprep.mubr.bf16.mxu0 0
        %2088 = vmatmul.mubr.bf16.gmra.mrb[0].mxu0 %v1991
        %v2089 = vpop.f32.mrb[0].mxu0
        %v2090 = vadd.f32 0.0, %v2089
        %v2091 = vpop.f32.mrb[0].mxu0
        %v2092 = vpop.f32.mrb[0].mxu0
        %v2093 = vadd.f32 0.0, %v2092
        %v2094 = vpop.f32.mrb[0].mxu0
        %2095 = vmatprep.mubr.bf16.mxu0 0
        %2096 = vmatmul.mubr.bf16.gmra.mrb[0].mxu0 %v1994
        %v2097 = vpop.f32.mrb[0].mxu0
        %v2098 = vadd.f32 0.0, %v2097
        %v2099 = vpop.f32.mrb[0].mxu0
        %v2100 = vpop.f32.mrb[0].mxu0
        %v2101 = vadd.f32 0.0, %v2100
        %v2102 = vpop.f32.mrb[0].mxu0
        %2103 = vdwg.mxu0
        %v2104 = vpack.c.bf16 %v2093, %v2090
        %v2105 = vpack.c.bf16 %v2101, %v2098
        %s2106 = scalar_lea.vmem %s5, 4
        %v2107 = vld [vmem:[%s2106] sm:$0xf]
        %v2109 = vsel %vm714, %v2107, 0
        %2111 = vmatprep.subr.bf16.mxu0 0
        %2112 = vmatpush1.bf16.msra.mxu0 %v2109
        %2113 = vmatprep.subr.bf16.mxu0 0
        %2114 = vmatpush1.bf16.msra.mxu0 0
        %2115 = vmatprep.subr.bf16.mxu0 0
        %2116 = vmatpush1.bf16.msra.mxu0 0
        %2117 = vmatprep.subr.bf16.mxu0 0
        %2118 = vmatpush1.bf16.msra.mxu0 0
        %2119 = vmatprep.subr.bf16.mxu0 0
        %2120 = vmatpush1.bf16.msra.mxu0 0
        %2121 = vmatprep.subr.bf16.mxu0 0
        %2122 = vmatpush1.bf16.msra.mxu0 0
        %2123 = vmatprep.subr.bf16.mxu0 0
        %2124 = vmatpush1.bf16.msra.mxu0 0
        %2125 = vmatprep.subr.bf16.mxu0 0
        %2126 = vmatpush1.bf16.msra.mxu0 0
        %2127 = vmatprep.subr.bf16.mxu0 0
        %2128 = vmatpush1.bf16.msra.mxu0 0
        %2129 = vmatprep.subr.bf16.mxu0 0
        %2130 = vmatpush1.bf16.msra.mxu0 0
        %2131 = vmatprep.subr.bf16.mxu0 0
        %2132 = vmatpush1.bf16.msra.mxu0 0
        %2133 = vmatprep.subr.bf16.mxu0 0
        %2134 = vmatpush1.bf16.msra.mxu0 0
        %2135 = vmatprep.subr.bf16.mxu0 0
        %2136 = vmatpush1.bf16.msra.mxu0 0
        %2137 = vmatprep.subr.bf16.mxu0 0
        %2138 = vmatpush1.bf16.msra.mxu0 0
        %2139 = vmatprep.subr.bf16.mxu0 0
        %2140 = vmatpush1.bf16.msra.mxu0 0
        %2141 = vmatprep.subr.bf16.mxu0 0
        %2142 = vmatpush1.bf16.msra.mxu0 0
        %2143 = vmatprep.mubr.bf16.mxu0 0
        %2144 = vmatmul.mubr.bf16.gmra.mrb[0].mxu0 %v1991
        %v2145 = vpop.f32.mrb[0].mxu0
        %v2146 = vadd.f32 0.0, %v2145
        %v2147 = vpop.f32.mrb[0].mxu0
        %v2148 = vpop.f32.mrb[0].mxu0
        %v2149 = vadd.f32 0.0, %v2148
        %v2150 = vpop.f32.mrb[0].mxu0
        %2151 = vmatprep.mubr.bf16.mxu0 0
        %2152 = vmatmul.mubr.bf16.gmra.mrb[0].mxu0 %v1994
        %v2153 = vpop.f32.mrb[0].mxu0
        %v2154 = vadd.f32 0.0, %v2153
        %v2155 = vpop.f32.mrb[0].mxu0
        %v2156 = vpop.f32.mrb[0].mxu0
        %v2157 = vadd.f32 0.0, %v2156
        %v2158 = vpop.f32.mrb[0].mxu0
        %2159 = vdwg.mxu0
        %v2160 = vpack.c.bf16 %v2149, %v2146
        %v2161 = vpack.c.bf16 %v2157, %v2154
        %v2162 = vld [vmem:[%s9] sm:$0xf]
        %v2163 = vld [vmem:[%s9 + $0x4] sm:$0xf]
        %v2164 = vld [vmem:[%s9 + $0x8] sm:$0xf]
        %v2165 = vld [vmem:[%s9 + $0xc] sm:$0xf]
        %vm2166 = vcmp.gt.bf16.partialorder %v2162, 1056980736
        %vm2167 = vcmp.gt.bf16.partialorder %v2163, 1056980736
        %vm2168 = vcmp.gt.bf16.partialorder %v2164, 1056980736
        %vm2169 = vcmp.gt.bf16.partialorder %v2165, 1056980736
        %2172 = vrot.lane.b32.xlu0 %v2048, 65
        %v2173 = vpop.permute.xlu0 %2172
        %2174 = vrot.lane.b32.xlu0 %v2049, 65
        %v2175 = vpop.permute.xlu0 %2174
        %2176 = vrot.lane.b32.xlu0 %v2048, 1
        %v2177 = vpop.permute.xlu0 %2176
        %2178 = vrot.lane.b32.xlu0 %v2049, 1
        %v2179 = vpop.permute.xlu0 %2178
        %v2182 = vsel %vm897, %v2173, %v2177
        %v2185 = vsel %vm897, %v2175, %v2179
        %v2188 = vunpack.c.l.b16 %v2182
        %v2189 = vunpack.c.h.b16 %v2182
        %v2190 = vunpack.c.l.b16 %v2185
        %v2191 = vunpack.c.h.b16 %v2185
        %v2192 = vpack.c.b16 %v2188, %v2188
        %v2193 = vpack.c.b16 %v2189, %v2189
        %v2194 = vpack.c.b16 %v2190, %v2190
        %v2195 = vpack.c.b16 %v2191, %v2191
        %v2200 = vunpack.c.l.b16 %v2048
        %v2201 = vunpack.c.h.b16 %v2048
        %v2202 = vunpack.c.l.b16 %v2049
        %v2203 = vunpack.c.h.b16 %v2049
        %v2204 = vpack.c.b16 %v2200, %v2200
        %v2205 = vpack.c.b16 %v2201, %v2201
        %v2206 = vpack.c.b16 %v2202, %v2202
        %v2207 = vpack.c.b16 %v2203, %v2203
        %v2212 = vsel %vm2166, %v2192, %v2204
        %v2213 = vsel %vm2167, %v2193, %v2205
        %v2214 = vsel %vm2168, %v2194, %v2206
        %v2215 = vsel %vm2169, %v2195, %v2207
        %v2216 = vld [vmem:[%s934] sm:$0xf]
        %v2217 = vld [vmem:[%s934 + $0x4] sm:$0xf]
        %v2218 = vld [vmem:[%s934 + $0x8] sm:$0xf]
        %v2219 = vld [vmem:[%s934 + $0xc] sm:$0xf]
        %vm2220 = vcmp.gt.bf16.partialorder %v2216, 1056980736
        %vm2221 = vcmp.gt.bf16.partialorder %v2217, 1056980736
        %vm2222 = vcmp.gt.bf16.partialorder %v2218, 1056980736
        %vm2223 = vcmp.gt.bf16.partialorder %v2219, 1056980736
        %v2228 = vunpack.c.l.b16 %v2212
        %v2229 = vunpack.c.l.b16 %v2213
        %v2230 = vunpack.c.l.b16 %v2214
        %v2231 = vunpack.c.l.b16 %v2215
        %v2232 = vpack.c.b16 %v2229, %v2228
        %v2233 = vpack.c.b16 %v2231, %v2230
        %2234 = vrot.lane.b32.xlu0 %v2232, 66
        %v2235 = vpop.permute.xlu0 %2234
        %2236 = vrot.lane.b32.xlu0 %v2233, 66
        %v2237 = vpop.permute.xlu0 %2236
        %2238 = vrot.lane.b32.xlu0 %v2232, 2
        %v2239 = vpop.permute.xlu0 %2238
        %2240 = vrot.lane.b32.xlu0 %v2233, 2
        %v2241 = vpop.permute.xlu0 %2240
        %v2244 = vsel %vm961, %v2235, %v2239
        %v2247 = vsel %vm961, %v2237, %v2241
        %v2250 = vunpack.c.l.b16 %v2244
        %v2251 = vunpack.c.h.b16 %v2244
        %v2252 = vunpack.c.l.b16 %v2247
        %v2253 = vunpack.c.h.b16 %v2247
        %v2254 = vpack.c.b16 %v2250, %v2250
        %v2255 = vpack.c.b16 %v2251, %v2251
        %v2256 = vpack.c.b16 %v2252, %v2252
        %v2257 = vpack.c.b16 %v2253, %v2253
        %v2262 = vsel %vm2220, %v2254, %v2212
        %v2263 = vsel %vm2221, %v2255, %v2213
        %v2264 = vsel %vm2222, %v2256, %v2214
        %v2265 = vsel %vm2223, %v2257, %v2215
        %v2266 = vld [vmem:[%s986] sm:$0xf]
        %v2267 = vld [vmem:[%s986 + $0x4] sm:$0xf]
        %v2268 = vld [vmem:[%s986 + $0x8] sm:$0xf]
        %v2269 = vld [vmem:[%s986 + $0xc] sm:$0xf]
        %vm2270 = vcmp.gt.bf16.partialorder %v2266, 1056980736
        %vm2271 = vcmp.gt.bf16.partialorder %v2267, 1056980736
        %vm2272 = vcmp.gt.bf16.partialorder %v2268, 1056980736
        %vm2273 = vcmp.gt.bf16.partialorder %v2269, 1056980736
        %v2278 = vunpack.c.l.b16 %v2262
        %v2279 = vunpack.c.l.b16 %v2263
        %v2280 = vunpack.c.l.b16 %v2264
        %v2281 = vunpack.c.l.b16 %v2265
        %v2282 = vpack.c.b16 %v2279, %v2278
        %v2283 = vpack.c.b16 %v2281, %v2280
        %2284 = vrot.lane.b32.xlu0 %v2282, 68
        %v2285 = vpop.permute.xlu0 %2284
        %2286 = vrot.lane.b32.xlu0 %v2283, 68
        %v2287 = vpop.permute.xlu0 %2286
        %2288 = vrot.lane.b32.xlu0 %v2282, 4
        %v2289 = vpop.permute.xlu0 %2288
        %2290 = vrot.lane.b32.xlu0 %v2283, 4
        %v2291 = vpop.permute.xlu0 %2290
        %v2294 = vsel %vm1013, %v2285, %v2289
        %v2297 = vsel %vm1013, %v2287, %v2291
        %v2300 = vunpack.c.l.b16 %v2294
        %v2301 = vunpack.c.h.b16 %v2294
        %v2302 = vunpack.c.l.b16 %v2297
        %v2303 = vunpack.c.h.b16 %v2297
        %v2304 = vpack.c.b16 %v2300, %v2300
        %v2305 = vpack.c.b16 %v2301, %v2301
        %v2306 = vpack.c.b16 %v2302, %v2302
        %v2307 = vpack.c.b16 %v2303, %v2303
        %v2312 = vsel %vm2270, %v2304, %v2262
        %v2313 = vsel %vm2271, %v2305, %v2263
        %v2314 = vsel %vm2272, %v2306, %v2264
        %v2315 = vsel %vm2273, %v2307, %v2265
        %v2316 = vld [vmem:[%s1038] sm:$0xf]
        %v2317 = vld [vmem:[%s1038 + $0x4] sm:$0xf]
        %v2318 = vld [vmem:[%s1038 + $0x8] sm:$0xf]
        %v2319 = vld [vmem:[%s1038 + $0xc] sm:$0xf]
        %vm2320 = vcmp.gt.bf16.partialorder %v2316, 1056980736
        %vm2321 = vcmp.gt.bf16.partialorder %v2317, 1056980736
        %vm2322 = vcmp.gt.bf16.partialorder %v2318, 1056980736
        %vm2323 = vcmp.gt.bf16.partialorder %v2319, 1056980736
        %v2328 = vunpack.c.l.b16 %v2312
        %v2329 = vunpack.c.l.b16 %v2313
        %v2330 = vunpack.c.l.b16 %v2314
        %v2331 = vunpack.c.l.b16 %v2315
        %v2332 = vpack.c.b16 %v2329, %v2328
        %v2333 = vpack.c.b16 %v2331, %v2330
        %2334 = vrot.lane.b32.xlu0 %v2332, 72
        %v2335 = vpop.permute.xlu0 %2334
        %2336 = vrot.lane.b32.xlu0 %v2333, 72
        %v2337 = vpop.permute.xlu0 %2336
        %2338 = vrot.lane.b32.xlu0 %v2332, 8
        %v2339 = vpop.permute.xlu0 %2338
        %2340 = vrot.lane.b32.xlu0 %v2333, 8
        %v2341 = vpop.permute.xlu0 %2340
        %v2344 = vsel %vm707, %v2335, %v2339
        %v2347 = vsel %vm707, %v2337, %v2341
        %v2350 = vunpack.c.l.b16 %v2344
        %v2351 = vunpack.c.h.b16 %v2344
        %v2352 = vunpack.c.l.b16 %v2347
        %v2353 = vunpack.c.h.b16 %v2347
        %v2354 = vpack.c.b16 %v2350, %v2350
        %v2355 = vpack.c.b16 %v2351, %v2351
        %v2356 = vpack.c.b16 %v2352, %v2352
        %v2357 = vpack.c.b16 %v2353, %v2353
        %v2362 = vsel %vm2320, %v2354, %v2312
        %v2363 = vsel %vm2321, %v2355, %v2313
        %v2364 = vsel %vm2322, %v2356, %v2314
        %v2365 = vsel %vm2323, %v2357, %v2315
        %v2366 = vld [vmem:[%s1089] sm:$0xf]
        %v2367 = vld [vmem:[%s1089 + $0x4] sm:$0xf]
        %v2368 = vld [vmem:[%s1089 + $0x8] sm:$0xf]
        %v2369 = vld [vmem:[%s1089 + $0xc] sm:$0xf]
        %vm2370 = vcmp.gt.bf16.partialorder %v2366, 1056980736
        %vm2371 = vcmp.gt.bf16.partialorder %v2367, 1056980736
        %vm2372 = vcmp.gt.bf16.partialorder %v2368, 1056980736
        %vm2373 = vcmp.gt.bf16.partialorder %v2369, 1056980736
        %v2378 = vunpack.c.l.b16 %v2362
        %v2379 = vunpack.c.l.b16 %v2363
        %v2380 = vunpack.c.l.b16 %v2364
        %v2381 = vunpack.c.l.b16 %v2365
        %v2382 = vpack.c.b16 %v2379, %v2378
        %v2383 = vpack.c.b16 %v2381, %v2380
        %2384 = vrot.lane.b32.xlu0 %v2382, 80
        %v2385 = vpop.permute.xlu0 %2384
        %2386 = vrot.lane.b32.xlu0 %v2383, 80
        %v2387 = vpop.permute.xlu0 %2386
        %2388 = vrot.lane.b32.xlu0 %v2382, 16
        %v2389 = vpop.permute.xlu0 %2388
        %2390 = vrot.lane.b32.xlu0 %v2383, 16
        %v2391 = vpop.permute.xlu0 %2390
        %v2394 = vsel %vm1116, %v2385, %v2389
        %v2397 = vsel %vm1116, %v2387, %v2391
        %v2400 = vunpack.c.l.b16 %v2394
        %v2401 = vunpack.c.h.b16 %v2394
        %v2402 = vunpack.c.l.b16 %v2397
        %v2403 = vunpack.c.h.b16 %v2397
        %v2404 = vpack.c.b16 %v2400, %v2400
        %v2405 = vpack.c.b16 %v2401, %v2401
        %v2406 = vpack.c.b16 %v2402, %v2402
        %v2407 = vpack.c.b16 %v2403, %v2403
        %v2412 = vsel %vm2370, %v2404, %v2362
        %v2413 = vsel %vm2371, %v2405, %v2363
        %v2414 = vsel %vm2372, %v2406, %v2364
        %v2415 = vsel %vm2373, %v2407, %v2365
        %v2416 = vld [vmem:[%s1141] sm:$0xf]
        %v2417 = vld [vmem:[%s1141 + $0x4] sm:$0xf]
        %v2418 = vld [vmem:[%s1141 + $0x8] sm:$0xf]
        %v2419 = vld [vmem:[%s1141 + $0xc] sm:$0xf]
        %vm2420 = vcmp.gt.bf16.partialorder %v2416, 1056980736
        %vm2421 = vcmp.gt.bf16.partialorder %v2417, 1056980736
        %vm2422 = vcmp.gt.bf16.partialorder %v2418, 1056980736
        %vm2423 = vcmp.gt.bf16.partialorder %v2419, 1056980736
        %v2428 = vunpack.c.l.b16 %v2412
        %v2429 = vunpack.c.l.b16 %v2413
        %v2430 = vunpack.c.l.b16 %v2414
        %v2431 = vunpack.c.l.b16 %v2415
        %v2432 = vpack.c.b16 %v2429, %v2428
        %v2433 = vpack.c.b16 %v2431, %v2430
        %2434 = vrot.lane.b32.xlu0 %v2432, 96
        %v2435 = vpop.permute.xlu0 %2434
        %2436 = vrot.lane.b32.xlu0 %v2433, 96
        %v2437 = vpop.permute.xlu0 %2436
        %2438 = vrot.lane.b32.xlu0 %v2432, 32
        %v2439 = vpop.permute.xlu0 %2438
        %2440 = vrot.lane.b32.xlu0 %v2433, 32
        %v2441 = vpop.permute.xlu0 %2440
        %v2444 = vsel %vm558, %v2435, %v2439
        %v2447 = vsel %vm558, %v2437, %v2441
        %v2450 = vunpack.c.l.b16 %v2444
        %v2451 = vunpack.c.h.b16 %v2444
        %v2452 = vunpack.c.l.b16 %v2447
        %v2453 = vunpack.c.h.b16 %v2447
        %v2454 = vpack.c.b16 %v2450, %v2450
        %v2455 = vpack.c.b16 %v2451, %v2451
        %v2456 = vpack.c.b16 %v2452, %v2452
        %v2457 = vpack.c.b16 %v2453, %v2453
        %v2462 = vsel %vm2420, %v2454, %v2412
        %v2463 = vsel %vm2421, %v2455, %v2413
        %v2464 = vsel %vm2422, %v2456, %v2414
        %v2465 = vsel %vm2423, %v2457, %v2415
        %v2466 = vld [vmem:[%s10] sm:$0xf]
        %v2467 = vld [vmem:[%s10 + $0x4] sm:$0xf]
        %v2468 = vld [vmem:[%s10 + $0x8] sm:$0xf]
        %v2469 = vld [vmem:[%s10 + $0xc] sm:$0xf]
        %vm2470 = vcmp.gt.bf16.partialorder %v2466, 1056980736
        %vm2471 = vcmp.gt.bf16.partialorder %v2467, 1056980736
        %vm2472 = vcmp.gt.bf16.partialorder %v2468, 1056980736
        %vm2473 = vcmp.gt.bf16.partialorder %v2469, 1056980736
        %2476 = vrot.lane.b32.xlu0 %v2104, 113
        %v2477 = vpop.permute.xlu0 %2476
        %2478 = vrot.lane.b32.xlu0 %v2105, 113
        %v2479 = vpop.permute.xlu0 %2478
        %2480 = vrot.lane.b32.xlu0 %v2104, 1
        %v2481 = vpop.permute.xlu0 %2480
        %2482 = vrot.lane.b32.xlu0 %v2105, 1
        %v2483 = vpop.permute.xlu0 %2482
        %v2486 = vsel %vm897, %v2477, %v2481
        %v2489 = vsel %vm897, %v2479, %v2483
        %v2492 = vunpack.c.l.b16 %v2486
        %v2493 = vunpack.c.h.b16 %v2486
        %v2494 = vunpack.c.l.b16 %v2489
        %v2495 = vunpack.c.h.b16 %v2489
        %v2496 = vpack.c.b16 %v2492, %v2492
        %v2497 = vpack.c.b16 %v2493, %v2493
        %v2498 = vpack.c.b16 %v2494, %v2494
        %v2499 = vpack.c.b16 %v2495, %v2495
        %v2504 = vunpack.c.l.b16 %v2104
        %v2505 = vunpack.c.h.b16 %v2104
        %v2506 = vunpack.c.l.b16 %v2105
        %v2507 = vunpack.c.h.b16 %v2105
        %v2508 = vpack.c.b16 %v2504, %v2504
        %v2509 = vpack.c.b16 %v2505, %v2505
        %v2510 = vpack.c.b16 %v2506, %v2506
        %v2511 = vpack.c.b16 %v2507, %v2507
        %v2516 = vsel %vm2470, %v2496, %v2508
        %v2517 = vsel %vm2471, %v2497, %v2509
        %v2518 = vsel %vm2472, %v2498, %v2510
        %v2519 = vsel %vm2473, %v2499, %v2511
        %v2520 = vld [vmem:[%s1246] sm:$0xf]
        %v2521 = vld [vmem:[%s1246 + $0x4] sm:$0xf]
        %v2522 = vld [vmem:[%s1246 + $0x8] sm:$0xf]
        %v2523 = vld [vmem:[%s1246 + $0xc] sm:$0xf]
        %vm2524 = vcmp.gt.bf16.partialorder %v2520, 1056980736
        %vm2525 = vcmp.gt.bf16.partialorder %v2521, 1056980736
        %vm2526 = vcmp.gt.bf16.partialorder %v2522, 1056980736
        %vm2527 = vcmp.gt.bf16.partialorder %v2523, 1056980736
        %v2532 = vunpack.c.l.b16 %v2516
        %v2533 = vunpack.c.l.b16 %v2517
        %v2534 = vunpack.c.l.b16 %v2518
        %v2535 = vunpack.c.l.b16 %v2519
        %v2536 = vpack.c.b16 %v2533, %v2532
        %v2537 = vpack.c.b16 %v2535, %v2534
        %2538 = vrot.lane.b32.xlu0 %v2536, 114
        %v2539 = vpop.permute.xlu0 %2538
        %2540 = vrot.lane.b32.xlu0 %v2537, 114
        %v2541 = vpop.permute.xlu0 %2540
        %2542 = vrot.lane.b32.xlu0 %v2536, 2
        %v2543 = vpop.permute.xlu0 %2542
        %2544 = vrot.lane.b32.xlu0 %v2537, 2
        %v2545 = vpop.permute.xlu0 %2544
        %v2548 = vsel %vm961, %v2539, %v2543
        %v2551 = vsel %vm961, %v2541, %v2545
        %v2554 = vunpack.c.l.b16 %v2548
        %v2555 = vunpack.c.h.b16 %v2548
        %v2556 = vunpack.c.l.b16 %v2551
        %v2557 = vunpack.c.h.b16 %v2551
        %v2558 = vpack.c.b16 %v2554, %v2554
        %v2559 = vpack.c.b16 %v2555, %v2555
        %v2560 = vpack.c.b16 %v2556, %v2556
        %v2561 = vpack.c.b16 %v2557, %v2557
        %v2566 = vsel %vm2524, %v2558, %v2516
        %v2567 = vsel %vm2525, %v2559, %v2517
        %v2568 = vsel %vm2526, %v2560, %v2518
        %v2569 = vsel %vm2527, %v2561, %v2519
        %v2570 = vld [vmem:[%s1297] sm:$0xf]
        %v2571 = vld [vmem:[%s1297 + $0x4] sm:$0xf]
        %v2572 = vld [vmem:[%s1297 + $0x8] sm:$0xf]
        %v2573 = vld [vmem:[%s1297 + $0xc] sm:$0xf]
        %vm2574 = vcmp.gt.bf16.partialorder %v2570, 1056980736
        %vm2575 = vcmp.gt.bf16.partialorder %v2571, 1056980736
        %vm2576 = vcmp.gt.bf16.partialorder %v2572, 1056980736
        %vm2577 = vcmp.gt.bf16.partialorder %v2573, 1056980736
        %v2582 = vunpack.c.l.b16 %v2566
        %v2583 = vunpack.c.l.b16 %v2567
        %v2584 = vunpack.c.l.b16 %v2568
        %v2585 = vunpack.c.l.b16 %v2569
        %v2586 = vpack.c.b16 %v2583, %v2582
        %v2587 = vpack.c.b16 %v2585, %v2584
        %2588 = vrot.lane.b32.xlu0 %v2586, 116
        %v2589 = vpop.permute.xlu0 %2588
        %2590 = vrot.lane.b32.xlu0 %v2587, 116
        %v2591 = vpop.permute.xlu0 %2590
        %2592 = vrot.lane.b32.xlu0 %v2586, 4
        %v2593 = vpop.permute.xlu0 %2592
        %2594 = vrot.lane.b32.xlu0 %v2587, 4
        %v2595 = vpop.permute.xlu0 %2594
        %v2598 = vsel %vm1013, %v2589, %v2593
        %v2601 = vsel %vm1013, %v2591, %v2595
        %v2604 = vunpack.c.l.b16 %v2598
        %v2605 = vunpack.c.h.b16 %v2598
        %v2606 = vunpack.c.l.b16 %v2601
        %v2607 = vunpack.c.h.b16 %v2601
        %v2608 = vpack.c.b16 %v2604, %v2604
        %v2609 = vpack.c.b16 %v2605, %v2605
        %v2610 = vpack.c.b16 %v2606, %v2606
        %v2611 = vpack.c.b16 %v2607, %v2607
        %v2616 = vsel %vm2574, %v2608, %v2566
        %v2617 = vsel %vm2575, %v2609, %v2567
        %v2618 = vsel %vm2576, %v2610, %v2568
        %v2619 = vsel %vm2577, %v2611, %v2569
        %v2620 = vld [vmem:[%s1348] sm:$0xf]
        %v2621 = vld [vmem:[%s1348 + $0x4] sm:$0xf]
        %v2622 = vld [vmem:[%s1348 + $0x8] sm:$0xf]
        %v2623 = vld [vmem:[%s1348 + $0xc] sm:$0xf]
        %vm2624 = vcmp.gt.bf16.partialorder %v2620, 1056980736
        %vm2625 = vcmp.gt.bf16.partialorder %v2621, 1056980736
        %vm2626 = vcmp.gt.bf16.partialorder %v2622, 1056980736
        %vm2627 = vcmp.gt.bf16.partialorder %v2623, 1056980736
        %v2632 = vunpack.c.l.b16 %v2616
        %v2633 = vunpack.c.l.b16 %v2617
        %v2634 = vunpack.c.l.b16 %v2618
        %v2635 = vunpack.c.l.b16 %v2619
        %v2636 = vpack.c.b16 %v2633, %v2632
        %v2637 = vpack.c.b16 %v2635, %v2634
        %2638 = vrot.lane.b32.xlu0 %v2636, 120
        %v2639 = vpop.permute.xlu0 %2638
        %2640 = vrot.lane.b32.xlu0 %v2637, 120
        %v2641 = vpop.permute.xlu0 %2640
        %2642 = vrot.lane.b32.xlu0 %v2636, 8
        %v2643 = vpop.permute.xlu0 %2642
        %2644 = vrot.lane.b32.xlu0 %v2637, 8
        %v2645 = vpop.permute.xlu0 %2644
        %v2648 = vsel %vm707, %v2639, %v2643
        %v2651 = vsel %vm707, %v2641, %v2645
        %v2654 = vunpack.c.l.b16 %v2648
        %v2655 = vunpack.c.h.b16 %v2648
        %v2656 = vunpack.c.l.b16 %v2651
        %v2657 = vunpack.c.h.b16 %v2651
        %v2658 = vpack.c.b16 %v2654, %v2654
        %v2659 = vpack.c.b16 %v2655, %v2655
        %v2660 = vpack.c.b16 %v2656, %v2656
        %v2661 = vpack.c.b16 %v2657, %v2657
        %v2666 = vsel %vm2624, %v2658, %v2616
        %v2667 = vsel %vm2625, %v2659, %v2617
        %v2668 = vsel %vm2626, %v2660, %v2618
        %v2669 = vsel %vm2627, %v2661, %v2619
        %v2670 = vld [vmem:[%s11] sm:$0xf]
        %v2671 = vld [vmem:[%s11 + $0x4] sm:$0xf]
        %v2672 = vld [vmem:[%s11 + $0x8] sm:$0xf]
        %v2673 = vld [vmem:[%s11 + $0xc] sm:$0xf]
        %vm2674 = vcmp.gt.bf16.partialorder %v2670, 1056980736
        %vm2675 = vcmp.gt.bf16.partialorder %v2671, 1056980736
        %vm2676 = vcmp.gt.bf16.partialorder %v2672, 1056980736
        %vm2677 = vcmp.gt.bf16.partialorder %v2673, 1056980736
        %2680 = vrot.lane.b32.xlu0 %v2160, 125
        %v2681 = vpop.permute.xlu0 %2680
        %2682 = vrot.lane.b32.xlu0 %v2161, 125
        %v2683 = vpop.permute.xlu0 %2682
        %2684 = vrot.lane.b32.xlu0 %v2160, 1
        %v2685 = vpop.permute.xlu0 %2684
        %2686 = vrot.lane.b32.xlu0 %v2161, 1
        %v2687 = vpop.permute.xlu0 %2686
        %v2690 = vsel %vm897, %v2681, %v2685
        %v2693 = vsel %vm897, %v2683, %v2687
        %v2696 = vunpack.c.l.b16 %v2690
        %v2697 = vunpack.c.h.b16 %v2690
        %v2698 = vunpack.c.l.b16 %v2693
        %v2699 = vunpack.c.h.b16 %v2693
        %v2700 = vpack.c.b16 %v2696, %v2696
        %v2701 = vpack.c.b16 %v2697, %v2697
        %v2702 = vpack.c.b16 %v2698, %v2698
        %v2703 = vpack.c.b16 %v2699, %v2699
        %v2708 = vunpack.c.l.b16 %v2160
        %v2709 = vunpack.c.h.b16 %v2160
        %v2710 = vunpack.c.l.b16 %v2161
        %v2711 = vunpack.c.h.b16 %v2161
        %v2712 = vpack.c.b16 %v2708, %v2708
        %v2713 = vpack.c.b16 %v2709, %v2709
        %v2714 = vpack.c.b16 %v2710, %v2710
        %v2715 = vpack.c.b16 %v2711, %v2711
        %v2720 = vsel %vm2674, %v2700, %v2712
        %v2721 = vsel %vm2675, %v2701, %v2713
        %v2722 = vsel %vm2676, %v2702, %v2714
        %v2723 = vsel %vm2677, %v2703, %v2715
        %v2724 = vld [vmem:[%s1453] sm:$0xf]
        %v2725 = vld [vmem:[%s1453 + $0x4] sm:$0xf]
        %v2726 = vld [vmem:[%s1453 + $0x8] sm:$0xf]
        %v2727 = vld [vmem:[%s1453 + $0xc] sm:$0xf]
        %vm2728 = vcmp.gt.bf16.partialorder %v2724, 1056980736
        %vm2729 = vcmp.gt.bf16.partialorder %v2725, 1056980736
        %vm2730 = vcmp.gt.bf16.partialorder %v2726, 1056980736
        %vm2731 = vcmp.gt.bf16.partialorder %v2727, 1056980736
        %v2736 = vunpack.c.l.b16 %v2720
        %v2737 = vunpack.c.l.b16 %v2721
        %v2738 = vunpack.c.l.b16 %v2722
        %v2739 = vunpack.c.l.b16 %v2723
        %v2740 = vpack.c.b16 %v2737, %v2736
        %v2741 = vpack.c.b16 %v2739, %v2738
        %2742 = vrot.lane.b32.xlu0 %v2740, 126
        %v2743 = vpop.permute.xlu0 %2742
        %2744 = vrot.lane.b32.xlu0 %v2741, 126
        %v2745 = vpop.permute.xlu0 %2744
        %2746 = vrot.lane.b32.xlu0 %v2740, 2
        %v2747 = vpop.permute.xlu0 %2746
        %2748 = vrot.lane.b32.xlu0 %v2741, 2
        %v2749 = vpop.permute.xlu0 %2748
        %v2752 = vsel %vm961, %v2743, %v2747
        %v2755 = vsel %vm961, %v2745, %v2749
        %v2758 = vunpack.c.l.b16 %v2752
        %v2759 = vunpack.c.h.b16 %v2752
        %v2760 = vunpack.c.l.b16 %v2755
        %v2761 = vunpack.c.h.b16 %v2755
        %v2762 = vpack.c.b16 %v2758, %v2758
        %v2763 = vpack.c.b16 %v2759, %v2759
        %v2764 = vpack.c.b16 %v2760, %v2760
        %v2765 = vpack.c.b16 %v2761, %v2761
        %v2770 = vsel %vm2728, %v2762, %v2720
        %v2771 = vsel %vm2729, %v2763, %v2721
        %v2772 = vsel %vm2730, %v2764, %v2722
        %v2773 = vsel %vm2731, %v2765, %v2723
        %v2778 = vunpack.c.l.b16 %v2462
        %v2779 = vunpack.c.l.b16 %v2463
        %v2780 = vunpack.c.l.b16 %v2464
        %v2781 = vunpack.c.l.b16 %v2465
        %v2782 = vpack.c.b16 %v2779, %v2778
        %v2783 = vpack.c.b16 %v2781, %v2780
        %v2785 = vsel %vm1538, %v2782, 0
        %v2788 = vsel %vm1538, %v2783, 0
        %2790 = vmatprep.subr.bf16.mxu0 0
        %2791 = vmatpush1.bf16.msra.mxu0 %v1530
        %2792 = vmatprep.subr.bf16.mxu0 0
        %2793 = vmatpush1.bf16.msra.mxu0 %v1531
        %2794 = vmatprep.subr.bf16.mxu0 0
        %2795 = vmatpush1.bf16.msra.mxu0 %v1532
        %2796 = vmatprep.subr.bf16.mxu0 0
        %2797 = vmatpush1.bf16.msra.mxu0 %v1533
        %2798 = vmatprep.subr.bf16.mxu0 0
        %2799 = vmatpush1.bf16.msra.mxu0 0
        %2800 = vmatprep.subr.bf16.mxu0 0
        %2801 = vmatpush1.bf16.msra.mxu0 0
        %2802 = vmatprep.subr.bf16.mxu0 0
        %2803 = vmatpush1.bf16.msra.mxu0 0
        %2804 = vmatprep.subr.bf16.mxu0 0
        %2805 = vmatpush1.bf16.msra.mxu0 0
        %2806 = vmatprep.subr.bf16.mxu0 0
        %2807 = vmatpush1.bf16.msra.mxu0 0
        %2808 = vmatprep.subr.bf16.mxu0 0
        %2809 = vmatpush1.bf16.msra.mxu0 0
        %2810 = vmatprep.subr.bf16.mxu0 0
        %2811 = vmatpush1.bf16.msra.mxu0 0
        %2812 = vmatprep.subr.bf16.mxu0 0
        %2813 = vmatpush1.bf16.msra.mxu0 0
        %2814 = vmatprep.subr.bf16.mxu0 0
        %2815 = vmatpush1.bf16.msra.mxu0 0
        %2816 = vmatprep.subr.bf16.mxu0 0
        %2817 = vmatpush1.bf16.msra.mxu0 0
        %2818 = vmatprep.subr.bf16.mxu0 0
        %2819 = vmatpush1.bf16.msra.mxu0 0
        %2820 = vmatprep.subr.bf16.mxu0 0
        %2821 = vmatpush1.bf16.msra.mxu0 0
        %2822 = vmatprep.mubr.bf16.mxu0 0
        %2823 = vmatmul.mubr.bf16.gmra.mrb[0].mxu0 %v2785
        %v2824 = vpop.f32.mrb[0].mxu0
        %v2825 = vadd.f32 0.0, %v2824
        %v2826 = vpop.f32.mrb[0].mxu0
        %v2827 = vpop.f32.mrb[0].mxu0
        %v2828 = vadd.f32 0.0, %v2827
        %v2829 = vpop.f32.mrb[0].mxu0
        %2830 = vmatprep.mubr.bf16.mxu0 0
        %2831 = vmatmul.mubr.bf16.gmra.mrb[0].mxu0 %v2788
        %v2832 = vpop.f32.mrb[0].mxu0
        %v2833 = vadd.f32 0.0, %v2832
        %v2834 = vpop.f32.mrb[0].mxu0
        %v2835 = vpop.f32.mrb[0].mxu0
        %v2836 = vadd.f32 0.0, %v2835
        %v2837 = vpop.f32.mrb[0].mxu0
        %2838 = vdwg.mxu0
        %2839 = vrot.lane.b32.xlu0 %v698, 88
        %v2840 = vpop.permute.xlu0 %2839
        %2841 = vrot.lane.b32.xlu0 %v699, 88
        %v2842 = vpop.permute.xlu0 %2841
        %2843 = vrot.lane.b32.xlu0 %v700, 88
        %v2844 = vpop.permute.xlu0 %2843
        %2845 = vrot.lane.b32.xlu0 %v701, 88
        %v2846 = vpop.permute.xlu0 %2845
        %2847 = vrot.lane.b32.xlu0 %v702, 88
        %v2848 = vpop.permute.xlu0 %2847
        %2849 = vrot.lane.b32.xlu0 %v703, 88
        %v2850 = vpop.permute.xlu0 %2849
        %2851 = vrot.lane.b32.xlu0 %v704, 88
        %v2852 = vpop.permute.xlu0 %2851
        %2853 = vrot.lane.b32.xlu0 %v705, 88
        %v2854 = vpop.permute.xlu0 %2853
        %v2856 = vsel %vm707, %v2840, 0
        %v2859 = vsel %vm707, %v2842, 0
        %v2862 = vsel %vm707, %v2844, 0
        %v2865 = vsel %vm707, %v2846, 0
        %v2868 = vsel %vm707, %v2848, 0
        %v2871 = vsel %vm707, %v2850, 0
        %v2874 = vsel %vm707, %v2852, 0
        %v2877 = vsel %vm707, %v2854, 0
        %2879 = vmatprep.subr.bf16.mxu0 0
        %2880 = vmatpush1.bf16.xpose.msra.mxu0 %v2856
        %2881 = vmatprep.subr.bf16.mxu0 0
        %2882 = vmatpush1.bf16.xpose.msra.mxu0 %v2859
        %2883 = vmatprep.subr.bf16.mxu0 0
        %2884 = vmatpush1.bf16.xpose.msra.mxu0 %v2862
        %2885 = vmatprep.subr.bf16.mxu0 0
        %2886 = vmatpush1.bf16.xpose.msra.mxu0 %v2865
        %2887 = vmatprep.subr.bf16.mxu0 0
        %2888 = vmatpush1.bf16.xpose.msra.mxu0 %v2868
        %2889 = vmatprep.subr.bf16.mxu0 0
        %2890 = vmatpush1.bf16.xpose.msra.mxu0 %v2871
        %2891 = vmatprep.subr.bf16.mxu0 0
        %2892 = vmatpush1.bf16.xpose.msra.mxu0 %v2874
        %2893 = vmatprep.subr.bf16.mxu0 0
        %2894 = vmatpush1.bf16.xpose.msra.mxu0 %v2877
        %2895 = vmatprep.subr.bf16.mxu0 0
        %2896 = vmatpush1.bf16.xpose.msra.mxu0 0
        %2897 = vmatprep.subr.bf16.mxu0 0
        %2898 = vmatpush1.bf16.xpose.msra.mxu0 0
        %2899 = vmatprep.subr.bf16.mxu0 0
        %2900 = vmatpush1.bf16.xpose.msra.mxu0 0
        %2901 = vmatprep.subr.bf16.mxu0 0
        %2902 = vmatpush1.bf16.xpose.msra.mxu0 0
        %2903 = vmatprep.subr.bf16.mxu0 0
        %2904 = vmatpush1.bf16.xpose.msra.mxu0 0
        %2905 = vmatprep.subr.bf16.mxu0 0
        %2906 = vmatpush1.bf16.xpose.msra.mxu0 0
        %2907 = vmatprep.subr.bf16.mxu0 0
        %2908 = vmatpush1.bf16.xpose.msra.mxu0 0
        %2909 = vmatprep.subr.bf16.mxu0 0
        %2910 = vmatpush1.bf16.xpose.msra.mxu0 0
        %2911 = vmatprep.mubr.bf16.mxu0 0
        %2912 = vmatmul.mubr.bf16.gmra.mrb[0].mxu0 %v1991
        %v2913 = vpop.f32.mrb[0].mxu0
        %v2914 = vadd.f32 %v2825, %v2913
        %v2915 = vpop.f32.mrb[0].mxu0
        %v2916 = vpop.f32.mrb[0].mxu0
        %v2917 = vadd.f32 %v2828, %v2916
        %v2918 = vpop.f32.mrb[0].mxu0
        %2919 = vmatprep.mubr.bf16.mxu0 0
        %2920 = vmatmul.mubr.bf16.gmra.mrb[0].mxu0 %v1994
        %v2921 = vpop.f32.mrb[0].mxu0
        %v2922 = vadd.f32 %v2833, %v2921
        %v2923 = vpop.f32.mrb[0].mxu0
        %v2924 = vpop.f32.mrb[0].mxu0
        %v2925 = vadd.f32 %v2836, %v2924
        %v2926 = vpop.f32.mrb[0].mxu0
        %2927 = vdwg.mxu0
        %v2932 = vunpack.c.l.b16 %v2666
        %v2933 = vunpack.c.l.b16 %v2667
        %v2934 = vunpack.c.l.b16 %v2668
        %v2935 = vunpack.c.l.b16 %v2669
        %v2936 = vpack.c.b16 %v2933, %v2932
        %v2937 = vpack.c.b16 %v2935, %v2934
        %v2939 = vsel %vm1116, %v2936, 0
        %v2942 = vsel %vm1116, %v2937, 0
        %2944 = vmatprep.subr.bf16.mxu0 0
        %2945 = vmatpush1.bf16.msra.mxu0 %v1705
        %2946 = vmatprep.subr.bf16.mxu0 0
        %2947 = vmatpush1.bf16.msra.mxu0 0
        %2948 = vmatprep.subr.bf16.mxu0 0
        %2949 = vmatpush1.bf16.msra.mxu0 0
        %2950 = vmatprep.subr.bf16.mxu0 0
        %2951 = vmatpush1.bf16.msra.mxu0 0
        %2952 = vmatprep.subr.bf16.mxu0 0
        %2953 = vmatpush1.bf16.msra.mxu0 0
        %2954 = vmatprep.subr.bf16.mxu0 0
        %2955 = vmatpush1.bf16.msra.mxu0 0
        %2956 = vmatprep.subr.bf16.mxu0 0
        %2957 = vmatpush1.bf16.msra.mxu0 0
        %2958 = vmatprep.subr.bf16.mxu0 0
        %2959 = vmatpush1.bf16.msra.mxu0 0
        %2960 = vmatprep.subr.bf16.mxu0 0
        %2961 = vmatpush1.bf16.msra.mxu0 0
        %2962 = vmatprep.subr.bf16.mxu0 0
        %2963 = vmatpush1.bf16.msra.mxu0 0
        %2964 = vmatprep.subr.bf16.mxu0 0
        %2965 = vmatpush1.bf16.msra.mxu0 0
        %2966 = vmatprep.subr.bf16.mxu0 0
        %2967 = vmatpush1.bf16.msra.mxu0 0
        %2968 = vmatprep.subr.bf16.mxu0 0
        %2969 = vmatpush1.bf16.msra.mxu0 0
        %2970 = vmatprep.subr.bf16.mxu0 0
        %2971 = vmatpush1.bf16.msra.mxu0 0
        %2972 = vmatprep.subr.bf16.mxu0 0
        %2973 = vmatpush1.bf16.msra.mxu0 0
        %2974 = vmatprep.subr.bf16.mxu0 0
        %2975 = vmatpush1.bf16.msra.mxu0 0
        %2976 = vmatprep.mubr.bf16.mxu0 0
        %2977 = vmatmul.mubr.bf16.gmra.mrb[0].mxu0 %v2939
        %v2978 = vpop.f32.mrb[0].mxu0
        %v2979 = vadd.f32 0.0, %v2978
        %v2980 = vpop.f32.mrb[0].mxu0
        %v2981 = vpop.f32.mrb[0].mxu0
        %v2982 = vadd.f32 0.0, %v2981
        %v2983 = vpop.f32.mrb[0].mxu0
        %2984 = vmatprep.mubr.bf16.mxu0 0
        %2985 = vmatmul.mubr.bf16.gmra.mrb[0].mxu0 %v2942
        %v2986 = vpop.f32.mrb[0].mxu0
        %v2987 = vadd.f32 0.0, %v2986
        %v2988 = vpop.f32.mrb[0].mxu0
        %v2989 = vpop.f32.mrb[0].mxu0
        %v2990 = vadd.f32 0.0, %v2989
        %v2991 = vpop.f32.mrb[0].mxu0
        %2992 = vdwg.mxu0
        %v2993 = vadd.f32 %v2914, %v2979
        %v2994 = vadd.f32 %v2917, %v2982
        %v2995 = vadd.f32 %v2922, %v2987
        %v2996 = vadd.f32 %v2925, %v2990
        %v3001 = vunpack.c.l.b16 %v2770
        %v3002 = vunpack.c.l.b16 %v2771
        %v3003 = vunpack.c.l.b16 %v2772
        %v3004 = vunpack.c.l.b16 %v2773
        %v3005 = vpack.c.b16 %v3002, %v3001
        %v3006 = vpack.c.b16 %v3004, %v3003
        %v3008 = vsel %vm1013, %v3005, 0
        %v3011 = vsel %vm1013, %v3006, 0
        %3013 = vmatprep.subr.bf16.mxu0 0
        %3014 = vmatpush1.bf16.msra.mxu0 %v1784
        %3015 = vmatprep.subr.bf16.mxu0 0
        %3016 = vmatpush1.bf16.msra.mxu0 0
        %3017 = vmatprep.subr.bf16.mxu0 0
        %3018 = vmatpush1.bf16.msra.mxu0 0
        %3019 = vmatprep.subr.bf16.mxu0 0
        %3020 = vmatpush1.bf16.msra.mxu0 0
        %3021 = vmatprep.subr.bf16.mxu0 0
        %3022 = vmatpush1.bf16.msra.mxu0 0
        %3023 = vmatprep.subr.bf16.mxu0 0
        %3024 = vmatpush1.bf16.msra.mxu0 0
        %3025 = vmatprep.subr.bf16.mxu0 0
        %3026 = vmatpush1.bf16.msra.mxu0 0
        %3027 = vmatprep.subr.bf16.mxu0 0
        %3028 = vmatpush1.bf16.msra.mxu0 0
        %3029 = vmatprep.subr.bf16.mxu0 0
        %3030 = vmatpush1.bf16.msra.mxu0 0
        %3031 = vmatprep.subr.bf16.mxu0 0
        %3032 = vmatpush1.bf16.msra.mxu0 0
        %3033 = vmatprep.subr.bf16.mxu0 0
        %3034 = vmatpush1.bf16.msra.mxu0 0
        %3035 = vmatprep.subr.bf16.mxu0 0
        %3036 = vmatpush1.bf16.msra.mxu0 0
        %3037 = vmatprep.subr.bf16.mxu0 0
        %3038 = vmatpush1.bf16.msra.mxu0 0
        %3039 = vmatprep.subr.bf16.mxu0 0
        %3040 = vmatpush1.bf16.msra.mxu0 0
        %3041 = vmatprep.subr.bf16.mxu0 0
        %3042 = vmatpush1.bf16.msra.mxu0 0
        %3043 = vmatprep.subr.bf16.mxu0 0
        %3044 = vmatpush1.bf16.msra.mxu0 0
        %3045 = vmatprep.mubr.bf16.mxu0 0
        %3046 = vmatmul.mubr.bf16.gmra.mrb[0].mxu0 %v3008
        %v3047 = vpop.f32.mrb[0].mxu0
        %v3048 = vadd.f32 0.0, %v3047
        %v3049 = vpop.f32.mrb[0].mxu0
        %v3050 = vpop.f32.mrb[0].mxu0
        %v3051 = vadd.f32 0.0, %v3050
        %v3052 = vpop.f32.mrb[0].mxu0
        %3053 = vmatprep.mubr.bf16.mxu0 0
        %3054 = vmatmul.mubr.bf16.gmra.mrb[0].mxu0 %v3011
        %v3055 = vpop.f32.mrb[0].mxu0
        %v3056 = vadd.f32 0.0, %v3055
        %v3057 = vpop.f32.mrb[0].mxu0
        %v3058 = vpop.f32.mrb[0].mxu0
        %v3059 = vadd.f32 0.0, %v3058
        %v3060 = vpop.f32.mrb[0].mxu0
        %3061 = vdwg.mxu0
        %v3062 = vadd.f32 %v2993, %v3048
        %v3063 = vadd.f32 %v2994, %v3051
        %v3064 = vadd.f32 %v2995, %v3056
        %v3065 = vadd.f32 %v2996, %v3059
        %v3066 = vadd.f32 %v3062, %v1843
        %v3067 = vadd.f32 %v3063, %v1843
        %v3068 = vadd.f32 %v3064, %v1843
        %v3069 = vadd.f32 %v3065, %v1843
        %3070 = vmax.xlane.f32.xlu0 %v3066
        %v3071 = vpop.xlane.xlu0 %3070
        %3072 = vmax.xlane.f32.xlu0 %v3067
        %v3073 = vpop.xlane.xlu0 %3072
        %3074 = vmax.xlane.f32.xlu0 %v3068
        %v3075 = vpop.xlane.xlu0 %3074
        %3076 = vmax.xlane.f32.xlu0 %v3069
        %v3077 = vpop.xlane.xlu0 %3076
        %v3078 = vsub.f32 %v3066, %v3071
        %v3079 = vsub.f32 %v3067, %v3073
        %v3080 = vsub.f32 %v3068, %v3075
        %v3081 = vsub.f32 %v3069, %v3077
        %v3082 = vmul.f32 %v3078, 1.442695
        %v3083 = vpow.pop %v3082
        %v3084 = vmul.f32 %v3079, 1.442695
        %v3085 = vpow.pop %v3084
        %v3086 = vmul.f32 %v3080, 1.442695
        %v3087 = vpow.pop %v3086
        %v3088 = vmul.f32 %v3081, 1.442695
        %v3089 = vpow.pop %v3088
        %3090 = vadd.xlane.f32.xlu0 %v3083
        %v3091 = vpop.xlane.xlu0 %3090
        %3092 = vadd.xlane.f32.xlu0 %v3085
        %v3093 = vpop.xlane.xlu0 %3092
        %3094 = vadd.xlane.f32.xlu0 %v3087
        %v3095 = vpop.xlane.xlu0 %3094
        %3096 = vadd.xlane.f32.xlu0 %v3089
        %v3097 = vpop.xlane.xlu0 %3096
        %v3098 = vrcp.pop %v3091
        %v3099 = vrcp.pop %v3093
        %v3100 = vrcp.pop %v3095
        %v3101 = vrcp.pop %v3097
        %v3102 = vmul.f32 %v3083, %v3098
        %v3103 = vmul.f32 %v3085, %v3099
        %v3104 = vmul.f32 %v3087, %v3100
        %v3105 = vmul.f32 %v3089, %v3101
        %v3106 = vpack.c.bf16 %v3103, %v3102
        %v3107 = vpack.c.bf16 %v3105, %v3104
        %v3110 = vunpack.c.l.b16 %v3106
        %v3111 = vunpack.c.h.b16 %v3106
        %v3112 = vunpack.c.l.b16 %v3107
        %v3113 = vunpack.c.h.b16 %v3107
        %v3114 = vpack.c.b16 %v3110, %v3110
        %v3115 = vpack.c.b16 %v3111, %v3111
        %v3116 = vpack.c.b16 %v3112, %v3112
        %v3117 = vpack.c.b16 %v3113, %v3113
        %s3122 = scalar_lea.vmem %s471, 16 [#allocation4]
        %3123 = vst [vmem:[%s3122] sm:$0xf] %v3114
        %3124 = vst [vmem:[%s3122 + $0x4] sm:$0xf] %v3115
        %3125 = vst [vmem:[%s3122 + $0x8] sm:$0xf] %v3116
        %3126 = vst [vmem:[%s3122 + $0xc] sm:$0xf] %v3117
        %3127 = vrot.lane.b32.xlu0 %v698, 56
        %v3128 = vpop.permute.xlu0 %3127
        %3129 = vrot.lane.b32.xlu0 %v699, 56
        %v3130 = vpop.permute.xlu0 %3129
        %3131 = vrot.lane.b32.xlu0 %v700, 56
        %v3132 = vpop.permute.xlu0 %3131
        %3133 = vrot.lane.b32.xlu0 %v701, 56
        %v3134 = vpop.permute.xlu0 %3133
        %3135 = vrot.lane.b32.xlu0 %v702, 56
        %v3136 = vpop.permute.xlu0 %3135
        %3137 = vrot.lane.b32.xlu0 %v703, 56
        %v3138 = vpop.permute.xlu0 %3137
        %3139 = vrot.lane.b32.xlu0 %v704, 56
        %v3140 = vpop.permute.xlu0 %3139
        %3141 = vrot.lane.b32.xlu0 %v705, 56
        %v3142 = vpop.permute.xlu0 %3141
        %3151 = vmatprep.subr.bf16.mxu0 0
        %3152 = vmatpush1.bf16.msra.mxu0 %v3128
        %3153 = vmatprep.subr.bf16.mxu0 0
        %3154 = vmatpush1.bf16.msra.mxu0 %v3130
        %3155 = vmatprep.subr.bf16.mxu0 0
        %3156 = vmatpush1.bf16.msra.mxu0 %v3132
        %3157 = vmatprep.subr.bf16.mxu0 0
        %3158 = vmatpush1.bf16.msra.mxu0 %v3134
        %3159 = vmatprep.subr.bf16.mxu0 0
        %3160 = vmatpush1.bf16.msra.mxu0 %v3136
        %3161 = vmatprep.subr.bf16.mxu0 0
        %3162 = vmatpush1.bf16.msra.mxu0 %v3138
        %3163 = vmatprep.subr.bf16.mxu0 0
        %3164 = vmatpush1.bf16.msra.mxu0 %v3140
        %3165 = vmatprep.subr.bf16.mxu0 0
        %3166 = vmatpush1.bf16.msra.mxu0 %v3142
        %3167 = vmatprep.subr.bf16.mxu0 0
        %3168 = vmatpush1.bf16.msra.mxu0 0
        %3169 = vmatprep.subr.bf16.mxu0 0
        %3170 = vmatpush1.bf16.msra.mxu0 0
        %3171 = vmatprep.subr.bf16.mxu0 0
        %3172 = vmatpush1.bf16.msra.mxu0 0
        %3173 = vmatprep.subr.bf16.mxu0 0
        %3174 = vmatpush1.bf16.msra.mxu0 0
        %3175 = vmatprep.subr.bf16.mxu0 0
        %3176 = vmatpush1.bf16.msra.mxu0 0
        %3177 = vmatprep.subr.bf16.mxu0 0
        %3178 = vmatpush1.bf16.msra.mxu0 0
        %3179 = vmatprep.subr.bf16.mxu0 0
        %3180 = vmatpush1.bf16.msra.mxu0 0
        %3181 = vmatprep.subr.bf16.mxu0 0
        %3182 = vmatpush1.bf16.msra.mxu0 0
        %3183 = vmatprep.mubr.bf16.mxu0 0
        %3184 = vmatmul.mubr.bf16.gmra.mrb[0].mxu0 %v3106
        %v3185 = vpop.f32.mrb[0].mxu0
        %v3186 = vadd.f32 0.0, %v3185
        %v3187 = vpop.f32.mrb[0].mxu0
        %v3188 = vpop.f32.mrb[0].mxu0
        %v3189 = vadd.f32 0.0, %v3188
        %v3190 = vpop.f32.mrb[0].mxu0
        %3191 = vmatprep.mubr.bf16.mxu0 0
        %3192 = vmatmul.mubr.bf16.gmra.mrb[0].mxu0 %v3107
        %v3193 = vpop.f32.mrb[0].mxu0
        %v3194 = vadd.f32 0.0, %v3193
        %v3195 = vpop.f32.mrb[0].mxu0
        %v3196 = vpop.f32.mrb[0].mxu0
        %v3197 = vadd.f32 0.0, %v3196
        %v3198 = vpop.f32.mrb[0].mxu0
        %3199 = vdwg.mxu0
        %3204 = vrot.lane.b32.xlu0 %v3186, 8
        %v3205 = vpop.permute.xlu0 %3204
        %3206 = vrot.lane.b32.xlu0 %v3189, 8
        %v3207 = vpop.permute.xlu0 %3206
        %3208 = vrot.lane.b32.xlu0 %v3194, 8
        %v3209 = vpop.permute.xlu0 %3208
        %3210 = vrot.lane.b32.xlu0 %v3197, 8
        %v3211 = vpop.permute.xlu0 %3210
        %vm3216 = vcmask 130112
        %3217 = vst.msk [vmem:[%s464] sm:$0xff] %vm3216, %v3205
        %3218 = vst.msk [vmem:[%s464 + $0x8] sm:$0xff] %vm3216, %v3207
        %3219 = vst.msk [vmem:[%s464 + $0x10] sm:$0xff] %vm3216, %v3209
        %3220 = vst.msk [vmem:[%s464 + $0x18] sm:$0xff] %vm3216, %v3211
        %s3221 = scalar_lea.vmem %s3, 8
        %v3222 = vld [vmem:[%s3221] sm:$0xf]
        %3223 = vrot.lane.b32.xlu0 %v696, 112
        %v3224 = vpop.permute.xlu0 %3223
        %3225 = vrot.lane.b32.xlu0 %v697, 112
        %v3226 = vpop.permute.xlu0 %3225
        %v3228 = vsel %vm707, %v3224, 0
        %v3231 = vsel %vm707, %v3226, 0
        %v3234 = vsel %vm714, %v3222, 0
        %3236 = vmatprep.subr.bf16.mxu0 0
        %3237 = vmatpush1.bf16.msra.mxu0 %v3234
        %3238 = vmatprep.subr.bf16.mxu0 0
        %3239 = vmatpush1.bf16.msra.mxu0 0
        %3240 = vmatprep.subr.bf16.mxu0 0
        %3241 = vmatpush1.bf16.msra.mxu0 0
        %3242 = vmatprep.subr.bf16.mxu0 0
        %3243 = vmatpush1.bf16.msra.mxu0 0
        %3244 = vmatprep.subr.bf16.mxu0 0
        %3245 = vmatpush1.bf16.msra.mxu0 0
        %3246 = vmatprep.subr.bf16.mxu0 0
        %3247 = vmatpush1.bf16.msra.mxu0 0
        %3248 = vmatprep.subr.bf16.mxu0 0
        %3249 = vmatpush1.bf16.msra.mxu0 0
        %3250 = vmatprep.subr.bf16.mxu0 0
        %3251 = vmatpush1.bf16.msra.mxu0 0
        %3252 = vmatprep.subr.bf16.mxu0 0
        %3253 = vmatpush1.bf16.msra.mxu0 0
        %3254 = vmatprep.subr.bf16.mxu0 0
        %3255 = vmatpush1.bf16.msra.mxu0 0
        %3256 = vmatprep.subr.bf16.mxu0 0
        %3257 = vmatpush1.bf16.msra.mxu0 0
        %3258 = vmatprep.subr.bf16.mxu0 0
        %3259 = vmatpush1.bf16.msra.mxu0 0
        %3260 = vmatprep.subr.bf16.mxu0 0
        %3261 = vmatpush1.bf16.msra.mxu0 0
        %3262 = vmatprep.subr.bf16.mxu0 0
        %3263 = vmatpush1.bf16.msra.mxu0 0
        %3264 = vmatprep.subr.bf16.mxu0 0
        %3265 = vmatpush1.bf16.msra.mxu0 0
        %3266 = vmatprep.subr.bf16.mxu0 0
        %3267 = vmatpush1.bf16.msra.mxu0 0
        %3268 = vmatprep.mubr.bf16.mxu0 0
        %3269 = vmatmul.mubr.bf16.gmra.mrb[0].mxu0 %v3228
        %v3270 = vpop.f32.mrb[0].mxu0
        %v3271 = vadd.f32 0.0, %v3270
        %v3272 = vpop.f32.mrb[0].mxu0
        %v3273 = vpop.f32.mrb[0].mxu0
        %v3274 = vadd.f32 0.0, %v3273
        %v3275 = vpop.f32.mrb[0].mxu0
        %3276 = vmatprep.mubr.bf16.mxu0 0
        %3277 = vmatmul.mubr.bf16.gmra.mrb[0].mxu0 %v3231
        %v3278 = vpop.f32.mrb[0].mxu0
        %v3279 = vadd.f32 0.0, %v3278
        %v3280 = vpop.f32.mrb[0].mxu0
        %v3281 = vpop.f32.mrb[0].mxu0
        %v3282 = vadd.f32 0.0, %v3281
        %v3283 = vpop.f32.mrb[0].mxu0
        %3284 = vdwg.mxu0
        %v3285 = vpack.c.bf16 %v3274, %v3271
        %v3286 = vpack.c.bf16 %v3282, %v3279
        %s3287 = scalar_lea.vmem %s4, 8
        %v3288 = vld [vmem:[%s3287] sm:$0xf]
        %v3290 = vsel %vm714, %v3288, 0
        %3292 = vmatprep.subr.bf16.mxu0 0
        %3293 = vmatpush1.bf16.msra.mxu0 %v3290
        %3294 = vmatprep.subr.bf16.mxu0 0
        %3295 = vmatpush1.bf16.msra.mxu0 0
        %3296 = vmatprep.subr.bf16.mxu0 0
        %3297 = vmatpush1.bf16.msra.mxu0 0
        %3298 = vmatprep.subr.bf16.mxu0 0
        %3299 = vmatpush1.bf16.msra.mxu0 0
        %3300 = vmatprep.subr.bf16.mxu0 0
        %3301 = vmatpush1.bf16.msra.mxu0 0
        %3302 = vmatprep.subr.bf16.mxu0 0
        %3303 = vmatpush1.bf16.msra.mxu0 0
        %3304 = vmatprep.subr.bf16.mxu0 0
        %3305 = vmatpush1.bf16.msra.mxu0 0
        %3306 = vmatprep.subr.bf16.mxu0 0
        %3307 = vmatpush1.bf16.msra.mxu0 0
        %3308 = vmatprep.subr.bf16.mxu0 0
        %3309 = vmatpush1.bf16.msra.mxu0 0
        %3310 = vmatprep.subr.bf16.mxu0 0
        %3311 = vmatpush1.bf16.msra.mxu0 0
        %3312 = vmatprep.subr.bf16.mxu0 0
        %3313 = vmatpush1.bf16.msra.mxu0 0
        %3314 = vmatprep.subr.bf16.mxu0 0
        %3315 = vmatpush1.bf16.msra.mxu0 0
        %3316 = vmatprep.subr.bf16.mxu0 0
        %3317 = vmatpush1.bf16.msra.mxu0 0
        %3318 = vmatprep.subr.bf16.mxu0 0
        %3319 = vmatpush1.bf16.msra.mxu0 0
        %3320 = vmatprep.subr.bf16.mxu0 0
        %3321 = vmatpush1.bf16.msra.mxu0 0
        %3322 = vmatprep.subr.bf16.mxu0 0
        %3323 = vmatpush1.bf16.msra.mxu0 0
        %3324 = vmatprep.mubr.bf16.mxu0 0
        %3325 = vmatmul.mubr.bf16.gmra.mrb[0].mxu0 %v3228
        %v3326 = vpop.f32.mrb[0].mxu0
        %v3327 = vadd.f32 0.0, %v3326
        %v3328 = vpop.f32.mrb[0].mxu0
        %v3329 = vpop.f32.mrb[0].mxu0
        %v3330 = vadd.f32 0.0, %v3329
        %v3331 = vpop.f32.mrb[0].mxu0
        %3332 = vmatprep.mubr.bf16.mxu0 0
        %3333 = vmatmul.mubr.bf16.gmra.mrb[0].mxu0 %v3231
        %v3334 = vpop.f32.mrb[0].mxu0
        %v3335 = vadd.f32 0.0, %v3334
        %v3336 = vpop.f32.mrb[0].mxu0
        %v3337 = vpop.f32.mrb[0].mxu0
        %v3338 = vadd.f32 0.0, %v3337
        %v3339 = vpop.f32.mrb[0].mxu0
        %3340 = vdwg.mxu0
        %v3341 = vpack.c.bf16 %v3330, %v3327
        %v3342 = vpack.c.bf16 %v3338, %v3335
        %s3343 = scalar_lea.vmem %s5, 8
        %v3344 = vld [vmem:[%s3343] sm:$0xf]
        %v3346 = vsel %vm714, %v3344, 0
        %3348 = vmatprep.subr.bf16.mxu0 0
        %3349 = vmatpush1.bf16.msra.mxu0 %v3346
        %3350 = vmatprep.subr.bf16.mxu0 0
        %3351 = vmatpush1.bf16.msra.mxu0 0
        %3352 = vmatprep.subr.bf16.mxu0 0
        %3353 = vmatpush1.bf16.msra.mxu0 0
        %3354 = vmatprep.subr.bf16.mxu0 0
        %3355 = vmatpush1.bf16.msra.mxu0 0
        %3356 = vmatprep.subr.bf16.mxu0 0
        %3357 = vmatpush1.bf16.msra.mxu0 0
        %3358 = vmatprep.subr.bf16.mxu0 0
        %3359 = vmatpush1.bf16.msra.mxu0 0
        %3360 = vmatprep.subr.bf16.mxu0 0
        %3361 = vmatpush1.bf16.msra.mxu0 0
        %3362 = vmatprep.subr.bf16.mxu0 0
        %3363 = vmatpush1.bf16.msra.mxu0 0
        %3364 = vmatprep.subr.bf16.mxu0 0
        %3365 = vmatpush1.bf16.msra.mxu0 0
        %3366 = vmatprep.subr.bf16.mxu0 0
        %3367 = vmatpush1.bf16.msra.mxu0 0
        %3368 = vmatprep.subr.bf16.mxu0 0
        %3369 = vmatpush1.bf16.msra.mxu0 0
        %3370 = vmatprep.subr.bf16.mxu0 0
        %3371 = vmatpush1.bf16.msra.mxu0 0
        %3372 = vmatprep.subr.bf16.mxu0 0
        %3373 = vmatpush1.bf16.msra.mxu0 0
        %3374 = vmatprep.subr.bf16.mxu0 0
        %3375 = vmatpush1.bf16.msra.mxu0 0
        %3376 = vmatprep.subr.bf16.mxu0 0
        %3377 = vmatpush1.bf16.msra.mxu0 0
        %3378 = vmatprep.subr.bf16.mxu0 0
        %3379 = vmatpush1.bf16.msra.mxu0 0
        %3380 = vmatprep.mubr.bf16.mxu0 0
        %3381 = vmatmul.mubr.bf16.gmra.mrb[0].mxu0 %v3228
        %v3382 = vpop.f32.mrb[0].mxu0
        %v3383 = vadd.f32 0.0, %v3382
        %v3384 = vpop.f32.mrb[0].mxu0
        %v3385 = vpop.f32.mrb[0].mxu0
        %v3386 = vadd.f32 0.0, %v3385
        %v3387 = vpop.f32.mrb[0].mxu0
        %3388 = vmatprep.mubr.bf16.mxu0 0
        %3389 = vmatmul.mubr.bf16.gmra.mrb[0].mxu0 %v3231
        %v3390 = vpop.f32.mrb[0].mxu0
        %v3391 = vadd.f32 0.0, %v3390
        %v3392 = vpop.f32.mrb[0].mxu0
        %v3393 = vpop.f32.mrb[0].mxu0
        %v3394 = vadd.f32 0.0, %v3393
        %v3395 = vpop.f32.mrb[0].mxu0
        %3396 = vdwg.mxu0
        %v3397 = vpack.c.bf16 %v3386, %v3383
        %v3398 = vpack.c.bf16 %v3394, %v3391
        %v3399 = vld [vmem:[%s9] sm:$0xf]
        %v3400 = vld [vmem:[%s9 + $0x4] sm:$0xf]
        %v3401 = vld [vmem:[%s9 + $0x8] sm:$0xf]
        %v3402 = vld [vmem:[%s9 + $0xc] sm:$0xf]
        %vm3403 = vcmp.gt.bf16.partialorder %v3399, 1056980736
        %vm3404 = vcmp.gt.bf16.partialorder %v3400, 1056980736
        %vm3405 = vcmp.gt.bf16.partialorder %v3401, 1056980736
        %vm3406 = vcmp.gt.bf16.partialorder %v3402, 1056980736
        %3409 = vrot.lane.b32.xlu0 %v3285, 65
        %v3410 = vpop.permute.xlu0 %3409
        %3411 = vrot.lane.b32.xlu0 %v3286, 65
        %v3412 = vpop.permute.xlu0 %3411
        %3413 = vrot.lane.b32.xlu0 %v3285, 1
        %v3414 = vpop.permute.xlu0 %3413
        %3415 = vrot.lane.b32.xlu0 %v3286, 1
        %v3416 = vpop.permute.xlu0 %3415
        %v3419 = vsel %vm897, %v3410, %v3414
        %v3422 = vsel %vm897, %v3412, %v3416
        %v3425 = vunpack.c.l.b16 %v3419
        %v3426 = vunpack.c.h.b16 %v3419
        %v3427 = vunpack.c.l.b16 %v3422
        %v3428 = vunpack.c.h.b16 %v3422
        %v3429 = vpack.c.b16 %v3425, %v3425
        %v3430 = vpack.c.b16 %v3426, %v3426
        %v3431 = vpack.c.b16 %v3427, %v3427
        %v3432 = vpack.c.b16 %v3428, %v3428
        %v3437 = vunpack.c.l.b16 %v3285
        %v3438 = vunpack.c.h.b16 %v3285
        %v3439 = vunpack.c.l.b16 %v3286
        %v3440 = vunpack.c.h.b16 %v3286
        %v3441 = vpack.c.b16 %v3437, %v3437
        %v3442 = vpack.c.b16 %v3438, %v3438
        %v3443 = vpack.c.b16 %v3439, %v3439
        %v3444 = vpack.c.b16 %v3440, %v3440
        %v3449 = vsel %vm3403, %v3429, %v3441
        %v3450 = vsel %vm3404, %v3430, %v3442
        %v3451 = vsel %vm3405, %v3431, %v3443
        %v3452 = vsel %vm3406, %v3432, %v3444
        %v3453 = vld [vmem:[%s934] sm:$0xf]
        %v3454 = vld [vmem:[%s934 + $0x4] sm:$0xf]
        %v3455 = vld [vmem:[%s934 + $0x8] sm:$0xf]
        %v3456 = vld [vmem:[%s934 + $0xc] sm:$0xf]
        %vm3457 = vcmp.gt.bf16.partialorder %v3453, 1056980736
        %vm3458 = vcmp.gt.bf16.partialorder %v3454, 1056980736
        %vm3459 = vcmp.gt.bf16.partialorder %v3455, 1056980736
        %vm3460 = vcmp.gt.bf16.partialorder %v3456, 1056980736
        %v3465 = vunpack.c.l.b16 %v3449
        %v3466 = vunpack.c.l.b16 %v3450
        %v3467 = vunpack.c.l.b16 %v3451
        %v3468 = vunpack.c.l.b16 %v3452
        %v3469 = vpack.c.b16 %v3466, %v3465
        %v3470 = vpack.c.b16 %v3468, %v3467
        %3471 = vrot.lane.b32.xlu0 %v3469, 66
        %v3472 = vpop.permute.xlu0 %3471
        %3473 = vrot.lane.b32.xlu0 %v3470, 66
        %v3474 = vpop.permute.xlu0 %3473
        %3475 = vrot.lane.b32.xlu0 %v3469, 2
        %v3476 = vpop.permute.xlu0 %3475
        %3477 = vrot.lane.b32.xlu0 %v3470, 2
        %v3478 = vpop.permute.xlu0 %3477
        %v3481 = vsel %vm961, %v3472, %v3476
        %v3484 = vsel %vm961, %v3474, %v3478
        %v3487 = vunpack.c.l.b16 %v3481
        %v3488 = vunpack.c.h.b16 %v3481
        %v3489 = vunpack.c.l.b16 %v3484
        %v3490 = vunpack.c.h.b16 %v3484
        %v3491 = vpack.c.b16 %v3487, %v3487
        %v3492 = vpack.c.b16 %v3488, %v3488
        %v3493 = vpack.c.b16 %v3489, %v3489
        %v3494 = vpack.c.b16 %v3490, %v3490
        %v3499 = vsel %vm3457, %v3491, %v3449
        %v3500 = vsel %vm3458, %v3492, %v3450
        %v3501 = vsel %vm3459, %v3493, %v3451
        %v3502 = vsel %vm3460, %v3494, %v3452
        %v3503 = vld [vmem:[%s986] sm:$0xf]
        %v3504 = vld [vmem:[%s986 + $0x4] sm:$0xf]
        %v3505 = vld [vmem:[%s986 + $0x8] sm:$0xf]
        %v3506 = vld [vmem:[%s986 + $0xc] sm:$0xf]
        %vm3507 = vcmp.gt.bf16.partialorder %v3503, 1056980736
        %vm3508 = vcmp.gt.bf16.partialorder %v3504, 1056980736
        %vm3509 = vcmp.gt.bf16.partialorder %v3505, 1056980736
        %vm3510 = vcmp.gt.bf16.partialorder %v3506, 1056980736
        %v3515 = vunpack.c.l.b16 %v3499
        %v3516 = vunpack.c.l.b16 %v3500
        %v3517 = vunpack.c.l.b16 %v3501
        %v3518 = vunpack.c.l.b16 %v3502
        %v3519 = vpack.c.b16 %v3516, %v3515
        %v3520 = vpack.c.b16 %v3518, %v3517
        %3521 = vrot.lane.b32.xlu0 %v3519, 68
        %v3522 = vpop.permute.xlu0 %3521
        %3523 = vrot.lane.b32.xlu0 %v3520, 68
        %v3524 = vpop.permute.xlu0 %3523
        %3525 = vrot.lane.b32.xlu0 %v3519, 4
        %v3526 = vpop.permute.xlu0 %3525
        %3527 = vrot.lane.b32.xlu0 %v3520, 4
        %v3528 = vpop.permute.xlu0 %3527
        %v3531 = vsel %vm1013, %v3522, %v3526
        %v3534 = vsel %vm1013, %v3524, %v3528
        %v3537 = vunpack.c.l.b16 %v3531
        %v3538 = vunpack.c.h.b16 %v3531
        %v3539 = vunpack.c.l.b16 %v3534
        %v3540 = vunpack.c.h.b16 %v3534
        %v3541 = vpack.c.b16 %v3537, %v3537
        %v3542 = vpack.c.b16 %v3538, %v3538
        %v3543 = vpack.c.b16 %v3539, %v3539
        %v3544 = vpack.c.b16 %v3540, %v3540
        %v3549 = vsel %vm3507, %v3541, %v3499
        %v3550 = vsel %vm3508, %v3542, %v3500
        %v3551 = vsel %vm3509, %v3543, %v3501
        %v3552 = vsel %vm3510, %v3544, %v3502
        %v3553 = vld [vmem:[%s1038] sm:$0xf]
        %v3554 = vld [vmem:[%s1038 + $0x4] sm:$0xf]
        %v3555 = vld [vmem:[%s1038 + $0x8] sm:$0xf]
        %v3556 = vld [vmem:[%s1038 + $0xc] sm:$0xf]
        %vm3557 = vcmp.gt.bf16.partialorder %v3553, 1056980736
        %vm3558 = vcmp.gt.bf16.partialorder %v3554, 1056980736
        %vm3559 = vcmp.gt.bf16.partialorder %v3555, 1056980736
        %vm3560 = vcmp.gt.bf16.partialorder %v3556, 1056980736
        %v3565 = vunpack.c.l.b16 %v3549
        %v3566 = vunpack.c.l.b16 %v3550
        %v3567 = vunpack.c.l.b16 %v3551
        %v3568 = vunpack.c.l.b16 %v3552
        %v3569 = vpack.c.b16 %v3566, %v3565
        %v3570 = vpack.c.b16 %v3568, %v3567
        %3571 = vrot.lane.b32.xlu0 %v3569, 72
        %v3572 = vpop.permute.xlu0 %3571
        %3573 = vrot.lane.b32.xlu0 %v3570, 72
        %v3574 = vpop.permute.xlu0 %3573
        %3575 = vrot.lane.b32.xlu0 %v3569, 8
        %v3576 = vpop.permute.xlu0 %3575
        %3577 = vrot.lane.b32.xlu0 %v3570, 8
        %v3578 = vpop.permute.xlu0 %3577
        %v3581 = vsel %vm707, %v3572, %v3576
        %v3584 = vsel %vm707, %v3574, %v3578
        %v3587 = vunpack.c.l.b16 %v3581
        %v3588 = vunpack.c.h.b16 %v3581
        %v3589 = vunpack.c.l.b16 %v3584
        %v3590 = vunpack.c.h.b16 %v3584
        %v3591 = vpack.c.b16 %v3587, %v3587
        %v3592 = vpack.c.b16 %v3588, %v3588
        %v3593 = vpack.c.b16 %v3589, %v3589
        %v3594 = vpack.c.b16 %v3590, %v3590
        %v3599 = vsel %vm3557, %v3591, %v3549
        %v3600 = vsel %vm3558, %v3592, %v3550
        %v3601 = vsel %vm3559, %v3593, %v3551
        %v3602 = vsel %vm3560, %v3594, %v3552
        %v3603 = vld [vmem:[%s1089] sm:$0xf]
        %v3604 = vld [vmem:[%s1089 + $0x4] sm:$0xf]
        %v3605 = vld [vmem:[%s1089 + $0x8] sm:$0xf]
        %v3606 = vld [vmem:[%s1089 + $0xc] sm:$0xf]
        %vm3607 = vcmp.gt.bf16.partialorder %v3603, 1056980736
        %vm3608 = vcmp.gt.bf16.partialorder %v3604, 1056980736
        %vm3609 = vcmp.gt.bf16.partialorder %v3605, 1056980736
        %vm3610 = vcmp.gt.bf16.partialorder %v3606, 1056980736
        %v3615 = vunpack.c.l.b16 %v3599
        %v3616 = vunpack.c.l.b16 %v3600
        %v3617 = vunpack.c.l.b16 %v3601
        %v3618 = vunpack.c.l.b16 %v3602
        %v3619 = vpack.c.b16 %v3616, %v3615
        %v3620 = vpack.c.b16 %v3618, %v3617
        %3621 = vrot.lane.b32.xlu0 %v3619, 80
        %v3622 = vpop.permute.xlu0 %3621
        %3623 = vrot.lane.b32.xlu0 %v3620, 80
        %v3624 = vpop.permute.xlu0 %3623
        %3625 = vrot.lane.b32.xlu0 %v3619, 16
        %v3626 = vpop.permute.xlu0 %3625
        %3627 = vrot.lane.b32.xlu0 %v3620, 16
        %v3628 = vpop.permute.xlu0 %3627
        %v3631 = vsel %vm1116, %v3622, %v3626
        %v3634 = vsel %vm1116, %v3624, %v3628
        %v3637 = vunpack.c.l.b16 %v3631
        %v3638 = vunpack.c.h.b16 %v3631
        %v3639 = vunpack.c.l.b16 %v3634
        %v3640 = vunpack.c.h.b16 %v3634
        %v3641 = vpack.c.b16 %v3637, %v3637
        %v3642 = vpack.c.b16 %v3638, %v3638
        %v3643 = vpack.c.b16 %v3639, %v3639
        %v3644 = vpack.c.b16 %v3640, %v3640
        %v3649 = vsel %vm3607, %v3641, %v3599
        %v3650 = vsel %vm3608, %v3642, %v3600
        %v3651 = vsel %vm3609, %v3643, %v3601
        %v3652 = vsel %vm3610, %v3644, %v3602
        %v3653 = vld [vmem:[%s1141] sm:$0xf]
        %v3654 = vld [vmem:[%s1141 + $0x4] sm:$0xf]
        %v3655 = vld [vmem:[%s1141 + $0x8] sm:$0xf]
        %v3656 = vld [vmem:[%s1141 + $0xc] sm:$0xf]
        %vm3657 = vcmp.gt.bf16.partialorder %v3653, 1056980736
        %vm3658 = vcmp.gt.bf16.partialorder %v3654, 1056980736
        %vm3659 = vcmp.gt.bf16.partialorder %v3655, 1056980736
        %vm3660 = vcmp.gt.bf16.partialorder %v3656, 1056980736
        %v3665 = vunpack.c.l.b16 %v3649
        %v3666 = vunpack.c.l.b16 %v3650
        %v3667 = vunpack.c.l.b16 %v3651
        %v3668 = vunpack.c.l.b16 %v3652
        %v3669 = vpack.c.b16 %v3666, %v3665
        %v3670 = vpack.c.b16 %v3668, %v3667
        %3671 = vrot.lane.b32.xlu0 %v3669, 96
        %v3672 = vpop.permute.xlu0 %3671
        %3673 = vrot.lane.b32.xlu0 %v3670, 96
        %v3674 = vpop.permute.xlu0 %3673
        %3675 = vrot.lane.b32.xlu0 %v3669, 32
        %v3676 = vpop.permute.xlu0 %3675
        %3677 = vrot.lane.b32.xlu0 %v3670, 32
        %v3678 = vpop.permute.xlu0 %3677
        %v3681 = vsel %vm558, %v3672, %v3676
        %v3684 = vsel %vm558, %v3674, %v3678
        %v3687 = vunpack.c.l.b16 %v3681
        %v3688 = vunpack.c.h.b16 %v3681
        %v3689 = vunpack.c.l.b16 %v3684
        %v3690 = vunpack.c.h.b16 %v3684
        %v3691 = vpack.c.b16 %v3687, %v3687
        %v3692 = vpack.c.b16 %v3688, %v3688
        %v3693 = vpack.c.b16 %v3689, %v3689
        %v3694 = vpack.c.b16 %v3690, %v3690
        %v3699 = vsel %vm3657, %v3691, %v3649
        %v3700 = vsel %vm3658, %v3692, %v3650
        %v3701 = vsel %vm3659, %v3693, %v3651
        %v3702 = vsel %vm3660, %v3694, %v3652
        %v3703 = vld [vmem:[%s10] sm:$0xf]
        %v3704 = vld [vmem:[%s10 + $0x4] sm:$0xf]
        %v3705 = vld [vmem:[%s10 + $0x8] sm:$0xf]
        %v3706 = vld [vmem:[%s10 + $0xc] sm:$0xf]
        %vm3707 = vcmp.gt.bf16.partialorder %v3703, 1056980736
        %vm3708 = vcmp.gt.bf16.partialorder %v3704, 1056980736
        %vm3709 = vcmp.gt.bf16.partialorder %v3705, 1056980736
        %vm3710 = vcmp.gt.bf16.partialorder %v3706, 1056980736
        %3713 = vrot.lane.b32.xlu0 %v3341, 113
        %v3714 = vpop.permute.xlu0 %3713
        %3715 = vrot.lane.b32.xlu0 %v3342, 113
        %v3716 = vpop.permute.xlu0 %3715
        %3717 = vrot.lane.b32.xlu0 %v3341, 1
        %v3718 = vpop.permute.xlu0 %3717
        %3719 = vrot.lane.b32.xlu0 %v3342, 1
        %v3720 = vpop.permute.xlu0 %3719
        %v3723 = vsel %vm897, %v3714, %v3718
        %v3726 = vsel %vm897, %v3716, %v3720
        %v3729 = vunpack.c.l.b16 %v3723
        %v3730 = vunpack.c.h.b16 %v3723
        %v3731 = vunpack.c.l.b16 %v3726
        %v3732 = vunpack.c.h.b16 %v3726
        %v3733 = vpack.c.b16 %v3729, %v3729
        %v3734 = vpack.c.b16 %v3730, %v3730
        %v3735 = vpack.c.b16 %v3731, %v3731
        %v3736 = vpack.c.b16 %v3732, %v3732
        %v3741 = vunpack.c.l.b16 %v3341
        %v3742 = vunpack.c.h.b16 %v3341
        %v3743 = vunpack.c.l.b16 %v3342
        %v3744 = vunpack.c.h.b16 %v3342
        %v3745 = vpack.c.b16 %v3741, %v3741
        %v3746 = vpack.c.b16 %v3742, %v3742
        %v3747 = vpack.c.b16 %v3743, %v3743
        %v3748 = vpack.c.b16 %v3744, %v3744
        %v3753 = vsel %vm3707, %v3733, %v3745
        %v3754 = vsel %vm3708, %v3734, %v3746
        %v3755 = vsel %vm3709, %v3735, %v3747
        %v3756 = vsel %vm3710, %v3736, %v3748
        %v3757 = vld [vmem:[%s1246] sm:$0xf]
        %v3758 = vld [vmem:[%s1246 + $0x4] sm:$0xf]
        %v3759 = vld [vmem:[%s1246 + $0x8] sm:$0xf]
        %v3760 = vld [vmem:[%s1246 + $0xc] sm:$0xf]
        %vm3761 = vcmp.gt.bf16.partialorder %v3757, 1056980736
        %vm3762 = vcmp.gt.bf16.partialorder %v3758, 1056980736
        %vm3763 = vcmp.gt.bf16.partialorder %v3759, 1056980736
        %vm3764 = vcmp.gt.bf16.partialorder %v3760, 1056980736
        %v3769 = vunpack.c.l.b16 %v3753
        %v3770 = vunpack.c.l.b16 %v3754
        %v3771 = vunpack.c.l.b16 %v3755
        %v3772 = vunpack.c.l.b16 %v3756
        %v3773 = vpack.c.b16 %v3770, %v3769
        %v3774 = vpack.c.b16 %v3772, %v3771
        %3775 = vrot.lane.b32.xlu0 %v3773, 114
        %v3776 = vpop.permute.xlu0 %3775
        %3777 = vrot.lane.b32.xlu0 %v3774, 114
        %v3778 = vpop.permute.xlu0 %3777
        %3779 = vrot.lane.b32.xlu0 %v3773, 2
        %v3780 = vpop.permute.xlu0 %3779
        %3781 = vrot.lane.b32.xlu0 %v3774, 2
        %v3782 = vpop.permute.xlu0 %3781
        %v3785 = vsel %vm961, %v3776, %v3780
        %v3788 = vsel %vm961, %v3778, %v3782
        %v3791 = vunpack.c.l.b16 %v3785
        %v3792 = vunpack.c.h.b16 %v3785
        %v3793 = vunpack.c.l.b16 %v3788
        %v3794 = vunpack.c.h.b16 %v3788
        %v3795 = vpack.c.b16 %v3791, %v3791
        %v3796 = vpack.c.b16 %v3792, %v3792
        %v3797 = vpack.c.b16 %v3793, %v3793
        %v3798 = vpack.c.b16 %v3794, %v3794
        %v3803 = vsel %vm3761, %v3795, %v3753
        %v3804 = vsel %vm3762, %v3796, %v3754
        %v3805 = vsel %vm3763, %v3797, %v3755
        %v3806 = vsel %vm3764, %v3798, %v3756
        %v3807 = vld [vmem:[%s1297] sm:$0xf]
        %v3808 = vld [vmem:[%s1297 + $0x4] sm:$0xf]
        %v3809 = vld [vmem:[%s1297 + $0x8] sm:$0xf]
        %v3810 = vld [vmem:[%s1297 + $0xc] sm:$0xf]
        %vm3811 = vcmp.gt.bf16.partialorder %v3807, 1056980736
        %vm3812 = vcmp.gt.bf16.partialorder %v3808, 1056980736
        %vm3813 = vcmp.gt.bf16.partialorder %v3809, 1056980736
        %vm3814 = vcmp.gt.bf16.partialorder %v3810, 1056980736
        %v3819 = vunpack.c.l.b16 %v3803
        %v3820 = vunpack.c.l.b16 %v3804
        %v3821 = vunpack.c.l.b16 %v3805
        %v3822 = vunpack.c.l.b16 %v3806
        %v3823 = vpack.c.b16 %v3820, %v3819
        %v3824 = vpack.c.b16 %v3822, %v3821
        %3825 = vrot.lane.b32.xlu0 %v3823, 116
        %v3826 = vpop.permute.xlu0 %3825
        %3827 = vrot.lane.b32.xlu0 %v3824, 116
        %v3828 = vpop.permute.xlu0 %3827
        %3829 = vrot.lane.b32.xlu0 %v3823, 4
        %v3830 = vpop.permute.xlu0 %3829
        %3831 = vrot.lane.b32.xlu0 %v3824, 4
        %v3832 = vpop.permute.xlu0 %3831
        %v3835 = vsel %vm1013, %v3826, %v3830
        %v3838 = vsel %vm1013, %v3828, %v3832
        %v3841 = vunpack.c.l.b16 %v3835
        %v3842 = vunpack.c.h.b16 %v3835
        %v3843 = vunpack.c.l.b16 %v3838
        %v3844 = vunpack.c.h.b16 %v3838
        %v3845 = vpack.c.b16 %v3841, %v3841
        %v3846 = vpack.c.b16 %v3842, %v3842
        %v3847 = vpack.c.b16 %v3843, %v3843
        %v3848 = vpack.c.b16 %v3844, %v3844
        %v3853 = vsel %vm3811, %v3845, %v3803
        %v3854 = vsel %vm3812, %v3846, %v3804
        %v3855 = vsel %vm3813, %v3847, %v3805
        %v3856 = vsel %vm3814, %v3848, %v3806
        %v3857 = vld [vmem:[%s1348] sm:$0xf]
        %v3858 = vld [vmem:[%s1348 + $0x4] sm:$0xf]
        %v3859 = vld [vmem:[%s1348 + $0x8] sm:$0xf]
        %v3860 = vld [vmem:[%s1348 + $0xc] sm:$0xf]
        %vm3861 = vcmp.gt.bf16.partialorder %v3857, 1056980736
        %vm3862 = vcmp.gt.bf16.partialorder %v3858, 1056980736
        %vm3863 = vcmp.gt.bf16.partialorder %v3859, 1056980736
        %vm3864 = vcmp.gt.bf16.partialorder %v3860, 1056980736
        %v3869 = vunpack.c.l.b16 %v3853
        %v3870 = vunpack.c.l.b16 %v3854
        %v3871 = vunpack.c.l.b16 %v3855
        %v3872 = vunpack.c.l.b16 %v3856
        %v3873 = vpack.c.b16 %v3870, %v3869
        %v3874 = vpack.c.b16 %v3872, %v3871
        %3875 = vrot.lane.b32.xlu0 %v3873, 120
        %v3876 = vpop.permute.xlu0 %3875
        %3877 = vrot.lane.b32.xlu0 %v3874, 120
        %v3878 = vpop.permute.xlu0 %3877
        %3879 = vrot.lane.b32.xlu0 %v3873, 8
        %v3880 = vpop.permute.xlu0 %3879
        %3881 = vrot.lane.b32.xlu0 %v3874, 8
        %v3882 = vpop.permute.xlu0 %3881
        %v3885 = vsel %vm707, %v3876, %v3880
        %v3888 = vsel %vm707, %v3878, %v3882
        %v3891 = vunpack.c.l.b16 %v3885
        %v3892 = vunpack.c.h.b16 %v3885
        %v3893 = vunpack.c.l.b16 %v3888
        %v3894 = vunpack.c.h.b16 %v3888
        %v3895 = vpack.c.b16 %v3891, %v3891
        %v3896 = vpack.c.b16 %v3892, %v3892
        %v3897 = vpack.c.b16 %v3893, %v3893
        %v3898 = vpack.c.b16 %v3894, %v3894
        %v3903 = vsel %vm3861, %v3895, %v3853
        %v3904 = vsel %vm3862, %v3896, %v3854
        %v3905 = vsel %vm3863, %v3897, %v3855
        %v3906 = vsel %vm3864, %v3898, %v3856
        %v3907 = vld [vmem:[%s11] sm:$0xf]
        %v3908 = vld [vmem:[%s11 + $0x4] sm:$0xf]
        %v3909 = vld [vmem:[%s11 + $0x8] sm:$0xf]
        %v3910 = vld [vmem:[%s11 + $0xc] sm:$0xf]
        %vm3911 = vcmp.gt.bf16.partialorder %v3907, 1056980736
        %vm3912 = vcmp.gt.bf16.partialorder %v3908, 1056980736
        %vm3913 = vcmp.gt.bf16.partialorder %v3909, 1056980736
        %vm3914 = vcmp.gt.bf16.partialorder %v3910, 1056980736
        %3917 = vrot.lane.b32.xlu0 %v3397, 125
        %v3918 = vpop.permute.xlu0 %3917
        %3919 = vrot.lane.b32.xlu0 %v3398, 125
        %v3920 = vpop.permute.xlu0 %3919
        %3921 = vrot.lane.b32.xlu0 %v3397, 1
        %v3922 = vpop.permute.xlu0 %3921
        %3923 = vrot.lane.b32.xlu0 %v3398, 1
        %v3924 = vpop.permute.xlu0 %3923
        %v3927 = vsel %vm897, %v3918, %v3922
        %v3930 = vsel %vm897, %v3920, %v3924
        %v3933 = vunpack.c.l.b16 %v3927
        %v3934 = vunpack.c.h.b16 %v3927
        %v3935 = vunpack.c.l.b16 %v3930
        %v3936 = vunpack.c.h.b16 %v3930
        %v3937 = vpack.c.b16 %v3933, %v3933
        %v3938 = vpack.c.b16 %v3934, %v3934
        %v3939 = vpack.c.b16 %v3935, %v3935
        %v3940 = vpack.c.b16 %v3936, %v3936
        %v3945 = vunpack.c.l.b16 %v3397
        %v3946 = vunpack.c.h.b16 %v3397
        %v3947 = vunpack.c.l.b16 %v3398
        %v3948 = vunpack.c.h.b16 %v3398
        %v3949 = vpack.c.b16 %v3945, %v3945
        %v3950 = vpack.c.b16 %v3946, %v3946
        %v3951 = vpack.c.b16 %v3947, %v3947
        %v3952 = vpack.c.b16 %v3948, %v3948
        %v3957 = vsel %vm3911, %v3937, %v3949
        %v3958 = vsel %vm3912, %v3938, %v3950
        %v3959 = vsel %vm3913, %v3939, %v3951
        %v3960 = vsel %vm3914, %v3940, %v3952
        %v3961 = vld [vmem:[%s1453] sm:$0xf]
        %v3962 = vld [vmem:[%s1453 + $0x4] sm:$0xf]
        %v3963 = vld [vmem:[%s1453 + $0x8] sm:$0xf]
        %v3964 = vld [vmem:[%s1453 + $0xc] sm:$0xf]
        %vm3965 = vcmp.gt.bf16.partialorder %v3961, 1056980736
        %vm3966 = vcmp.gt.bf16.partialorder %v3962, 1056980736
        %vm3967 = vcmp.gt.bf16.partialorder %v3963, 1056980736
        %vm3968 = vcmp.gt.bf16.partialorder %v3964, 1056980736
        %v3973 = vunpack.c.l.b16 %v3957
        %v3974 = vunpack.c.l.b16 %v3958
        %v3975 = vunpack.c.l.b16 %v3959
        %v3976 = vunpack.c.l.b16 %v3960
        %v3977 = vpack.c.b16 %v3974, %v3973
        %v3978 = vpack.c.b16 %v3976, %v3975
        %3979 = vrot.lane.b32.xlu0 %v3977, 126
        %v3980 = vpop.permute.xlu0 %3979
        %3981 = vrot.lane.b32.xlu0 %v3978, 126
        %v3982 = vpop.permute.xlu0 %3981
        %3983 = vrot.lane.b32.xlu0 %v3977, 2
        %v3984 = vpop.permute.xlu0 %3983
        %3985 = vrot.lane.b32.xlu0 %v3978, 2
        %v3986 = vpop.permute.xlu0 %3985
        %v3989 = vsel %vm961, %v3980, %v3984
        %v3992 = vsel %vm961, %v3982, %v3986
        %v3995 = vunpack.c.l.b16 %v3989
        %v3996 = vunpack.c.h.b16 %v3989
        %v3997 = vunpack.c.l.b16 %v3992
        %v3998 = vunpack.c.h.b16 %v3992
        %v3999 = vpack.c.b16 %v3995, %v3995
        %v4000 = vpack.c.b16 %v3996, %v3996
        %v4001 = vpack.c.b16 %v3997, %v3997
        %v4002 = vpack.c.b16 %v3998, %v3998
        %v4007 = vsel %vm3965, %v3999, %v3957
        %v4008 = vsel %vm3966, %v4000, %v3958
        %v4009 = vsel %vm3967, %v4001, %v3959
        %v4010 = vsel %vm3968, %v4002, %v3960
        %v4015 = vunpack.c.l.b16 %v3699
        %v4016 = vunpack.c.l.b16 %v3700
        %v4017 = vunpack.c.l.b16 %v3701
        %v4018 = vunpack.c.l.b16 %v3702
        %v4019 = vpack.c.b16 %v4016, %v4015
        %v4020 = vpack.c.b16 %v4018, %v4017
        %v4022 = vsel %vm1538, %v4019, 0
        %v4025 = vsel %vm1538, %v4020, 0
        %4027 = vmatprep.subr.bf16.mxu0 0
        %4028 = vmatpush1.bf16.msra.mxu0 %v1530
        %4029 = vmatprep.subr.bf16.mxu0 0
        %4030 = vmatpush1.bf16.msra.mxu0 %v1531
        %4031 = vmatprep.subr.bf16.mxu0 0
        %4032 = vmatpush1.bf16.msra.mxu0 %v1532
        %4033 = vmatprep.subr.bf16.mxu0 0
        %4034 = vmatpush1.bf16.msra.mxu0 %v1533
        %4035 = vmatprep.subr.bf16.mxu0 0
        %4036 = vmatpush1.bf16.msra.mxu0 0
        %4037 = vmatprep.subr.bf16.mxu0 0
        %4038 = vmatpush1.bf16.msra.mxu0 0
        %4039 = vmatprep.subr.bf16.mxu0 0
        %4040 = vmatpush1.bf16.msra.mxu0 0
        %4041 = vmatprep.subr.bf16.mxu0 0
        %4042 = vmatpush1.bf16.msra.mxu0 0
        %4043 = vmatprep.subr.bf16.mxu0 0
        %4044 = vmatpush1.bf16.msra.mxu0 0
        %4045 = vmatprep.subr.bf16.mxu0 0
        %4046 = vmatpush1.bf16.msra.mxu0 0
        %4047 = vmatprep.subr.bf16.mxu0 0
        %4048 = vmatpush1.bf16.msra.mxu0 0
        %4049 = vmatprep.subr.bf16.mxu0 0
        %4050 = vmatpush1.bf16.msra.mxu0 0
        %4051 = vmatprep.subr.bf16.mxu0 0
        %4052 = vmatpush1.bf16.msra.mxu0 0
        %4053 = vmatprep.subr.bf16.mxu0 0
        %4054 = vmatpush1.bf16.msra.mxu0 0
        %4055 = vmatprep.subr.bf16.mxu0 0
        %4056 = vmatpush1.bf16.msra.mxu0 0
        %4057 = vmatprep.subr.bf16.mxu0 0
        %4058 = vmatpush1.bf16.msra.mxu0 0
        %4059 = vmatprep.mubr.bf16.mxu0 0
        %4060 = vmatmul.mubr.bf16.gmra.mrb[0].mxu0 %v4022
        %v4061 = vpop.f32.mrb[0].mxu0
        %v4062 = vadd.f32 0.0, %v4061
        %v4063 = vpop.f32.mrb[0].mxu0
        %v4064 = vpop.f32.mrb[0].mxu0
        %v4065 = vadd.f32 0.0, %v4064
        %v4066 = vpop.f32.mrb[0].mxu0
        %4067 = vmatprep.mubr.bf16.mxu0 0
        %4068 = vmatmul.mubr.bf16.gmra.mrb[0].mxu0 %v4025
        %v4069 = vpop.f32.mrb[0].mxu0
        %v4070 = vadd.f32 0.0, %v4069
        %v4071 = vpop.f32.mrb[0].mxu0
        %v4072 = vpop.f32.mrb[0].mxu0
        %v4073 = vadd.f32 0.0, %v4072
        %v4074 = vpop.f32.mrb[0].mxu0
        %4075 = vdwg.mxu0
        %4076 = vrot.lane.b32.xlu0 %v698, 80
        %v4077 = vpop.permute.xlu0 %4076
        %4078 = vrot.lane.b32.xlu0 %v699, 80
        %v4079 = vpop.permute.xlu0 %4078
        %4080 = vrot.lane.b32.xlu0 %v700, 80
        %v4081 = vpop.permute.xlu0 %4080
        %4082 = vrot.lane.b32.xlu0 %v701, 80
        %v4083 = vpop.permute.xlu0 %4082
        %4084 = vrot.lane.b32.xlu0 %v702, 80
        %v4085 = vpop.permute.xlu0 %4084
        %4086 = vrot.lane.b32.xlu0 %v703, 80
        %v4087 = vpop.permute.xlu0 %4086
        %4088 = vrot.lane.b32.xlu0 %v704, 80
        %v4089 = vpop.permute.xlu0 %4088
        %4090 = vrot.lane.b32.xlu0 %v705, 80
        %v4091 = vpop.permute.xlu0 %4090
        %v4093 = vsel %vm707, %v4077, 0
        %v4096 = vsel %vm707, %v4079, 0
        %v4099 = vsel %vm707, %v4081, 0
        %v4102 = vsel %vm707, %v4083, 0
        %v4105 = vsel %vm707, %v4085, 0
        %v4108 = vsel %vm707, %v4087, 0
        %v4111 = vsel %vm707, %v4089, 0
        %v4114 = vsel %vm707, %v4091, 0
        %4116 = vmatprep.subr.bf16.mxu0 0
        %4117 = vmatpush1.bf16.xpose.msra.mxu0 %v4093
        %4118 = vmatprep.subr.bf16.mxu0 0
        %4119 = vmatpush1.bf16.xpose.msra.mxu0 %v4096
        %4120 = vmatprep.subr.bf16.mxu0 0
        %4121 = vmatpush1.bf16.xpose.msra.mxu0 %v4099
        %4122 = vmatprep.subr.bf16.mxu0 0
        %4123 = vmatpush1.bf16.xpose.msra.mxu0 %v4102
        %4124 = vmatprep.subr.bf16.mxu0 0
        %4125 = vmatpush1.bf16.xpose.msra.mxu0 %v4105
        %4126 = vmatprep.subr.bf16.mxu0 0
        %4127 = vmatpush1.bf16.xpose.msra.mxu0 %v4108
        %4128 = vmatprep.subr.bf16.mxu0 0
        %4129 = vmatpush1.bf16.xpose.msra.mxu0 %v4111
        %4130 = vmatprep.subr.bf16.mxu0 0
        %4131 = vmatpush1.bf16.xpose.msra.mxu0 %v4114
        %4132 = vmatprep.subr.bf16.mxu0 0
        %4133 = vmatpush1.bf16.xpose.msra.mxu0 0
        %4134 = vmatprep.subr.bf16.mxu0 0
        %4135 = vmatpush1.bf16.xpose.msra.mxu0 0
        %4136 = vmatprep.subr.bf16.mxu0 0
        %4137 = vmatpush1.bf16.xpose.msra.mxu0 0
        %4138 = vmatprep.subr.bf16.mxu0 0
        %4139 = vmatpush1.bf16.xpose.msra.mxu0 0
        %4140 = vmatprep.subr.bf16.mxu0 0
        %4141 = vmatpush1.bf16.xpose.msra.mxu0 0
        %4142 = vmatprep.subr.bf16.mxu0 0
        %4143 = vmatpush1.bf16.xpose.msra.mxu0 0
        %4144 = vmatprep.subr.bf16.mxu0 0
        %4145 = vmatpush1.bf16.xpose.msra.mxu0 0
        %4146 = vmatprep.subr.bf16.mxu0 0
        %4147 = vmatpush1.bf16.xpose.msra.mxu0 0
        %4148 = vmatprep.mubr.bf16.mxu0 0
        %4149 = vmatmul.mubr.bf16.gmra.mrb[0].mxu0 %v3228
        %v4150 = vpop.f32.mrb[0].mxu0
        %v4151 = vadd.f32 %v4062, %v4150
        %v4152 = vpop.f32.mrb[0].mxu0
        %v4153 = vpop.f32.mrb[0].mxu0
        %v4154 = vadd.f32 %v4065, %v4153
        %v4155 = vpop.f32.mrb[0].mxu0
        %4156 = vmatprep.mubr.bf16.mxu0 0
        %4157 = vmatmul.mubr.bf16.gmra.mrb[0].mxu0 %v3231
        %v4158 = vpop.f32.mrb[0].mxu0
        %v4159 = vadd.f32 %v4070, %v4158
        %v4160 = vpop.f32.mrb[0].mxu0
        %v4161 = vpop.f32.mrb[0].mxu0
        %v4162 = vadd.f32 %v4073, %v4161
        %v4163 = vpop.f32.mrb[0].mxu0
        %4164 = vdwg.mxu0
        %v4169 = vunpack.c.l.b16 %v3903
        %v4170 = vunpack.c.l.b16 %v3904
        %v4171 = vunpack.c.l.b16 %v3905
        %v4172 = vunpack.c.l.b16 %v3906
        %v4173 = vpack.c.b16 %v4170, %v4169
        %v4174 = vpack.c.b16 %v4172, %v4171
        %v4176 = vsel %vm1116, %v4173, 0
        %v4179 = vsel %vm1116, %v4174, 0
        %4181 = vmatprep.subr.bf16.mxu0 0
        %4182 = vmatpush1.bf16.msra.mxu0 %v1705
        %4183 = vmatprep.subr.bf16.mxu0 0
        %4184 = vmatpush1.bf16.msra.mxu0 0
        %4185 = vmatprep.subr.bf16.mxu0 0
        %4186 = vmatpush1.bf16.msra.mxu0 0
        %4187 = vmatprep.subr.bf16.mxu0 0
        %4188 = vmatpush1.bf16.msra.mxu0 0
        %4189 = vmatprep.subr.bf16.mxu0 0
        %4190 = vmatpush1.bf16.msra.mxu0 0
        %4191 = vmatprep.subr.bf16.mxu0 0
        %4192 = vmatpush1.bf16.msra.mxu0 0
        %4193 = vmatprep.subr.bf16.mxu0 0
        %4194 = vmatpush1.bf16.msra.mxu0 0
        %4195 = vmatprep.subr.bf16.mxu0 0
        %4196 = vmatpush1.bf16.msra.mxu0 0
        %4197 = vmatprep.subr.bf16.mxu0 0
        %4198 = vmatpush1.bf16.msra.mxu0 0
        %4199 = vmatprep.subr.bf16.mxu0 0
        %4200 = vmatpush1.bf16.msra.mxu0 0
        %4201 = vmatprep.subr.bf16.mxu0 0
        %4202 = vmatpush1.bf16.msra.mxu0 0
        %4203 = vmatprep.subr.bf16.mxu0 0
        %4204 = vmatpush1.bf16.msra.mxu0 0
        %4205 = vmatprep.subr.bf16.mxu0 0
        %4206 = vmatpush1.bf16.msra.mxu0 0
        %4207 = vmatprep.subr.bf16.mxu0 0
        %4208 = vmatpush1.bf16.msra.mxu0 0
        %4209 = vmatprep.subr.bf16.mxu0 0
        %4210 = vmatpush1.bf16.msra.mxu0 0
        %4211 = vmatprep.subr.bf16.mxu0 0
        %4212 = vmatpush1.bf16.msra.mxu0 0
        %4213 = vmatprep.mubr.bf16.mxu0 0
        %4214 = vmatmul.mubr.bf16.gmra.mrb[0].mxu0 %v4176
        %v4215 = vpop.f32.mrb[0].mxu0
        %v4216 = vadd.f32 0.0, %v4215
        %v4217 = vpop.f32.mrb[0].mxu0
        %v4218 = vpop.f32.mrb[0].mxu0
        %v4219 = vadd.f32 0.0, %v4218
        %v4220 = vpop.f32.mrb[0].mxu0
        %4221 = vmatprep.mubr.bf16.mxu0 0
        %4222 = vmatmul.mubr.bf16.gmra.mrb[0].mxu0 %v4179
        %v4223 = vpop.f32.mrb[0].mxu0
        %v4224 = vadd.f32 0.0, %v4223
        %v4225 = vpop.f32.mrb[0].mxu0
        %v4226 = vpop.f32.mrb[0].mxu0
        %v4227 = vadd.f32 0.0, %v4226
        %v4228 = vpop.f32.mrb[0].mxu0
        %4229 = vdwg.mxu0
        %v4230 = vadd.f32 %v4151, %v4216
        %v4231 = vadd.f32 %v4154, %v4219
        %v4232 = vadd.f32 %v4159, %v4224
        %v4233 = vadd.f32 %v4162, %v4227
        %v4238 = vunpack.c.l.b16 %v4007
        %v4239 = vunpack.c.l.b16 %v4008
        %v4240 = vunpack.c.l.b16 %v4009
        %v4241 = vunpack.c.l.b16 %v4010
        %v4242 = vpack.c.b16 %v4239, %v4238
        %v4243 = vpack.c.b16 %v4241, %v4240
        %v4245 = vsel %vm1013, %v4242, 0
        %v4248 = vsel %vm1013, %v4243, 0
        %4250 = vmatprep.subr.bf16.mxu0 0
        %4251 = vmatpush1.bf16.msra.mxu0 %v1784
        %4252 = vmatprep.subr.bf16.mxu0 0
        %4253 = vmatpush1.bf16.msra.mxu0 0
        %4254 = vmatprep.subr.bf16.mxu0 0
        %4255 = vmatpush1.bf16.msra.mxu0 0
        %4256 = vmatprep.subr.bf16.mxu0 0
        %4257 = vmatpush1.bf16.msra.mxu0 0
        %4258 = vmatprep.subr.bf16.mxu0 0
        %4259 = vmatpush1.bf16.msra.mxu0 0
        %4260 = vmatprep.subr.bf16.mxu0 0
        %4261 = vmatpush1.bf16.msra.mxu0 0
        %4262 = vmatprep.subr.bf16.mxu0 0
        %4263 = vmatpush1.bf16.msra.mxu0 0
        %4264 = vmatprep.subr.bf16.mxu0 0
        %4265 = vmatpush1.bf16.msra.mxu0 0
        %4266 = vmatprep.subr.bf16.mxu0 0
        %4267 = vmatpush1.bf16.msra.mxu0 0
        %4268 = vmatprep.subr.bf16.mxu0 0
        %4269 = vmatpush1.bf16.msra.mxu0 0
        %4270 = vmatprep.subr.bf16.mxu0 0
        %4271 = vmatpush1.bf16.msra.mxu0 0
        %4272 = vmatprep.subr.bf16.mxu0 0
        %4273 = vmatpush1.bf16.msra.mxu0 0
        %4274 = vmatprep.subr.bf16.mxu0 0
        %4275 = vmatpush1.bf16.msra.mxu0 0
        %4276 = vmatprep.subr.bf16.mxu0 0
        %4277 = vmatpush1.bf16.msra.mxu0 0
        %4278 = vmatprep.subr.bf16.mxu0 0
        %4279 = vmatpush1.bf16.msra.mxu0 0
        %4280 = vmatprep.subr.bf16.mxu0 0
        %4281 = vmatpush1.bf16.msra.mxu0 0
        %4282 = vmatprep.mubr.bf16.mxu0 0
        %4283 = vmatmul.mubr.bf16.gmra.mrb[0].mxu0 %v4245
        %v4284 = vpop.f32.mrb[0].mxu0
        %v4285 = vadd.f32 0.0, %v4284
        %v4286 = vpop.f32.mrb[0].mxu0
        %v4287 = vpop.f32.mrb[0].mxu0
        %v4288 = vadd.f32 0.0, %v4287
        %v4289 = vpop.f32.mrb[0].mxu0
        %4290 = vmatprep.mubr.bf16.mxu0 0
        %4291 = vmatmul.mubr.bf16.gmra.mrb[0].mxu0 %v4248
        %v4292 = vpop.f32.mrb[0].mxu0
        %v4293 = vadd.f32 0.0, %v4292
        %v4294 = vpop.f32.mrb[0].mxu0
        %v4295 = vpop.f32.mrb[0].mxu0
        %v4296 = vadd.f32 0.0, %v4295
        %v4297 = vpop.f32.mrb[0].mxu0
        %4298 = vdwg.mxu0
        %v4299 = vadd.f32 %v4230, %v4285
        %v4300 = vadd.f32 %v4231, %v4288
        %v4301 = vadd.f32 %v4232, %v4293
        %v4302 = vadd.f32 %v4233, %v4296
        %v4303 = vadd.f32 %v4299, %v1843
        %v4304 = vadd.f32 %v4300, %v1843
        %v4305 = vadd.f32 %v4301, %v1843
        %v4306 = vadd.f32 %v4302, %v1843
        %4307 = vmax.xlane.f32.xlu0 %v4303
        %v4308 = vpop.xlane.xlu0 %4307
        %4309 = vmax.xlane.f32.xlu0 %v4304
        %v4310 = vpop.xlane.xlu0 %4309
        %4311 = vmax.xlane.f32.xlu0 %v4305
        %v4312 = vpop.xlane.xlu0 %4311
        %4313 = vmax.xlane.f32.xlu0 %v4306
        %v4314 = vpop.xlane.xlu0 %4313
        %v4315 = vsub.f32 %v4303, %v4308
        %v4316 = vsub.f32 %v4304, %v4310
        %v4317 = vsub.f32 %v4305, %v4312
        %v4318 = vsub.f32 %v4306, %v4314
        %v4319 = vmul.f32 %v4315, 1.442695
        %v4320 = vpow.pop %v4319
        %v4321 = vmul.f32 %v4316, 1.442695
        %v4322 = vpow.pop %v4321
        %v4323 = vmul.f32 %v4317, 1.442695
        %v4324 = vpow.pop %v4323
        %v4325 = vmul.f32 %v4318, 1.442695
        %v4326 = vpow.pop %v4325
        %4327 = vadd.xlane.f32.xlu0 %v4320
        %v4328 = vpop.xlane.xlu0 %4327
        %4329 = vadd.xlane.f32.xlu0 %v4322
        %v4330 = vpop.xlane.xlu0 %4329
        %4331 = vadd.xlane.f32.xlu0 %v4324
        %v4332 = vpop.xlane.xlu0 %4331
        %4333 = vadd.xlane.f32.xlu0 %v4326
        %v4334 = vpop.xlane.xlu0 %4333
        %v4335 = vrcp.pop %v4328
        %v4336 = vrcp.pop %v4330
        %v4337 = vrcp.pop %v4332
        %v4338 = vrcp.pop %v4334
        %v4339 = vmul.f32 %v4320, %v4335
        %v4340 = vmul.f32 %v4322, %v4336
        %v4341 = vmul.f32 %v4324, %v4337
        %v4342 = vmul.f32 %v4326, %v4338
        %v4343 = vpack.c.bf16 %v4340, %v4339
        %v4344 = vpack.c.bf16 %v4342, %v4341
        %v4347 = vunpack.c.l.b16 %v4343
        %v4348 = vunpack.c.h.b16 %v4343
        %v4349 = vunpack.c.l.b16 %v4344
        %v4350 = vunpack.c.h.b16 %v4344
        %v4351 = vpack.c.b16 %v4347, %v4347
        %v4352 = vpack.c.b16 %v4348, %v4348
        %v4353 = vpack.c.b16 %v4349, %v4349
        %v4354 = vpack.c.b16 %v4350, %v4350
        %s4359 = scalar_lea.vmem %s471, 32 [#allocation4]
        %4360 = vst [vmem:[%s4359] sm:$0xf] %v4351
        %4361 = vst [vmem:[%s4359 + $0x4] sm:$0xf] %v4352
        %4362 = vst [vmem:[%s4359 + $0x8] sm:$0xf] %v4353
        %4363 = vst [vmem:[%s4359 + $0xc] sm:$0xf] %v4354
        %4364 = vrot.lane.b32.xlu0 %v698, 48
        %v4365 = vpop.permute.xlu0 %4364
        %4366 = vrot.lane.b32.xlu0 %v699, 48
        %v4367 = vpop.permute.xlu0 %4366
        %4368 = vrot.lane.b32.xlu0 %v700, 48
        %v4369 = vpop.permute.xlu0 %4368
        %4370 = vrot.lane.b32.xlu0 %v701, 48
        %v4371 = vpop.permute.xlu0 %4370
        %4372 = vrot.lane.b32.xlu0 %v702, 48
        %v4373 = vpop.permute.xlu0 %4372
        %4374 = vrot.lane.b32.xlu0 %v703, 48
        %v4375 = vpop.permute.xlu0 %4374
        %4376 = vrot.lane.b32.xlu0 %v704, 48
        %v4377 = vpop.permute.xlu0 %4376
        %4378 = vrot.lane.b32.xlu0 %v705, 48
        %v4379 = vpop.permute.xlu0 %4378
        %4388 = vmatprep.subr.bf16.mxu0 0
        %4389 = vmatpush1.bf16.msra.mxu0 %v4365
        %4390 = vmatprep.subr.bf16.mxu0 0
        %4391 = vmatpush1.bf16.msra.mxu0 %v4367
        %4392 = vmatprep.subr.bf16.mxu0 0
        %4393 = vmatpush1.bf16.msra.mxu0 %v4369
        %4394 = vmatprep.subr.bf16.mxu0 0
        %4395 = vmatpush1.bf16.msra.mxu0 %v4371
        %4396 = vmatprep.subr.bf16.mxu0 0
        %4397 = vmatpush1.bf16.msra.mxu0 %v4373
        %4398 = vmatprep.subr.bf16.mxu0 0
        %4399 = vmatpush1.bf16.msra.mxu0 %v4375
        %4400 = vmatprep.subr.bf16.mxu0 0
        %4401 = vmatpush1.bf16.msra.mxu0 %v4377
        %4402 = vmatprep.subr.bf16.mxu0 0
        %4403 = vmatpush1.bf16.msra.mxu0 %v4379
        %4404 = vmatprep.subr.bf16.mxu0 0
        %4405 = vmatpush1.bf16.msra.mxu0 0
        %4406 = vmatprep.subr.bf16.mxu0 0
        %4407 = vmatpush1.bf16.msra.mxu0 0
        %4408 = vmatprep.subr.bf16.mxu0 0
        %4409 = vmatpush1.bf16.msra.mxu0 0
        %4410 = vmatprep.subr.bf16.mxu0 0
        %4411 = vmatpush1.bf16.msra.mxu0 0
        %4412 = vmatprep.subr.bf16.mxu0 0
        %4413 = vmatpush1.bf16.msra.mxu0 0
        %4414 = vmatprep.subr.bf16.mxu0 0
        %4415 = vmatpush1.bf16.msra.mxu0 0
        %4416 = vmatprep.subr.bf16.mxu0 0
        %4417 = vmatpush1.bf16.msra.mxu0 0
        %4418 = vmatprep.subr.bf16.mxu0 0
        %4419 = vmatpush1.bf16.msra.mxu0 0
        %4420 = vmatprep.mubr.bf16.mxu0 0
        %4421 = vmatmul.mubr.bf16.gmra.mrb[0].mxu0 %v4343
        %v4422 = vpop.f32.mrb[0].mxu0
        %v4423 = vadd.f32 0.0, %v4422
        %v4424 = vpop.f32.mrb[0].mxu0
        %v4425 = vpop.f32.mrb[0].mxu0
        %v4426 = vadd.f32 0.0, %v4425
        %v4427 = vpop.f32.mrb[0].mxu0
        %4428 = vmatprep.mubr.bf16.mxu0 0
        %4429 = vmatmul.mubr.bf16.gmra.mrb[0].mxu0 %v4344
        %v4430 = vpop.f32.mrb[0].mxu0
        %v4431 = vadd.f32 0.0, %v4430
        %v4432 = vpop.f32.mrb[0].mxu0
        %v4433 = vpop.f32.mrb[0].mxu0
        %v4434 = vadd.f32 0.0, %v4433
        %v4435 = vpop.f32.mrb[0].mxu0
        %4436 = vdwg.mxu0
        %4441 = vrot.lane.b32.xlu0 %v4423, 16
        %v4442 = vpop.permute.xlu0 %4441
        %4443 = vrot.lane.b32.xlu0 %v4426, 16
        %v4444 = vpop.permute.xlu0 %4443
        %4445 = vrot.lane.b32.xlu0 %v4431, 16
        %v4446 = vpop.permute.xlu0 %4445
        %4447 = vrot.lane.b32.xlu0 %v4434, 16
        %v4448 = vpop.permute.xlu0 %4447
        %vm4453 = vcmask 195712
        %4454 = vst.msk [vmem:[%s464] sm:$0xff] %vm4453, %v4442
        %4455 = vst.msk [vmem:[%s464 + $0x8] sm:$0xff] %vm4453, %v4444
        %4456 = vst.msk [vmem:[%s464 + $0x10] sm:$0xff] %vm4453, %v4446
        %4457 = vst.msk [vmem:[%s464 + $0x18] sm:$0xff] %vm4453, %v4448
        %s4458 = scalar_lea.vmem %s3, 12
        %v4459 = vld [vmem:[%s4458] sm:$0xf]
        %4460 = vrot.lane.b32.xlu0 %v696, 104
        %v4461 = vpop.permute.xlu0 %4460
        %4462 = vrot.lane.b32.xlu0 %v697, 104
        %v4463 = vpop.permute.xlu0 %4462
        %v4465 = vsel %vm707, %v4461, 0
        %v4468 = vsel %vm707, %v4463, 0
        %v4471 = vsel %vm714, %v4459, 0
        %4473 = vmatprep.subr.bf16.mxu0 0
        %4474 = vmatpush1.bf16.msra.mxu0 %v4471
        %4475 = vmatprep.subr.bf16.mxu0 0
        %4476 = vmatpush1.bf16.msra.mxu0 0
        %4477 = vmatprep.subr.bf16.mxu0 0
        %4478 = vmatpush1.bf16.msra.mxu0 0
        %4479 = vmatprep.subr.bf16.mxu0 0
        %4480 = vmatpush1.bf16.msra.mxu0 0
        %4481 = vmatprep.subr.bf16.mxu0 0
        %4482 = vmatpush1.bf16.msra.mxu0 0
        %4483 = vmatprep.subr.bf16.mxu0 0
        %4484 = vmatpush1.bf16.msra.mxu0 0
        %4485 = vmatprep.subr.bf16.mxu0 0
        %4486 = vmatpush1.bf16.msra.mxu0 0
        %4487 = vmatprep.subr.bf16.mxu0 0
        %4488 = vmatpush1.bf16.msra.mxu0 0
        %4489 = vmatprep.subr.bf16.mxu0 0
        %4490 = vmatpush1.bf16.msra.mxu0 0
        %4491 = vmatprep.subr.bf16.mxu0 0
        %4492 = vmatpush1.bf16.msra.mxu0 0
        %4493 = vmatprep.subr.bf16.mxu0 0
        %4494 = vmatpush1.bf16.msra.mxu0 0
        %4495 = vmatprep.subr.bf16.mxu0 0
        %4496 = vmatpush1.bf16.msra.mxu0 0
        %4497 = vmatprep.subr.bf16.mxu0 0
        %4498 = vmatpush1.bf16.msra.mxu0 0
        %4499 = vmatprep.subr.bf16.mxu0 0
        %4500 = vmatpush1.bf16.msra.mxu0 0
        %4501 = vmatprep.subr.bf16.mxu0 0
        %4502 = vmatpush1.bf16.msra.mxu0 0
        %4503 = vmatprep.subr.bf16.mxu0 0
        %4504 = vmatpush1.bf16.msra.mxu0 0
        %4505 = vmatprep.mubr.bf16.mxu0 0
        %4506 = vmatmul.mubr.bf16.gmra.mrb[0].mxu0 %v4465
        %v4507 = vpop.f32.mrb[0].mxu0
        %v4508 = vadd.f32 0.0, %v4507
        %v4509 = vpop.f32.mrb[0].mxu0
        %v4510 = vpop.f32.mrb[0].mxu0
        %v4511 = vadd.f32 0.0, %v4510
        %v4512 = vpop.f32.mrb[0].mxu0
        %4513 = vmatprep.mubr.bf16.mxu0 0
        %4514 = vmatmul.mubr.bf16.gmra.mrb[0].mxu0 %v4468
        %v4515 = vpop.f32.mrb[0].mxu0
        %v4516 = vadd.f32 0.0, %v4515
        %v4517 = vpop.f32.mrb[0].mxu0
        %v4518 = vpop.f32.mrb[0].mxu0
        %v4519 = vadd.f32 0.0, %v4518
        %v4520 = vpop.f32.mrb[0].mxu0
        %4521 = vdwg.mxu0
        %v4522 = vpack.c.bf16 %v4511, %v4508
        %v4523 = vpack.c.bf16 %v4519, %v4516
        %s4524 = scalar_lea.vmem %s4, 12
        %v4525 = vld [vmem:[%s4524] sm:$0xf]
        %v4527 = vsel %vm714, %v4525, 0
        %4529 = vmatprep.subr.bf16.mxu0 0
        %4530 = vmatpush1.bf16.msra.mxu0 %v4527
        %4531 = vmatprep.subr.bf16.mxu0 0
        %4532 = vmatpush1.bf16.msra.mxu0 0
        %4533 = vmatprep.subr.bf16.mxu0 0
        %4534 = vmatpush1.bf16.msra.mxu0 0
        %4535 = vmatprep.subr.bf16.mxu0 0
        %4536 = vmatpush1.bf16.msra.mxu0 0
        %4537 = vmatprep.subr.bf16.mxu0 0
        %4538 = vmatpush1.bf16.msra.mxu0 0
        %4539 = vmatprep.subr.bf16.mxu0 0
        %4540 = vmatpush1.bf16.msra.mxu0 0
        %4541 = vmatprep.subr.bf16.mxu0 0
        %4542 = vmatpush1.bf16.msra.mxu0 0
        %4543 = vmatprep.subr.bf16.mxu0 0
        %4544 = vmatpush1.bf16.msra.mxu0 0
        %4545 = vmatprep.subr.bf16.mxu0 0
        %4546 = vmatpush1.bf16.msra.mxu0 0
        %4547 = vmatprep.subr.bf16.mxu0 0
        %4548 = vmatpush1.bf16.msra.mxu0 0
        %4549 = vmatprep.subr.bf16.mxu0 0
        %4550 = vmatpush1.bf16.msra.mxu0 0
        %4551 = vmatprep.subr.bf16.mxu0 0
        %4552 = vmatpush1.bf16.msra.mxu0 0
        %4553 = vmatprep.subr.bf16.mxu0 0
        %4554 = vmatpush1.bf16.msra.mxu0 0
        %4555 = vmatprep.subr.bf16.mxu0 0
        %4556 = vmatpush1.bf16.msra.mxu0 0
        %4557 = vmatprep.subr.bf16.mxu0 0
        %4558 = vmatpush1.bf16.msra.mxu0 0
        %4559 = vmatprep.subr.bf16.mxu0 0
        %4560 = vmatpush1.bf16.msra.mxu0 0
        %4561 = vmatprep.mubr.bf16.mxu0 0
        %4562 = vmatmul.mubr.bf16.gmra.mrb[0].mxu0 %v4465
        %v4563 = vpop.f32.mrb[0].mxu0
        %v4564 = vadd.f32 0.0, %v4563
        %v4565 = vpop.f32.mrb[0].mxu0
        %v4566 = vpop.f32.mrb[0].mxu0
        %v4567 = vadd.f32 0.0, %v4566
        %v4568 = vpop.f32.mrb[0].mxu0
        %4569 = vmatprep.mubr.bf16.mxu0 0
        %4570 = vmatmul.mubr.bf16.gmra.mrb[0].mxu0 %v4468
        %v4571 = vpop.f32.mrb[0].mxu0
        %v4572 = vadd.f32 0.0, %v4571
        %v4573 = vpop.f32.mrb[0].mxu0
        %v4574 = vpop.f32.mrb[0].mxu0
        %v4575 = vadd.f32 0.0, %v4574
        %v4576 = vpop.f32.mrb[0].mxu0
        %4577 = vdwg.mxu0
        %v4578 = vpack.c.bf16 %v4567, %v4564
        %v4579 = vpack.c.bf16 %v4575, %v4572
        %s4580 = scalar_lea.vmem %s5, 12
        %v4581 = vld [vmem:[%s4580] sm:$0xf]
        %v4583 = vsel %vm714, %v4581, 0
        %4585 = vmatprep.subr.bf16.mxu0 0
        %4586 = vmatpush1.bf16.msra.mxu0 %v4583
        %4587 = vmatprep.subr.bf16.mxu0 0
        %4588 = vmatpush1.bf16.msra.mxu0 0
        %4589 = vmatprep.subr.bf16.mxu0 0
        %4590 = vmatpush1.bf16.msra.mxu0 0
        %4591 = vmatprep.subr.bf16.mxu0 0
        %4592 = vmatpush1.bf16.msra.mxu0 0
        %4593 = vmatprep.subr.bf16.mxu0 0
        %4594 = vmatpush1.bf16.msra.mxu0 0
        %4595 = vmatprep.subr.bf16.mxu0 0
        %4596 = vmatpush1.bf16.msra.mxu0 0
        %4597 = vmatprep.subr.bf16.mxu0 0
        %4598 = vmatpush1.bf16.msra.mxu0 0
        %4599 = vmatprep.subr.bf16.mxu0 0
        %4600 = vmatpush1.bf16.msra.mxu0 0
        %4601 = vmatprep.subr.bf16.mxu0 0
        %4602 = vmatpush1.bf16.msra.mxu0 0
        %4603 = vmatprep.subr.bf16.mxu0 0
        %4604 = vmatpush1.bf16.msra.mxu0 0
        %4605 = vmatprep.subr.bf16.mxu0 0
        %4606 = vmatpush1.bf16.msra.mxu0 0
        %4607 = vmatprep.subr.bf16.mxu0 0
        %4608 = vmatpush1.bf16.msra.mxu0 0
        %4609 = vmatprep.subr.bf16.mxu0 0
        %4610 = vmatpush1.bf16.msra.mxu0 0
        %4611 = vmatprep.subr.bf16.mxu0 0
        %4612 = vmatpush1.bf16.msra.mxu0 0
        %4613 = vmatprep.subr.bf16.mxu0 0
        %4614 = vmatpush1.bf16.msra.mxu0 0
        %4615 = vmatprep.subr.bf16.mxu0 0
        %4616 = vmatpush1.bf16.msra.mxu0 0
        %4617 = vmatprep.mubr.bf16.mxu0 0
        %4618 = vmatmul.mubr.bf16.gmra.mrb[0].mxu0 %v4465
        %v4619 = vpop.f32.mrb[0].mxu0
        %v4620 = vadd.f32 0.0, %v4619
        %v4621 = vpop.f32.mrb[0].mxu0
        %v4622 = vpop.f32.mrb[0].mxu0
        %v4623 = vadd.f32 0.0, %v4622
        %v4624 = vpop.f32.mrb[0].mxu0
        %4625 = vmatprep.mubr.bf16.mxu0 0
        %4626 = vmatmul.mubr.bf16.gmra.mrb[0].mxu0 %v4468
        %v4627 = vpop.f32.mrb[0].mxu0
        %v4628 = vadd.f32 0.0, %v4627
        %v4629 = vpop.f32.mrb[0].mxu0
        %v4630 = vpop.f32.mrb[0].mxu0
        %v4631 = vadd.f32 0.0, %v4630
        %v4632 = vpop.f32.mrb[0].mxu0
        %4633 = vdwg.mxu0
        %v4634 = vpack.c.bf16 %v4623, %v4620
        %v4635 = vpack.c.bf16 %v4631, %v4628
        %v4636 = vld [vmem:[%s9] sm:$0xf]
        %v4637 = vld [vmem:[%s9 + $0x4] sm:$0xf]
        %v4638 = vld [vmem:[%s9 + $0x8] sm:$0xf]
        %v4639 = vld [vmem:[%s9 + $0xc] sm:$0xf]
        %vm4640 = vcmp.gt.bf16.partialorder %v4636, 1056980736
        %vm4641 = vcmp.gt.bf16.partialorder %v4637, 1056980736
        %vm4642 = vcmp.gt.bf16.partialorder %v4638, 1056980736
        %vm4643 = vcmp.gt.bf16.partialorder %v4639, 1056980736
        %4646 = vrot.lane.b32.xlu0 %v4522, 65
        %v4647 = vpop.permute.xlu0 %4646
        %4648 = vrot.lane.b32.xlu0 %v4523, 65
        %v4649 = vpop.permute.xlu0 %4648
        %4650 = vrot.lane.b32.xlu0 %v4522, 1
        %v4651 = vpop.permute.xlu0 %4650
        %4652 = vrot.lane.b32.xlu0 %v4523, 1
        %v4653 = vpop.permute.xlu0 %4652
        %v4656 = vsel %vm897, %v4647, %v4651
        %v4659 = vsel %vm897, %v4649, %v4653
        %v4662 = vunpack.c.l.b16 %v4656
        %v4663 = vunpack.c.h.b16 %v4656
        %v4664 = vunpack.c.l.b16 %v4659
        %v4665 = vunpack.c.h.b16 %v4659
        %v4666 = vpack.c.b16 %v4662, %v4662
        %v4667 = vpack.c.b16 %v4663, %v4663
        %v4668 = vpack.c.b16 %v4664, %v4664
        %v4669 = vpack.c.b16 %v4665, %v4665
        %v4674 = vunpack.c.l.b16 %v4522
        %v4675 = vunpack.c.h.b16 %v4522
        %v4676 = vunpack.c.l.b16 %v4523
        %v4677 = vunpack.c.h.b16 %v4523
        %v4678 = vpack.c.b16 %v4674, %v4674
        %v4679 = vpack.c.b16 %v4675, %v4675
        %v4680 = vpack.c.b16 %v4676, %v4676
        %v4681 = vpack.c.b16 %v4677, %v4677
        %v4686 = vsel %vm4640, %v4666, %v4678
        %v4687 = vsel %vm4641, %v4667, %v4679
        %v4688 = vsel %vm4642, %v4668, %v4680
        %v4689 = vsel %vm4643, %v4669, %v4681
        %v4690 = vld [vmem:[%s934] sm:$0xf]
        %v4691 = vld [vmem:[%s934 + $0x4] sm:$0xf]
        %v4692 = vld [vmem:[%s934 + $0x8] sm:$0xf]
        %v4693 = vld [vmem:[%s934 + $0xc] sm:$0xf]
        %vm4694 = vcmp.gt.bf16.partialorder %v4690, 1056980736
        %vm4695 = vcmp.gt.bf16.partialorder %v4691, 1056980736
        %vm4696 = vcmp.gt.bf16.partialorder %v4692, 1056980736
        %vm4697 = vcmp.gt.bf16.partialorder %v4693, 1056980736
        %v4702 = vunpack.c.l.b16 %v4686
        %v4703 = vunpack.c.l.b16 %v4687
        %v4704 = vunpack.c.l.b16 %v4688
        %v4705 = vunpack.c.l.b16 %v4689
        %v4706 = vpack.c.b16 %v4703, %v4702
        %v4707 = vpack.c.b16 %v4705, %v4704
        %4708 = vrot.lane.b32.xlu0 %v4706, 66
        %v4709 = vpop.permute.xlu0 %4708
        %4710 = vrot.lane.b32.xlu0 %v4707, 66
        %v4711 = vpop.permute.xlu0 %4710
        %4712 = vrot.lane.b32.xlu0 %v4706, 2
        %v4713 = vpop.permute.xlu0 %4712
        %4714 = vrot.lane.b32.xlu0 %v4707, 2
        %v4715 = vpop.permute.xlu0 %4714
        %v4718 = vsel %vm961, %v4709, %v4713
        %v4721 = vsel %vm961, %v4711, %v4715
        %v4724 = vunpack.c.l.b16 %v4718
        %v4725 = vunpack.c.h.b16 %v4718
        %v4726 = vunpack.c.l.b16 %v4721
        %v4727 = vunpack.c.h.b16 %v4721
        %v4728 = vpack.c.b16 %v4724, %v4724
        %v4729 = vpack.c.b16 %v4725, %v4725
        %v4730 = vpack.c.b16 %v4726, %v4726
        %v4731 = vpack.c.b16 %v4727, %v4727
        %v4736 = vsel %vm4694, %v4728, %v4686
        %v4737 = vsel %vm4695, %v4729, %v4687
        %v4738 = vsel %vm4696, %v4730, %v4688
        %v4739 = vsel %vm4697, %v4731, %v4689
        %v4740 = vld [vmem:[%s986] sm:$0xf]
        %v4741 = vld [vmem:[%s986 + $0x4] sm:$0xf]
        %v4742 = vld [vmem:[%s986 + $0x8] sm:$0xf]
        %v4743 = vld [vmem:[%s986 + $0xc] sm:$0xf]
        %vm4744 = vcmp.gt.bf16.partialorder %v4740, 1056980736
        %vm4745 = vcmp.gt.bf16.partialorder %v4741, 1056980736
        %vm4746 = vcmp.gt.bf16.partialorder %v4742, 1056980736
        %vm4747 = vcmp.gt.bf16.partialorder %v4743, 1056980736
        %v4752 = vunpack.c.l.b16 %v4736
        %v4753 = vunpack.c.l.b16 %v4737
        %v4754 = vunpack.c.l.b16 %v4738
        %v4755 = vunpack.c.l.b16 %v4739
        %v4756 = vpack.c.b16 %v4753, %v4752
        %v4757 = vpack.c.b16 %v4755, %v4754
        %4758 = vrot.lane.b32.xlu0 %v4756, 68
        %v4759 = vpop.permute.xlu0 %4758
        %4760 = vrot.lane.b32.xlu0 %v4757, 68
        %v4761 = vpop.permute.xlu0 %4760
        %4762 = vrot.lane.b32.xlu0 %v4756, 4
        %v4763 = vpop.permute.xlu0 %4762
        %4764 = vrot.lane.b32.xlu0 %v4757, 4
        %v4765 = vpop.permute.xlu0 %4764
        %v4768 = vsel %vm1013, %v4759, %v4763
        %v4771 = vsel %vm1013, %v4761, %v4765
        %v4774 = vunpack.c.l.b16 %v4768
        %v4775 = vunpack.c.h.b16 %v4768
        %v4776 = vunpack.c.l.b16 %v4771
        %v4777 = vunpack.c.h.b16 %v4771
        %v4778 = vpack.c.b16 %v4774, %v4774
        %v4779 = vpack.c.b16 %v4775, %v4775
        %v4780 = vpack.c.b16 %v4776, %v4776
        %v4781 = vpack.c.b16 %v4777, %v4777
        %v4786 = vsel %vm4744, %v4778, %v4736
        %v4787 = vsel %vm4745, %v4779, %v4737
        %v4788 = vsel %vm4746, %v4780, %v4738
        %v4789 = vsel %vm4747, %v4781, %v4739
        %v4790 = vld [vmem:[%s1038] sm:$0xf]
        %v4791 = vld [vmem:[%s1038 + $0x4] sm:$0xf]
        %v4792 = vld [vmem:[%s1038 + $0x8] sm:$0xf]
        %v4793 = vld [vmem:[%s1038 + $0xc] sm:$0xf]
        %vm4794 = vcmp.gt.bf16.partialorder %v4790, 1056980736
        %vm4795 = vcmp.gt.bf16.partialorder %v4791, 1056980736
        %vm4796 = vcmp.gt.bf16.partialorder %v4792, 1056980736
        %vm4797 = vcmp.gt.bf16.partialorder %v4793, 1056980736
        %v4802 = vunpack.c.l.b16 %v4786
        %v4803 = vunpack.c.l.b16 %v4787
        %v4804 = vunpack.c.l.b16 %v4788
        %v4805 = vunpack.c.l.b16 %v4789
        %v4806 = vpack.c.b16 %v4803, %v4802
        %v4807 = vpack.c.b16 %v4805, %v4804
        %4808 = vrot.lane.b32.xlu0 %v4806, 72
        %v4809 = vpop.permute.xlu0 %4808
        %4810 = vrot.lane.b32.xlu0 %v4807, 72
        %v4811 = vpop.permute.xlu0 %4810
        %4812 = vrot.lane.b32.xlu0 %v4806, 8
        %v4813 = vpop.permute.xlu0 %4812
        %4814 = vrot.lane.b32.xlu0 %v4807, 8
        %v4815 = vpop.permute.xlu0 %4814
        %v4818 = vsel %vm707, %v4809, %v4813
        %v4821 = vsel %vm707, %v4811, %v4815
        %v4824 = vunpack.c.l.b16 %v4818
        %v4825 = vunpack.c.h.b16 %v4818
        %v4826 = vunpack.c.l.b16 %v4821
        %v4827 = vunpack.c.h.b16 %v4821
        %v4828 = vpack.c.b16 %v4824, %v4824
        %v4829 = vpack.c.b16 %v4825, %v4825
        %v4830 = vpack.c.b16 %v4826, %v4826
        %v4831 = vpack.c.b16 %v4827, %v4827
        %v4836 = vsel %vm4794, %v4828, %v4786
        %v4837 = vsel %vm4795, %v4829, %v4787
        %v4838 = vsel %vm4796, %v4830, %v4788
        %v4839 = vsel %vm4797, %v4831, %v4789
        %v4840 = vld [vmem:[%s1089] sm:$0xf]
        %v4841 = vld [vmem:[%s1089 + $0x4] sm:$0xf]
        %v4842 = vld [vmem:[%s1089 + $0x8] sm:$0xf]
        %v4843 = vld [vmem:[%s1089 + $0xc] sm:$0xf]
        %vm4844 = vcmp.gt.bf16.partialorder %v4840, 1056980736
        %vm4845 = vcmp.gt.bf16.partialorder %v4841, 1056980736
        %vm4846 = vcmp.gt.bf16.partialorder %v4842, 1056980736
        %vm4847 = vcmp.gt.bf16.partialorder %v4843, 1056980736
        %v4852 = vunpack.c.l.b16 %v4836
        %v4853 = vunpack.c.l.b16 %v4837
        %v4854 = vunpack.c.l.b16 %v4838
        %v4855 = vunpack.c.l.b16 %v4839
        %v4856 = vpack.c.b16 %v4853, %v4852
        %v4857 = vpack.c.b16 %v4855, %v4854
        %4858 = vrot.lane.b32.xlu0 %v4856, 80
        %v4859 = vpop.permute.xlu0 %4858
        %4860 = vrot.lane.b32.xlu0 %v4857, 80
        %v4861 = vpop.permute.xlu0 %4860
        %4862 = vrot.lane.b32.xlu0 %v4856, 16
        %v4863 = vpop.permute.xlu0 %4862
        %4864 = vrot.lane.b32.xlu0 %v4857, 16
        %v4865 = vpop.permute.xlu0 %4864
        %v4868 = vsel %vm1116, %v4859, %v4863
        %v4871 = vsel %vm1116, %v4861, %v4865
        %v4874 = vunpack.c.l.b16 %v4868
        %v4875 = vunpack.c.h.b16 %v4868
        %v4876 = vunpack.c.l.b16 %v4871
        %v4877 = vunpack.c.h.b16 %v4871
        %v4878 = vpack.c.b16 %v4874, %v4874
        %v4879 = vpack.c.b16 %v4875, %v4875
        %v4880 = vpack.c.b16 %v4876, %v4876
        %v4881 = vpack.c.b16 %v4877, %v4877
        %v4886 = vsel %vm4844, %v4878, %v4836
        %v4887 = vsel %vm4845, %v4879, %v4837
        %v4888 = vsel %vm4846, %v4880, %v4838
        %v4889 = vsel %vm4847, %v4881, %v4839
        %v4890 = vld [vmem:[%s1141] sm:$0xf]
        %v4891 = vld [vmem:[%s1141 + $0x4] sm:$0xf]
        %v4892 = vld [vmem:[%s1141 + $0x8] sm:$0xf]
        %v4893 = vld [vmem:[%s1141 + $0xc] sm:$0xf]
        %vm4894 = vcmp.gt.bf16.partialorder %v4890, 1056980736
        %vm4895 = vcmp.gt.bf16.partialorder %v4891, 1056980736
        %vm4896 = vcmp.gt.bf16.partialorder %v4892, 1056980736
        %vm4897 = vcmp.gt.bf16.partialorder %v4893, 1056980736
        %v4902 = vunpack.c.l.b16 %v4886
        %v4903 = vunpack.c.l.b16 %v4887
        %v4904 = vunpack.c.l.b16 %v4888
        %v4905 = vunpack.c.l.b16 %v4889
        %v4906 = vpack.c.b16 %v4903, %v4902
        %v4907 = vpack.c.b16 %v4905, %v4904
        %4908 = vrot.lane.b32.xlu0 %v4906, 96
        %v4909 = vpop.permute.xlu0 %4908
        %4910 = vrot.lane.b32.xlu0 %v4907, 96
        %v4911 = vpop.permute.xlu0 %4910
        %4912 = vrot.lane.b32.xlu0 %v4906, 32
        %v4913 = vpop.permute.xlu0 %4912
        %4914 = vrot.lane.b32.xlu0 %v4907, 32
        %v4915 = vpop.permute.xlu0 %4914
        %v4918 = vsel %vm558, %v4909, %v4913
        %v4921 = vsel %vm558, %v4911, %v4915
        %v4924 = vunpack.c.l.b16 %v4918
        %v4925 = vunpack.c.h.b16 %v4918
        %v4926 = vunpack.c.l.b16 %v4921
        %v4927 = vunpack.c.h.b16 %v4921
        %v4928 = vpack.c.b16 %v4924, %v4924
        %v4929 = vpack.c.b16 %v4925, %v4925
        %v4930 = vpack.c.b16 %v4926, %v4926
        %v4931 = vpack.c.b16 %v4927, %v4927
        %v4936 = vsel %vm4894, %v4928, %v4886
        %v4937 = vsel %vm4895, %v4929, %v4887
        %v4938 = vsel %vm4896, %v4930, %v4888
        %v4939 = vsel %vm4897, %v4931, %v4889
        %v4940 = vld [vmem:[%s10] sm:$0xf]
        %v4941 = vld [vmem:[%s10 + $0x4] sm:$0xf]
        %v4942 = vld [vmem:[%s10 + $0x8] sm:$0xf]
        %v4943 = vld [vmem:[%s10 + $0xc] sm:$0xf]
        %vm4944 = vcmp.gt.bf16.partialorder %v4940, 1056980736
        %vm4945 = vcmp.gt.bf16.partialorder %v4941, 1056980736
        %vm4946 = vcmp.gt.bf16.partialorder %v4942, 1056980736
        %vm4947 = vcmp.gt.bf16.partialorder %v4943, 1056980736
        %4950 = vrot.lane.b32.xlu0 %v4578, 113
        %v4951 = vpop.permute.xlu0 %4950
        %4952 = vrot.lane.b32.xlu0 %v4579, 113
        %v4953 = vpop.permute.xlu0 %4952
        %4954 = vrot.lane.b32.xlu0 %v4578, 1
        %v4955 = vpop.permute.xlu0 %4954
        %4956 = vrot.lane.b32.xlu0 %v4579, 1
        %v4957 = vpop.permute.xlu0 %4956
        %v4960 = vsel %vm897, %v4951, %v4955
        %v4963 = vsel %vm897, %v4953, %v4957
        %v4966 = vunpack.c.l.b16 %v4960
        %v4967 = vunpack.c.h.b16 %v4960
        %v4968 = vunpack.c.l.b16 %v4963
        %v4969 = vunpack.c.h.b16 %v4963
        %v4970 = vpack.c.b16 %v4966, %v4966
        %v4971 = vpack.c.b16 %v4967, %v4967
        %v4972 = vpack.c.b16 %v4968, %v4968
        %v4973 = vpack.c.b16 %v4969, %v4969
        %v4978 = vunpack.c.l.b16 %v4578
        %v4979 = vunpack.c.h.b16 %v4578
        %v4980 = vunpack.c.l.b16 %v4579
        %v4981 = vunpack.c.h.b16 %v4579
        %v4982 = vpack.c.b16 %v4978, %v4978
        %v4983 = vpack.c.b16 %v4979, %v4979
        %v4984 = vpack.c.b16 %v4980, %v4980
        %v4985 = vpack.c.b16 %v4981, %v4981
        %v4990 = vsel %vm4944, %v4970, %v4982
        %v4991 = vsel %vm4945, %v4971, %v4983
        %v4992 = vsel %vm4946, %v4972, %v4984
        %v4993 = vsel %vm4947, %v4973, %v4985
        %v4994 = vld [vmem:[%s1246] sm:$0xf]
        %v4995 = vld [vmem:[%s1246 + $0x4] sm:$0xf]
        %v4996 = vld [vmem:[%s1246 + $0x8] sm:$0xf]
        %v4997 = vld [vmem:[%s1246 + $0xc] sm:$0xf]
        %vm4998 = vcmp.gt.bf16.partialorder %v4994, 1056980736
        %vm4999 = vcmp.gt.bf16.partialorder %v4995, 1056980736
        %vm5000 = vcmp.gt.bf16.partialorder %v4996, 1056980736
        %vm5001 = vcmp.gt.bf16.partialorder %v4997, 1056980736
        %v5006 = vunpack.c.l.b16 %v4990
        %v5007 = vunpack.c.l.b16 %v4991
        %v5008 = vunpack.c.l.b16 %v4992
        %v5009 = vunpack.c.l.b16 %v4993
        %v5010 = vpack.c.b16 %v5007, %v5006
        %v5011 = vpack.c.b16 %v5009, %v5008
        %5012 = vrot.lane.b32.xlu0 %v5010, 114
        %v5013 = vpop.permute.xlu0 %5012
        %5014 = vrot.lane.b32.xlu0 %v5011, 114
        %v5015 = vpop.permute.xlu0 %5014
        %5016 = vrot.lane.b32.xlu0 %v5010, 2
        %v5017 = vpop.permute.xlu0 %5016
        %5018 = vrot.lane.b32.xlu0 %v5011, 2
        %v5019 = vpop.permute.xlu0 %5018
        %v5022 = vsel %vm961, %v5013, %v5017
        %v5025 = vsel %vm961, %v5015, %v5019
        %v5028 = vunpack.c.l.b16 %v5022
        %v5029 = vunpack.c.h.b16 %v5022
        %v5030 = vunpack.c.l.b16 %v5025
        %v5031 = vunpack.c.h.b16 %v5025
        %v5032 = vpack.c.b16 %v5028, %v5028
        %v5033 = vpack.c.b16 %v5029, %v5029
        %v5034 = vpack.c.b16 %v5030, %v5030
        %v5035 = vpack.c.b16 %v5031, %v5031
        %v5040 = vsel %vm4998, %v5032, %v4990
        %v5041 = vsel %vm4999, %v5033, %v4991
        %v5042 = vsel %vm5000, %v5034, %v4992
        %v5043 = vsel %vm5001, %v5035, %v4993
        %v5044 = vld [vmem:[%s1297] sm:$0xf]
        %v5045 = vld [vmem:[%s1297 + $0x4] sm:$0xf]
        %v5046 = vld [vmem:[%s1297 + $0x8] sm:$0xf]
        %v5047 = vld [vmem:[%s1297 + $0xc] sm:$0xf]
        %vm5048 = vcmp.gt.bf16.partialorder %v5044, 1056980736
        %vm5049 = vcmp.gt.bf16.partialorder %v5045, 1056980736
        %vm5050 = vcmp.gt.bf16.partialorder %v5046, 1056980736
        %vm5051 = vcmp.gt.bf16.partialorder %v5047, 1056980736
        %v5056 = vunpack.c.l.b16 %v5040
        %v5057 = vunpack.c.l.b16 %v5041
        %v5058 = vunpack.c.l.b16 %v5042
        %v5059 = vunpack.c.l.b16 %v5043
        %v5060 = vpack.c.b16 %v5057, %v5056
        %v5061 = vpack.c.b16 %v5059, %v5058
        %5062 = vrot.lane.b32.xlu0 %v5060, 116
        %v5063 = vpop.permute.xlu0 %5062
        %5064 = vrot.lane.b32.xlu0 %v5061, 116
        %v5065 = vpop.permute.xlu0 %5064
        %5066 = vrot.lane.b32.xlu0 %v5060, 4
        %v5067 = vpop.permute.xlu0 %5066
        %5068 = vrot.lane.b32.xlu0 %v5061, 4
        %v5069 = vpop.permute.xlu0 %5068
        %v5072 = vsel %vm1013, %v5063, %v5067
        %v5075 = vsel %vm1013, %v5065, %v5069
        %v5078 = vunpack.c.l.b16 %v5072
        %v5079 = vunpack.c.h.b16 %v5072
        %v5080 = vunpack.c.l.b16 %v5075
        %v5081 = vunpack.c.h.b16 %v5075
        %v5082 = vpack.c.b16 %v5078, %v5078
        %v5083 = vpack.c.b16 %v5079, %v5079
        %v5084 = vpack.c.b16 %v5080, %v5080
        %v5085 = vpack.c.b16 %v5081, %v5081
        %v5090 = vsel %vm5048, %v5082, %v5040
        %v5091 = vsel %vm5049, %v5083, %v5041
        %v5092 = vsel %vm5050, %v5084, %v5042
        %v5093 = vsel %vm5051, %v5085, %v5043
        %v5094 = vld [vmem:[%s1348] sm:$0xf]
        %v5095 = vld [vmem:[%s1348 + $0x4] sm:$0xf]
        %v5096 = vld [vmem:[%s1348 + $0x8] sm:$0xf]
        %v5097 = vld [vmem:[%s1348 + $0xc] sm:$0xf]
        %vm5098 = vcmp.gt.bf16.partialorder %v5094, 1056980736
        %vm5099 = vcmp.gt.bf16.partialorder %v5095, 1056980736
        %vm5100 = vcmp.gt.bf16.partialorder %v5096, 1056980736
        %vm5101 = vcmp.gt.bf16.partialorder %v5097, 1056980736
        %v5106 = vunpack.c.l.b16 %v5090
        %v5107 = vunpack.c.l.b16 %v5091
        %v5108 = vunpack.c.l.b16 %v5092
        %v5109 = vunpack.c.l.b16 %v5093
        %v5110 = vpack.c.b16 %v5107, %v5106
        %v5111 = vpack.c.b16 %v5109, %v5108
        %5112 = vrot.lane.b32.xlu0 %v5110, 120
        %v5113 = vpop.permute.xlu0 %5112
        %5114 = vrot.lane.b32.xlu0 %v5111, 120
        %v5115 = vpop.permute.xlu0 %5114
        %5116 = vrot.lane.b32.xlu0 %v5110, 8
        %v5117 = vpop.permute.xlu0 %5116
        %5118 = vrot.lane.b32.xlu0 %v5111, 8
        %v5119 = vpop.permute.xlu0 %5118
        %v5122 = vsel %vm707, %v5113, %v5117
        %v5125 = vsel %vm707, %v5115, %v5119
        %v5128 = vunpack.c.l.b16 %v5122
        %v5129 = vunpack.c.h.b16 %v5122
        %v5130 = vunpack.c.l.b16 %v5125
        %v5131 = vunpack.c.h.b16 %v5125
        %v5132 = vpack.c.b16 %v5128, %v5128
        %v5133 = vpack.c.b16 %v5129, %v5129
        %v5134 = vpack.c.b16 %v5130, %v5130
        %v5135 = vpack.c.b16 %v5131, %v5131
        %v5140 = vsel %vm5098, %v5132, %v5090
        %v5141 = vsel %vm5099, %v5133, %v5091
        %v5142 = vsel %vm5100, %v5134, %v5092
        %v5143 = vsel %vm5101, %v5135, %v5093
        %v5144 = vld [vmem:[%s11] sm:$0xf]
        %v5145 = vld [vmem:[%s11 + $0x4] sm:$0xf]
        %v5146 = vld [vmem:[%s11 + $0x8] sm:$0xf]
        %v5147 = vld [vmem:[%s11 + $0xc] sm:$0xf]
        %vm5148 = vcmp.gt.bf16.partialorder %v5144, 1056980736
        %vm5149 = vcmp.gt.bf16.partialorder %v5145, 1056980736
        %vm5150 = vcmp.gt.bf16.partialorder %v5146, 1056980736
        %vm5151 = vcmp.gt.bf16.partialorder %v5147, 1056980736
        %5154 = vrot.lane.b32.xlu0 %v4634, 125
        %v5155 = vpop.permute.xlu0 %5154
        %5156 = vrot.lane.b32.xlu0 %v4635, 125
        %v5157 = vpop.permute.xlu0 %5156
        %5158 = vrot.lane.b32.xlu0 %v4634, 1
        %v5159 = vpop.permute.xlu0 %5158
        %5160 = vrot.lane.b32.xlu0 %v4635, 1
        %v5161 = vpop.permute.xlu0 %5160
        %v5164 = vsel %vm897, %v5155, %v5159
        %v5167 = vsel %vm897, %v5157, %v5161
        %v5170 = vunpack.c.l.b16 %v5164
        %v5171 = vunpack.c.h.b16 %v5164
        %v5172 = vunpack.c.l.b16 %v5167
        %v5173 = vunpack.c.h.b16 %v5167
        %v5174 = vpack.c.b16 %v5170, %v5170
        %v5175 = vpack.c.b16 %v5171, %v5171
        %v5176 = vpack.c.b16 %v5172, %v5172
        %v5177 = vpack.c.b16 %v5173, %v5173
        %v5182 = vunpack.c.l.b16 %v4634
        %v5183 = vunpack.c.h.b16 %v4634
        %v5184 = vunpack.c.l.b16 %v4635
        %v5185 = vunpack.c.h.b16 %v4635
        %v5186 = vpack.c.b16 %v5182, %v5182
        %v5187 = vpack.c.b16 %v5183, %v5183
        %v5188 = vpack.c.b16 %v5184, %v5184
        %v5189 = vpack.c.b16 %v5185, %v5185
        %v5194 = vsel %vm5148, %v5174, %v5186
        %v5195 = vsel %vm5149, %v5175, %v5187
        %v5196 = vsel %vm5150, %v5176, %v5188
        %v5197 = vsel %vm5151, %v5177, %v5189
        %v5198 = vld [vmem:[%s1453] sm:$0xf]
        %v5199 = vld [vmem:[%s1453 + $0x4] sm:$0xf]
        %v5200 = vld [vmem:[%s1453 + $0x8] sm:$0xf]
        %v5201 = vld [vmem:[%s1453 + $0xc] sm:$0xf]
        %vm5202 = vcmp.gt.bf16.partialorder %v5198, 1056980736
        %vm5203 = vcmp.gt.bf16.partialorder %v5199, 1056980736
        %vm5204 = vcmp.gt.bf16.partialorder %v5200, 1056980736
        %vm5205 = vcmp.gt.bf16.partialorder %v5201, 1056980736
        %v5210 = vunpack.c.l.b16 %v5194
        %v5211 = vunpack.c.l.b16 %v5195
        %v5212 = vunpack.c.l.b16 %v5196
        %v5213 = vunpack.c.l.b16 %v5197
        %v5214 = vpack.c.b16 %v5211, %v5210
        %v5215 = vpack.c.b16 %v5213, %v5212
        %5216 = vrot.lane.b32.xlu0 %v5214, 126
        %v5217 = vpop.permute.xlu0 %5216
        %5218 = vrot.lane.b32.xlu0 %v5215, 126
        %v5219 = vpop.permute.xlu0 %5218
        %5220 = vrot.lane.b32.xlu0 %v5214, 2
        %v5221 = vpop.permute.xlu0 %5220
        %5222 = vrot.lane.b32.xlu0 %v5215, 2
        %v5223 = vpop.permute.xlu0 %5222
        %v5226 = vsel %vm961, %v5217, %v5221
        %v5229 = vsel %vm961, %v5219, %v5223
        %v5232 = vunpack.c.l.b16 %v5226
        %v5233 = vunpack.c.h.b16 %v5226
        %v5234 = vunpack.c.l.b16 %v5229
        %v5235 = vunpack.c.h.b16 %v5229
        %v5236 = vpack.c.b16 %v5232, %v5232
        %v5237 = vpack.c.b16 %v5233, %v5233
        %v5238 = vpack.c.b16 %v5234, %v5234
        %v5239 = vpack.c.b16 %v5235, %v5235
        %v5244 = vsel %vm5202, %v5236, %v5194
        %v5245 = vsel %vm5203, %v5237, %v5195
        %v5246 = vsel %vm5204, %v5238, %v5196
        %v5247 = vsel %vm5205, %v5239, %v5197
        %v5252 = vunpack.c.l.b16 %v4936
        %v5253 = vunpack.c.l.b16 %v4937
        %v5254 = vunpack.c.l.b16 %v4938
        %v5255 = vunpack.c.l.b16 %v4939
        %v5256 = vpack.c.b16 %v5253, %v5252
        %v5257 = vpack.c.b16 %v5255, %v5254
        %v5259 = vsel %vm1538, %v5256, 0
        %v5262 = vsel %vm1538, %v5257, 0
        %5264 = vmatprep.subr.bf16.mxu0 0
        %5265 = vmatpush1.bf16.msra.mxu0 %v1530
        %5266 = vmatprep.subr.bf16.mxu0 0
        %5267 = vmatpush1.bf16.msra.mxu0 %v1531
        %5268 = vmatprep.subr.bf16.mxu0 0
        %5269 = vmatpush1.bf16.msra.mxu0 %v1532
        %5270 = vmatprep.subr.bf16.mxu0 0
        %5271 = vmatpush1.bf16.msra.mxu0 %v1533
        %5272 = vmatprep.subr.bf16.mxu0 0
        %5273 = vmatpush1.bf16.msra.mxu0 0
        %5274 = vmatprep.subr.bf16.mxu0 0
        %5275 = vmatpush1.bf16.msra.mxu0 0
        %5276 = vmatprep.subr.bf16.mxu0 0
        %5277 = vmatpush1.bf16.msra.mxu0 0
        %5278 = vmatprep.subr.bf16.mxu0 0
        %5279 = vmatpush1.bf16.msra.mxu0 0
        %5280 = vmatprep.subr.bf16.mxu0 0
        %5281 = vmatpush1.bf16.msra.mxu0 0
        %5282 = vmatprep.subr.bf16.mxu0 0
        %5283 = vmatpush1.bf16.msra.mxu0 0
        %5284 = vmatprep.subr.bf16.mxu0 0
        %5285 = vmatpush1.bf16.msra.mxu0 0
        %5286 = vmatprep.subr.bf16.mxu0 0
        %5287 = vmatpush1.bf16.msra.mxu0 0
        %5288 = vmatprep.subr.bf16.mxu0 0
        %5289 = vmatpush1.bf16.msra.mxu0 0
        %5290 = vmatprep.subr.bf16.mxu0 0
        %5291 = vmatpush1.bf16.msra.mxu0 0
        %5292 = vmatprep.subr.bf16.mxu0 0
        %5293 = vmatpush1.bf16.msra.mxu0 0
        %5294 = vmatprep.subr.bf16.mxu0 0
        %5295 = vmatpush1.bf16.msra.mxu0 0
        %5296 = vmatprep.mubr.bf16.mxu0 0
        %5297 = vmatmul.mubr.bf16.gmra.mrb[0].mxu0 %v5259
        %v5298 = vpop.f32.mrb[0].mxu0
        %v5299 = vadd.f32 0.0, %v5298
        %v5300 = vpop.f32.mrb[0].mxu0
        %v5301 = vpop.f32.mrb[0].mxu0
        %v5302 = vadd.f32 0.0, %v5301
        %v5303 = vpop.f32.mrb[0].mxu0
        %5304 = vmatprep.mubr.bf16.mxu0 0
        %5305 = vmatmul.mubr.bf16.gmra.mrb[0].mxu0 %v5262
        %v5306 = vpop.f32.mrb[0].mxu0
        %v5307 = vadd.f32 0.0, %v5306
        %v5308 = vpop.f32.mrb[0].mxu0
        %v5309 = vpop.f32.mrb[0].mxu0
        %v5310 = vadd.f32 0.0, %v5309
        %v5311 = vpop.f32.mrb[0].mxu0
        %5312 = vdwg.mxu0
        %5313 = vrot.lane.b32.xlu0 %v698, 72
        %v5314 = vpop.permute.xlu0 %5313
        %5315 = vrot.lane.b32.xlu0 %v699, 72
        %v5316 = vpop.permute.xlu0 %5315
        %5317 = vrot.lane.b32.xlu0 %v700, 72
        %v5318 = vpop.permute.xlu0 %5317
        %5319 = vrot.lane.b32.xlu0 %v701, 72
        %v5320 = vpop.permute.xlu0 %5319
        %5321 = vrot.lane.b32.xlu0 %v702, 72
        %v5322 = vpop.permute.xlu0 %5321
        %5323 = vrot.lane.b32.xlu0 %v703, 72
        %v5324 = vpop.permute.xlu0 %5323
        %5325 = vrot.lane.b32.xlu0 %v704, 72
        %v5326 = vpop.permute.xlu0 %5325
        %5327 = vrot.lane.b32.xlu0 %v705, 72
        %v5328 = vpop.permute.xlu0 %5327
        %v5330 = vsel %vm707, %v5314, 0
        %v5333 = vsel %vm707, %v5316, 0
        %v5336 = vsel %vm707, %v5318, 0
        %v5339 = vsel %vm707, %v5320, 0
        %v5342 = vsel %vm707, %v5322, 0
        %v5345 = vsel %vm707, %v5324, 0
        %v5348 = vsel %vm707, %v5326, 0
        %v5351 = vsel %vm707, %v5328, 0
        %5353 = vmatprep.subr.bf16.mxu0 0
        %5354 = vmatpush1.bf16.xpose.msra.mxu0 %v5330
        %5355 = vmatprep.subr.bf16.mxu0 0
        %5356 = vmatpush1.bf16.xpose.msra.mxu0 %v5333
        %5357 = vmatprep.subr.bf16.mxu0 0
        %5358 = vmatpush1.bf16.xpose.msra.mxu0 %v5336
        %5359 = vmatprep.subr.bf16.mxu0 0
        %5360 = vmatpush1.bf16.xpose.msra.mxu0 %v5339
        %5361 = vmatprep.subr.bf16.mxu0 0
        %5362 = vmatpush1.bf16.xpose.msra.mxu0 %v5342
        %5363 = vmatprep.subr.bf16.mxu0 0
        %5364 = vmatpush1.bf16.xpose.msra.mxu0 %v5345
        %5365 = vmatprep.subr.bf16.mxu0 0
        %5366 = vmatpush1.bf16.xpose.msra.mxu0 %v5348
        %5367 = vmatprep.subr.bf16.mxu0 0
        %5368 = vmatpush1.bf16.xpose.msra.mxu0 %v5351
        %5369 = vmatprep.subr.bf16.mxu0 0
        %5370 = vmatpush1.bf16.xpose.msra.mxu0 0
        %5371 = vmatprep.subr.bf16.mxu0 0
        %5372 = vmatpush1.bf16.xpose.msra.mxu0 0
        %5373 = vmatprep.subr.bf16.mxu0 0
        %5374 = vmatpush1.bf16.xpose.msra.mxu0 0
        %5375 = vmatprep.subr.bf16.mxu0 0
        %5376 = vmatpush1.bf16.xpose.msra.mxu0 0
        %5377 = vmatprep.subr.bf16.mxu0 0
        %5378 = vmatpush1.bf16.xpose.msra.mxu0 0
        %5379 = vmatprep.subr.bf16.mxu0 0
        %5380 = vmatpush1.bf16.xpose.msra.mxu0 0
        %5381 = vmatprep.subr.bf16.mxu0 0
        %5382 = vmatpush1.bf16.xpose.msra.mxu0 0
        %5383 = vmatprep.subr.bf16.mxu0 0
        %5384 = vmatpush1.bf16.xpose.msra.mxu0 0
        %5385 = vmatprep.mubr.bf16.mxu0 0
        %5386 = vmatmul.mubr.bf16.gmra.mrb[0].mxu0 %v4465
        %v5387 = vpop.f32.mrb[0].mxu0
        %v5388 = vadd.f32 %v5299, %v5387
        %v5389 = vpop.f32.mrb[0].mxu0
        %v5390 = vpop.f32.mrb[0].mxu0
        %v5391 = vadd.f32 %v5302, %v5390
        %v5392 = vpop.f32.mrb[0].mxu0
        %5393 = vmatprep.mubr.bf16.mxu0 0
        %5394 = vmatmul.mubr.bf16.gmra.mrb[0].mxu0 %v4468
        %v5395 = vpop.f32.mrb[0].mxu0
        %v5396 = vadd.f32 %v5307, %v5395
        %v5397 = vpop.f32.mrb[0].mxu0
        %v5398 = vpop.f32.mrb[0].mxu0
        %v5399 = vadd.f32 %v5310, %v5398
        %v5400 = vpop.f32.mrb[0].mxu0
        %5401 = vdwg.mxu0
        %v5406 = vunpack.c.l.b16 %v5140
        %v5407 = vunpack.c.l.b16 %v5141
        %v5408 = vunpack.c.l.b16 %v5142
        %v5409 = vunpack.c.l.b16 %v5143
        %v5410 = vpack.c.b16 %v5407, %v5406
        %v5411 = vpack.c.b16 %v5409, %v5408
        %v5413 = vsel %vm1116, %v5410, 0
        %v5416 = vsel %vm1116, %v5411, 0
        %5418 = vmatprep.subr.bf16.mxu0 0
        %5419 = vmatpush1.bf16.msra.mxu0 %v1705
        %5420 = vmatprep.subr.bf16.mxu0 0
        %5421 = vmatpush1.bf16.msra.mxu0 0
        %5422 = vmatprep.subr.bf16.mxu0 0
        %5423 = vmatpush1.bf16.msra.mxu0 0
        %5424 = vmatprep.subr.bf16.mxu0 0
        %5425 = vmatpush1.bf16.msra.mxu0 0
        %5426 = vmatprep.subr.bf16.mxu0 0
        %5427 = vmatpush1.bf16.msra.mxu0 0
        %5428 = vmatprep.subr.bf16.mxu0 0
        %5429 = vmatpush1.bf16.msra.mxu0 0
        %5430 = vmatprep.subr.bf16.mxu0 0
        %5431 = vmatpush1.bf16.msra.mxu0 0
        %5432 = vmatprep.subr.bf16.mxu0 0
        %5433 = vmatpush1.bf16.msra.mxu0 0
        %5434 = vmatprep.subr.bf16.mxu0 0
        %5435 = vmatpush1.bf16.msra.mxu0 0
        %5436 = vmatprep.subr.bf16.mxu0 0
        %5437 = vmatpush1.bf16.msra.mxu0 0
        %5438 = vmatprep.subr.bf16.mxu0 0
        %5439 = vmatpush1.bf16.msra.mxu0 0
        %5440 = vmatprep.subr.bf16.mxu0 0
        %5441 = vmatpush1.bf16.msra.mxu0 0
        %5442 = vmatprep.subr.bf16.mxu0 0
        %5443 = vmatpush1.bf16.msra.mxu0 0
        %5444 = vmatprep.subr.bf16.mxu0 0
        %5445 = vmatpush1.bf16.msra.mxu0 0
        %5446 = vmatprep.subr.bf16.mxu0 0
        %5447 = vmatpush1.bf16.msra.mxu0 0
        %5448 = vmatprep.subr.bf16.mxu0 0
        %5449 = vmatpush1.bf16.msra.mxu0 0
        %5450 = vmatprep.mubr.bf16.mxu0 0
        %5451 = vmatmul.mubr.bf16.gmra.mrb[0].mxu0 %v5413
        %v5452 = vpop.f32.mrb[0].mxu0
        %v5453 = vadd.f32 0.0, %v5452
        %v5454 = vpop.f32.mrb[0].mxu0
        %v5455 = vpop.f32.mrb[0].mxu0
        %v5456 = vadd.f32 0.0, %v5455
        %v5457 = vpop.f32.mrb[0].mxu0
        %5458 = vmatprep.mubr.bf16.mxu0 0
        %5459 = vmatmul.mubr.bf16.gmra.mrb[0].mxu0 %v5416
        %v5460 = vpop.f32.mrb[0].mxu0
        %v5461 = vadd.f32 0.0, %v5460
        %v5462 = vpop.f32.mrb[0].mxu0
        %v5463 = vpop.f32.mrb[0].mxu0
        %v5464 = vadd.f32 0.0, %v5463
        %v5465 = vpop.f32.mrb[0].mxu0
        %5466 = vdwg.mxu0
        %v5467 = vadd.f32 %v5388, %v5453
        %v5468 = vadd.f32 %v5391, %v5456
        %v5469 = vadd.f32 %v5396, %v5461
        %v5470 = vadd.f32 %v5399, %v5464
        %v5475 = vunpack.c.l.b16 %v5244
        %v5476 = vunpack.c.l.b16 %v5245
        %v5477 = vunpack.c.l.b16 %v5246
        %v5478 = vunpack.c.l.b16 %v5247
        %v5479 = vpack.c.b16 %v5476, %v5475
        %v5480 = vpack.c.b16 %v5478, %v5477
        %v5482 = vsel %vm1013, %v5479, 0
        %v5485 = vsel %vm1013, %v5480, 0
        %5487 = vmatprep.subr.bf16.mxu0 0
        %5488 = vmatpush1.bf16.msra.mxu0 %v1784
        %5489 = vmatprep.subr.bf16.mxu0 0
        %5490 = vmatpush1.bf16.msra.mxu0 0
        %5491 = vmatprep.subr.bf16.mxu0 0
        %5492 = vmatpush1.bf16.msra.mxu0 0
        %5493 = vmatprep.subr.bf16.mxu0 0
        %5494 = vmatpush1.bf16.msra.mxu0 0
        %5495 = vmatprep.subr.bf16.mxu0 0
        %5496 = vmatpush1.bf16.msra.mxu0 0
        %5497 = vmatprep.subr.bf16.mxu0 0
        %5498 = vmatpush1.bf16.msra.mxu0 0
        %5499 = vmatprep.subr.bf16.mxu0 0
        %5500 = vmatpush1.bf16.msra.mxu0 0
        %5501 = vmatprep.subr.bf16.mxu0 0
        %5502 = vmatpush1.bf16.msra.mxu0 0
        %5503 = vmatprep.subr.bf16.mxu0 0
        %5504 = vmatpush1.bf16.msra.mxu0 0
        %5505 = vmatprep.subr.bf16.mxu0 0
        %5506 = vmatpush1.bf16.msra.mxu0 0
        %5507 = vmatprep.subr.bf16.mxu0 0
        %5508 = vmatpush1.bf16.msra.mxu0 0
        %5509 = vmatprep.subr.bf16.mxu0 0
        %5510 = vmatpush1.bf16.msra.mxu0 0
        %5511 = vmatprep.subr.bf16.mxu0 0
        %5512 = vmatpush1.bf16.msra.mxu0 0
        %5513 = vmatprep.subr.bf16.mxu0 0
        %5514 = vmatpush1.bf16.msra.mxu0 0
        %5515 = vmatprep.subr.bf16.mxu0 0
        %5516 = vmatpush1.bf16.msra.mxu0 0
        %5517 = vmatprep.subr.bf16.mxu0 0
        %5518 = vmatpush1.bf16.msra.mxu0 0
        %5519 = vmatprep.mubr.bf16.mxu0 0
        %5520 = vmatmul.mubr.bf16.gmra.mrb[0].mxu0 %v5482
        %v5521 = vpop.f32.mrb[0].mxu0
        %v5522 = vadd.f32 0.0, %v5521
        %v5523 = vpop.f32.mrb[0].mxu0
        %v5524 = vpop.f32.mrb[0].mxu0
        %v5525 = vadd.f32 0.0, %v5524
        %v5526 = vpop.f32.mrb[0].mxu0
        %5527 = vmatprep.mubr.bf16.mxu0 0
        %5528 = vmatmul.mubr.bf16.gmra.mrb[0].mxu0 %v5485
        %v5529 = vpop.f32.mrb[0].mxu0
        %v5530 = vadd.f32 0.0, %v5529
        %v5531 = vpop.f32.mrb[0].mxu0
        %v5532 = vpop.f32.mrb[0].mxu0
        %v5533 = vadd.f32 0.0, %v5532
        %v5534 = vpop.f32.mrb[0].mxu0
        %5535 = vdwg.mxu0
        %v5536 = vadd.f32 %v5467, %v5522
        %v5537 = vadd.f32 %v5468, %v5525
        %v5538 = vadd.f32 %v5469, %v5530
        %v5539 = vadd.f32 %v5470, %v5533
        %v5540 = vadd.f32 %v5536, %v1843
        %v5541 = vadd.f32 %v5537, %v1843
        %v5542 = vadd.f32 %v5538, %v1843
        %v5543 = vadd.f32 %v5539, %v1843
        %5544 = vmax.xlane.f32.xlu0 %v5540
        %v5545 = vpop.xlane.xlu0 %5544
        %5546 = vmax.xlane.f32.xlu0 %v5541
        %v5547 = vpop.xlane.xlu0 %5546
        %5548 = vmax.xlane.f32.xlu0 %v5542
        %v5549 = vpop.xlane.xlu0 %5548
        %5550 = vmax.xlane.f32.xlu0 %v5543
        %v5551 = vpop.xlane.xlu0 %5550
        %v5552 = vsub.f32 %v5540, %v5545
        %v5553 = vsub.f32 %v5541, %v5547
        %v5554 = vsub.f32 %v5542, %v5549
        %v5555 = vsub.f32 %v5543, %v5551
        %v5556 = vmul.f32 %v5552, 1.442695
        %v5557 = vpow.pop %v5556
        %v5558 = vmul.f32 %v5553, 1.442695
        %v5559 = vpow.pop %v5558
        %v5560 = vmul.f32 %v5554, 1.442695
        %v5561 = vpow.pop %v5560
        %v5562 = vmul.f32 %v5555, 1.442695
        %v5563 = vpow.pop %v5562
        %5564 = vadd.xlane.f32.xlu0 %v5557
        %v5565 = vpop.xlane.xlu0 %5564
        %5566 = vadd.xlane.f32.xlu0 %v5559
        %v5567 = vpop.xlane.xlu0 %5566
        %5568 = vadd.xlane.f32.xlu0 %v5561
        %v5569 = vpop.xlane.xlu0 %5568
        %5570 = vadd.xlane.f32.xlu0 %v5563
        %v5571 = vpop.xlane.xlu0 %5570
        %v5572 = vrcp.pop %v5565
        %v5573 = vrcp.pop %v5567
        %v5574 = vrcp.pop %v5569
        %v5575 = vrcp.pop %v5571
        %v5576 = vmul.f32 %v5557, %v5572
        %v5577 = vmul.f32 %v5559, %v5573
        %v5578 = vmul.f32 %v5561, %v5574
        %v5579 = vmul.f32 %v5563, %v5575
        %v5580 = vpack.c.bf16 %v5577, %v5576
        %v5581 = vpack.c.bf16 %v5579, %v5578
        %v5584 = vunpack.c.l.b16 %v5580
        %v5585 = vunpack.c.h.b16 %v5580
        %v5586 = vunpack.c.l.b16 %v5581
        %v5587 = vunpack.c.h.b16 %v5581
        %v5588 = vpack.c.b16 %v5584, %v5584
        %v5589 = vpack.c.b16 %v5585, %v5585
        %v5590 = vpack.c.b16 %v5586, %v5586
        %v5591 = vpack.c.b16 %v5587, %v5587
        %s5596 = scalar_lea.vmem %s471, 48 [#allocation4]
        %5597 = vst [vmem:[%s5596] sm:$0xf] %v5588
        %5598 = vst [vmem:[%s5596 + $0x4] sm:$0xf] %v5589
        %5599 = vst [vmem:[%s5596 + $0x8] sm:$0xf] %v5590
        %5600 = vst [vmem:[%s5596 + $0xc] sm:$0xf] %v5591
        %5601 = vrot.lane.b32.xlu0 %v698, 40
        %v5602 = vpop.permute.xlu0 %5601
        %5603 = vrot.lane.b32.xlu0 %v699, 40
        %v5604 = vpop.permute.xlu0 %5603
        %5605 = vrot.lane.b32.xlu0 %v700, 40
        %v5606 = vpop.permute.xlu0 %5605
        %5607 = vrot.lane.b32.xlu0 %v701, 40
        %v5608 = vpop.permute.xlu0 %5607
        %5609 = vrot.lane.b32.xlu0 %v702, 40
        %v5610 = vpop.permute.xlu0 %5609
        %5611 = vrot.lane.b32.xlu0 %v703, 40
        %v5612 = vpop.permute.xlu0 %5611
        %5613 = vrot.lane.b32.xlu0 %v704, 40
        %v5614 = vpop.permute.xlu0 %5613
        %5615 = vrot.lane.b32.xlu0 %v705, 40
        %v5616 = vpop.permute.xlu0 %5615
        %5625 = vmatprep.subr.bf16.mxu0 0
        %5626 = vmatpush1.bf16.msra.mxu0 %v5602
        %5627 = vmatprep.subr.bf16.mxu0 0
        %5628 = vmatpush1.bf16.msra.mxu0 %v5604
        %5629 = vmatprep.subr.bf16.mxu0 0
        %5630 = vmatpush1.bf16.msra.mxu0 %v5606
        %5631 = vmatprep.subr.bf16.mxu0 0
        %5632 = vmatpush1.bf16.msra.mxu0 %v5608
        %5633 = vmatprep.subr.bf16.mxu0 0
        %5634 = vmatpush1.bf16.msra.mxu0 %v5610
        %5635 = vmatprep.subr.bf16.mxu0 0
        %5636 = vmatpush1.bf16.msra.mxu0 %v5612
        %5637 = vmatprep.subr.bf16.mxu0 0
        %5638 = vmatpush1.bf16.msra.mxu0 %v5614
        %5639 = vmatprep.subr.bf16.mxu0 0
        %5640 = vmatpush1.bf16.msra.mxu0 %v5616
        %5641 = vmatprep.subr.bf16.mxu0 0
        %5642 = vmatpush1.bf16.msra.mxu0 0
        %5643 = vmatprep.subr.bf16.mxu0 0
        %5644 = vmatpush1.bf16.msra.mxu0 0
        %5645 = vmatprep.subr.bf16.mxu0 0
        %5646 = vmatpush1.bf16.msra.mxu0 0
        %5647 = vmatprep.subr.bf16.mxu0 0
        %5648 = vmatpush1.bf16.msra.mxu0 0
        %5649 = vmatprep.subr.bf16.mxu0 0
        %5650 = vmatpush1.bf16.msra.mxu0 0
        %5651 = vmatprep.subr.bf16.mxu0 0
        %5652 = vmatpush1.bf16.msra.mxu0 0
        %5653 = vmatprep.subr.bf16.mxu0 0
        %5654 = vmatpush1.bf16.msra.mxu0 0
        %5655 = vmatprep.subr.bf16.mxu0 0
        %5656 = vmatpush1.bf16.msra.mxu0 0
        %5657 = vmatprep.mubr.bf16.mxu0 0
        %5658 = vmatmul.mubr.bf16.gmra.mrb[0].mxu0 %v5580
        %v5659 = vpop.f32.mrb[0].mxu0
        %v5660 = vadd.f32 0.0, %v5659
        %v5661 = vpop.f32.mrb[0].mxu0
        %v5662 = vpop.f32.mrb[0].mxu0
        %v5663 = vadd.f32 0.0, %v5662
        %v5664 = vpop.f32.mrb[0].mxu0
        %5665 = vmatprep.mubr.bf16.mxu0 0
        %5666 = vmatmul.mubr.bf16.gmra.mrb[0].mxu0 %v5581
        %v5667 = vpop.f32.mrb[0].mxu0
        %v5668 = vadd.f32 0.0, %v5667
        %v5669 = vpop.f32.mrb[0].mxu0
        %v5670 = vpop.f32.mrb[0].mxu0
        %v5671 = vadd.f32 0.0, %v5670
        %v5672 = vpop.f32.mrb[0].mxu0
        %5673 = vdwg.mxu0
        %5678 = vrot.lane.b32.xlu0 %v5660, 24
        %v5679 = vpop.permute.xlu0 %5678
        %5680 = vrot.lane.b32.xlu0 %v5663, 24
        %v5681 = vpop.permute.xlu0 %5680
        %5682 = vrot.lane.b32.xlu0 %v5668, 24
        %v5683 = vpop.permute.xlu0 %5682
        %5684 = vrot.lane.b32.xlu0 %v5671, 24
        %v5685 = vpop.permute.xlu0 %5684
        %vm5690 = vcmask 261312
        %5691 = vst.msk [vmem:[%s464] sm:$0xff] %vm5690, %v5679
        %5692 = vst.msk [vmem:[%s464 + $0x8] sm:$0xff] %vm5690, %v5681
        %5693 = vst.msk [vmem:[%s464 + $0x10] sm:$0xff] %vm5690, %v5683
        %5694 = vst.msk [vmem:[%s464 + $0x18] sm:$0xff] %vm5690, %v5685
        %s5695 = sand.u32 %s318, 1
        %s5696 = scalar_lea.sflag [#allocation3], %s5695
        %s5697 = sand.u32 %s318, 1
        %s5698 = smul.addr %s5697, 32
        %s5699 = scalar_lea.vmem [#allocation2], %s5698
        %s5700 = sand.u32 %s344, 1
        %s5701 = scalar_lea.sflag [#allocation5], %s5700
        %s5702 = sand.u32 %s344, 1
        %s5703 = smul.addr %s5702, 64
        %s5704 = scalar_lea.vmem [#allocation4], %s5703
        // Predicated region
        $region73: #{tpu_custom_call.1} parent=71 // pred_check
          %p5705 = pneg %p328
        $region74: #{tpu_custom_call.1} parent=71 // pred_check_branch
          %5707 = sbr.rel (%p5705) target = $region76
        $region75: #{tpu_custom_call.1} parent=71 // pred_region
          %s5709 = ssub.s32 512, 512
          %5710 = vsyncadd %s5696, %s5709
          %s5711 = smul.addr %s32, 4
          %s5712 = smul.addr %s5711, 128
          %s5713 = scalar_lea.hbm %s13, %s5712
          %s5714 = sshll.u32 %s5699, 4
          %s5715 = int_to_ptr.vmem [resolvable:$true] %s5714
          %5720 = dma.vmem_to_hbm [thread:$0]  %s5715, 512, %s5713, %s5696, 128, 128, 8
        $region76: #{tpu_custom_call.1} parent=71 // pred_fallthru
          _
        // Predicated region
        $region77: #{tpu_custom_call.1} parent=71 // pred_check
          %p5721 = pneg %p354
        $region78: #{tpu_custom_call.1} parent=71 // pred_check_branch
          %5723 = sbr.rel (%p5721) target = $region80
        $region79: #{tpu_custom_call.1} parent=71 // pred_region
          %s5725 = ssub.s32 1024, 1024
          %5726 = vsyncadd %s5701, %s5725
          %s5727 = smul.addr %s32, 16
          %s5728 = smul.addr %s5727, 64
          %s5729 = scalar_lea.hbm %s14, %s5728
          %s5730 = sshll.u32 %s5704, 4
          %s5731 = int_to_ptr.vmem [resolvable:$true] %s5730
          %5736 = dma.vmem_to_hbm [thread:$0]  %s5731, 1024, %s5729, %s5701, 64, 64, 4
        $region80: #{tpu_custom_call.1} parent=71 // pred_fallthru
          _
      $region72: #{tpu_custom_call.1} parent=5 // pred_fallthru
        _
      %p5737 = scmp.le.s32.totalorder 2, %s27
      // Predicated region
      $region81: #{tpu_custom_call.1} parent=5 // pred_check
        %p5738 = pneg %p5737
      $region82: #{tpu_custom_call.1} parent=5 // pred_check_branch
        %5740 = sbr.rel (%p5738) target = $region84
      $region83: #{tpu_custom_call.1} parent=5 // pred_region
        %s5741 = ssub.s32 %s27, 2
        // Predicated region
        $region85: #{tpu_custom_call.1} parent=83 // pred_check
          %p5742 = pneg %p334
        $region86: #{tpu_custom_call.1} parent=83 // pred_check_branch
          %5744 = sbr.rel (%p5742) target = $region88
        $region87: #{tpu_custom_call.1} parent=83 // pred_region
          %s5745 = sand.u32 %s319, 1
          %s5746 = scalar_lea.sflag [#allocation3], %s5745
          %s5747 = sand.u32 %s319, 1
          %s5748 = smul.addr %s5747, 32
          %s5749 = scalar_lea.vmem [#allocation2], %s5748
          %5750 = dma.done %s5746, 512
        $region88: #{tpu_custom_call.1} parent=83 // pred_fallthru
          _
        // Predicated region
        $region89: #{tpu_custom_call.1} parent=83 // pred_check
          %p5751 = pneg %p360
        $region90: #{tpu_custom_call.1} parent=83 // pred_check_branch
          %5753 = sbr.rel (%p5751) target = $region92
        $region91: #{tpu_custom_call.1} parent=83 // pred_region
          %s5754 = sand.u32 %s345, 1
          %s5755 = scalar_lea.sflag [#allocation5], %s5754
          %s5756 = sand.u32 %s345, 1
          %s5757 = smul.addr %s5756, 64
          %s5758 = scalar_lea.vmem [#allocation4], %s5757
          %5759 = dma.done %s5755, 1024
        $region92: #{tpu_custom_call.1} parent=83 // pred_fallthru
          _
      $region84: #{tpu_custom_call.1} parent=5 // pred_fallthru
        _
    $region6: #{tpu_custom_call.1} parent=1 // loop_footer
      %s31 = sadd.s32 1, %s27
    $region7: #{tpu_custom_call.1} parent=1 // loop_footer_branch
      %26 = sbr.rel target = $region3
    $region8: #{tpu_custom_call.1} parent=1 // loop_exit
      _
    %5760 = vsyncpa [#allocation3], 1
    %s5761 = scalar_lea.sflag [#allocation3], 1
    %5762 = vsyncpa %s5761, 1
    %5763 = vsyncpa [#allocation5], 1
    %s5764 = scalar_lea.sflag [#allocation5], 1
    %5765 = vsyncpa %s5764, 1

</llo_original>
